<compile_context>
chip_gen: v7x
topology: tpu7x:2x2x1
jax: 0.10.0
libtpu: 0.0.40
codegen_flags: <defaults>
</compile_context>

<pallas_src>
import numpy as np
import jax
import jax.numpy as jnp
from jax.experimental import pallas as pl
from jax.experimental.pallas import tpu as pltpu

BETA = 0.75
KSIZE = 11
PAD = (KSIZE - 1) // 2
SIGMA = 1.5
DATA_RANGE = 1.0
C1 = (0.01 * DATA_RANGE) ** 2
C2 = (0.03 * DATA_RANGE) ** 2
_OUT_LANES = 128  # lane-dense packed partial-sum row


def _gaussian_1d():
    # Deterministic "parameter" of the SSIM metric (ignite's gaussian window).
    half = (KSIZE - 1) * 0.5
    coords = np.linspace(-half, half, KSIZE)
    g = np.exp(-0.5 * (coords / SIGMA) ** 2)
    return (g / g.sum()).astype(np.float32)


_G1D = _gaussian_1d()  # (11,) -- 2D window = outer(g, g)


def _reflect_conv_matrix(n):
    """Banded (n, n) matrix M with  M @ x  ==  'valid' 1-D gaussian conv of the
    reflect-padded (pad=5, no edge repeat — torch/ignite convention) signal x."""
    m = np.zeros((n, n), np.float64)
    for o in range(n):
        for k in range(KSIZE):
            i = o - PAD + k
            if i < 0:
                i = -i
            elif i >= n:
                i = 2 * (n - 1) - i
            m[o, i] += float(_G1D[k])
    return m.astype(np.float32)


def _mse_ssim_kernel(mh_ref, mwt_ref, c_ref, co_ref, s_ref, so_ref, out_ref):
    i = pl.program_id(1)  # inner reduction step over the B*C slices of this core

    mh = mh_ref[...]    # (H, H)  left-multiply banded gaussian (rows / H axis)
    mwt = mwt_ref[...]  # (W, W)  right-multiply banded gaussian (cols / W axis)

    def gconv(m):
        # reflect-pad + separable 11x11 gaussian conv == M_H @ m @ M_W^T  (MXU)
        r = jnp.dot(mh, m, precision=jax.lax.Precision.HIGHEST,
                    preferred_element_type=jnp.float32)
        return jnp.dot(r, mwt, precision=jax.lax.Precision.HIGHEST,
                       preferred_element_type=jnp.float32)

    def pair_stats(x, y):
        # x, y: (H, W) unpadded slices.  Returns (sum of squared error,
        # sum of per-pixel SSIM index) over this slice.
        d = x - y
        mse_sum = jnp.sum(d * d)

        mu_x = gconv(x)
        mu_y = gconv(y)
        e_xx = gconv(x * x)
        e_yy = gconv(y * y)
        e_xy = gconv(x * y)

        mu_x2 = mu_x * mu_x
        mu_y2 = mu_y * mu_y
        mu_xy = mu_x * mu_y
        a1 = 2.0 * mu_xy + C1
        a2 = 2.0 * (e_xy - mu_xy) + C2
        b1 = mu_x2 + mu_y2 + C1
        b2 = (e_xx - mu_x2) + (e_yy - mu_y2) + C2
        ssim_idx = (a1 * a2) * pl.reciprocal(b1 * b2, approx=False)
        return mse_sum, jnp.sum(ssim_idx)

    cmse, cssim = pair_stats(c_ref[0], co_ref[0])
    smse, sssim = pair_stats(s_ref[0], so_ref[0])

    # Pack the four partial sums into one lane-dense row.
    lane = jax.lax.broadcasted_iota(jnp.int32, (1, 1, _OUT_LANES), 2)
    vec = (cmse * (lane == 0).astype(jnp.float32)
           + cssim * (lane == 1).astype(jnp.float32)
           + smse * (lane == 2).astype(jnp.float32)
           + sssim * (lane == 3).astype(jnp.float32))

    @pl.when(i == 0)
    def _():
        out_ref[...] = jnp.zeros_like(out_ref)

    out_ref[...] += vec


def mse_and_ssim_loss(cover, secret, cover_original, secret_original):
    """Returns (combined, cover_loss, secret_loss, cover_mse, secret_mse,
    cover_ssim, secret_ssim).  SSIM values are returned as scalars (the
    PyTorch module returns ignite Engine state objects holding them)."""
    f32 = jnp.float32
    B, C, H, W = cover.shape
    BC = B * C

    # Split the B*C axis two ways so v7x's 2 TensorCores each take half
    # (pure sequential loop on 1-TC v5e/v6e; wrapper sums the partials).
    P = 2 if (BC % 2 == 0 and BC >= 2) else 1
    inner = BC // P

    def flat(x):
        return x.astype(f32).reshape(BC, H, W)

    c, co = flat(cover), flat(cover_original)
    s, so = flat(secret), flat(secret_original)

    mh = jnp.asarray(_reflect_conv_matrix(H))       # (H, H)
    mwt = jnp.asarray(_reflect_conv_matrix(W).T)    # (W, W)

    img_spec = pl.BlockSpec((1, H, W), lambda p, i: (p * inner + i, 0, 0))

    out = pl.pallas_call(
        _mse_ssim_kernel,
        out_shape=jax.ShapeDtypeStruct((P, 1, _OUT_LANES), f32),
        grid_spec=pltpu.PrefetchScalarGridSpec(
            num_scalar_prefetch=0,
            grid=(P, inner),
            in_specs=[
                pl.BlockSpec((H, H), lambda p, i: (0, 0)),   # M_H (stays resident)
                pl.BlockSpec((W, W), lambda p, i: (0, 0)),   # M_W^T
                img_spec, img_spec, img_spec, img_spec,
            ],
            out_specs=pl.BlockSpec((1, 1, _OUT_LANES), lambda p, i: (p, 0, 0)),
        ),
        compiler_params=pltpu.CompilerParams(
            dimension_semantics=("parallel", "arbitrary"),
            vmem_limit_bytes=48 * 1024 * 1024,   # headroom on v7x's 64 MiB VMEM
        ),
    )(mh, mwt, c, co, s, so)

    sums = jnp.sum(out, axis=(0, 1))                 # (128,) per-core partials added
    inv_n = 1.0 / float(BC * H * W)
    cmse = sums[0] * inv_n
    cssim = sums[1] * inv_n
    smse = sums[2] * inv_n
    sssim = sums[3] * inv_n

    closs = cmse + (1.0 - cssim)
    sloss = smse + (1.0 - sssim)
    comb = closs + BETA * sloss
    return comb, closs, sloss, cmse, smse, cssim, sssim


def _reference(cover, secret, cover_o, secret_o):
    """Pure-JAX reference (depthwise conv via lax.conv_general_dilated)."""
    g2 = jnp.asarray(np.outer(_G1D, _G1D).astype(np.float32))

    def ssim(x, y):
        B, C, H, W = x.shape
        xp = jnp.pad(x, ((0, 0), (0, 0), (PAD, PAD), (PAD, PAD)), mode="reflect")
        yp = jnp.pad(y, ((0, 0), (0, 0), (PAD, PAD), (PAD, PAD)), mode="reflect")
        kern = jnp.broadcast_to(g2[None, None], (C, 1, KSIZE, KSIZE))

        def conv(z):
            return jax.lax.conv_general_dilated(
                z, kern, (1, 1), "VALID", feature_group_count=C,
                dimension_numbers=("NCHW", "OIHW", "NCHW"))

        mu_x, mu_y = conv(xp), conv(yp)
        e_xx, e_yy, e_xy = conv(xp * xp), conv(yp * yp), conv(xp * yp)
        mu_x2, mu_y2, mu_xy = mu_x * mu_x, mu_y * mu_y, mu_x * mu_y
        a1 = 2 * mu_xy + C1
        a2 = 2 * (e_xy - mu_xy) + C2
        b1 = mu_x2 + mu_y2 + C1
        b2 = (e_xx - mu_x2) + (e_yy - mu_y2) + C2
        return jnp.mean((a1 * a2) / (b1 * b2))

    cmse = jnp.mean((cover - cover_o) ** 2)
    smse = jnp.mean((secret - secret_o) ** 2)
    cssim = ssim(cover, cover_o)
    sssim = ssim(secret, secret_o)
    closs = cmse + (1 - cssim)
    sloss = smse + (1 - sssim)
    return closs + BETA * sloss, closs, sloss, cmse, smse, cssim, sssim


if __name__ == "__main__":
    key = jax.random.PRNGKey(0)
    k1, k2, k3, k4 = jax.random.split(key, 4)
    B, C, H, W = 2, 3, 16, 16                       # images in [0, 1]
    cover = jax.random.uniform(k1, (B, C, H, W), jnp.float32)
    secret = jax.random.uniform(k2, (B, C, H, W), jnp.float32)
    cover_original = jax.random.uniform(k3, (B, C, H, W), jnp.float32)
    secret_original = jax.random.uniform(k4, (B, C, H, W), jnp.float32)

    out = mse_and_ssim_loss(cover, secret, cover_original, secret_original)
    out = jax.block_until_ready(out)

    ref = _reference(cover, secret, cover_original, secret_original)
    for got, want in zip(out, ref):
        np.testing.assert_allclose(np.asarray(got), np.asarray(want),
                                   rtol=1e-3, atol=1e-4)

    print("KERNEL_OK")
</pallas_src>

<mosaic_0001>
module attributes {stable_mosaic.version = 11 : i64} {
  func.func @_mse_ssim_kernel(%arg0: i32, %arg1: i32, %arg2: memref<16x16xf32, #tpu.memory_space<vmem>>, %arg3: memref<16x16xf32, #tpu.memory_space<vmem>>, %arg4: memref<1x16x16xf32, #tpu.memory_space<vmem>>, %arg5: memref<1x16x16xf32, #tpu.memory_space<vmem>>, %arg6: memref<1x16x16xf32, #tpu.memory_space<vmem>>, %arg7: memref<1x16x16xf32, #tpu.memory_space<vmem>>, %arg8: memref<1x1x128xf32, #tpu.memory_space<vmem>>) attributes {dimension_semantics = [#tpu.dimension_semantics<parallel>, #tpu.dimension_semantics<arbitrary>], iteration_bounds = array<i64: 2, 3>, scalar_prefetch = 0 : i64, scratch_operands = 0 : i64, tpu.core_type = #tpu.core_type<tc>, window_params = [{pipeline_mode = #tpu.pipeline_mode<synchronous>, transform_indices = @transform_0, window_bounds = array<i64: 16, 16>}, {pipeline_mode = #tpu.pipeline_mode<synchronous>, transform_indices = @transform_1, window_bounds = array<i64: 16, 16>}, {transform_indices = @transform_2, window_bounds = array<i64: 1, 16, 16>}, {transform_indices = @transform_3, window_bounds = array<i64: 1, 16, 16>}, {transform_indices = @transform_4, window_bounds = array<i64: 1, 16, 16>}, {transform_indices = @transform_5, window_bounds = array<i64: 1, 16, 16>}, {transform_indices = @transform_6, window_bounds = array<i64: 1, 1, 128>}]} {
    %c0 = arith.constant 0 : index
    %c0_0 = arith.constant 0 : index
    %0 = vector.load %arg2[%c0, %c0_0] : memref<16x16xf32, #tpu.memory_space<vmem>>, vector<16x16xf32>
    %c0_1 = arith.constant 0 : index
    %c0_2 = arith.constant 0 : index
    %1 = vector.load %arg3[%c0_1, %c0_2] : memref<16x16xf32, #tpu.memory_space<vmem>>, vector<16x16xf32>
    %c0_3 = arith.constant 0 : index
    %c0_4 = arith.constant 0 : index
    %c0_5 = arith.constant 0 : index
    %2 = vector.load %arg4[%c0_3, %c0_4, %c0_5] : memref<1x16x16xf32, #tpu.memory_space<vmem>>, vector<1x16x16xf32>
    %3 = vector.shape_cast %2 : vector<1x16x16xf32> to vector<16x16xf32>
    %c0_6 = arith.constant 0 : index
    %c0_7 = arith.constant 0 : index
    %c0_8 = arith.constant 0 : index
    %4 = vector.load %arg5[%c0_6, %c0_7, %c0_8] : memref<1x16x16xf32, #tpu.memory_space<vmem>>, vector<1x16x16xf32>
    %5 = vector.shape_cast %4 : vector<1x16x16xf32> to vector<16x16xf32>
    %6 = arith.subf %3, %5 : vector<16x16xf32>
    %7 = arith.mulf %6, %6 : vector<16x16xf32>
    %8 = vector.shape_cast %7 : vector<16x16xf32> to vector<1x16x16xf32>
    %cst = arith.constant dense<0.000000e+00> : vector<1xf32>
    %9 = vector.multi_reduction <add>, %8, %cst [1, 2] : vector<1x16x16xf32> to vector<1xf32>
    %10 = vector.shape_cast %9 : vector<1xf32> to vector<1x1x1xf32>
    %11 = vector.extract %10[0, 0, 0] : f32 from vector<1x1x1xf32>
    %cst_9 = arith.constant dense<0.000000e+00> : vector<16x16xf32>
    %12 = tpu.matmul %0, %3, %cst_9 {dimension_numbers = #tpu.dot_dimension_numbers<[1], [0], [0], [1], [0, 0, 1, 1], [], []>, precision = #tpu.contract_precision<fp32>} : vector<16x16xf32>, vector<16x16xf32>, vector<16x16xf32> -> vector<16x16xf32>
    %cst_10 = arith.constant dense<0.000000e+00> : vector<16x16xf32>
    %13 = tpu.matmul %12, %1, %cst_10 {dimension_numbers = #tpu.dot_dimension_numbers<[1], [0], [0], [1], [0, 0, 1, 1], [], []>, precision = #tpu.contract_precision<fp32>} : vector<16x16xf32>, vector<16x16xf32>, vector<16x16xf32> -> vector<16x16xf32>
    %cst_11 = arith.constant dense<0.000000e+00> : vector<16x16xf32>
    %14 = tpu.matmul %0, %5, %cst_11 {dimension_numbers = #tpu.dot_dimension_numbers<[1], [0], [0], [1], [0, 0, 1, 1], [], []>, precision = #tpu.contract_precision<fp32>} : vector<16x16xf32>, vector<16x16xf32>, vector<16x16xf32> -> vector<16x16xf32>
    %cst_12 = arith.constant dense<0.000000e+00> : vector<16x16xf32>
    %15 = tpu.matmul %14, %1, %cst_12 {dimension_numbers = #tpu.dot_dimension_numbers<[1], [0], [0], [1], [0, 0, 1, 1], [], []>, precision = #tpu.contract_precision<fp32>} : vector<16x16xf32>, vector<16x16xf32>, vector<16x16xf32> -> vector<16x16xf32>
    %16 = arith.mulf %3, %3 : vector<16x16xf32>
    %cst_13 = arith.constant dense<0.000000e+00> : vector<16x16xf32>
    %17 = tpu.matmul %0, %16, %cst_13 {dimension_numbers = #tpu.dot_dimension_numbers<[1], [0], [0], [1], [0, 0, 1, 1], [], []>, precision = #tpu.contract_precision<fp32>} : vector<16x16xf32>, vector<16x16xf32>, vector<16x16xf32> -> vector<16x16xf32>
    %cst_14 = arith.constant dense<0.000000e+00> : vector<16x16xf32>
    %18 = tpu.matmul %17, %1, %cst_14 {dimension_numbers = #tpu.dot_dimension_numbers<[1], [0], [0], [1], [0, 0, 1, 1], [], []>, precision = #tpu.contract_precision<fp32>} : vector<16x16xf32>, vector<16x16xf32>, vector<16x16xf32> -> vector<16x16xf32>
    %19 = arith.mulf %5, %5 : vector<16x16xf32>
    %cst_15 = arith.constant dense<0.000000e+00> : vector<16x16xf32>
    %20 = tpu.matmul %0, %19, %cst_15 {dimension_numbers = #tpu.dot_dimension_numbers<[1], [0], [0], [1], [0, 0, 1, 1], [], []>, precision = #tpu.contract_precision<fp32>} : vector<16x16xf32>, vector<16x16xf32>, vector<16x16xf32> -> vector<16x16xf32>
    %cst_16 = arith.constant dense<0.000000e+00> : vector<16x16xf32>
    %21 = tpu.matmul %20, %1, %cst_16 {dimension_numbers = #tpu.dot_dimension_numbers<[1], [0], [0], [1], [0, 0, 1, 1], [], []>, precision = #tpu.contract_precision<fp32>} : vector<16x16xf32>, vector<16x16xf32>, vector<16x16xf32> -> vector<16x16xf32>
    %22 = arith.mulf %3, %5 : vector<16x16xf32>
    %cst_17 = arith.constant dense<0.000000e+00> : vector<16x16xf32>
    %23 = tpu.matmul %0, %22, %cst_17 {dimension_numbers = #tpu.dot_dimension_numbers<[1], [0], [0], [1], [0, 0, 1, 1], [], []>, precision = #tpu.contract_precision<fp32>} : vector<16x16xf32>, vector<16x16xf32>, vector<16x16xf32> -> vector<16x16xf32>
    %cst_18 = arith.constant dense<0.000000e+00> : vector<16x16xf32>
    %24 = tpu.matmul %23, %1, %cst_18 {dimension_numbers = #tpu.dot_dimension_numbers<[1], [0], [0], [1], [0, 0, 1, 1], [], []>, precision = #tpu.contract_precision<fp32>} : vector<16x16xf32>, vector<16x16xf32>, vector<16x16xf32> -> vector<16x16xf32>
    %25 = arith.mulf %13, %13 : vector<16x16xf32>
    %26 = arith.mulf %15, %15 : vector<16x16xf32>
    %27 = arith.mulf %13, %15 : vector<16x16xf32>
    %cst_19 = arith.constant 2.000000e+00 : f32
    %28 = vector.broadcast %cst_19 : f32 to vector<16x16xf32>
    %29 = arith.mulf %28, %27 : vector<16x16xf32>
    %cst_20 = arith.constant 9.99999974E-5 : f32
    %30 = vector.broadcast %cst_20 : f32 to vector<16x16xf32>
    %31 = arith.addf %29, %30 : vector<16x16xf32>
    %32 = arith.subf %24, %27 : vector<16x16xf32>
    %cst_21 = arith.constant 2.000000e+00 : f32
    %33 = vector.broadcast %cst_21 : f32 to vector<16x16xf32>
    %34 = arith.mulf %33, %32 : vector<16x16xf32>
    %cst_22 = arith.constant 8.99999984E-4 : f32
    %35 = vector.broadcast %cst_22 : f32 to vector<16x16xf32>
    %36 = arith.addf %34, %35 : vector<16x16xf32>
    %37 = arith.addf %25, %26 : vector<16x16xf32>
    %cst_23 = arith.constant 9.99999974E-5 : f32
    %38 = vector.broadcast %cst_23 : f32 to vector<16x16xf32>
    %39 = arith.addf %37, %38 : vector<16x16xf32>
    %40 = arith.subf %18, %25 : vector<16x16xf32>
    %41 = arith.subf %21, %26 : vector<16x16xf32>
    %42 = arith.addf %40, %41 : vector<16x16xf32>
    %cst_24 = arith.constant 8.99999984E-4 : f32
    %43 = vector.broadcast %cst_24 : f32 to vector<16x16xf32>
    %44 = arith.addf %42, %43 : vector<16x16xf32>
    %45 = arith.mulf %31, %36 : vector<16x16xf32>
    %46 = arith.mulf %39, %44 : vector<16x16xf32>
    %47 = tpu.reciprocal %46 : vector<16x16xf32> -> vector<16x16xf32>
    %48 = arith.mulf %45, %47 : vector<16x16xf32>
    %49 = vector.shape_cast %48 : vector<16x16xf32> to vector<1x16x16xf32>
    %cst_25 = arith.constant dense<0.000000e+00> : vector<1xf32>
    %50 = vector.multi_reduction <add>, %49, %cst_25 [1, 2] : vector<1x16x16xf32> to vector<1xf32>
    %51 = vector.shape_cast %50 : vector<1xf32> to vector<1x1x1xf32>
    %52 = vector.extract %51[0, 0, 0] : f32 from vector<1x1x1xf32>
    %c0_26 = arith.constant 0 : index
    %c0_27 = arith.constant 0 : index
    %c0_28 = arith.constant 0 : index
    %53 = vector.load %arg6[%c0_26, %c0_27, %c0_28] : memref<1x16x16xf32, #tpu.memory_space<vmem>>, vector<1x16x16xf32>
    %54 = vector.shape_cast %53 : vector<1x16x16xf32> to vector<16x16xf32>
    %c0_29 = arith.constant 0 : index
    %c0_30 = arith.constant 0 : index
    %c0_31 = arith.constant 0 : index
    %55 = vector.load %arg7[%c0_29, %c0_30, %c0_31] : memref<1x16x16xf32, #tpu.memory_space<vmem>>, vector<1x16x16xf32>
    %56 = vector.shape_cast %55 : vector<1x16x16xf32> to vector<16x16xf32>
    %57 = arith.subf %54, %56 : vector<16x16xf32>
    %58 = arith.mulf %57, %57 : vector<16x16xf32>
    %59 = vector.shape_cast %58 : vector<16x16xf32> to vector<1x16x16xf32>
    %cst_32 = arith.constant dense<0.000000e+00> : vector<1xf32>
    %60 = vector.multi_reduction <add>, %59, %cst_32 [1, 2] : vector<1x16x16xf32> to vector<1xf32>
    %61 = vector.shape_cast %60 : vector<1xf32> to vector<1x1x1xf32>
    %62 = vector.extract %61[0, 0, 0] : f32 from vector<1x1x1xf32>
    %cst_33 = arith.constant dense<0.000000e+00> : vector<16x16xf32>
    %63 = tpu.matmul %0, %54, %cst_33 {dimension_numbers = #tpu.dot_dimension_numbers<[1], [0], [0], [1], [0, 0, 1, 1], [], []>, precision = #tpu.contract_precision<fp32>} : vector<16x16xf32>, vector<16x16xf32>, vector<16x16xf32> -> vector<16x16xf32>
    %cst_34 = arith.constant dense<0.000000e+00> : vector<16x16xf32>
    %64 = tpu.matmul %63, %1, %cst_34 {dimension_numbers = #tpu.dot_dimension_numbers<[1], [0], [0], [1], [0, 0, 1, 1], [], []>, precision = #tpu.contract_precision<fp32>} : vector<16x16xf32>, vector<16x16xf32>, vector<16x16xf32> -> vector<16x16xf32>
    %cst_35 = arith.constant dense<0.000000e+00> : vector<16x16xf32>
    %65 = tpu.matmul %0, %56, %cst_35 {dimension_numbers = #tpu.dot_dimension_numbers<[1], [0], [0], [1], [0, 0, 1, 1], [], []>, precision = #tpu.contract_precision<fp32>} : vector<16x16xf32>, vector<16x16xf32>, vector<16x16xf32> -> vector<16x16xf32>
    %cst_36 = arith.constant dense<0.000000e+00> : vector<16x16xf32>
    %66 = tpu.matmul %65, %1, %cst_36 {dimension_numbers = #tpu.dot_dimension_numbers<[1], [0], [0], [1], [0, 0, 1, 1], [], []>, precision = #tpu.contract_precision<fp32>} : vector<16x16xf32>, vector<16x16xf32>, vector<16x16xf32> -> vector<16x16xf32>
    %67 = arith.mulf %54, %54 : vector<16x16xf32>
    %cst_37 = arith.constant dense<0.000000e+00> : vector<16x16xf32>
    %68 = tpu.matmul %0, %67, %cst_37 {dimension_numbers = #tpu.dot_dimension_numbers<[1], [0], [0], [1], [0, 0, 1, 1], [], []>, precision = #tpu.contract_precision<fp32>} : vector<16x16xf32>, vector<16x16xf32>, vector<16x16xf32> -> vector<16x16xf32>
    %cst_38 = arith.constant dense<0.000000e+00> : vector<16x16xf32>
    %69 = tpu.matmul %68, %1, %cst_38 {dimension_numbers = #tpu.dot_dimension_numbers<[1], [0], [0], [1], [0, 0, 1, 1], [], []>, precision = #tpu.contract_precision<fp32>} : vector<16x16xf32>, vector<16x16xf32>, vector<16x16xf32> -> vector<16x16xf32>
    %70 = arith.mulf %56, %56 : vector<16x16xf32>
    %cst_39 = arith.constant dense<0.000000e+00> : vector<16x16xf32>
    %71 = tpu.matmul %0, %70, %cst_39 {dimension_numbers = #tpu.dot_dimension_numbers<[1], [0], [0], [1], [0, 0, 1, 1], [], []>, precision = #tpu.contract_precision<fp32>} : vector<16x16xf32>, vector<16x16xf32>, vector<16x16xf32> -> vector<16x16xf32>
    %cst_40 = arith.constant dense<0.000000e+00> : vector<16x16xf32>
    %72 = tpu.matmul %71, %1, %cst_40 {dimension_numbers = #tpu.dot_dimension_numbers<[1], [0], [0], [1], [0, 0, 1, 1], [], []>, precision = #tpu.contract_precision<fp32>} : vector<16x16xf32>, vector<16x16xf32>, vector<16x16xf32> -> vector<16x16xf32>
    %73 = arith.mulf %54, %56 : vector<16x16xf32>
    %cst_41 = arith.constant dense<0.000000e+00> : vector<16x16xf32>
    %74 = tpu.matmul %0, %73, %cst_41 {dimension_numbers = #tpu.dot_dimension_numbers<[1], [0], [0], [1], [0, 0, 1, 1], [], []>, precision = #tpu.contract_precision<fp32>} : vector<16x16xf32>, vector<16x16xf32>, vector<16x16xf32> -> vector<16x16xf32>
    %cst_42 = arith.constant dense<0.000000e+00> : vector<16x16xf32>
    %75 = tpu.matmul %74, %1, %cst_42 {dimension_numbers = #tpu.dot_dimension_numbers<[1], [0], [0], [1], [0, 0, 1, 1], [], []>, precision = #tpu.contract_precision<fp32>} : vector<16x16xf32>, vector<16x16xf32>, vector<16x16xf32> -> vector<16x16xf32>
    %76 = arith.mulf %64, %64 : vector<16x16xf32>
    %77 = arith.mulf %66, %66 : vector<16x16xf32>
    %78 = arith.mulf %64, %66 : vector<16x16xf32>
    %cst_43 = arith.constant 2.000000e+00 : f32
    %79 = vector.broadcast %cst_43 : f32 to vector<16x16xf32>
    %80 = arith.mulf %79, %78 : vector<16x16xf32>
    %cst_44 = arith.constant 9.99999974E-5 : f32
    %81 = vector.broadcast %cst_44 : f32 to vector<16x16xf32>
    %82 = arith.addf %80, %81 : vector<16x16xf32>
    %83 = arith.subf %75, %78 : vector<16x16xf32>
    %cst_45 = arith.constant 2.000000e+00 : f32
    %84 = vector.broadcast %cst_45 : f32 to vector<16x16xf32>
    %85 = arith.mulf %84, %83 : vector<16x16xf32>
    %cst_46 = arith.constant 8.99999984E-4 : f32
    %86 = vector.broadcast %cst_46 : f32 to vector<16x16xf32>
    %87 = arith.addf %85, %86 : vector<16x16xf32>
    %88 = arith.addf %76, %77 : vector<16x16xf32>
    %cst_47 = arith.constant 9.99999974E-5 : f32
    %89 = vector.broadcast %cst_47 : f32 to vector<16x16xf32>
    %90 = arith.addf %88, %89 : vector<16x16xf32>
    %91 = arith.subf %69, %76 : vector<16x16xf32>
    %92 = arith.subf %72, %77 : vector<16x16xf32>
    %93 = arith.addf %91, %92 : vector<16x16xf32>
    %cst_48 = arith.constant 8.99999984E-4 : f32
    %94 = vector.broadcast %cst_48 : f32 to vector<16x16xf32>
    %95 = arith.addf %93, %94 : vector<16x16xf32>
    %96 = arith.mulf %82, %87 : vector<16x16xf32>
    %97 = arith.mulf %90, %95 : vector<16x16xf32>
    %98 = tpu.reciprocal %97 : vector<16x16xf32> -> vector<16x16xf32>
    %99 = arith.mulf %96, %98 : vector<16x16xf32>
    %100 = vector.shape_cast %99 : vector<16x16xf32> to vector<1x16x16xf32>
    %cst_49 = arith.constant dense<0.000000e+00> : vector<1xf32>
    %101 = vector.multi_reduction <add>, %100, %cst_49 [1, 2] : vector<1x16x16xf32> to vector<1xf32>
    %102 = vector.shape_cast %101 : vector<1xf32> to vector<1x1x1xf32>
    %103 = vector.extract %102[0, 0, 0] : f32 from vector<1x1x1xf32>
    %104 = tpu.iota {dimensions = array<i32: 2>} : vector<1x1x128xi32>
    %c0_i32 = arith.constant 0 : i32
    %105 = vector.broadcast %c0_i32 : i32 to vector<1x1x128xi32>
    %106 = arith.cmpi eq, %104, %105 : vector<1x1x128xi32>
    %107 = arith.extui %106 : vector<1x1x128xi1> to vector<1x1x128xi32>
    %108 = arith.sitofp %107 : vector<1x1x128xi32> to vector<1x1x128xf32>
    %109 = vector.broadcast %11 : f32 to vector<1x1x128xf32>
    %110 = arith.mulf %109, %108 : vector<1x1x128xf32>
    %c1_i32 = arith.constant 1 : i32
    %111 = vector.broadcast %c1_i32 : i32 to vector<1x1x128xi32>
    %112 = arith.cmpi eq, %104, %111 : vector<1x1x128xi32>
    %113 = arith.extui %112 : vector<1x1x128xi1> to vector<1x1x128xi32>
    %114 = arith.sitofp %113 : vector<1x1x128xi32> to vector<1x1x128xf32>
    %115 = vector.broadcast %52 : f32 to vector<1x1x128xf32>
    %116 = arith.mulf %115, %114 : vector<1x1x128xf32>
    %117 = arith.addf %110, %116 : vector<1x1x128xf32>
    %c2_i32 = arith.constant 2 : i32
    %118 = vector.broadcast %c2_i32 : i32 to vector<1x1x128xi32>
    %119 = arith.cmpi eq, %104, %118 : vector<1x1x128xi32>
    %120 = arith.extui %119 : vector<1x1x128xi1> to vector<1x1x128xi32>
    %121 = arith.sitofp %120 : vector<1x1x128xi32> to vector<1x1x128xf32>
    %122 = vector.broadcast %62 : f32 to vector<1x1x128xf32>
    %123 = arith.mulf %122, %121 : vector<1x1x128xf32>
    %124 = arith.addf %117, %123 : vector<1x1x128xf32>
    %c3_i32 = arith.constant 3 : i32
    %125 = vector.broadcast %c3_i32 : i32 to vector<1x1x128xi32>
    %126 = arith.cmpi eq, %104, %125 : vector<1x1x128xi32>
    %127 = arith.extui %126 : vector<1x1x128xi1> to vector<1x1x128xi32>
    %128 = arith.sitofp %127 : vector<1x1x128xi32> to vector<1x1x128xf32>
    %129 = vector.broadcast %103 : f32 to vector<1x1x128xf32>
    %130 = arith.mulf %129, %128 : vector<1x1x128xf32>
    %131 = arith.addf %124, %130 : vector<1x1x128xf32>
    %c0_i32_50 = arith.constant 0 : i32
    %132 = arith.cmpi eq, %arg1, %c0_i32_50 : i32
    %133 = arith.extui %132 : i1 to i32
    %c0_i32_51 = arith.constant 0 : i32
    %134 = arith.cmpi ne, %133, %c0_i32_51 : i32
    scf.if %134 {
      %cst_58 = arith.constant 0.000000e+00 : f32
      %138 = vector.broadcast %cst_58 : f32 to vector<1x1x128xf32>
      %c0_59 = arith.constant 0 : index
      %c0_60 = arith.constant 0 : index
      %c0_61 = arith.constant 0 : index
      %139 = vector.load %arg8[%c0_59, %c0_60, %c0_61] : memref<1x1x128xf32, #tpu.memory_space<vmem>>, vector<1x1x128xf32>
      tpu.vector_store %arg8[%c0_59, %c0_60, %c0_61], %138 {strides = array<i32>} : memref<1x1x128xf32, #tpu.memory_space<vmem>>, vector<1x1x128xf32>,
    } else {
    }
    %c0_52 = arith.constant 0 : index
    %c0_53 = arith.constant 0 : index
    %c0_54 = arith.constant 0 : index
    %135 = vector.load %arg8[%c0_52, %c0_53, %c0_54] : memref<1x1x128xf32, #tpu.memory_space<vmem>>, vector<1x1x128xf32>
    %136 = arith.addf %135, %131 : vector<1x1x128xf32>
    %c0_55 = arith.constant 0 : index
    %c0_56 = arith.constant 0 : index
    %c0_57 = arith.constant 0 : index
    %137 = vector.load %arg8[%c0_55, %c0_56, %c0_57] : memref<1x1x128xf32, #tpu.memory_space<vmem>>, vector<1x1x128xf32>
    tpu.vector_store %arg8[%c0_55, %c0_56, %c0_57], %136 {strides = array<i32>} : memref<1x1x128xf32, #tpu.memory_space<vmem>>, vector<1x1x128xf32>,
    return
  }
  func.func @transform_0(%arg0: i32, %arg1: i32) -> (i32, i32) {
    %c0_i32 = arith.constant 0 : i32
    %c0_i32_0 = arith.constant 0 : i32
    %c0_i32_1 = arith.constant 0 : i32
    return %c0_i32, %c0_i32_0 : i32, i32
  }
  func.func @transform_1(%arg0: i32, %arg1: i32) -> (i32, i32) {
    %c0_i32 = arith.constant 0 : i32
    %c0_i32_0 = arith.constant 0 : i32
    %c0_i32_1 = arith.constant 0 : i32
    return %c0_i32, %c0_i32_0 : i32, i32
  }
  func.func @transform_2(%arg0: i32, %arg1: i32) -> (i32, i32, i32) {
    %c3_i32 = arith.constant 3 : i32
    %0 = arith.muli %arg0, %c3_i32 : i32
    %1 = arith.addi %0, %arg1 : i32
    %c0_i32 = arith.constant 0 : i32
    %c0_i32_0 = arith.constant 0 : i32
    %c0_i32_1 = arith.constant 0 : i32
    return %1, %c0_i32, %c0_i32_0 : i32, i32, i32
  }
  func.func @transform_3(%arg0: i32, %arg1: i32) -> (i32, i32, i32) {
    %c3_i32 = arith.constant 3 : i32
    %0 = arith.muli %arg0, %c3_i32 : i32
    %1 = arith.addi %0, %arg1 : i32
    %c0_i32 = arith.constant 0 : i32
    %c0_i32_0 = arith.constant 0 : i32
    %c0_i32_1 = arith.constant 0 : i32
    return %1, %c0_i32, %c0_i32_0 : i32, i32, i32
  }
  func.func @transform_4(%arg0: i32, %arg1: i32) -> (i32, i32, i32) {
    %c3_i32 = arith.constant 3 : i32
    %0 = arith.muli %arg0, %c3_i32 : i32
    %1 = arith.addi %0, %arg1 : i32
    %c0_i32 = arith.constant 0 : i32
    %c0_i32_0 = arith.constant 0 : i32
    %c0_i32_1 = arith.constant 0 : i32
    return %1, %c0_i32, %c0_i32_0 : i32, i32, i32
  }
  func.func @transform_5(%arg0: i32, %arg1: i32) -> (i32, i32, i32) {
    %c3_i32 = arith.constant 3 : i32
    %0 = arith.muli %arg0, %c3_i32 : i32
    %1 = arith.addi %0, %arg1 : i32
    %c0_i32 = arith.constant 0 : i32
    %c0_i32_0 = arith.constant 0 : i32
    %c0_i32_1 = arith.constant 0 : i32
    return %1, %c0_i32, %c0_i32_0 : i32, i32, i32
  }
  func.func @transform_6(%arg0: i32, %arg1: i32) -> (i32, i32, i32) {
    %c0_i32 = arith.constant 0 : i32
    %c0_i32_0 = arith.constant 0 : i32
    %c0_i32_1 = arith.constant 0 : i32
    return %arg0, %c0_i32, %c0_i32_0 : i32, i32, i32
  }
}

</mosaic_0001>

<llo_original>
// kernel: tpu_custom_call.1
$region0: #{tpu_custom_call.1}
  #allocation0 [shape = 'u32[]', space=smem, size = 0x4, offset = 0x4, fixed_abs, tag = 'smem constant byte address 0x4 - core index']
  #allocation1 [shape = 'u32[144,128]{1,0:T(1,128)}', space=vmem, size = 0x12000, scoped, tag = 'internal scratch']
  %s0 = inlined_call_operand.hbm [shape: f32[16,16], index: 0, kind: input, shape index: {}]
  %s1 = inlined_call_operand.hbm [shape: f32[16,16], index: 1, kind: input, shape index: {}]
  %s2 = inlined_call_operand.hbm [shape: f32[6,16,16], index: 2, kind: input, shape index: {}]
  %s3 = inlined_call_operand.hbm [shape: f32[6,16,16], index: 3, kind: input, shape index: {}]
  %s4 = inlined_call_operand.hbm [shape: f32[6,16,16], index: 4, kind: input, shape index: {}]
  %s5 = inlined_call_operand.hbm [shape: f32[6,16,16], index: 5, kind: input, shape index: {}]
  %s6 = inlined_call_operand.hbm [shape: f32[2,1,128], index: 6, kind: output, shape index: {}]
  %s7 = sld [smem:[#allocation0]]
  $region85: #{tpu_custom_call.1} parent=0
    _
  %s9 = ssub.s32 1, %s7
  %s10 = scalar_select 0, %s9, %s7
  $region1: #{tpu_custom_call.1} parent=0
    #allocation2 [shape = 'u8[8192]{0}', space=vmem, size = 0x2000, scoped, tag = 'input window, operand 0, single buffered']
    #allocation3 [shape = 's32[2]{0}', space=sflag, size = 0x8, scoped, tag = 'scoped memory for tpu_custom_call.1']
    #allocation4 [shape = 's32[2]{0}', space=sflag, size = 0x8, scoped, tag = 'scoped memory for tpu_custom_call.1']
    #allocation5 [shape = 'u8[8192]{0}', space=vmem, size = 0x2000, scoped, tag = 'input window, operand 1, single buffered']
    #allocation6 [shape = 's32[1]{0}', space=sflag, size = 0x4, scoped, tag = 'scoped memory for tpu_custom_call.1']
    #allocation7 [shape = 'u8[16384]{0}', space=vmem, size = 0x4000, scoped, tag = 'input window, operand 2']
    #allocation8 [shape = 'u8[16384]{0}', space=vmem, size = 0x4000, scoped, tag = 'input window, operand 3']
    #allocation9 [shape = 'u8[16384]{0}', space=vmem, size = 0x4000, scoped, tag = 'input window, operand 4']
    #allocation10 [shape = 'u8[16384]{0}', space=vmem, size = 0x4000, scoped, tag = 'input window, operand 5']
    #allocation11 [shape = 'u8[1024]{0}', space=vmem, size = 0x400, scoped, tag = 'output window, operand 0']
    %11 = vsyncpa [#allocation3], 0
    %12 = vsyncpa [#allocation6], 0
    %13 = vsyncpa [#allocation4], 0
    %s14 = scalar_lea.sflag [#allocation4], 1
    %15 = vsyncpa %s14, 0
    loop: start=0, step=1, limit=8
    $region2: #{tpu_custom_call.1} parent=1 // loop_pre_header
      _
    $region3: #{tpu_custom_call.1} parent=1 // loop_header
      %s17 = sphi 0, %s21
      %p18 = scmp.ge.s32.totalorder %s17, 8
      %s24 = sphi 0, %s36
      %s25 = sphi 0, %s32
      %s26 = sphi 0, %s24
      %s27 = sphi 0, %s25
      %s28 = sphi 0, %s26
      %s29 = sphi 0, %s27
      %s37 = sphi 0, %s37
      %s39 = sphi 0, %s37
      %s40 = sphi 0, %s39
      %s54 = sphi 0, %s40
      %s58 = sphi 0, %s58
      %s60 = sphi 0, %s58
      %s61 = sphi 0, %s60
      %s75 = sphi 0, %s61
      %s85 = sphi 0, %s87
      %s88 = sphi 0, %s85
      %s89 = sphi 0, %s88
      %s105 = sphi 0, %s89
      %s115 = sphi 0, %s117
      %s118 = sphi 0, %s115
      %s119 = sphi 0, %s118
      %s135 = sphi 0, %s119
      %s145 = sphi 0, %s147
      %s148 = sphi 0, %s145
      %s149 = sphi 0, %s148
      %s165 = sphi 0, %s149
      %s175 = sphi 0, %s177
      %s178 = sphi 0, %s175
      %s179 = sphi 0, %s178
      %s195 = sphi 0, %s179
      %s201 = sphi 0, %s203
      %s204 = sphi 0, %s201
      %s205 = sphi 0, %s204
      %s221 = sphi 0, %s205
    $region4: #{tpu_custom_call.1} parent=1 // loop_header_branch
      %20 = sbr.rel (%p18) target = $region8
    $region5: #{tpu_custom_call.1} parent=1 // loop_body
      %s22 = ssub.s32 %s17, 1
      %s23 = ssub.s32 %s17, 2
      %s30 = sadd.s32 1, %s25
      %p31 = scmp.ge.s32.totalorder %s30, 3
      %s32 = scalar_select %p31, 0, %s30
      %s33 = sadd.s32 1, %s24
      %s34 = scalar_select %p31, %s33, %s24
      %p35 = scmp.ge.s32.totalorder %s34, 2
      %s36 = scalar_select %p35, 0, %s34
      %s38 = sadd.s32 %s37, 1
      %p41 = scmp.eq.s32.totalorder %s17, 5
      %p42 = scmp.ne.s32.totalorder %s37, %s39
      %p43 = scmp.eq.s32.totalorder %s17, 0
      %p44 = por %p42, %p43
      %p45 = scmp.ne.s32.totalorder %s37, %s39
      %p46 = scmp.eq.s32.totalorder %s22, 5
      %p47 = por %p45, %p46
      %p48 = scmp.ne.s32.totalorder %s39, %s40
      %p49 = scmp.eq.s32.totalorder %s22, 0
      %p50 = por %p48, %p49
      %p51 = scmp.ne.s32.totalorder %s39, %s40
      %p52 = scmp.eq.s32.totalorder %s23, 5
      %p53 = por %p51, %p52
      %p55 = scmp.ne.s32.totalorder %s40, %s54
      %p56 = scmp.eq.s32.totalorder %s23, 0
      %p57 = por %p55, %p56
      %s59 = sadd.s32 %s58, 1
      %p62 = scmp.eq.s32.totalorder %s17, 5
      %p63 = scmp.ne.s32.totalorder %s58, %s60
      %p64 = scmp.eq.s32.totalorder %s17, 0
      %p65 = por %p63, %p64
      %p66 = scmp.ne.s32.totalorder %s58, %s60
      %p67 = scmp.eq.s32.totalorder %s22, 5
      %p68 = por %p66, %p67
      %p69 = scmp.ne.s32.totalorder %s60, %s61
      %p70 = scmp.eq.s32.totalorder %s22, 0
      %p71 = por %p69, %p70
      %p72 = scmp.ne.s32.totalorder %s60, %s61
      %p73 = scmp.eq.s32.totalorder %s23, 5
      %p74 = por %p72, %p73
      %p76 = scmp.ne.s32.totalorder %s61, %s75
      %p77 = scmp.eq.s32.totalorder %s23, 0
      %p78 = por %p76, %p77
      %s79 = smul.u32 %s24, 3
      %s80 = sadd.s32 %s79, %s25
      %s81 = smul.u32 %s36, 3
      %s82 = sadd.s32 %s81, %s32
      %s83 = ssub.s32 %s80, %s82
      %p84 = scmp.eq.s32.totalorder %s83, 0
      %s86 = sadd.s32 %s85, 1
      %s87 = scalar_select %p84, %s85, %s86
      %p90 = pneg %p84
      %p91 = scmp.eq.s32.totalorder %s17, 5
      %p92 = por %p90, %p91
      %p93 = scmp.ne.s32.totalorder %s85, %s88
      %p94 = scmp.eq.s32.totalorder %s17, 0
      %p95 = por %p93, %p94
      %p96 = scmp.ne.s32.totalorder %s85, %s88
      %p97 = scmp.eq.s32.totalorder %s22, 5
      %p98 = por %p96, %p97
      %p99 = scmp.ne.s32.totalorder %s88, %s89
      %p100 = scmp.eq.s32.totalorder %s22, 0
      %p101 = por %p99, %p100
      %p102 = scmp.ne.s32.totalorder %s88, %s89
      %p103 = scmp.eq.s32.totalorder %s23, 5
      %p104 = por %p102, %p103
      %p106 = scmp.ne.s32.totalorder %s89, %s105
      %p107 = scmp.eq.s32.totalorder %s23, 0
      %p108 = por %p106, %p107
      %s109 = smul.u32 %s24, 3
      %s110 = sadd.s32 %s109, %s25
      %s111 = smul.u32 %s36, 3
      %s112 = sadd.s32 %s111, %s32
      %s113 = ssub.s32 %s110, %s112
      %p114 = scmp.eq.s32.totalorder %s113, 0
      %s116 = sadd.s32 %s115, 1
      %s117 = scalar_select %p114, %s115, %s116
      %p120 = pneg %p114
      %p121 = scmp.eq.s32.totalorder %s17, 5
      %p122 = por %p120, %p121
      %p123 = scmp.ne.s32.totalorder %s115, %s118
      %p124 = scmp.eq.s32.totalorder %s17, 0
      %p125 = por %p123, %p124
      %p126 = scmp.ne.s32.totalorder %s115, %s118
      %p127 = scmp.eq.s32.totalorder %s22, 5
      %p128 = por %p126, %p127
      %p129 = scmp.ne.s32.totalorder %s118, %s119
      %p130 = scmp.eq.s32.totalorder %s22, 0
      %p131 = por %p129, %p130
      %p132 = scmp.ne.s32.totalorder %s118, %s119
      %p133 = scmp.eq.s32.totalorder %s23, 5
      %p134 = por %p132, %p133
      %p136 = scmp.ne.s32.totalorder %s119, %s135
      %p137 = scmp.eq.s32.totalorder %s23, 0
      %p138 = por %p136, %p137
      %s139 = smul.u32 %s24, 3
      %s140 = sadd.s32 %s139, %s25
      %s141 = smul.u32 %s36, 3
      %s142 = sadd.s32 %s141, %s32
      %s143 = ssub.s32 %s140, %s142
      %p144 = scmp.eq.s32.totalorder %s143, 0
      %s146 = sadd.s32 %s145, 1
      %s147 = scalar_select %p144, %s145, %s146
      %p150 = pneg %p144
      %p151 = scmp.eq.s32.totalorder %s17, 5
      %p152 = por %p150, %p151
      %p153 = scmp.ne.s32.totalorder %s145, %s148
      %p154 = scmp.eq.s32.totalorder %s17, 0
      %p155 = por %p153, %p154
      %p156 = scmp.ne.s32.totalorder %s145, %s148
      %p157 = scmp.eq.s32.totalorder %s22, 5
      %p158 = por %p156, %p157
      %p159 = scmp.ne.s32.totalorder %s148, %s149
      %p160 = scmp.eq.s32.totalorder %s22, 0
      %p161 = por %p159, %p160
      %p162 = scmp.ne.s32.totalorder %s148, %s149
      %p163 = scmp.eq.s32.totalorder %s23, 5
      %p164 = por %p162, %p163
      %p166 = scmp.ne.s32.totalorder %s149, %s165
      %p167 = scmp.eq.s32.totalorder %s23, 0
      %p168 = por %p166, %p167
      %s169 = smul.u32 %s24, 3
      %s170 = sadd.s32 %s169, %s25
      %s171 = smul.u32 %s36, 3
      %s172 = sadd.s32 %s171, %s32
      %s173 = ssub.s32 %s170, %s172
      %p174 = scmp.eq.s32.totalorder %s173, 0
      %s176 = sadd.s32 %s175, 1
      %s177 = scalar_select %p174, %s175, %s176
      %p180 = pneg %p174
      %p181 = scmp.eq.s32.totalorder %s17, 5
      %p182 = por %p180, %p181
      %p183 = scmp.ne.s32.totalorder %s175, %s178
      %p184 = scmp.eq.s32.totalorder %s17, 0
      %p185 = por %p183, %p184
      %p186 = scmp.ne.s32.totalorder %s175, %s178
      %p187 = scmp.eq.s32.totalorder %s22, 5
      %p188 = por %p186, %p187
      %p189 = scmp.ne.s32.totalorder %s178, %s179
      %p190 = scmp.eq.s32.totalorder %s22, 0
      %p191 = por %p189, %p190
      %p192 = scmp.ne.s32.totalorder %s178, %s179
      %p193 = scmp.eq.s32.totalorder %s23, 5
      %p194 = por %p192, %p193
      %p196 = scmp.ne.s32.totalorder %s179, %s195
      %p197 = scmp.eq.s32.totalorder %s23, 0
      %p198 = por %p196, %p197
      %s199 = ssub.s32 %s24, %s36
      %p200 = scmp.eq.s32.totalorder %s199, 0
      %s202 = sadd.s32 %s201, 1
      %s203 = scalar_select %p200, %s201, %s202
      %p206 = pneg %p200
      %p207 = scmp.eq.s32.totalorder %s17, 5
      %p208 = por %p206, %p207
      %p209 = scmp.ne.s32.totalorder %s201, %s204
      %p210 = scmp.eq.s32.totalorder %s17, 0
      %p211 = por %p209, %p210
      %p212 = scmp.ne.s32.totalorder %s201, %s204
      %p213 = scmp.eq.s32.totalorder %s22, 5
      %p214 = por %p212, %p213
      %p215 = scmp.ne.s32.totalorder %s204, %s205
      %p216 = scmp.eq.s32.totalorder %s22, 0
      %p217 = por %p215, %p216
      %p218 = scmp.ne.s32.totalorder %s204, %s205
      %p219 = scmp.eq.s32.totalorder %s23, 5
      %p220 = por %p218, %p219
      %p222 = scmp.ne.s32.totalorder %s205, %s221
      %p223 = scmp.eq.s32.totalorder %s23, 0
      %p224 = por %p222, %p223
      %p225 = scmp.le.s32.totalorder 1, %s17
      %p226 = scmp.lt.s32.totalorder %s17, 7
      %p227 = pnand %p225, %p226
      %p228 = pneg %p227
      // Predicated region
      $region9: #{tpu_custom_call.1} parent=5 // pred_check
        _
      $region10: #{tpu_custom_call.1} parent=5 // pred_check_branch
        %230 = sbr.rel (%p227) target = $region12
      $region11: #{tpu_custom_call.1} parent=5 // pred_region
        %s231 = ssub.s32 %s17, 1
        // Predicated region
        $region13: #{tpu_custom_call.1} parent=11 // pred_check
          %p232 = pneg %p50
        $region14: #{tpu_custom_call.1} parent=11 // pred_check_branch
          %234 = sbr.rel (%p232) target = $region16
        $region15: #{tpu_custom_call.1} parent=11 // pred_region
          %s236 = ssub.s32 256, 256
          %237 = vsyncadd [#allocation3], %s236
          %s238 = sshll.u32 [#allocation2], 4
          %s239 = int_to_ptr.vmem [resolvable:$true] %s238
          %244 = dma.hbm_to_vmem [thread:$0]  %s0, 256, %s239, [#allocation3], 128, 128, 8
        $region16: #{tpu_custom_call.1} parent=11 // pred_fallthru
          _
        // Predicated region
        $region17: #{tpu_custom_call.1} parent=11 // pred_check
          %p245 = pneg %p71
        $region18: #{tpu_custom_call.1} parent=11 // pred_check_branch
          %247 = sbr.rel (%p245) target = $region20
        $region19: #{tpu_custom_call.1} parent=11 // pred_region
          %s249 = ssub.s32 256, 256
          %250 = vsyncadd [#allocation6], %s249
          %s251 = sshll.u32 [#allocation5], 4
          %s252 = int_to_ptr.vmem [resolvable:$true] %s251
          %257 = dma.hbm_to_vmem [thread:$0]  %s1, 256, %s252, [#allocation6], 128, 128, 8
        $region20: #{tpu_custom_call.1} parent=11 // pred_fallthru
          _
      $region12: #{tpu_custom_call.1} parent=5 // pred_fallthru
        _
      %p258 = scmp.lt.s32.totalorder %s17, 6
      // Predicated region
      $region21: #{tpu_custom_call.1} parent=5 // pred_check
        %p259 = pneg %p258
      $region22: #{tpu_custom_call.1} parent=5 // pred_check_branch
        %261 = sbr.rel (%p259) target = $region24
      $region23: #{tpu_custom_call.1} parent=5 // pred_region
        // Predicated region
        $region25: #{tpu_custom_call.1} parent=23 // pred_check
          %p262 = pneg %p95
        $region26: #{tpu_custom_call.1} parent=23 // pred_check_branch
          %264 = sbr.rel (%p262) target = $region28
        $region27: #{tpu_custom_call.1} parent=23 // pred_region
          %s265 = sand.u32 %s17, 1
          %s266 = scalar_lea.sflag [#allocation3], %s265
          %s267 = sand.u32 %s85, 1
          %s268 = smul.addr %s267, 16
          %s269 = scalar_lea.vmem [#allocation7], %s268
          %s270 = smul.u32 %s24, 3
          %s271 = sadd.s32 %s270, %s25
          %s273 = ssub.s32 256, 256
          %274 = vsyncadd %s266, %s273
          %s275 = smul.addr %s271, 2
          %s276 = smul.addr %s275, 128
          %s277 = scalar_lea.hbm %s2, %s276
          %s278 = sshll.u32 %s269, 4
          %s279 = int_to_ptr.vmem [resolvable:$true] %s278
          %284 = dma.hbm_to_vmem [thread:$0]  %s277, 256, %s279, %s266, 128, 128, 8
        $region28: #{tpu_custom_call.1} parent=23 // pred_fallthru
          _
        // Predicated region
        $region29: #{tpu_custom_call.1} parent=23 // pred_check
          %p285 = pneg %p125
        $region30: #{tpu_custom_call.1} parent=23 // pred_check_branch
          %287 = sbr.rel (%p285) target = $region32
        $region31: #{tpu_custom_call.1} parent=23 // pred_region
          %s288 = sand.u32 %s17, 1
          %s289 = scalar_lea.sflag [#allocation3], %s288
          %s290 = sand.u32 %s115, 1
          %s291 = smul.addr %s290, 16
          %s292 = scalar_lea.vmem [#allocation8], %s291
          %s293 = smul.u32 %s24, 3
          %s294 = sadd.s32 %s293, %s25
          %s296 = ssub.s32 256, 256
          %297 = vsyncadd %s289, %s296
          %s298 = smul.addr %s294, 2
          %s299 = smul.addr %s298, 128
          %s300 = scalar_lea.hbm %s3, %s299
          %s301 = sshll.u32 %s292, 4
          %s302 = int_to_ptr.vmem [resolvable:$true] %s301
          %307 = dma.hbm_to_vmem [thread:$0]  %s300, 256, %s302, %s289, 128, 128, 8
        $region32: #{tpu_custom_call.1} parent=23 // pred_fallthru
          _
        // Predicated region
        $region33: #{tpu_custom_call.1} parent=23 // pred_check
          %p308 = pneg %p155
        $region34: #{tpu_custom_call.1} parent=23 // pred_check_branch
          %310 = sbr.rel (%p308) target = $region36
        $region35: #{tpu_custom_call.1} parent=23 // pred_region
          %s311 = sand.u32 %s17, 1
          %s312 = scalar_lea.sflag [#allocation3], %s311
          %s313 = sand.u32 %s145, 1
          %s314 = smul.addr %s313, 16
          %s315 = scalar_lea.vmem [#allocation9], %s314
          %s316 = smul.u32 %s24, 3
          %s317 = sadd.s32 %s316, %s25
          %s319 = ssub.s32 256, 256
          %320 = vsyncadd %s312, %s319
          %s321 = smul.addr %s317, 2
          %s322 = smul.addr %s321, 128
          %s323 = scalar_lea.hbm %s4, %s322
          %s324 = sshll.u32 %s315, 4
          %s325 = int_to_ptr.vmem [resolvable:$true] %s324
          %330 = dma.hbm_to_vmem [thread:$0]  %s323, 256, %s325, %s312, 128, 128, 8
        $region36: #{tpu_custom_call.1} parent=23 // pred_fallthru
          _
        // Predicated region
        $region37: #{tpu_custom_call.1} parent=23 // pred_check
          %p331 = pneg %p185
        $region38: #{tpu_custom_call.1} parent=23 // pred_check_branch
          %333 = sbr.rel (%p331) target = $region40
        $region39: #{tpu_custom_call.1} parent=23 // pred_region
          %s334 = sand.u32 %s17, 1
          %s335 = scalar_lea.sflag [#allocation3], %s334
          %s336 = sand.u32 %s175, 1
          %s337 = smul.addr %s336, 16
          %s338 = scalar_lea.vmem [#allocation10], %s337
          %s339 = smul.u32 %s24, 3
          %s340 = sadd.s32 %s339, %s25
          %s342 = ssub.s32 256, 256
          %343 = vsyncadd %s335, %s342
          %s344 = smul.addr %s340, 2
          %s345 = smul.addr %s344, 128
          %s346 = scalar_lea.hbm %s5, %s345
          %s347 = sshll.u32 %s338, 4
          %s348 = int_to_ptr.vmem [resolvable:$true] %s347
          %353 = dma.hbm_to_vmem [thread:$0]  %s346, 256, %s348, %s335, 128, 128, 8
        $region40: #{tpu_custom_call.1} parent=23 // pred_fallthru
          _
      $region24: #{tpu_custom_call.1} parent=5 // pred_fallthru
        _
      %p354 = scmp.le.s32.totalorder 1, %s17
      %p355 = scmp.lt.s32.totalorder %s17, 7
      %p356 = pnand %p354, %p355
      %p357 = pneg %p356
      // Predicated region
      $region41: #{tpu_custom_call.1} parent=5 // pred_check
        _
      $region42: #{tpu_custom_call.1} parent=5 // pred_check_branch
        %359 = sbr.rel (%p356) target = $region44
      $region43: #{tpu_custom_call.1} parent=5 // pred_region
        %s360 = ssub.s32 %s17, 1
        // Predicated region
        $region45: #{tpu_custom_call.1} parent=43 // pred_check
          %p361 = pneg %p50
        $region46: #{tpu_custom_call.1} parent=43 // pred_check_branch
          %363 = sbr.rel (%p361) target = $region48
        $region47: #{tpu_custom_call.1} parent=43 // pred_region
          %364 = dma.done [#allocation3], 256
        $region48: #{tpu_custom_call.1} parent=43 // pred_fallthru
          _
        // Predicated region
        $region49: #{tpu_custom_call.1} parent=43 // pred_check
          %p365 = pneg %p71
        $region50: #{tpu_custom_call.1} parent=43 // pred_check_branch
          %367 = sbr.rel (%p365) target = $region52
        $region51: #{tpu_custom_call.1} parent=43 // pred_region
          %368 = dma.done [#allocation6], 256
        $region52: #{tpu_custom_call.1} parent=43 // pred_fallthru
          _
        %s369 = sand.u32 %s22, 1
        %s370 = scalar_lea.sflag [#allocation3], %s369
        %s371 = sand.u32 %s88, 1
        %s372 = smul.addr %s371, 16
        %s373 = scalar_lea.vmem [#allocation7], %s372
        // Predicated region
        $region53: #{tpu_custom_call.1} parent=43 // pred_check
          %p374 = pneg %p101
        $region54: #{tpu_custom_call.1} parent=43 // pred_check_branch
          %376 = sbr.rel (%p374) target = $region56
        $region55: #{tpu_custom_call.1} parent=43 // pred_region
          %377 = dma.done %s370, 256
        $region56: #{tpu_custom_call.1} parent=43 // pred_fallthru
          _
        %s378 = sand.u32 %s22, 1
        %s379 = scalar_lea.sflag [#allocation3], %s378
        %s380 = sand.u32 %s118, 1
        %s381 = smul.addr %s380, 16
        %s382 = scalar_lea.vmem [#allocation8], %s381
        // Predicated region
        $region57: #{tpu_custom_call.1} parent=43 // pred_check
          %p383 = pneg %p131
        $region58: #{tpu_custom_call.1} parent=43 // pred_check_branch
          %385 = sbr.rel (%p383) target = $region60
        $region59: #{tpu_custom_call.1} parent=43 // pred_region
          %386 = dma.done %s379, 256
        $region60: #{tpu_custom_call.1} parent=43 // pred_fallthru
          _
        %s387 = sand.u32 %s22, 1
        %s388 = scalar_lea.sflag [#allocation3], %s387
        %s389 = sand.u32 %s148, 1
        %s390 = smul.addr %s389, 16
        %s391 = scalar_lea.vmem [#allocation9], %s390
        // Predicated region
        $region61: #{tpu_custom_call.1} parent=43 // pred_check
          %p392 = pneg %p161
        $region62: #{tpu_custom_call.1} parent=43 // pred_check_branch
          %394 = sbr.rel (%p392) target = $region64
        $region63: #{tpu_custom_call.1} parent=43 // pred_region
          %395 = dma.done %s388, 256
        $region64: #{tpu_custom_call.1} parent=43 // pred_fallthru
          _
        %s396 = sand.u32 %s22, 1
        %s397 = scalar_lea.sflag [#allocation3], %s396
        %s398 = sand.u32 %s178, 1
        %s399 = smul.addr %s398, 16
        %s400 = scalar_lea.vmem [#allocation10], %s399
        // Predicated region
        $region65: #{tpu_custom_call.1} parent=43 // pred_check
          %p401 = pneg %p191
        $region66: #{tpu_custom_call.1} parent=43 // pred_check_branch
          %403 = sbr.rel (%p401) target = $region68
        $region67: #{tpu_custom_call.1} parent=43 // pred_region
          %404 = dma.done %s397, 256
        $region68: #{tpu_custom_call.1} parent=43 // pred_fallthru
          _
        %p405 = pneg %p50
        %p406 = pneg %p47
        %p407 = pneg %p71
        %p408 = pneg %p68
        %s409 = sand.u32 %s22, 1
        %s410 = scalar_lea.sflag [#allocation3], %s409
        %s411 = sand.u32 %s88, 1
        %s412 = smul.addr %s411, 16
        %s413 = scalar_lea.vmem [#allocation7], %s412
        %p414 = pneg %p101
        %p415 = pneg %p98
        %s416 = sand.u32 %s22, 1
        %s417 = scalar_lea.sflag [#allocation3], %s416
        %s418 = sand.u32 %s118, 1
        %s419 = smul.addr %s418, 16
        %s420 = scalar_lea.vmem [#allocation8], %s419
        %p421 = pneg %p131
        %p422 = pneg %p128
        %s423 = sand.u32 %s22, 1
        %s424 = scalar_lea.sflag [#allocation3], %s423
        %s425 = sand.u32 %s148, 1
        %s426 = smul.addr %s425, 16
        %s427 = scalar_lea.vmem [#allocation9], %s426
        %p428 = pneg %p161
        %p429 = pneg %p158
        %s430 = sand.u32 %s22, 1
        %s431 = scalar_lea.sflag [#allocation3], %s430
        %s432 = sand.u32 %s178, 1
        %s433 = smul.addr %s432, 16
        %s434 = scalar_lea.vmem [#allocation10], %s433
        %p435 = pneg %p191
        %p436 = pneg %p188
        %p437 = pneg %p217
        %p438 = pneg %p214
        %s439 = sand.u32 %s204, 1
        %s440 = scalar_lea.sflag [#allocation4], %s439
        %s441 = sand.u32 %s204, 1
        %s442 = scalar_lea.vmem [#allocation11], %s441
        %s443 = smul.u32 %s26, 3
        %s444 = sadd.s32 %s443, %s27
        %s445 = smul.u32 %s26, 3
        %s446 = sadd.s32 %s445, %s27
        %s447 = smul.u32 %s26, 3
        %s448 = sadd.s32 %s447, %s27
        %s449 = smul.u32 %s26, 3
        %s450 = sadd.s32 %s449, %s27
        %v451 = vld [vmem:[#allocation2] sm:$0xff]
        %v452 = vld [vmem:[#allocation2 + $0x8] sm:$0xff]
        %v453 = vld [vmem:[#allocation5] sm:$0xff]
        %v454 = vld [vmem:[#allocation5 + $0x8] sm:$0xff]
        %v455 = vld [vmem:[%s373] sm:$0xff]
        %v456 = vld [vmem:[%s373 + $0x8] sm:$0xff]
        %v457 = vld [vmem:[%s382] sm:$0xff]
        %v458 = vld [vmem:[%s382 + $0x8] sm:$0xff]
        %v459 = vsub.f32 %v455, %v457
        %v460 = vsub.f32 %v456, %v458
        %v461 = vmul.f32 %v459, %v459
        %v462 = vmul.f32 %v460, %v460
        %vm463 = vcmask 130048
        %v464 = vsel %vm463, %v461, 0.0
        %v465 = vsel %vm463, %v462, 0.0
        %v466 = vadd.f32 %v464, %v465
        %467 = vadd.xlane.f32.xlu0 %v466
        %v468 = vpop.xlane.xlu0 %467
        %v469 = vrot.slane %v468, 4
        %v470 = vadd.f32 %v468, %v469
        %v471 = vrot.slane %v470, 2
        %v472 = vadd.f32 %v470, %v471
        %v473 = vrot.slane %v472, 1
        %v474 = vadd.f32 %v472, %v473
        %s475 = vtos %v474
        %v477 = vsel %vm463, %v451, 0
        %v480 = vsel %vm463, %v452, 0
        %482 = vmatprep.subr.mxu0 0.0
        %v483 = vand.u32 %v455, 4294901760
        %484 = vmatpush1.msra.mxu0 %v483
        %485 = vmatprep.subr.mxu0 0.0
        %v486 = vand.u32 %v456, 4294901760
        %487 = vmatpush1.msra.mxu0 %v486
        %488 = vmatprep.subr.mxu0 0.0
        %489 = vmatpush1.msra.mxu0 0.0
        %490 = vmatprep.subr.mxu0 0.0
        %491 = vmatpush1.msra.mxu0 0.0
        %492 = vmatprep.subr.mxu0 0.0
        %493 = vmatpush1.msra.mxu0 0.0
        %494 = vmatprep.subr.mxu0 0.0
        %495 = vmatpush1.msra.mxu0 0.0
        %496 = vmatprep.subr.mxu0 0.0
        %497 = vmatpush1.msra.mxu0 0.0
        %498 = vmatprep.subr.mxu0 0.0
        %499 = vmatpush1.msra.mxu0 0.0
        %500 = vmatprep.subr.mxu0 0.0
        %501 = vmatpush1.msra.mxu0 0.0
        %502 = vmatprep.subr.mxu0 0.0
        %503 = vmatpush1.msra.mxu0 0.0
        %504 = vmatprep.subr.mxu0 0.0
        %505 = vmatpush1.msra.mxu0 0.0
        %506 = vmatprep.subr.mxu0 0.0
        %507 = vmatpush1.msra.mxu0 0.0
        %508 = vmatprep.subr.mxu0 0.0
        %509 = vmatpush1.msra.mxu0 0.0
        %510 = vmatprep.subr.mxu0 0.0
        %511 = vmatpush1.msra.mxu0 0.0
        %512 = vmatprep.subr.mxu0 0.0
        %513 = vmatpush1.msra.mxu0 0.0
        %514 = vmatprep.subr.mxu0 0.0
        %515 = vmatpush1.msra.mxu0 0.0
        %516 = vmatprep.subr.mxu0 0.0
        %517 = vmatpush1.msra.mxu0 0.0
        %518 = vmatprep.subr.mxu0 0.0
        %519 = vmatpush1.msra.mxu0 0.0
        %520 = vmatprep.subr.mxu0 0.0
        %521 = vmatpush1.msra.mxu0 0.0
        %522 = vmatprep.subr.mxu0 0.0
        %523 = vmatpush1.msra.mxu0 0.0
        %524 = vmatprep.subr.mxu0 0.0
        %525 = vmatpush1.msra.mxu0 0.0
        %526 = vmatprep.subr.mxu0 0.0
        %527 = vmatpush1.msra.mxu0 0.0
        %528 = vmatprep.subr.mxu0 0.0
        %529 = vmatpush1.msra.mxu0 0.0
        %530 = vmatprep.subr.mxu0 0.0
        %531 = vmatpush1.msra.mxu0 0.0
        %532 = vmatprep.subr.mxu0 0.0
        %533 = vmatpush1.msra.mxu0 0.0
        %534 = vmatprep.subr.mxu0 0.0
        %535 = vmatpush1.msra.mxu0 0.0
        %536 = vmatprep.subr.mxu0 0.0
        %537 = vmatpush1.msra.mxu0 0.0
        %538 = vmatprep.subr.mxu0 0.0
        %539 = vmatpush1.msra.mxu0 0.0
        %540 = vmatprep.subr.mxu0 0.0
        %541 = vmatpush1.msra.mxu0 0.0
        %542 = vmatprep.subr.mxu0 0.0
        %543 = vmatpush1.msra.mxu0 0.0
        %544 = vmatprep.subr.mxu0 0.0
        %545 = vmatpush1.msra.mxu0 0.0
        %546 = vmatprep.subr.mxu0 0.0
        %547 = vmatpush1.msra.mxu0 0.0
        %548 = vmatprep.mubr.f32.mxu0 0.0
        %v549 = vand.u32 %v477, 4294901760
        %v550 = vsub.f32 %v477, %v549
        %v551 = vand.u32 %v550, 4294901760
        %v552 = vsub.f32 %v550, %v551
        %v553 = vand.u32 %v552, 4294901760
        %554 = vmatmul.mubr.f32.gmra.mrb[0].mxu0 %v553
        %v555 = vpop.f32.mrb[0].mxu0
        %v556 = vadd.f32 0.0, %v555
        %v557 = vpop.f32.mrb[0].mxu0
        %558 = vmatprep.mubr.f32.mxu0 0.0
        %v559 = vand.u32 %v480, 4294901760
        %v560 = vsub.f32 %v480, %v559
        %v561 = vand.u32 %v560, 4294901760
        %v562 = vsub.f32 %v560, %v561
        %v563 = vand.u32 %v562, 4294901760
        %564 = vmatmul.mubr.f32.gmra.mrb[0].mxu0 %v563
        %v565 = vpop.f32.mrb[0].mxu0
        %v566 = vadd.f32 0.0, %v565
        %v567 = vpop.f32.mrb[0].mxu0
        %568 = vdwg.mxu0
        %569 = vmatprep.subr.mxu0 0.0
        %v570 = vand.u32 %v455, 4294901760
        %v571 = vsub.f32 %v455, %v570
        %v572 = vand.u32 %v571, 4294901760
        %v573 = vsub.f32 %v571, %v572
        %v574 = vand.u32 %v573, 4294901760
        %575 = vmatpush1.msra.mxu0 %v574
        %576 = vmatprep.subr.mxu0 0.0
        %v577 = vand.u32 %v456, 4294901760
        %v578 = vsub.f32 %v456, %v577
        %v579 = vand.u32 %v578, 4294901760
        %v580 = vsub.f32 %v578, %v579
        %v581 = vand.u32 %v580, 4294901760
        %582 = vmatpush1.msra.mxu0 %v581
        %583 = vmatprep.subr.mxu0 0.0
        %584 = vmatpush1.msra.mxu0 0.0
        %585 = vmatprep.subr.mxu0 0.0
        %586 = vmatpush1.msra.mxu0 0.0
        %587 = vmatprep.subr.mxu0 0.0
        %588 = vmatpush1.msra.mxu0 0.0
        %589 = vmatprep.subr.mxu0 0.0
        %590 = vmatpush1.msra.mxu0 0.0
        %591 = vmatprep.subr.mxu0 0.0
        %592 = vmatpush1.msra.mxu0 0.0
        %593 = vmatprep.subr.mxu0 0.0
        %594 = vmatpush1.msra.mxu0 0.0
        %595 = vmatprep.subr.mxu0 0.0
        %596 = vmatpush1.msra.mxu0 0.0
        %597 = vmatprep.subr.mxu0 0.0
        %598 = vmatpush1.msra.mxu0 0.0
        %599 = vmatprep.subr.mxu0 0.0
        %600 = vmatpush1.msra.mxu0 0.0
        %601 = vmatprep.subr.mxu0 0.0
        %602 = vmatpush1.msra.mxu0 0.0
        %603 = vmatprep.subr.mxu0 0.0
        %604 = vmatpush1.msra.mxu0 0.0
        %605 = vmatprep.subr.mxu0 0.0
        %606 = vmatpush1.msra.mxu0 0.0
        %607 = vmatprep.subr.mxu0 0.0
        %608 = vmatpush1.msra.mxu0 0.0
        %609 = vmatprep.subr.mxu0 0.0
        %610 = vmatpush1.msra.mxu0 0.0
        %611 = vmatprep.subr.mxu0 0.0
        %612 = vmatpush1.msra.mxu0 0.0
        %613 = vmatprep.subr.mxu0 0.0
        %614 = vmatpush1.msra.mxu0 0.0
        %615 = vmatprep.subr.mxu0 0.0
        %616 = vmatpush1.msra.mxu0 0.0
        %617 = vmatprep.subr.mxu0 0.0
        %618 = vmatpush1.msra.mxu0 0.0
        %619 = vmatprep.subr.mxu0 0.0
        %620 = vmatpush1.msra.mxu0 0.0
        %621 = vmatprep.subr.mxu0 0.0
        %622 = vmatpush1.msra.mxu0 0.0
        %623 = vmatprep.subr.mxu0 0.0
        %624 = vmatpush1.msra.mxu0 0.0
        %625 = vmatprep.subr.mxu0 0.0
        %626 = vmatpush1.msra.mxu0 0.0
        %627 = vmatprep.subr.mxu0 0.0
        %628 = vmatpush1.msra.mxu0 0.0
        %629 = vmatprep.subr.mxu0 0.0
        %630 = vmatpush1.msra.mxu0 0.0
        %631 = vmatprep.subr.mxu0 0.0
        %632 = vmatpush1.msra.mxu0 0.0
        %633 = vmatprep.subr.mxu0 0.0
        %634 = vmatpush1.msra.mxu0 0.0
        %635 = vmatprep.subr.mxu0 0.0
        %636 = vmatpush1.msra.mxu0 0.0
        %637 = vmatprep.subr.mxu0 0.0
        %638 = vmatpush1.msra.mxu0 0.0
        %639 = vmatprep.subr.mxu0 0.0
        %640 = vmatpush1.msra.mxu0 0.0
        %641 = vmatprep.subr.mxu0 0.0
        %642 = vmatpush1.msra.mxu0 0.0
        %643 = vmatprep.mubr.f32.mxu0 0.0
        %v644 = vand.u32 %v477, 4294901760
        %645 = vmatmul.mubr.f32.gmra.mrb[0].mxu0 %v644
        %v646 = vpop.f32.mrb[0].mxu0
        %v647 = vadd.f32 %v556, %v646
        %v648 = vpop.f32.mrb[0].mxu0
        %649 = vmatprep.mubr.f32.mxu0 0.0
        %v650 = vand.u32 %v480, 4294901760
        %651 = vmatmul.mubr.f32.gmra.mrb[0].mxu0 %v650
        %v652 = vpop.f32.mrb[0].mxu0
        %v653 = vadd.f32 %v566, %v652
        %v654 = vpop.f32.mrb[0].mxu0
        %655 = vdwg.mxu0
        %656 = vmatprep.subr.mxu0 0.0
        %v657 = vand.u32 %v455, 4294901760
        %v658 = vsub.f32 %v455, %v657
        %659 = vmatpush1.msra.mxu0 %v658
        %660 = vmatprep.subr.mxu0 0.0
        %v661 = vand.u32 %v456, 4294901760
        %v662 = vsub.f32 %v456, %v661
        %663 = vmatpush1.msra.mxu0 %v662
        %664 = vmatprep.subr.mxu0 0.0
        %665 = vmatpush1.msra.mxu0 0.0
        %666 = vmatprep.subr.mxu0 0.0
        %667 = vmatpush1.msra.mxu0 0.0
        %668 = vmatprep.subr.mxu0 0.0
        %669 = vmatpush1.msra.mxu0 0.0
        %670 = vmatprep.subr.mxu0 0.0
        %671 = vmatpush1.msra.mxu0 0.0
        %672 = vmatprep.subr.mxu0 0.0
        %673 = vmatpush1.msra.mxu0 0.0
        %674 = vmatprep.subr.mxu0 0.0
        %675 = vmatpush1.msra.mxu0 0.0
        %676 = vmatprep.subr.mxu0 0.0
        %677 = vmatpush1.msra.mxu0 0.0
        %678 = vmatprep.subr.mxu0 0.0
        %679 = vmatpush1.msra.mxu0 0.0
        %680 = vmatprep.subr.mxu0 0.0
        %681 = vmatpush1.msra.mxu0 0.0
        %682 = vmatprep.subr.mxu0 0.0
        %683 = vmatpush1.msra.mxu0 0.0
        %684 = vmatprep.subr.mxu0 0.0
        %685 = vmatpush1.msra.mxu0 0.0
        %686 = vmatprep.subr.mxu0 0.0
        %687 = vmatpush1.msra.mxu0 0.0
        %688 = vmatprep.subr.mxu0 0.0
        %689 = vmatpush1.msra.mxu0 0.0
        %690 = vmatprep.subr.mxu0 0.0
        %691 = vmatpush1.msra.mxu0 0.0
        %692 = vmatprep.subr.mxu0 0.0
        %693 = vmatpush1.msra.mxu0 0.0
        %694 = vmatprep.subr.mxu0 0.0
        %695 = vmatpush1.msra.mxu0 0.0
        %696 = vmatprep.subr.mxu0 0.0
        %697 = vmatpush1.msra.mxu0 0.0
        %698 = vmatprep.subr.mxu0 0.0
        %699 = vmatpush1.msra.mxu0 0.0
        %700 = vmatprep.subr.mxu0 0.0
        %701 = vmatpush1.msra.mxu0 0.0
        %702 = vmatprep.subr.mxu0 0.0
        %703 = vmatpush1.msra.mxu0 0.0
        %704 = vmatprep.subr.mxu0 0.0
        %705 = vmatpush1.msra.mxu0 0.0
        %706 = vmatprep.subr.mxu0 0.0
        %707 = vmatpush1.msra.mxu0 0.0
        %708 = vmatprep.subr.mxu0 0.0
        %709 = vmatpush1.msra.mxu0 0.0
        %710 = vmatprep.subr.mxu0 0.0
        %711 = vmatpush1.msra.mxu0 0.0
        %712 = vmatprep.subr.mxu0 0.0
        %713 = vmatpush1.msra.mxu0 0.0
        %714 = vmatprep.subr.mxu0 0.0
        %715 = vmatpush1.msra.mxu0 0.0
        %716 = vmatprep.subr.mxu0 0.0
        %717 = vmatpush1.msra.mxu0 0.0
        %718 = vmatprep.subr.mxu0 0.0
        %719 = vmatpush1.msra.mxu0 0.0
        %720 = vmatprep.subr.mxu0 0.0
        %721 = vmatpush1.msra.mxu0 0.0
        %722 = vmatprep.subr.mxu0 0.0
        %723 = vmatpush1.msra.mxu0 0.0
        %724 = vmatprep.mubr.f32.mxu0 0.0
        %v725 = vand.u32 %v477, 4294901760
        %v726 = vsub.f32 %v477, %v725
        %727 = vmatmul.mubr.f32.gmra.mrb[0].mxu0 %v726
        %v728 = vpop.f32.mrb[0].mxu0
        %v729 = vadd.f32 %v647, %v728
        %v730 = vpop.f32.mrb[0].mxu0
        %731 = vmatprep.mubr.f32.mxu0 0.0
        %v732 = vand.u32 %v480, 4294901760
        %v733 = vsub.f32 %v480, %v732
        %734 = vmatmul.mubr.f32.gmra.mrb[0].mxu0 %v733
        %v735 = vpop.f32.mrb[0].mxu0
        %v736 = vadd.f32 %v653, %v735
        %v737 = vpop.f32.mrb[0].mxu0
        %738 = vdwg.mxu0
        %739 = vmatprep.subr.mxu0 0.0
        %v740 = vand.u32 %v455, 4294901760
        %741 = vmatpush1.msra.mxu0 %v740
        %742 = vmatprep.subr.mxu0 0.0
        %v743 = vand.u32 %v456, 4294901760
        %744 = vmatpush1.msra.mxu0 %v743
        %745 = vmatprep.subr.mxu0 0.0
        %746 = vmatpush1.msra.mxu0 0.0
        %747 = vmatprep.subr.mxu0 0.0
        %748 = vmatpush1.msra.mxu0 0.0
        %749 = vmatprep.subr.mxu0 0.0
        %750 = vmatpush1.msra.mxu0 0.0
        %751 = vmatprep.subr.mxu0 0.0
        %752 = vmatpush1.msra.mxu0 0.0
        %753 = vmatprep.subr.mxu0 0.0
        %754 = vmatpush1.msra.mxu0 0.0
        %755 = vmatprep.subr.mxu0 0.0
        %756 = vmatpush1.msra.mxu0 0.0
        %757 = vmatprep.subr.mxu0 0.0
        %758 = vmatpush1.msra.mxu0 0.0
        %759 = vmatprep.subr.mxu0 0.0
        %760 = vmatpush1.msra.mxu0 0.0
        %761 = vmatprep.subr.mxu0 0.0
        %762 = vmatpush1.msra.mxu0 0.0
        %763 = vmatprep.subr.mxu0 0.0
        %764 = vmatpush1.msra.mxu0 0.0
        %765 = vmatprep.subr.mxu0 0.0
        %766 = vmatpush1.msra.mxu0 0.0
        %767 = vmatprep.subr.mxu0 0.0
        %768 = vmatpush1.msra.mxu0 0.0
        %769 = vmatprep.subr.mxu0 0.0
        %770 = vmatpush1.msra.mxu0 0.0
        %771 = vmatprep.subr.mxu0 0.0
        %772 = vmatpush1.msra.mxu0 0.0
        %773 = vmatprep.subr.mxu0 0.0
        %774 = vmatpush1.msra.mxu0 0.0
        %775 = vmatprep.subr.mxu0 0.0
        %776 = vmatpush1.msra.mxu0 0.0
        %777 = vmatprep.subr.mxu0 0.0
        %778 = vmatpush1.msra.mxu0 0.0
        %779 = vmatprep.subr.mxu0 0.0
        %780 = vmatpush1.msra.mxu0 0.0
        %781 = vmatprep.subr.mxu0 0.0
        %782 = vmatpush1.msra.mxu0 0.0
        %783 = vmatprep.subr.mxu0 0.0
        %784 = vmatpush1.msra.mxu0 0.0
        %785 = vmatprep.subr.mxu0 0.0
        %786 = vmatpush1.msra.mxu0 0.0
        %787 = vmatprep.subr.mxu0 0.0
        %788 = vmatpush1.msra.mxu0 0.0
        %789 = vmatprep.subr.mxu0 0.0
        %790 = vmatpush1.msra.mxu0 0.0
        %791 = vmatprep.subr.mxu0 0.0
        %792 = vmatpush1.msra.mxu0 0.0
        %793 = vmatprep.subr.mxu0 0.0
        %794 = vmatpush1.msra.mxu0 0.0
        %795 = vmatprep.subr.mxu0 0.0
        %796 = vmatpush1.msra.mxu0 0.0
        %797 = vmatprep.subr.mxu0 0.0
        %798 = vmatpush1.msra.mxu0 0.0
        %799 = vmatprep.subr.mxu0 0.0
        %800 = vmatpush1.msra.mxu0 0.0
        %801 = vmatprep.subr.mxu0 0.0
        %802 = vmatpush1.msra.mxu0 0.0
        %803 = vmatprep.subr.mxu0 0.0
        %804 = vmatpush1.msra.mxu0 0.0
        %805 = vmatprep.mubr.f32.mxu0 0.0
        %v806 = vand.u32 %v477, 4294901760
        %v807 = vsub.f32 %v477, %v806
        %v808 = vand.u32 %v807, 4294901760
        %809 = vmatmul.mubr.f32.gmra.mrb[0].mxu0 %v808
        %v810 = vpop.f32.mrb[0].mxu0
        %v811 = vadd.f32 %v729, %v810
        %v812 = vpop.f32.mrb[0].mxu0
        %813 = vmatprep.mubr.f32.mxu0 0.0
        %v814 = vand.u32 %v480, 4294901760
        %v815 = vsub.f32 %v480, %v814
        %v816 = vand.u32 %v815, 4294901760
        %817 = vmatmul.mubr.f32.gmra.mrb[0].mxu0 %v816
        %v818 = vpop.f32.mrb[0].mxu0
        %v819 = vadd.f32 %v736, %v818
        %v820 = vpop.f32.mrb[0].mxu0
        %821 = vdwg.mxu0
        %822 = vmatprep.subr.mxu0 0.0
        %v823 = vand.u32 %v455, 4294901760
        %v824 = vsub.f32 %v455, %v823
        %v825 = vand.u32 %v824, 4294901760
        %826 = vmatpush1.msra.mxu0 %v825
        %827 = vmatprep.subr.mxu0 0.0
        %v828 = vand.u32 %v456, 4294901760
        %v829 = vsub.f32 %v456, %v828
        %v830 = vand.u32 %v829, 4294901760
        %831 = vmatpush1.msra.mxu0 %v830
        %832 = vmatprep.subr.mxu0 0.0
        %833 = vmatpush1.msra.mxu0 0.0
        %834 = vmatprep.subr.mxu0 0.0
        %835 = vmatpush1.msra.mxu0 0.0
        %836 = vmatprep.subr.mxu0 0.0
        %837 = vmatpush1.msra.mxu0 0.0
        %838 = vmatprep.subr.mxu0 0.0
        %839 = vmatpush1.msra.mxu0 0.0
        %840 = vmatprep.subr.mxu0 0.0
        %841 = vmatpush1.msra.mxu0 0.0
        %842 = vmatprep.subr.mxu0 0.0
        %843 = vmatpush1.msra.mxu0 0.0
        %844 = vmatprep.subr.mxu0 0.0
        %845 = vmatpush1.msra.mxu0 0.0
        %846 = vmatprep.subr.mxu0 0.0
        %847 = vmatpush1.msra.mxu0 0.0
        %848 = vmatprep.subr.mxu0 0.0
        %849 = vmatpush1.msra.mxu0 0.0
        %850 = vmatprep.subr.mxu0 0.0
        %851 = vmatpush1.msra.mxu0 0.0
        %852 = vmatprep.subr.mxu0 0.0
        %853 = vmatpush1.msra.mxu0 0.0
        %854 = vmatprep.subr.mxu0 0.0
        %855 = vmatpush1.msra.mxu0 0.0
        %856 = vmatprep.subr.mxu0 0.0
        %857 = vmatpush1.msra.mxu0 0.0
        %858 = vmatprep.subr.mxu0 0.0
        %859 = vmatpush1.msra.mxu0 0.0
        %860 = vmatprep.subr.mxu0 0.0
        %861 = vmatpush1.msra.mxu0 0.0
        %862 = vmatprep.subr.mxu0 0.0
        %863 = vmatpush1.msra.mxu0 0.0
        %864 = vmatprep.subr.mxu0 0.0
        %865 = vmatpush1.msra.mxu0 0.0
        %866 = vmatprep.subr.mxu0 0.0
        %867 = vmatpush1.msra.mxu0 0.0
        %868 = vmatprep.subr.mxu0 0.0
        %869 = vmatpush1.msra.mxu0 0.0
        %870 = vmatprep.subr.mxu0 0.0
        %871 = vmatpush1.msra.mxu0 0.0
        %872 = vmatprep.subr.mxu0 0.0
        %873 = vmatpush1.msra.mxu0 0.0
        %874 = vmatprep.subr.mxu0 0.0
        %875 = vmatpush1.msra.mxu0 0.0
        %876 = vmatprep.subr.mxu0 0.0
        %877 = vmatpush1.msra.mxu0 0.0
        %878 = vmatprep.subr.mxu0 0.0
        %879 = vmatpush1.msra.mxu0 0.0
        %880 = vmatprep.subr.mxu0 0.0
        %881 = vmatpush1.msra.mxu0 0.0
        %882 = vmatprep.subr.mxu0 0.0
        %883 = vmatpush1.msra.mxu0 0.0
        %884 = vmatprep.subr.mxu0 0.0
        %885 = vmatpush1.msra.mxu0 0.0
        %886 = vmatprep.subr.mxu0 0.0
        %887 = vmatpush1.msra.mxu0 0.0
        %888 = vmatprep.subr.mxu0 0.0
        %889 = vmatpush1.msra.mxu0 0.0
        %890 = vmatprep.subr.mxu0 0.0
        %891 = vmatpush1.msra.mxu0 0.0
        %892 = vmatprep.mubr.f32.mxu0 0.0
        %v893 = vand.u32 %v477, 4294901760
        %894 = vmatmul.mubr.f32.gmra.mrb[0].mxu0 %v893
        %v895 = vpop.f32.mrb[0].mxu0
        %v896 = vadd.f32 %v811, %v895
        %v897 = vpop.f32.mrb[0].mxu0
        %898 = vmatprep.mubr.f32.mxu0 0.0
        %v899 = vand.u32 %v480, 4294901760
        %900 = vmatmul.mubr.f32.gmra.mrb[0].mxu0 %v899
        %v901 = vpop.f32.mrb[0].mxu0
        %v902 = vadd.f32 %v819, %v901
        %v903 = vpop.f32.mrb[0].mxu0
        %904 = vdwg.mxu0
        %905 = vmatprep.subr.mxu0 0.0
        %v906 = vand.u32 %v455, 4294901760
        %907 = vmatpush1.msra.mxu0 %v906
        %908 = vmatprep.subr.mxu0 0.0
        %v909 = vand.u32 %v456, 4294901760
        %910 = vmatpush1.msra.mxu0 %v909
        %911 = vmatprep.subr.mxu0 0.0
        %912 = vmatpush1.msra.mxu0 0.0
        %913 = vmatprep.subr.mxu0 0.0
        %914 = vmatpush1.msra.mxu0 0.0
        %915 = vmatprep.subr.mxu0 0.0
        %916 = vmatpush1.msra.mxu0 0.0
        %917 = vmatprep.subr.mxu0 0.0
        %918 = vmatpush1.msra.mxu0 0.0
        %919 = vmatprep.subr.mxu0 0.0
        %920 = vmatpush1.msra.mxu0 0.0
        %921 = vmatprep.subr.mxu0 0.0
        %922 = vmatpush1.msra.mxu0 0.0
        %923 = vmatprep.subr.mxu0 0.0
        %924 = vmatpush1.msra.mxu0 0.0
        %925 = vmatprep.subr.mxu0 0.0
        %926 = vmatpush1.msra.mxu0 0.0
        %927 = vmatprep.subr.mxu0 0.0
        %928 = vmatpush1.msra.mxu0 0.0
        %929 = vmatprep.subr.mxu0 0.0
        %930 = vmatpush1.msra.mxu0 0.0
        %931 = vmatprep.subr.mxu0 0.0
        %932 = vmatpush1.msra.mxu0 0.0
        %933 = vmatprep.subr.mxu0 0.0
        %934 = vmatpush1.msra.mxu0 0.0
        %935 = vmatprep.subr.mxu0 0.0
        %936 = vmatpush1.msra.mxu0 0.0
        %937 = vmatprep.subr.mxu0 0.0
        %938 = vmatpush1.msra.mxu0 0.0
        %939 = vmatprep.subr.mxu0 0.0
        %940 = vmatpush1.msra.mxu0 0.0
        %941 = vmatprep.subr.mxu0 0.0
        %942 = vmatpush1.msra.mxu0 0.0
        %943 = vmatprep.subr.mxu0 0.0
        %944 = vmatpush1.msra.mxu0 0.0
        %945 = vmatprep.subr.mxu0 0.0
        %946 = vmatpush1.msra.mxu0 0.0
        %947 = vmatprep.subr.mxu0 0.0
        %948 = vmatpush1.msra.mxu0 0.0
        %949 = vmatprep.subr.mxu0 0.0
        %950 = vmatpush1.msra.mxu0 0.0
        %951 = vmatprep.subr.mxu0 0.0
        %952 = vmatpush1.msra.mxu0 0.0
        %953 = vmatprep.subr.mxu0 0.0
        %954 = vmatpush1.msra.mxu0 0.0
        %955 = vmatprep.subr.mxu0 0.0
        %956 = vmatpush1.msra.mxu0 0.0
        %957 = vmatprep.subr.mxu0 0.0
        %958 = vmatpush1.msra.mxu0 0.0
        %959 = vmatprep.subr.mxu0 0.0
        %960 = vmatpush1.msra.mxu0 0.0
        %961 = vmatprep.subr.mxu0 0.0
        %962 = vmatpush1.msra.mxu0 0.0
        %963 = vmatprep.subr.mxu0 0.0
        %964 = vmatpush1.msra.mxu0 0.0
        %965 = vmatprep.subr.mxu0 0.0
        %966 = vmatpush1.msra.mxu0 0.0
        %967 = vmatprep.subr.mxu0 0.0
        %968 = vmatpush1.msra.mxu0 0.0
        %969 = vmatprep.subr.mxu0 0.0
        %970 = vmatpush1.msra.mxu0 0.0
        %971 = vmatprep.mubr.f32.mxu0 0.0
        %v972 = vand.u32 %v477, 4294901760
        %973 = vmatmul.mubr.f32.gmra.mrb[0].mxu0 %v972
        %v974 = vpop.f32.mrb[0].mxu0
        %v975 = vadd.f32 %v896, %v974
        %v976 = vpop.f32.mrb[0].mxu0
        %977 = vmatprep.mubr.f32.mxu0 0.0
        %v978 = vand.u32 %v480, 4294901760
        %979 = vmatmul.mubr.f32.gmra.mrb[0].mxu0 %v978
        %v980 = vpop.f32.mrb[0].mxu0
        %v981 = vadd.f32 %v902, %v980
        %v982 = vpop.f32.mrb[0].mxu0
        %983 = vdwg.mxu0
        %v985 = vsel %vm463, %v975, 0
        %v988 = vsel %vm463, %v981, 0
        %990 = vmatprep.subr.mxu0 0.0
        %v991 = vand.u32 %v453, 4294901760
        %992 = vmatpush1.msra.mxu0 %v991
        %993 = vmatprep.subr.mxu0 0.0
        %v994 = vand.u32 %v454, 4294901760
        %995 = vmatpush1.msra.mxu0 %v994
        %996 = vmatprep.subr.mxu0 0.0
        %997 = vmatpush1.msra.mxu0 0.0
        %998 = vmatprep.subr.mxu0 0.0
        %999 = vmatpush1.msra.mxu0 0.0
        %1000 = vmatprep.subr.mxu0 0.0
        %1001 = vmatpush1.msra.mxu0 0.0
        %1002 = vmatprep.subr.mxu0 0.0
        %1003 = vmatpush1.msra.mxu0 0.0
        %1004 = vmatprep.subr.mxu0 0.0
        %1005 = vmatpush1.msra.mxu0 0.0
        %1006 = vmatprep.subr.mxu0 0.0
        %1007 = vmatpush1.msra.mxu0 0.0
        %1008 = vmatprep.subr.mxu0 0.0
        %1009 = vmatpush1.msra.mxu0 0.0
        %1010 = vmatprep.subr.mxu0 0.0
        %1011 = vmatpush1.msra.mxu0 0.0
        %1012 = vmatprep.subr.mxu0 0.0
        %1013 = vmatpush1.msra.mxu0 0.0
        %1014 = vmatprep.subr.mxu0 0.0
        %1015 = vmatpush1.msra.mxu0 0.0
        %1016 = vmatprep.subr.mxu0 0.0
        %1017 = vmatpush1.msra.mxu0 0.0
        %1018 = vmatprep.subr.mxu0 0.0
        %1019 = vmatpush1.msra.mxu0 0.0
        %1020 = vmatprep.subr.mxu0 0.0
        %1021 = vmatpush1.msra.mxu0 0.0
        %1022 = vmatprep.subr.mxu0 0.0
        %1023 = vmatpush1.msra.mxu0 0.0
        %1024 = vmatprep.subr.mxu0 0.0
        %1025 = vmatpush1.msra.mxu0 0.0
        %1026 = vmatprep.subr.mxu0 0.0
        %1027 = vmatpush1.msra.mxu0 0.0
        %1028 = vmatprep.subr.mxu0 0.0
        %1029 = vmatpush1.msra.mxu0 0.0
        %1030 = vmatprep.subr.mxu0 0.0
        %1031 = vmatpush1.msra.mxu0 0.0
        %1032 = vmatprep.subr.mxu0 0.0
        %1033 = vmatpush1.msra.mxu0 0.0
        %1034 = vmatprep.subr.mxu0 0.0
        %1035 = vmatpush1.msra.mxu0 0.0
        %1036 = vmatprep.subr.mxu0 0.0
        %1037 = vmatpush1.msra.mxu0 0.0
        %1038 = vmatprep.subr.mxu0 0.0
        %1039 = vmatpush1.msra.mxu0 0.0
        %1040 = vmatprep.subr.mxu0 0.0
        %1041 = vmatpush1.msra.mxu0 0.0
        %1042 = vmatprep.subr.mxu0 0.0
        %1043 = vmatpush1.msra.mxu0 0.0
        %1044 = vmatprep.subr.mxu0 0.0
        %1045 = vmatpush1.msra.mxu0 0.0
        %1046 = vmatprep.subr.mxu0 0.0
        %1047 = vmatpush1.msra.mxu0 0.0
        %1048 = vmatprep.subr.mxu0 0.0
        %1049 = vmatpush1.msra.mxu0 0.0
        %1050 = vmatprep.subr.mxu0 0.0
        %1051 = vmatpush1.msra.mxu0 0.0
        %1052 = vmatprep.subr.mxu0 0.0
        %1053 = vmatpush1.msra.mxu0 0.0
        %1054 = vmatprep.subr.mxu0 0.0
        %1055 = vmatpush1.msra.mxu0 0.0
        %1056 = vmatprep.mubr.f32.mxu0 0.0
        %v1057 = vand.u32 %v985, 4294901760
        %v1058 = vsub.f32 %v985, %v1057
        %v1059 = vand.u32 %v1058, 4294901760
        %v1060 = vsub.f32 %v1058, %v1059
        %v1061 = vand.u32 %v1060, 4294901760
        %1062 = vmatmul.mubr.f32.gmra.mrb[0].mxu0 %v1061
        %v1063 = vpop.f32.mrb[0].mxu0
        %v1064 = vadd.f32 0.0, %v1063
        %v1065 = vpop.f32.mrb[0].mxu0
        %1066 = vmatprep.mubr.f32.mxu0 0.0
        %v1067 = vand.u32 %v988, 4294901760
        %v1068 = vsub.f32 %v988, %v1067
        %v1069 = vand.u32 %v1068, 4294901760
        %v1070 = vsub.f32 %v1068, %v1069
        %v1071 = vand.u32 %v1070, 4294901760
        %1072 = vmatmul.mubr.f32.gmra.mrb[0].mxu0 %v1071
        %v1073 = vpop.f32.mrb[0].mxu0
        %v1074 = vadd.f32 0.0, %v1073
        %v1075 = vpop.f32.mrb[0].mxu0
        %1076 = vdwg.mxu0
        %1077 = vmatprep.subr.mxu0 0.0
        %v1078 = vand.u32 %v453, 4294901760
        %v1079 = vsub.f32 %v453, %v1078
        %v1080 = vand.u32 %v1079, 4294901760
        %v1081 = vsub.f32 %v1079, %v1080
        %v1082 = vand.u32 %v1081, 4294901760
        %1083 = vmatpush1.msra.mxu0 %v1082
        %1084 = vmatprep.subr.mxu0 0.0
        %v1085 = vand.u32 %v454, 4294901760
        %v1086 = vsub.f32 %v454, %v1085
        %v1087 = vand.u32 %v1086, 4294901760
        %v1088 = vsub.f32 %v1086, %v1087
        %v1089 = vand.u32 %v1088, 4294901760
        %1090 = vmatpush1.msra.mxu0 %v1089
        %1091 = vmatprep.subr.mxu0 0.0
        %1092 = vmatpush1.msra.mxu0 0.0
        %1093 = vmatprep.subr.mxu0 0.0
        %1094 = vmatpush1.msra.mxu0 0.0
        %1095 = vmatprep.subr.mxu0 0.0
        %1096 = vmatpush1.msra.mxu0 0.0
        %1097 = vmatprep.subr.mxu0 0.0
        %1098 = vmatpush1.msra.mxu0 0.0
        %1099 = vmatprep.subr.mxu0 0.0
        %1100 = vmatpush1.msra.mxu0 0.0
        %1101 = vmatprep.subr.mxu0 0.0
        %1102 = vmatpush1.msra.mxu0 0.0
        %1103 = vmatprep.subr.mxu0 0.0
        %1104 = vmatpush1.msra.mxu0 0.0
        %1105 = vmatprep.subr.mxu0 0.0
        %1106 = vmatpush1.msra.mxu0 0.0
        %1107 = vmatprep.subr.mxu0 0.0
        %1108 = vmatpush1.msra.mxu0 0.0
        %1109 = vmatprep.subr.mxu0 0.0
        %1110 = vmatpush1.msra.mxu0 0.0
        %1111 = vmatprep.subr.mxu0 0.0
        %1112 = vmatpush1.msra.mxu0 0.0
        %1113 = vmatprep.subr.mxu0 0.0
        %1114 = vmatpush1.msra.mxu0 0.0
        %1115 = vmatprep.subr.mxu0 0.0
        %1116 = vmatpush1.msra.mxu0 0.0
        %1117 = vmatprep.subr.mxu0 0.0
        %1118 = vmatpush1.msra.mxu0 0.0
        %1119 = vmatprep.subr.mxu0 0.0
        %1120 = vmatpush1.msra.mxu0 0.0
        %1121 = vmatprep.subr.mxu0 0.0
        %1122 = vmatpush1.msra.mxu0 0.0
        %1123 = vmatprep.subr.mxu0 0.0
        %1124 = vmatpush1.msra.mxu0 0.0
        %1125 = vmatprep.subr.mxu0 0.0
        %1126 = vmatpush1.msra.mxu0 0.0
        %1127 = vmatprep.subr.mxu0 0.0
        %1128 = vmatpush1.msra.mxu0 0.0
        %1129 = vmatprep.subr.mxu0 0.0
        %1130 = vmatpush1.msra.mxu0 0.0
        %1131 = vmatprep.subr.mxu0 0.0
        %1132 = vmatpush1.msra.mxu0 0.0
        %1133 = vmatprep.subr.mxu0 0.0
        %1134 = vmatpush1.msra.mxu0 0.0
        %1135 = vmatprep.subr.mxu0 0.0
        %1136 = vmatpush1.msra.mxu0 0.0
        %1137 = vmatprep.subr.mxu0 0.0
        %1138 = vmatpush1.msra.mxu0 0.0
        %1139 = vmatprep.subr.mxu0 0.0
        %1140 = vmatpush1.msra.mxu0 0.0
        %1141 = vmatprep.subr.mxu0 0.0
        %1142 = vmatpush1.msra.mxu0 0.0
        %1143 = vmatprep.subr.mxu0 0.0
        %1144 = vmatpush1.msra.mxu0 0.0
        %1145 = vmatprep.subr.mxu0 0.0
        %1146 = vmatpush1.msra.mxu0 0.0
        %1147 = vmatprep.subr.mxu0 0.0
        %1148 = vmatpush1.msra.mxu0 0.0
        %1149 = vmatprep.subr.mxu0 0.0
        %1150 = vmatpush1.msra.mxu0 0.0
        %1151 = vmatprep.mubr.f32.mxu0 0.0
        %v1152 = vand.u32 %v985, 4294901760
        %1153 = vmatmul.mubr.f32.gmra.mrb[0].mxu0 %v1152
        %v1154 = vpop.f32.mrb[0].mxu0
        %v1155 = vadd.f32 %v1064, %v1154
        %v1156 = vpop.f32.mrb[0].mxu0
        %1157 = vmatprep.mubr.f32.mxu0 0.0
        %v1158 = vand.u32 %v988, 4294901760
        %1159 = vmatmul.mubr.f32.gmra.mrb[0].mxu0 %v1158
        %v1160 = vpop.f32.mrb[0].mxu0
        %v1161 = vadd.f32 %v1074, %v1160
        %v1162 = vpop.f32.mrb[0].mxu0
        %1163 = vdwg.mxu0
        %1164 = vmatprep.subr.mxu0 0.0
        %v1165 = vand.u32 %v453, 4294901760
        %v1166 = vsub.f32 %v453, %v1165
        %1167 = vmatpush1.msra.mxu0 %v1166
        %1168 = vmatprep.subr.mxu0 0.0
        %v1169 = vand.u32 %v454, 4294901760
        %v1170 = vsub.f32 %v454, %v1169
        %1171 = vmatpush1.msra.mxu0 %v1170
        %1172 = vmatprep.subr.mxu0 0.0
        %1173 = vmatpush1.msra.mxu0 0.0
        %1174 = vmatprep.subr.mxu0 0.0
        %1175 = vmatpush1.msra.mxu0 0.0
        %1176 = vmatprep.subr.mxu0 0.0
        %1177 = vmatpush1.msra.mxu0 0.0
        %1178 = vmatprep.subr.mxu0 0.0
        %1179 = vmatpush1.msra.mxu0 0.0
        %1180 = vmatprep.subr.mxu0 0.0
        %1181 = vmatpush1.msra.mxu0 0.0
        %1182 = vmatprep.subr.mxu0 0.0
        %1183 = vmatpush1.msra.mxu0 0.0
        %1184 = vmatprep.subr.mxu0 0.0
        %1185 = vmatpush1.msra.mxu0 0.0
        %1186 = vmatprep.subr.mxu0 0.0
        %1187 = vmatpush1.msra.mxu0 0.0
        %1188 = vmatprep.subr.mxu0 0.0
        %1189 = vmatpush1.msra.mxu0 0.0
        %1190 = vmatprep.subr.mxu0 0.0
        %1191 = vmatpush1.msra.mxu0 0.0
        %1192 = vmatprep.subr.mxu0 0.0
        %1193 = vmatpush1.msra.mxu0 0.0
        %1194 = vmatprep.subr.mxu0 0.0
        %1195 = vmatpush1.msra.mxu0 0.0
        %1196 = vmatprep.subr.mxu0 0.0
        %1197 = vmatpush1.msra.mxu0 0.0
        %1198 = vmatprep.subr.mxu0 0.0
        %1199 = vmatpush1.msra.mxu0 0.0
        %1200 = vmatprep.subr.mxu0 0.0
        %1201 = vmatpush1.msra.mxu0 0.0
        %1202 = vmatprep.subr.mxu0 0.0
        %1203 = vmatpush1.msra.mxu0 0.0
        %1204 = vmatprep.subr.mxu0 0.0
        %1205 = vmatpush1.msra.mxu0 0.0
        %1206 = vmatprep.subr.mxu0 0.0
        %1207 = vmatpush1.msra.mxu0 0.0
        %1208 = vmatprep.subr.mxu0 0.0
        %1209 = vmatpush1.msra.mxu0 0.0
        %1210 = vmatprep.subr.mxu0 0.0
        %1211 = vmatpush1.msra.mxu0 0.0
        %1212 = vmatprep.subr.mxu0 0.0
        %1213 = vmatpush1.msra.mxu0 0.0
        %1214 = vmatprep.subr.mxu0 0.0
        %1215 = vmatpush1.msra.mxu0 0.0
        %1216 = vmatprep.subr.mxu0 0.0
        %1217 = vmatpush1.msra.mxu0 0.0
        %1218 = vmatprep.subr.mxu0 0.0
        %1219 = vmatpush1.msra.mxu0 0.0
        %1220 = vmatprep.subr.mxu0 0.0
        %1221 = vmatpush1.msra.mxu0 0.0
        %1222 = vmatprep.subr.mxu0 0.0
        %1223 = vmatpush1.msra.mxu0 0.0
        %1224 = vmatprep.subr.mxu0 0.0
        %1225 = vmatpush1.msra.mxu0 0.0
        %1226 = vmatprep.subr.mxu0 0.0
        %1227 = vmatpush1.msra.mxu0 0.0
        %1228 = vmatprep.subr.mxu0 0.0
        %1229 = vmatpush1.msra.mxu0 0.0
        %1230 = vmatprep.subr.mxu0 0.0
        %1231 = vmatpush1.msra.mxu0 0.0
        %1232 = vmatprep.mubr.f32.mxu0 0.0
        %v1233 = vand.u32 %v985, 4294901760
        %v1234 = vsub.f32 %v985, %v1233
        %1235 = vmatmul.mubr.f32.gmra.mrb[0].mxu0 %v1234
        %v1236 = vpop.f32.mrb[0].mxu0
        %v1237 = vadd.f32 %v1155, %v1236
        %v1238 = vpop.f32.mrb[0].mxu0
        %1239 = vmatprep.mubr.f32.mxu0 0.0
        %v1240 = vand.u32 %v988, 4294901760
        %v1241 = vsub.f32 %v988, %v1240
        %1242 = vmatmul.mubr.f32.gmra.mrb[0].mxu0 %v1241
        %v1243 = vpop.f32.mrb[0].mxu0
        %v1244 = vadd.f32 %v1161, %v1243
        %v1245 = vpop.f32.mrb[0].mxu0
        %1246 = vdwg.mxu0
        %1247 = vmatprep.subr.mxu0 0.0
        %v1248 = vand.u32 %v453, 4294901760
        %1249 = vmatpush1.msra.mxu0 %v1248
        %1250 = vmatprep.subr.mxu0 0.0
        %v1251 = vand.u32 %v454, 4294901760
        %1252 = vmatpush1.msra.mxu0 %v1251
        %1253 = vmatprep.subr.mxu0 0.0
        %1254 = vmatpush1.msra.mxu0 0.0
        %1255 = vmatprep.subr.mxu0 0.0
        %1256 = vmatpush1.msra.mxu0 0.0
        %1257 = vmatprep.subr.mxu0 0.0
        %1258 = vmatpush1.msra.mxu0 0.0
        %1259 = vmatprep.subr.mxu0 0.0
        %1260 = vmatpush1.msra.mxu0 0.0
        %1261 = vmatprep.subr.mxu0 0.0
        %1262 = vmatpush1.msra.mxu0 0.0
        %1263 = vmatprep.subr.mxu0 0.0
        %1264 = vmatpush1.msra.mxu0 0.0
        %1265 = vmatprep.subr.mxu0 0.0
        %1266 = vmatpush1.msra.mxu0 0.0
        %1267 = vmatprep.subr.mxu0 0.0
        %1268 = vmatpush1.msra.mxu0 0.0
        %1269 = vmatprep.subr.mxu0 0.0
        %1270 = vmatpush1.msra.mxu0 0.0
        %1271 = vmatprep.subr.mxu0 0.0
        %1272 = vmatpush1.msra.mxu0 0.0
        %1273 = vmatprep.subr.mxu0 0.0
        %1274 = vmatpush1.msra.mxu0 0.0
        %1275 = vmatprep.subr.mxu0 0.0
        %1276 = vmatpush1.msra.mxu0 0.0
        %1277 = vmatprep.subr.mxu0 0.0
        %1278 = vmatpush1.msra.mxu0 0.0
        %1279 = vmatprep.subr.mxu0 0.0
        %1280 = vmatpush1.msra.mxu0 0.0
        %1281 = vmatprep.subr.mxu0 0.0
        %1282 = vmatpush1.msra.mxu0 0.0
        %1283 = vmatprep.subr.mxu0 0.0
        %1284 = vmatpush1.msra.mxu0 0.0
        %1285 = vmatprep.subr.mxu0 0.0
        %1286 = vmatpush1.msra.mxu0 0.0
        %1287 = vmatprep.subr.mxu0 0.0
        %1288 = vmatpush1.msra.mxu0 0.0
        %1289 = vmatprep.subr.mxu0 0.0
        %1290 = vmatpush1.msra.mxu0 0.0
        %1291 = vmatprep.subr.mxu0 0.0
        %1292 = vmatpush1.msra.mxu0 0.0
        %1293 = vmatprep.subr.mxu0 0.0
        %1294 = vmatpush1.msra.mxu0 0.0
        %1295 = vmatprep.subr.mxu0 0.0
        %1296 = vmatpush1.msra.mxu0 0.0
        %1297 = vmatprep.subr.mxu0 0.0
        %1298 = vmatpush1.msra.mxu0 0.0
        %1299 = vmatprep.subr.mxu0 0.0
        %1300 = vmatpush1.msra.mxu0 0.0
        %1301 = vmatprep.subr.mxu0 0.0
        %1302 = vmatpush1.msra.mxu0 0.0
        %1303 = vmatprep.subr.mxu0 0.0
        %1304 = vmatpush1.msra.mxu0 0.0
        %1305 = vmatprep.subr.mxu0 0.0
        %1306 = vmatpush1.msra.mxu0 0.0
        %1307 = vmatprep.subr.mxu0 0.0
        %1308 = vmatpush1.msra.mxu0 0.0
        %1309 = vmatprep.subr.mxu0 0.0
        %1310 = vmatpush1.msra.mxu0 0.0
        %1311 = vmatprep.subr.mxu0 0.0
        %1312 = vmatpush1.msra.mxu0 0.0
        %1313 = vmatprep.mubr.f32.mxu0 0.0
        %v1314 = vand.u32 %v985, 4294901760
        %v1315 = vsub.f32 %v985, %v1314
        %v1316 = vand.u32 %v1315, 4294901760
        %1317 = vmatmul.mubr.f32.gmra.mrb[0].mxu0 %v1316
        %v1318 = vpop.f32.mrb[0].mxu0
        %v1319 = vadd.f32 %v1237, %v1318
        %v1320 = vpop.f32.mrb[0].mxu0
        %1321 = vmatprep.mubr.f32.mxu0 0.0
        %v1322 = vand.u32 %v988, 4294901760
        %v1323 = vsub.f32 %v988, %v1322
        %v1324 = vand.u32 %v1323, 4294901760
        %1325 = vmatmul.mubr.f32.gmra.mrb[0].mxu0 %v1324
        %v1326 = vpop.f32.mrb[0].mxu0
        %v1327 = vadd.f32 %v1244, %v1326
        %v1328 = vpop.f32.mrb[0].mxu0
        %1329 = vdwg.mxu0
        %1330 = vmatprep.subr.mxu0 0.0
        %v1331 = vand.u32 %v453, 4294901760
        %v1332 = vsub.f32 %v453, %v1331
        %v1333 = vand.u32 %v1332, 4294901760
        %1334 = vmatpush1.msra.mxu0 %v1333
        %1335 = vmatprep.subr.mxu0 0.0
        %v1336 = vand.u32 %v454, 4294901760
        %v1337 = vsub.f32 %v454, %v1336
        %v1338 = vand.u32 %v1337, 4294901760
        %1339 = vmatpush1.msra.mxu0 %v1338
        %1340 = vmatprep.subr.mxu0 0.0
        %1341 = vmatpush1.msra.mxu0 0.0
        %1342 = vmatprep.subr.mxu0 0.0
        %1343 = vmatpush1.msra.mxu0 0.0
        %1344 = vmatprep.subr.mxu0 0.0
        %1345 = vmatpush1.msra.mxu0 0.0
        %1346 = vmatprep.subr.mxu0 0.0
        %1347 = vmatpush1.msra.mxu0 0.0
        %1348 = vmatprep.subr.mxu0 0.0
        %1349 = vmatpush1.msra.mxu0 0.0
        %1350 = vmatprep.subr.mxu0 0.0
        %1351 = vmatpush1.msra.mxu0 0.0
        %1352 = vmatprep.subr.mxu0 0.0
        %1353 = vmatpush1.msra.mxu0 0.0
        %1354 = vmatprep.subr.mxu0 0.0
        %1355 = vmatpush1.msra.mxu0 0.0
        %1356 = vmatprep.subr.mxu0 0.0
        %1357 = vmatpush1.msra.mxu0 0.0
        %1358 = vmatprep.subr.mxu0 0.0
        %1359 = vmatpush1.msra.mxu0 0.0
        %1360 = vmatprep.subr.mxu0 0.0
        %1361 = vmatpush1.msra.mxu0 0.0
        %1362 = vmatprep.subr.mxu0 0.0
        %1363 = vmatpush1.msra.mxu0 0.0
        %1364 = vmatprep.subr.mxu0 0.0
        %1365 = vmatpush1.msra.mxu0 0.0
        %1366 = vmatprep.subr.mxu0 0.0
        %1367 = vmatpush1.msra.mxu0 0.0
        %1368 = vmatprep.subr.mxu0 0.0
        %1369 = vmatpush1.msra.mxu0 0.0
        %1370 = vmatprep.subr.mxu0 0.0
        %1371 = vmatpush1.msra.mxu0 0.0
        %1372 = vmatprep.subr.mxu0 0.0
        %1373 = vmatpush1.msra.mxu0 0.0
        %1374 = vmatprep.subr.mxu0 0.0
        %1375 = vmatpush1.msra.mxu0 0.0
        %1376 = vmatprep.subr.mxu0 0.0
        %1377 = vmatpush1.msra.mxu0 0.0
        %1378 = vmatprep.subr.mxu0 0.0
        %1379 = vmatpush1.msra.mxu0 0.0
        %1380 = vmatprep.subr.mxu0 0.0
        %1381 = vmatpush1.msra.mxu0 0.0
        %1382 = vmatprep.subr.mxu0 0.0
        %1383 = vmatpush1.msra.mxu0 0.0
        %1384 = vmatprep.subr.mxu0 0.0
        %1385 = vmatpush1.msra.mxu0 0.0
        %1386 = vmatprep.subr.mxu0 0.0
        %1387 = vmatpush1.msra.mxu0 0.0
        %1388 = vmatprep.subr.mxu0 0.0
        %1389 = vmatpush1.msra.mxu0 0.0
        %1390 = vmatprep.subr.mxu0 0.0
        %1391 = vmatpush1.msra.mxu0 0.0
        %1392 = vmatprep.subr.mxu0 0.0
        %1393 = vmatpush1.msra.mxu0 0.0
        %1394 = vmatprep.subr.mxu0 0.0
        %1395 = vmatpush1.msra.mxu0 0.0
        %1396 = vmatprep.subr.mxu0 0.0
        %1397 = vmatpush1.msra.mxu0 0.0
        %1398 = vmatprep.subr.mxu0 0.0
        %1399 = vmatpush1.msra.mxu0 0.0
        %1400 = vmatprep.mubr.f32.mxu0 0.0
        %v1401 = vand.u32 %v985, 4294901760
        %1402 = vmatmul.mubr.f32.gmra.mrb[0].mxu0 %v1401
        %v1403 = vpop.f32.mrb[0].mxu0
        %v1404 = vadd.f32 %v1319, %v1403
        %v1405 = vpop.f32.mrb[0].mxu0
        %1406 = vmatprep.mubr.f32.mxu0 0.0
        %v1407 = vand.u32 %v988, 4294901760
        %1408 = vmatmul.mubr.f32.gmra.mrb[0].mxu0 %v1407
        %v1409 = vpop.f32.mrb[0].mxu0
        %v1410 = vadd.f32 %v1327, %v1409
        %v1411 = vpop.f32.mrb[0].mxu0
        %1412 = vdwg.mxu0
        %1413 = vmatprep.subr.mxu0 0.0
        %v1414 = vand.u32 %v453, 4294901760
        %1415 = vmatpush1.msra.mxu0 %v1414
        %1416 = vmatprep.subr.mxu0 0.0
        %v1417 = vand.u32 %v454, 4294901760
        %1418 = vmatpush1.msra.mxu0 %v1417
        %1419 = vmatprep.subr.mxu0 0.0
        %1420 = vmatpush1.msra.mxu0 0.0
        %1421 = vmatprep.subr.mxu0 0.0
        %1422 = vmatpush1.msra.mxu0 0.0
        %1423 = vmatprep.subr.mxu0 0.0
        %1424 = vmatpush1.msra.mxu0 0.0
        %1425 = vmatprep.subr.mxu0 0.0
        %1426 = vmatpush1.msra.mxu0 0.0
        %1427 = vmatprep.subr.mxu0 0.0
        %1428 = vmatpush1.msra.mxu0 0.0
        %1429 = vmatprep.subr.mxu0 0.0
        %1430 = vmatpush1.msra.mxu0 0.0
        %1431 = vmatprep.subr.mxu0 0.0
        %1432 = vmatpush1.msra.mxu0 0.0
        %1433 = vmatprep.subr.mxu0 0.0
        %1434 = vmatpush1.msra.mxu0 0.0
        %1435 = vmatprep.subr.mxu0 0.0
        %1436 = vmatpush1.msra.mxu0 0.0
        %1437 = vmatprep.subr.mxu0 0.0
        %1438 = vmatpush1.msra.mxu0 0.0
        %1439 = vmatprep.subr.mxu0 0.0
        %1440 = vmatpush1.msra.mxu0 0.0
        %1441 = vmatprep.subr.mxu0 0.0
        %1442 = vmatpush1.msra.mxu0 0.0
        %1443 = vmatprep.subr.mxu0 0.0
        %1444 = vmatpush1.msra.mxu0 0.0
        %1445 = vmatprep.subr.mxu0 0.0
        %1446 = vmatpush1.msra.mxu0 0.0
        %1447 = vmatprep.subr.mxu0 0.0
        %1448 = vmatpush1.msra.mxu0 0.0
        %1449 = vmatprep.subr.mxu0 0.0
        %1450 = vmatpush1.msra.mxu0 0.0
        %1451 = vmatprep.subr.mxu0 0.0
        %1452 = vmatpush1.msra.mxu0 0.0
        %1453 = vmatprep.subr.mxu0 0.0
        %1454 = vmatpush1.msra.mxu0 0.0
        %1455 = vmatprep.subr.mxu0 0.0
        %1456 = vmatpush1.msra.mxu0 0.0
        %1457 = vmatprep.subr.mxu0 0.0
        %1458 = vmatpush1.msra.mxu0 0.0
        %1459 = vmatprep.subr.mxu0 0.0
        %1460 = vmatpush1.msra.mxu0 0.0
        %1461 = vmatprep.subr.mxu0 0.0
        %1462 = vmatpush1.msra.mxu0 0.0
        %1463 = vmatprep.subr.mxu0 0.0
        %1464 = vmatpush1.msra.mxu0 0.0
        %1465 = vmatprep.subr.mxu0 0.0
        %1466 = vmatpush1.msra.mxu0 0.0
        %1467 = vmatprep.subr.mxu0 0.0
        %1468 = vmatpush1.msra.mxu0 0.0
        %1469 = vmatprep.subr.mxu0 0.0
        %1470 = vmatpush1.msra.mxu0 0.0
        %1471 = vmatprep.subr.mxu0 0.0
        %1472 = vmatpush1.msra.mxu0 0.0
        %1473 = vmatprep.subr.mxu0 0.0
        %1474 = vmatpush1.msra.mxu0 0.0
        %1475 = vmatprep.subr.mxu0 0.0
        %1476 = vmatpush1.msra.mxu0 0.0
        %1477 = vmatprep.subr.mxu0 0.0
        %1478 = vmatpush1.msra.mxu0 0.0
        %1479 = vmatprep.mubr.f32.mxu0 0.0
        %v1480 = vand.u32 %v985, 4294901760
        %1481 = vmatmul.mubr.f32.gmra.mrb[0].mxu0 %v1480
        %v1482 = vpop.f32.mrb[0].mxu0
        %v1483 = vadd.f32 %v1404, %v1482
        %v1484 = vpop.f32.mrb[0].mxu0
        %1485 = vmatprep.mubr.f32.mxu0 0.0
        %v1486 = vand.u32 %v988, 4294901760
        %1487 = vmatmul.mubr.f32.gmra.mrb[0].mxu0 %v1486
        %v1488 = vpop.f32.mrb[0].mxu0
        %v1489 = vadd.f32 %v1410, %v1488
        %v1490 = vpop.f32.mrb[0].mxu0
        %1491 = vdwg.mxu0
        %1492 = vmatprep.subr.mxu0 0.0
        %v1493 = vand.u32 %v457, 4294901760
        %1494 = vmatpush1.msra.mxu0 %v1493
        %1495 = vmatprep.subr.mxu0 0.0
        %v1496 = vand.u32 %v458, 4294901760
        %1497 = vmatpush1.msra.mxu0 %v1496
        %1498 = vmatprep.subr.mxu0 0.0
        %1499 = vmatpush1.msra.mxu0 0.0
        %1500 = vmatprep.subr.mxu0 0.0
        %1501 = vmatpush1.msra.mxu0 0.0
        %1502 = vmatprep.subr.mxu0 0.0
        %1503 = vmatpush1.msra.mxu0 0.0
        %1504 = vmatprep.subr.mxu0 0.0
        %1505 = vmatpush1.msra.mxu0 0.0
        %1506 = vmatprep.subr.mxu0 0.0
        %1507 = vmatpush1.msra.mxu0 0.0
        %1508 = vmatprep.subr.mxu0 0.0
        %1509 = vmatpush1.msra.mxu0 0.0
        %1510 = vmatprep.subr.mxu0 0.0
        %1511 = vmatpush1.msra.mxu0 0.0
        %1512 = vmatprep.subr.mxu0 0.0
        %1513 = vmatpush1.msra.mxu0 0.0
        %1514 = vmatprep.subr.mxu0 0.0
        %1515 = vmatpush1.msra.mxu0 0.0
        %1516 = vmatprep.subr.mxu0 0.0
        %1517 = vmatpush1.msra.mxu0 0.0
        %1518 = vmatprep.subr.mxu0 0.0
        %1519 = vmatpush1.msra.mxu0 0.0
        %1520 = vmatprep.subr.mxu0 0.0
        %1521 = vmatpush1.msra.mxu0 0.0
        %1522 = vmatprep.subr.mxu0 0.0
        %1523 = vmatpush1.msra.mxu0 0.0
        %1524 = vmatprep.subr.mxu0 0.0
        %1525 = vmatpush1.msra.mxu0 0.0
        %1526 = vmatprep.subr.mxu0 0.0
        %1527 = vmatpush1.msra.mxu0 0.0
        %1528 = vmatprep.subr.mxu0 0.0
        %1529 = vmatpush1.msra.mxu0 0.0
        %1530 = vmatprep.subr.mxu0 0.0
        %1531 = vmatpush1.msra.mxu0 0.0
        %1532 = vmatprep.subr.mxu0 0.0
        %1533 = vmatpush1.msra.mxu0 0.0
        %1534 = vmatprep.subr.mxu0 0.0
        %1535 = vmatpush1.msra.mxu0 0.0
        %1536 = vmatprep.subr.mxu0 0.0
        %1537 = vmatpush1.msra.mxu0 0.0
        %1538 = vmatprep.subr.mxu0 0.0
        %1539 = vmatpush1.msra.mxu0 0.0
        %1540 = vmatprep.subr.mxu0 0.0
        %1541 = vmatpush1.msra.mxu0 0.0
        %1542 = vmatprep.subr.mxu0 0.0
        %1543 = vmatpush1.msra.mxu0 0.0
        %1544 = vmatprep.subr.mxu0 0.0
        %1545 = vmatpush1.msra.mxu0 0.0
        %1546 = vmatprep.subr.mxu0 0.0
        %1547 = vmatpush1.msra.mxu0 0.0
        %1548 = vmatprep.subr.mxu0 0.0
        %1549 = vmatpush1.msra.mxu0 0.0
        %1550 = vmatprep.subr.mxu0 0.0
        %1551 = vmatpush1.msra.mxu0 0.0
        %1552 = vmatprep.subr.mxu0 0.0
        %1553 = vmatpush1.msra.mxu0 0.0
        %1554 = vmatprep.subr.mxu0 0.0
        %1555 = vmatpush1.msra.mxu0 0.0
        %1556 = vmatprep.subr.mxu0 0.0
        %1557 = vmatpush1.msra.mxu0 0.0
        %1558 = vmatprep.mubr.f32.mxu0 0.0
        %v1559 = vand.u32 %v477, 4294901760
        %v1560 = vsub.f32 %v477, %v1559
        %v1561 = vand.u32 %v1560, 4294901760
        %v1562 = vsub.f32 %v1560, %v1561
        %v1563 = vand.u32 %v1562, 4294901760
        %1564 = vmatmul.mubr.f32.gmra.mrb[0].mxu0 %v1563
        %v1565 = vpop.f32.mrb[0].mxu0
        %v1566 = vadd.f32 0.0, %v1565
        %v1567 = vpop.f32.mrb[0].mxu0
        %1568 = vmatprep.mubr.f32.mxu0 0.0
        %v1569 = vand.u32 %v480, 4294901760
        %v1570 = vsub.f32 %v480, %v1569
        %v1571 = vand.u32 %v1570, 4294901760
        %v1572 = vsub.f32 %v1570, %v1571
        %v1573 = vand.u32 %v1572, 4294901760
        %1574 = vmatmul.mubr.f32.gmra.mrb[0].mxu0 %v1573
        %v1575 = vpop.f32.mrb[0].mxu0
        %v1576 = vadd.f32 0.0, %v1575
        %v1577 = vpop.f32.mrb[0].mxu0
        %1578 = vdwg.mxu0
        %1579 = vmatprep.subr.mxu0 0.0
        %v1580 = vand.u32 %v457, 4294901760
        %v1581 = vsub.f32 %v457, %v1580
        %v1582 = vand.u32 %v1581, 4294901760
        %v1583 = vsub.f32 %v1581, %v1582
        %v1584 = vand.u32 %v1583, 4294901760
        %1585 = vmatpush1.msra.mxu0 %v1584
        %1586 = vmatprep.subr.mxu0 0.0
        %v1587 = vand.u32 %v458, 4294901760
        %v1588 = vsub.f32 %v458, %v1587
        %v1589 = vand.u32 %v1588, 4294901760
        %v1590 = vsub.f32 %v1588, %v1589
        %v1591 = vand.u32 %v1590, 4294901760
        %1592 = vmatpush1.msra.mxu0 %v1591
        %1593 = vmatprep.subr.mxu0 0.0
        %1594 = vmatpush1.msra.mxu0 0.0
        %1595 = vmatprep.subr.mxu0 0.0
        %1596 = vmatpush1.msra.mxu0 0.0
        %1597 = vmatprep.subr.mxu0 0.0
        %1598 = vmatpush1.msra.mxu0 0.0
        %1599 = vmatprep.subr.mxu0 0.0
        %1600 = vmatpush1.msra.mxu0 0.0
        %1601 = vmatprep.subr.mxu0 0.0
        %1602 = vmatpush1.msra.mxu0 0.0
        %1603 = vmatprep.subr.mxu0 0.0
        %1604 = vmatpush1.msra.mxu0 0.0
        %1605 = vmatprep.subr.mxu0 0.0
        %1606 = vmatpush1.msra.mxu0 0.0
        %1607 = vmatprep.subr.mxu0 0.0
        %1608 = vmatpush1.msra.mxu0 0.0
        %1609 = vmatprep.subr.mxu0 0.0
        %1610 = vmatpush1.msra.mxu0 0.0
        %1611 = vmatprep.subr.mxu0 0.0
        %1612 = vmatpush1.msra.mxu0 0.0
        %1613 = vmatprep.subr.mxu0 0.0
        %1614 = vmatpush1.msra.mxu0 0.0
        %1615 = vmatprep.subr.mxu0 0.0
        %1616 = vmatpush1.msra.mxu0 0.0
        %1617 = vmatprep.subr.mxu0 0.0
        %1618 = vmatpush1.msra.mxu0 0.0
        %1619 = vmatprep.subr.mxu0 0.0
        %1620 = vmatpush1.msra.mxu0 0.0
        %1621 = vmatprep.subr.mxu0 0.0
        %1622 = vmatpush1.msra.mxu0 0.0
        %1623 = vmatprep.subr.mxu0 0.0
        %1624 = vmatpush1.msra.mxu0 0.0
        %1625 = vmatprep.subr.mxu0 0.0
        %1626 = vmatpush1.msra.mxu0 0.0
        %1627 = vmatprep.subr.mxu0 0.0
        %1628 = vmatpush1.msra.mxu0 0.0
        %1629 = vmatprep.subr.mxu0 0.0
        %1630 = vmatpush1.msra.mxu0 0.0
        %1631 = vmatprep.subr.mxu0 0.0
        %1632 = vmatpush1.msra.mxu0 0.0
        %1633 = vmatprep.subr.mxu0 0.0
        %1634 = vmatpush1.msra.mxu0 0.0
        %1635 = vmatprep.subr.mxu0 0.0
        %1636 = vmatpush1.msra.mxu0 0.0
        %1637 = vmatprep.subr.mxu0 0.0
        %1638 = vmatpush1.msra.mxu0 0.0
        %1639 = vmatprep.subr.mxu0 0.0
        %1640 = vmatpush1.msra.mxu0 0.0
        %1641 = vmatprep.subr.mxu0 0.0
        %1642 = vmatpush1.msra.mxu0 0.0
        %1643 = vmatprep.subr.mxu0 0.0
        %1644 = vmatpush1.msra.mxu0 0.0
        %1645 = vmatprep.subr.mxu0 0.0
        %1646 = vmatpush1.msra.mxu0 0.0
        %1647 = vmatprep.subr.mxu0 0.0
        %1648 = vmatpush1.msra.mxu0 0.0
        %1649 = vmatprep.subr.mxu0 0.0
        %1650 = vmatpush1.msra.mxu0 0.0
        %1651 = vmatprep.subr.mxu0 0.0
        %1652 = vmatpush1.msra.mxu0 0.0
        %1653 = vmatprep.mubr.f32.mxu0 0.0
        %v1654 = vand.u32 %v477, 4294901760
        %1655 = vmatmul.mubr.f32.gmra.mrb[0].mxu0 %v1654
        %v1656 = vpop.f32.mrb[0].mxu0
        %v1657 = vadd.f32 %v1566, %v1656
        %v1658 = vpop.f32.mrb[0].mxu0
        %1659 = vmatprep.mubr.f32.mxu0 0.0
        %v1660 = vand.u32 %v480, 4294901760
        %1661 = vmatmul.mubr.f32.gmra.mrb[0].mxu0 %v1660
        %v1662 = vpop.f32.mrb[0].mxu0
        %v1663 = vadd.f32 %v1576, %v1662
        %v1664 = vpop.f32.mrb[0].mxu0
        %1665 = vdwg.mxu0
        %1666 = vmatprep.subr.mxu0 0.0
        %v1667 = vand.u32 %v457, 4294901760
        %v1668 = vsub.f32 %v457, %v1667
        %1669 = vmatpush1.msra.mxu0 %v1668
        %1670 = vmatprep.subr.mxu0 0.0
        %v1671 = vand.u32 %v458, 4294901760
        %v1672 = vsub.f32 %v458, %v1671
        %1673 = vmatpush1.msra.mxu0 %v1672
        %1674 = vmatprep.subr.mxu0 0.0
        %1675 = vmatpush1.msra.mxu0 0.0
        %1676 = vmatprep.subr.mxu0 0.0
        %1677 = vmatpush1.msra.mxu0 0.0
        %1678 = vmatprep.subr.mxu0 0.0
        %1679 = vmatpush1.msra.mxu0 0.0
        %1680 = vmatprep.subr.mxu0 0.0
        %1681 = vmatpush1.msra.mxu0 0.0
        %1682 = vmatprep.subr.mxu0 0.0
        %1683 = vmatpush1.msra.mxu0 0.0
        %1684 = vmatprep.subr.mxu0 0.0
        %1685 = vmatpush1.msra.mxu0 0.0
        %1686 = vmatprep.subr.mxu0 0.0
        %1687 = vmatpush1.msra.mxu0 0.0
        %1688 = vmatprep.subr.mxu0 0.0
        %1689 = vmatpush1.msra.mxu0 0.0
        %1690 = vmatprep.subr.mxu0 0.0
        %1691 = vmatpush1.msra.mxu0 0.0
        %1692 = vmatprep.subr.mxu0 0.0
        %1693 = vmatpush1.msra.mxu0 0.0
        %1694 = vmatprep.subr.mxu0 0.0
        %1695 = vmatpush1.msra.mxu0 0.0
        %1696 = vmatprep.subr.mxu0 0.0
        %1697 = vmatpush1.msra.mxu0 0.0
        %1698 = vmatprep.subr.mxu0 0.0
        %1699 = vmatpush1.msra.mxu0 0.0
        %1700 = vmatprep.subr.mxu0 0.0
        %1701 = vmatpush1.msra.mxu0 0.0
        %1702 = vmatprep.subr.mxu0 0.0
        %1703 = vmatpush1.msra.mxu0 0.0
        %1704 = vmatprep.subr.mxu0 0.0
        %1705 = vmatpush1.msra.mxu0 0.0
        %1706 = vmatprep.subr.mxu0 0.0
        %1707 = vmatpush1.msra.mxu0 0.0
        %1708 = vmatprep.subr.mxu0 0.0
        %1709 = vmatpush1.msra.mxu0 0.0
        %1710 = vmatprep.subr.mxu0 0.0
        %1711 = vmatpush1.msra.mxu0 0.0
        %1712 = vmatprep.subr.mxu0 0.0
        %1713 = vmatpush1.msra.mxu0 0.0
        %1714 = vmatprep.subr.mxu0 0.0
        %1715 = vmatpush1.msra.mxu0 0.0
        %1716 = vmatprep.subr.mxu0 0.0
        %1717 = vmatpush1.msra.mxu0 0.0
        %1718 = vmatprep.subr.mxu0 0.0
        %1719 = vmatpush1.msra.mxu0 0.0
        %1720 = vmatprep.subr.mxu0 0.0
        %1721 = vmatpush1.msra.mxu0 0.0
        %1722 = vmatprep.subr.mxu0 0.0
        %1723 = vmatpush1.msra.mxu0 0.0
        %1724 = vmatprep.subr.mxu0 0.0
        %1725 = vmatpush1.msra.mxu0 0.0
        %1726 = vmatprep.subr.mxu0 0.0
        %1727 = vmatpush1.msra.mxu0 0.0
        %1728 = vmatprep.subr.mxu0 0.0
        %1729 = vmatpush1.msra.mxu0 0.0
        %1730 = vmatprep.subr.mxu0 0.0
        %1731 = vmatpush1.msra.mxu0 0.0
        %1732 = vmatprep.subr.mxu0 0.0
        %1733 = vmatpush1.msra.mxu0 0.0
        %1734 = vmatprep.mubr.f32.mxu0 0.0
        %v1735 = vand.u32 %v477, 4294901760
        %v1736 = vsub.f32 %v477, %v1735
        %1737 = vmatmul.mubr.f32.gmra.mrb[0].mxu0 %v1736
        %v1738 = vpop.f32.mrb[0].mxu0
        %v1739 = vadd.f32 %v1657, %v1738
        %v1740 = vpop.f32.mrb[0].mxu0
        %1741 = vmatprep.mubr.f32.mxu0 0.0
        %v1742 = vand.u32 %v480, 4294901760
        %v1743 = vsub.f32 %v480, %v1742
        %1744 = vmatmul.mubr.f32.gmra.mrb[0].mxu0 %v1743
        %v1745 = vpop.f32.mrb[0].mxu0
        %v1746 = vadd.f32 %v1663, %v1745
        %v1747 = vpop.f32.mrb[0].mxu0
        %1748 = vdwg.mxu0
        %1749 = vmatprep.subr.mxu0 0.0
        %v1750 = vand.u32 %v457, 4294901760
        %1751 = vmatpush1.msra.mxu0 %v1750
        %1752 = vmatprep.subr.mxu0 0.0
        %v1753 = vand.u32 %v458, 4294901760
        %1754 = vmatpush1.msra.mxu0 %v1753
        %1755 = vmatprep.subr.mxu0 0.0
        %1756 = vmatpush1.msra.mxu0 0.0
        %1757 = vmatprep.subr.mxu0 0.0
        %1758 = vmatpush1.msra.mxu0 0.0
        %1759 = vmatprep.subr.mxu0 0.0
        %1760 = vmatpush1.msra.mxu0 0.0
        %1761 = vmatprep.subr.mxu0 0.0
        %1762 = vmatpush1.msra.mxu0 0.0
        %1763 = vmatprep.subr.mxu0 0.0
        %1764 = vmatpush1.msra.mxu0 0.0
        %1765 = vmatprep.subr.mxu0 0.0
        %1766 = vmatpush1.msra.mxu0 0.0
        %1767 = vmatprep.subr.mxu0 0.0
        %1768 = vmatpush1.msra.mxu0 0.0
        %1769 = vmatprep.subr.mxu0 0.0
        %1770 = vmatpush1.msra.mxu0 0.0
        %1771 = vmatprep.subr.mxu0 0.0
        %1772 = vmatpush1.msra.mxu0 0.0
        %1773 = vmatprep.subr.mxu0 0.0
        %1774 = vmatpush1.msra.mxu0 0.0
        %1775 = vmatprep.subr.mxu0 0.0
        %1776 = vmatpush1.msra.mxu0 0.0
        %1777 = vmatprep.subr.mxu0 0.0
        %1778 = vmatpush1.msra.mxu0 0.0
        %1779 = vmatprep.subr.mxu0 0.0
        %1780 = vmatpush1.msra.mxu0 0.0
        %1781 = vmatprep.subr.mxu0 0.0
        %1782 = vmatpush1.msra.mxu0 0.0
        %1783 = vmatprep.subr.mxu0 0.0
        %1784 = vmatpush1.msra.mxu0 0.0
        %1785 = vmatprep.subr.mxu0 0.0
        %1786 = vmatpush1.msra.mxu0 0.0
        %1787 = vmatprep.subr.mxu0 0.0
        %1788 = vmatpush1.msra.mxu0 0.0
        %1789 = vmatprep.subr.mxu0 0.0
        %1790 = vmatpush1.msra.mxu0 0.0
        %1791 = vmatprep.subr.mxu0 0.0
        %1792 = vmatpush1.msra.mxu0 0.0
        %1793 = vmatprep.subr.mxu0 0.0
        %1794 = vmatpush1.msra.mxu0 0.0
        %1795 = vmatprep.subr.mxu0 0.0
        %1796 = vmatpush1.msra.mxu0 0.0
        %1797 = vmatprep.subr.mxu0 0.0
        %1798 = vmatpush1.msra.mxu0 0.0
        %1799 = vmatprep.subr.mxu0 0.0
        %1800 = vmatpush1.msra.mxu0 0.0
        %1801 = vmatprep.subr.mxu0 0.0
        %1802 = vmatpush1.msra.mxu0 0.0
        %1803 = vmatprep.subr.mxu0 0.0
        %1804 = vmatpush1.msra.mxu0 0.0
        %1805 = vmatprep.subr.mxu0 0.0
        %1806 = vmatpush1.msra.mxu0 0.0
        %1807 = vmatprep.subr.mxu0 0.0
        %1808 = vmatpush1.msra.mxu0 0.0
        %1809 = vmatprep.subr.mxu0 0.0
        %1810 = vmatpush1.msra.mxu0 0.0
        %1811 = vmatprep.subr.mxu0 0.0
        %1812 = vmatpush1.msra.mxu0 0.0
        %1813 = vmatprep.subr.mxu0 0.0
        %1814 = vmatpush1.msra.mxu0 0.0
        %1815 = vmatprep.mubr.f32.mxu0 0.0
        %v1816 = vand.u32 %v477, 4294901760
        %v1817 = vsub.f32 %v477, %v1816
        %v1818 = vand.u32 %v1817, 4294901760
        %1819 = vmatmul.mubr.f32.gmra.mrb[0].mxu0 %v1818
        %v1820 = vpop.f32.mrb[0].mxu0
        %v1821 = vadd.f32 %v1739, %v1820
        %v1822 = vpop.f32.mrb[0].mxu0
        %1823 = vmatprep.mubr.f32.mxu0 0.0
        %v1824 = vand.u32 %v480, 4294901760
        %v1825 = vsub.f32 %v480, %v1824
        %v1826 = vand.u32 %v1825, 4294901760
        %1827 = vmatmul.mubr.f32.gmra.mrb[0].mxu0 %v1826
        %v1828 = vpop.f32.mrb[0].mxu0
        %v1829 = vadd.f32 %v1746, %v1828
        %v1830 = vpop.f32.mrb[0].mxu0
        %1831 = vdwg.mxu0
        %1832 = vmatprep.subr.mxu0 0.0
        %v1833 = vand.u32 %v457, 4294901760
        %v1834 = vsub.f32 %v457, %v1833
        %v1835 = vand.u32 %v1834, 4294901760
        %1836 = vmatpush1.msra.mxu0 %v1835
        %1837 = vmatprep.subr.mxu0 0.0
        %v1838 = vand.u32 %v458, 4294901760
        %v1839 = vsub.f32 %v458, %v1838
        %v1840 = vand.u32 %v1839, 4294901760
        %1841 = vmatpush1.msra.mxu0 %v1840
        %1842 = vmatprep.subr.mxu0 0.0
        %1843 = vmatpush1.msra.mxu0 0.0
        %1844 = vmatprep.subr.mxu0 0.0
        %1845 = vmatpush1.msra.mxu0 0.0
        %1846 = vmatprep.subr.mxu0 0.0
        %1847 = vmatpush1.msra.mxu0 0.0
        %1848 = vmatprep.subr.mxu0 0.0
        %1849 = vmatpush1.msra.mxu0 0.0
        %1850 = vmatprep.subr.mxu0 0.0
        %1851 = vmatpush1.msra.mxu0 0.0
        %1852 = vmatprep.subr.mxu0 0.0
        %1853 = vmatpush1.msra.mxu0 0.0
        %1854 = vmatprep.subr.mxu0 0.0
        %1855 = vmatpush1.msra.mxu0 0.0
        %1856 = vmatprep.subr.mxu0 0.0
        %1857 = vmatpush1.msra.mxu0 0.0
        %1858 = vmatprep.subr.mxu0 0.0
        %1859 = vmatpush1.msra.mxu0 0.0
        %1860 = vmatprep.subr.mxu0 0.0
        %1861 = vmatpush1.msra.mxu0 0.0
        %1862 = vmatprep.subr.mxu0 0.0
        %1863 = vmatpush1.msra.mxu0 0.0
        %1864 = vmatprep.subr.mxu0 0.0
        %1865 = vmatpush1.msra.mxu0 0.0
        %1866 = vmatprep.subr.mxu0 0.0
        %1867 = vmatpush1.msra.mxu0 0.0
        %1868 = vmatprep.subr.mxu0 0.0
        %1869 = vmatpush1.msra.mxu0 0.0
        %1870 = vmatprep.subr.mxu0 0.0
        %1871 = vmatpush1.msra.mxu0 0.0
        %1872 = vmatprep.subr.mxu0 0.0
        %1873 = vmatpush1.msra.mxu0 0.0
        %1874 = vmatprep.subr.mxu0 0.0
        %1875 = vmatpush1.msra.mxu0 0.0
        %1876 = vmatprep.subr.mxu0 0.0
        %1877 = vmatpush1.msra.mxu0 0.0
        %1878 = vmatprep.subr.mxu0 0.0
        %1879 = vmatpush1.msra.mxu0 0.0
        %1880 = vmatprep.subr.mxu0 0.0
        %1881 = vmatpush1.msra.mxu0 0.0
        %1882 = vmatprep.subr.mxu0 0.0
        %1883 = vmatpush1.msra.mxu0 0.0
        %1884 = vmatprep.subr.mxu0 0.0
        %1885 = vmatpush1.msra.mxu0 0.0
        %1886 = vmatprep.subr.mxu0 0.0
        %1887 = vmatpush1.msra.mxu0 0.0
        %1888 = vmatprep.subr.mxu0 0.0
        %1889 = vmatpush1.msra.mxu0 0.0
        %1890 = vmatprep.subr.mxu0 0.0
        %1891 = vmatpush1.msra.mxu0 0.0
        %1892 = vmatprep.subr.mxu0 0.0
        %1893 = vmatpush1.msra.mxu0 0.0
        %1894 = vmatprep.subr.mxu0 0.0
        %1895 = vmatpush1.msra.mxu0 0.0
        %1896 = vmatprep.subr.mxu0 0.0
        %1897 = vmatpush1.msra.mxu0 0.0
        %1898 = vmatprep.subr.mxu0 0.0
        %1899 = vmatpush1.msra.mxu0 0.0
        %1900 = vmatprep.subr.mxu0 0.0
        %1901 = vmatpush1.msra.mxu0 0.0
        %1902 = vmatprep.mubr.f32.mxu0 0.0
        %v1903 = vand.u32 %v477, 4294901760
        %1904 = vmatmul.mubr.f32.gmra.mrb[0].mxu0 %v1903
        %v1905 = vpop.f32.mrb[0].mxu0
        %v1906 = vadd.f32 %v1821, %v1905
        %v1907 = vpop.f32.mrb[0].mxu0
        %1908 = vmatprep.mubr.f32.mxu0 0.0
        %v1909 = vand.u32 %v480, 4294901760
        %1910 = vmatmul.mubr.f32.gmra.mrb[0].mxu0 %v1909
        %v1911 = vpop.f32.mrb[0].mxu0
        %v1912 = vadd.f32 %v1829, %v1911
        %v1913 = vpop.f32.mrb[0].mxu0
        %1914 = vdwg.mxu0
        %1915 = vmatprep.subr.mxu0 0.0
        %v1916 = vand.u32 %v457, 4294901760
        %1917 = vmatpush1.msra.mxu0 %v1916
        %1918 = vmatprep.subr.mxu0 0.0
        %v1919 = vand.u32 %v458, 4294901760
        %1920 = vmatpush1.msra.mxu0 %v1919
        %1921 = vmatprep.subr.mxu0 0.0
        %1922 = vmatpush1.msra.mxu0 0.0
        %1923 = vmatprep.subr.mxu0 0.0
        %1924 = vmatpush1.msra.mxu0 0.0
        %1925 = vmatprep.subr.mxu0 0.0
        %1926 = vmatpush1.msra.mxu0 0.0
        %1927 = vmatprep.subr.mxu0 0.0
        %1928 = vmatpush1.msra.mxu0 0.0
        %1929 = vmatprep.subr.mxu0 0.0
        %1930 = vmatpush1.msra.mxu0 0.0
        %1931 = vmatprep.subr.mxu0 0.0
        %1932 = vmatpush1.msra.mxu0 0.0
        %1933 = vmatprep.subr.mxu0 0.0
        %1934 = vmatpush1.msra.mxu0 0.0
        %1935 = vmatprep.subr.mxu0 0.0
        %1936 = vmatpush1.msra.mxu0 0.0
        %1937 = vmatprep.subr.mxu0 0.0
        %1938 = vmatpush1.msra.mxu0 0.0
        %1939 = vmatprep.subr.mxu0 0.0
        %1940 = vmatpush1.msra.mxu0 0.0
        %1941 = vmatprep.subr.mxu0 0.0
        %1942 = vmatpush1.msra.mxu0 0.0
        %1943 = vmatprep.subr.mxu0 0.0
        %1944 = vmatpush1.msra.mxu0 0.0
        %1945 = vmatprep.subr.mxu0 0.0
        %1946 = vmatpush1.msra.mxu0 0.0
        %1947 = vmatprep.subr.mxu0 0.0
        %1948 = vmatpush1.msra.mxu0 0.0
        %1949 = vmatprep.subr.mxu0 0.0
        %1950 = vmatpush1.msra.mxu0 0.0
        %1951 = vmatprep.subr.mxu0 0.0
        %1952 = vmatpush1.msra.mxu0 0.0
        %1953 = vmatprep.subr.mxu0 0.0
        %1954 = vmatpush1.msra.mxu0 0.0
        %1955 = vmatprep.subr.mxu0 0.0
        %1956 = vmatpush1.msra.mxu0 0.0
        %1957 = vmatprep.subr.mxu0 0.0
        %1958 = vmatpush1.msra.mxu0 0.0
        %1959 = vmatprep.subr.mxu0 0.0
        %1960 = vmatpush1.msra.mxu0 0.0
        %1961 = vmatprep.subr.mxu0 0.0
        %1962 = vmatpush1.msra.mxu0 0.0
        %1963 = vmatprep.subr.mxu0 0.0
        %1964 = vmatpush1.msra.mxu0 0.0
        %1965 = vmatprep.subr.mxu0 0.0
        %1966 = vmatpush1.msra.mxu0 0.0
        %1967 = vmatprep.subr.mxu0 0.0
        %1968 = vmatpush1.msra.mxu0 0.0
        %1969 = vmatprep.subr.mxu0 0.0
        %1970 = vmatpush1.msra.mxu0 0.0
        %1971 = vmatprep.subr.mxu0 0.0
        %1972 = vmatpush1.msra.mxu0 0.0
        %1973 = vmatprep.subr.mxu0 0.0
        %1974 = vmatpush1.msra.mxu0 0.0
        %1975 = vmatprep.subr.mxu0 0.0
        %1976 = vmatpush1.msra.mxu0 0.0
        %1977 = vmatprep.subr.mxu0 0.0
        %1978 = vmatpush1.msra.mxu0 0.0
        %1979 = vmatprep.subr.mxu0 0.0
        %1980 = vmatpush1.msra.mxu0 0.0
        %1981 = vmatprep.mubr.f32.mxu0 0.0
        %v1982 = vand.u32 %v477, 4294901760
        %1983 = vmatmul.mubr.f32.gmra.mrb[0].mxu0 %v1982
        %v1984 = vpop.f32.mrb[0].mxu0
        %v1985 = vadd.f32 %v1906, %v1984
        %v1986 = vpop.f32.mrb[0].mxu0
        %1987 = vmatprep.mubr.f32.mxu0 0.0
        %v1988 = vand.u32 %v480, 4294901760
        %1989 = vmatmul.mubr.f32.gmra.mrb[0].mxu0 %v1988
        %v1990 = vpop.f32.mrb[0].mxu0
        %v1991 = vadd.f32 %v1912, %v1990
        %v1992 = vpop.f32.mrb[0].mxu0
        %1993 = vdwg.mxu0
        %v1995 = vsel %vm463, %v1985, 0
        %v1998 = vsel %vm463, %v1991, 0
        %2000 = vmatprep.subr.mxu0 0.0
        %v2001 = vand.u32 %v453, 4294901760
        %2002 = vmatpush1.msra.mxu0 %v2001
        %2003 = vmatprep.subr.mxu0 0.0
        %v2004 = vand.u32 %v454, 4294901760
        %2005 = vmatpush1.msra.mxu0 %v2004
        %2006 = vmatprep.subr.mxu0 0.0
        %2007 = vmatpush1.msra.mxu0 0.0
        %2008 = vmatprep.subr.mxu0 0.0
        %2009 = vmatpush1.msra.mxu0 0.0
        %2010 = vmatprep.subr.mxu0 0.0
        %2011 = vmatpush1.msra.mxu0 0.0
        %2012 = vmatprep.subr.mxu0 0.0
        %2013 = vmatpush1.msra.mxu0 0.0
        %2014 = vmatprep.subr.mxu0 0.0
        %2015 = vmatpush1.msra.mxu0 0.0
        %2016 = vmatprep.subr.mxu0 0.0
        %2017 = vmatpush1.msra.mxu0 0.0
        %2018 = vmatprep.subr.mxu0 0.0
        %2019 = vmatpush1.msra.mxu0 0.0
        %2020 = vmatprep.subr.mxu0 0.0
        %2021 = vmatpush1.msra.mxu0 0.0
        %2022 = vmatprep.subr.mxu0 0.0
        %2023 = vmatpush1.msra.mxu0 0.0
        %2024 = vmatprep.subr.mxu0 0.0
        %2025 = vmatpush1.msra.mxu0 0.0
        %2026 = vmatprep.subr.mxu0 0.0
        %2027 = vmatpush1.msra.mxu0 0.0
        %2028 = vmatprep.subr.mxu0 0.0
        %2029 = vmatpush1.msra.mxu0 0.0
        %2030 = vmatprep.subr.mxu0 0.0
        %2031 = vmatpush1.msra.mxu0 0.0
        %2032 = vmatprep.subr.mxu0 0.0
        %2033 = vmatpush1.msra.mxu0 0.0
        %2034 = vmatprep.subr.mxu0 0.0
        %2035 = vmatpush1.msra.mxu0 0.0
        %2036 = vmatprep.subr.mxu0 0.0
        %2037 = vmatpush1.msra.mxu0 0.0
        %2038 = vmatprep.subr.mxu0 0.0
        %2039 = vmatpush1.msra.mxu0 0.0
        %2040 = vmatprep.subr.mxu0 0.0
        %2041 = vmatpush1.msra.mxu0 0.0
        %2042 = vmatprep.subr.mxu0 0.0
        %2043 = vmatpush1.msra.mxu0 0.0
        %2044 = vmatprep.subr.mxu0 0.0
        %2045 = vmatpush1.msra.mxu0 0.0
        %2046 = vmatprep.subr.mxu0 0.0
        %2047 = vmatpush1.msra.mxu0 0.0
        %2048 = vmatprep.subr.mxu0 0.0
        %2049 = vmatpush1.msra.mxu0 0.0
        %2050 = vmatprep.subr.mxu0 0.0
        %2051 = vmatpush1.msra.mxu0 0.0
        %2052 = vmatprep.subr.mxu0 0.0
        %2053 = vmatpush1.msra.mxu0 0.0
        %2054 = vmatprep.subr.mxu0 0.0
        %2055 = vmatpush1.msra.mxu0 0.0
        %2056 = vmatprep.subr.mxu0 0.0
        %2057 = vmatpush1.msra.mxu0 0.0
        %2058 = vmatprep.subr.mxu0 0.0
        %2059 = vmatpush1.msra.mxu0 0.0
        %2060 = vmatprep.subr.mxu0 0.0
        %2061 = vmatpush1.msra.mxu0 0.0
        %2062 = vmatprep.subr.mxu0 0.0
        %2063 = vmatpush1.msra.mxu0 0.0
        %2064 = vmatprep.subr.mxu0 0.0
        %2065 = vmatpush1.msra.mxu0 0.0
        %2066 = vmatprep.mubr.f32.mxu0 0.0
        %v2067 = vand.u32 %v1995, 4294901760
        %v2068 = vsub.f32 %v1995, %v2067
        %v2069 = vand.u32 %v2068, 4294901760
        %v2070 = vsub.f32 %v2068, %v2069
        %v2071 = vand.u32 %v2070, 4294901760
        %2072 = vmatmul.mubr.f32.gmra.mrb[0].mxu0 %v2071
        %v2073 = vpop.f32.mrb[0].mxu0
        %v2074 = vadd.f32 0.0, %v2073
        %v2075 = vpop.f32.mrb[0].mxu0
        %2076 = vmatprep.mubr.f32.mxu0 0.0
        %v2077 = vand.u32 %v1998, 4294901760
        %v2078 = vsub.f32 %v1998, %v2077
        %v2079 = vand.u32 %v2078, 4294901760
        %v2080 = vsub.f32 %v2078, %v2079
        %v2081 = vand.u32 %v2080, 4294901760
        %2082 = vmatmul.mubr.f32.gmra.mrb[0].mxu0 %v2081
        %v2083 = vpop.f32.mrb[0].mxu0
        %v2084 = vadd.f32 0.0, %v2083
        %v2085 = vpop.f32.mrb[0].mxu0
        %2086 = vdwg.mxu0
        %2087 = vmatprep.subr.mxu0 0.0
        %v2088 = vand.u32 %v453, 4294901760
        %v2089 = vsub.f32 %v453, %v2088
        %v2090 = vand.u32 %v2089, 4294901760
        %v2091 = vsub.f32 %v2089, %v2090
        %v2092 = vand.u32 %v2091, 4294901760
        %2093 = vmatpush1.msra.mxu0 %v2092
        %2094 = vmatprep.subr.mxu0 0.0
        %v2095 = vand.u32 %v454, 4294901760
        %v2096 = vsub.f32 %v454, %v2095
        %v2097 = vand.u32 %v2096, 4294901760
        %v2098 = vsub.f32 %v2096, %v2097
        %v2099 = vand.u32 %v2098, 4294901760
        %2100 = vmatpush1.msra.mxu0 %v2099
        %2101 = vmatprep.subr.mxu0 0.0
        %2102 = vmatpush1.msra.mxu0 0.0
        %2103 = vmatprep.subr.mxu0 0.0
        %2104 = vmatpush1.msra.mxu0 0.0
        %2105 = vmatprep.subr.mxu0 0.0
        %2106 = vmatpush1.msra.mxu0 0.0
        %2107 = vmatprep.subr.mxu0 0.0
        %2108 = vmatpush1.msra.mxu0 0.0
        %2109 = vmatprep.subr.mxu0 0.0
        %2110 = vmatpush1.msra.mxu0 0.0
        %2111 = vmatprep.subr.mxu0 0.0
        %2112 = vmatpush1.msra.mxu0 0.0
        %2113 = vmatprep.subr.mxu0 0.0
        %2114 = vmatpush1.msra.mxu0 0.0
        %2115 = vmatprep.subr.mxu0 0.0
        %2116 = vmatpush1.msra.mxu0 0.0
        %2117 = vmatprep.subr.mxu0 0.0
        %2118 = vmatpush1.msra.mxu0 0.0
        %2119 = vmatprep.subr.mxu0 0.0
        %2120 = vmatpush1.msra.mxu0 0.0
        %2121 = vmatprep.subr.mxu0 0.0
        %2122 = vmatpush1.msra.mxu0 0.0
        %2123 = vmatprep.subr.mxu0 0.0
        %2124 = vmatpush1.msra.mxu0 0.0
        %2125 = vmatprep.subr.mxu0 0.0
        %2126 = vmatpush1.msra.mxu0 0.0
        %2127 = vmatprep.subr.mxu0 0.0
        %2128 = vmatpush1.msra.mxu0 0.0
        %2129 = vmatprep.subr.mxu0 0.0
        %2130 = vmatpush1.msra.mxu0 0.0
        %2131 = vmatprep.subr.mxu0 0.0
        %2132 = vmatpush1.msra.mxu0 0.0
        %2133 = vmatprep.subr.mxu0 0.0
        %2134 = vmatpush1.msra.mxu0 0.0
        %2135 = vmatprep.subr.mxu0 0.0
        %2136 = vmatpush1.msra.mxu0 0.0
        %2137 = vmatprep.subr.mxu0 0.0
        %2138 = vmatpush1.msra.mxu0 0.0
        %2139 = vmatprep.subr.mxu0 0.0
        %2140 = vmatpush1.msra.mxu0 0.0
        %2141 = vmatprep.subr.mxu0 0.0
        %2142 = vmatpush1.msra.mxu0 0.0
        %2143 = vmatprep.subr.mxu0 0.0
        %2144 = vmatpush1.msra.mxu0 0.0
        %2145 = vmatprep.subr.mxu0 0.0
        %2146 = vmatpush1.msra.mxu0 0.0
        %2147 = vmatprep.subr.mxu0 0.0
        %2148 = vmatpush1.msra.mxu0 0.0
        %2149 = vmatprep.subr.mxu0 0.0
        %2150 = vmatpush1.msra.mxu0 0.0
        %2151 = vmatprep.subr.mxu0 0.0
        %2152 = vmatpush1.msra.mxu0 0.0
        %2153 = vmatprep.subr.mxu0 0.0
        %2154 = vmatpush1.msra.mxu0 0.0
        %2155 = vmatprep.subr.mxu0 0.0
        %2156 = vmatpush1.msra.mxu0 0.0
        %2157 = vmatprep.subr.mxu0 0.0
        %2158 = vmatpush1.msra.mxu0 0.0
        %2159 = vmatprep.subr.mxu0 0.0
        %2160 = vmatpush1.msra.mxu0 0.0
        %2161 = vmatprep.mubr.f32.mxu0 0.0
        %v2162 = vand.u32 %v1995, 4294901760
        %2163 = vmatmul.mubr.f32.gmra.mrb[0].mxu0 %v2162
        %v2164 = vpop.f32.mrb[0].mxu0
        %v2165 = vadd.f32 %v2074, %v2164
        %v2166 = vpop.f32.mrb[0].mxu0
        %2167 = vmatprep.mubr.f32.mxu0 0.0
        %v2168 = vand.u32 %v1998, 4294901760
        %2169 = vmatmul.mubr.f32.gmra.mrb[0].mxu0 %v2168
        %v2170 = vpop.f32.mrb[0].mxu0
        %v2171 = vadd.f32 %v2084, %v2170
        %v2172 = vpop.f32.mrb[0].mxu0
        %2173 = vdwg.mxu0
        %2174 = vmatprep.subr.mxu0 0.0
        %v2175 = vand.u32 %v453, 4294901760
        %v2176 = vsub.f32 %v453, %v2175
        %2177 = vmatpush1.msra.mxu0 %v2176
        %2178 = vmatprep.subr.mxu0 0.0
        %v2179 = vand.u32 %v454, 4294901760
        %v2180 = vsub.f32 %v454, %v2179
        %2181 = vmatpush1.msra.mxu0 %v2180
        %2182 = vmatprep.subr.mxu0 0.0
        %2183 = vmatpush1.msra.mxu0 0.0
        %2184 = vmatprep.subr.mxu0 0.0
        %2185 = vmatpush1.msra.mxu0 0.0
        %2186 = vmatprep.subr.mxu0 0.0
        %2187 = vmatpush1.msra.mxu0 0.0
        %2188 = vmatprep.subr.mxu0 0.0
        %2189 = vmatpush1.msra.mxu0 0.0
        %2190 = vmatprep.subr.mxu0 0.0
        %2191 = vmatpush1.msra.mxu0 0.0
        %2192 = vmatprep.subr.mxu0 0.0
        %2193 = vmatpush1.msra.mxu0 0.0
        %2194 = vmatprep.subr.mxu0 0.0
        %2195 = vmatpush1.msra.mxu0 0.0
        %2196 = vmatprep.subr.mxu0 0.0
        %2197 = vmatpush1.msra.mxu0 0.0
        %2198 = vmatprep.subr.mxu0 0.0
        %2199 = vmatpush1.msra.mxu0 0.0
        %2200 = vmatprep.subr.mxu0 0.0
        %2201 = vmatpush1.msra.mxu0 0.0
        %2202 = vmatprep.subr.mxu0 0.0
        %2203 = vmatpush1.msra.mxu0 0.0
        %2204 = vmatprep.subr.mxu0 0.0
        %2205 = vmatpush1.msra.mxu0 0.0
        %2206 = vmatprep.subr.mxu0 0.0
        %2207 = vmatpush1.msra.mxu0 0.0
        %2208 = vmatprep.subr.mxu0 0.0
        %2209 = vmatpush1.msra.mxu0 0.0
        %2210 = vmatprep.subr.mxu0 0.0
        %2211 = vmatpush1.msra.mxu0 0.0
        %2212 = vmatprep.subr.mxu0 0.0
        %2213 = vmatpush1.msra.mxu0 0.0
        %2214 = vmatprep.subr.mxu0 0.0
        %2215 = vmatpush1.msra.mxu0 0.0
        %2216 = vmatprep.subr.mxu0 0.0
        %2217 = vmatpush1.msra.mxu0 0.0
        %2218 = vmatprep.subr.mxu0 0.0
        %2219 = vmatpush1.msra.mxu0 0.0
        %2220 = vmatprep.subr.mxu0 0.0
        %2221 = vmatpush1.msra.mxu0 0.0
        %2222 = vmatprep.subr.mxu0 0.0
        %2223 = vmatpush1.msra.mxu0 0.0
        %2224 = vmatprep.subr.mxu0 0.0
        %2225 = vmatpush1.msra.mxu0 0.0
        %2226 = vmatprep.subr.mxu0 0.0
        %2227 = vmatpush1.msra.mxu0 0.0
        %2228 = vmatprep.subr.mxu0 0.0
        %2229 = vmatpush1.msra.mxu0 0.0
        %2230 = vmatprep.subr.mxu0 0.0
        %2231 = vmatpush1.msra.mxu0 0.0
        %2232 = vmatprep.subr.mxu0 0.0
        %2233 = vmatpush1.msra.mxu0 0.0
        %2234 = vmatprep.subr.mxu0 0.0
        %2235 = vmatpush1.msra.mxu0 0.0
        %2236 = vmatprep.subr.mxu0 0.0
        %2237 = vmatpush1.msra.mxu0 0.0
        %2238 = vmatprep.subr.mxu0 0.0
        %2239 = vmatpush1.msra.mxu0 0.0
        %2240 = vmatprep.subr.mxu0 0.0
        %2241 = vmatpush1.msra.mxu0 0.0
        %2242 = vmatprep.mubr.f32.mxu0 0.0
        %v2243 = vand.u32 %v1995, 4294901760
        %v2244 = vsub.f32 %v1995, %v2243
        %2245 = vmatmul.mubr.f32.gmra.mrb[0].mxu0 %v2244
        %v2246 = vpop.f32.mrb[0].mxu0
        %v2247 = vadd.f32 %v2165, %v2246
        %v2248 = vpop.f32.mrb[0].mxu0
        %2249 = vmatprep.mubr.f32.mxu0 0.0
        %v2250 = vand.u32 %v1998, 4294901760
        %v2251 = vsub.f32 %v1998, %v2250
        %2252 = vmatmul.mubr.f32.gmra.mrb[0].mxu0 %v2251
        %v2253 = vpop.f32.mrb[0].mxu0
        %v2254 = vadd.f32 %v2171, %v2253
        %v2255 = vpop.f32.mrb[0].mxu0
        %2256 = vdwg.mxu0
        %2257 = vmatprep.subr.mxu0 0.0
        %v2258 = vand.u32 %v453, 4294901760
        %2259 = vmatpush1.msra.mxu0 %v2258
        %2260 = vmatprep.subr.mxu0 0.0
        %v2261 = vand.u32 %v454, 4294901760
        %2262 = vmatpush1.msra.mxu0 %v2261
        %2263 = vmatprep.subr.mxu0 0.0
        %2264 = vmatpush1.msra.mxu0 0.0
        %2265 = vmatprep.subr.mxu0 0.0
        %2266 = vmatpush1.msra.mxu0 0.0
        %2267 = vmatprep.subr.mxu0 0.0
        %2268 = vmatpush1.msra.mxu0 0.0
        %2269 = vmatprep.subr.mxu0 0.0
        %2270 = vmatpush1.msra.mxu0 0.0
        %2271 = vmatprep.subr.mxu0 0.0
        %2272 = vmatpush1.msra.mxu0 0.0
        %2273 = vmatprep.subr.mxu0 0.0
        %2274 = vmatpush1.msra.mxu0 0.0
        %2275 = vmatprep.subr.mxu0 0.0
        %2276 = vmatpush1.msra.mxu0 0.0
        %2277 = vmatprep.subr.mxu0 0.0
        %2278 = vmatpush1.msra.mxu0 0.0
        %2279 = vmatprep.subr.mxu0 0.0
        %2280 = vmatpush1.msra.mxu0 0.0
        %2281 = vmatprep.subr.mxu0 0.0
        %2282 = vmatpush1.msra.mxu0 0.0
        %2283 = vmatprep.subr.mxu0 0.0
        %2284 = vmatpush1.msra.mxu0 0.0
        %2285 = vmatprep.subr.mxu0 0.0
        %2286 = vmatpush1.msra.mxu0 0.0
        %2287 = vmatprep.subr.mxu0 0.0
        %2288 = vmatpush1.msra.mxu0 0.0
        %2289 = vmatprep.subr.mxu0 0.0
        %2290 = vmatpush1.msra.mxu0 0.0
        %2291 = vmatprep.subr.mxu0 0.0
        %2292 = vmatpush1.msra.mxu0 0.0
        %2293 = vmatprep.subr.mxu0 0.0
        %2294 = vmatpush1.msra.mxu0 0.0
        %2295 = vmatprep.subr.mxu0 0.0
        %2296 = vmatpush1.msra.mxu0 0.0
        %2297 = vmatprep.subr.mxu0 0.0
        %2298 = vmatpush1.msra.mxu0 0.0
        %2299 = vmatprep.subr.mxu0 0.0
        %2300 = vmatpush1.msra.mxu0 0.0
        %2301 = vmatprep.subr.mxu0 0.0
        %2302 = vmatpush1.msra.mxu0 0.0
        %2303 = vmatprep.subr.mxu0 0.0
        %2304 = vmatpush1.msra.mxu0 0.0
        %2305 = vmatprep.subr.mxu0 0.0
        %2306 = vmatpush1.msra.mxu0 0.0
        %2307 = vmatprep.subr.mxu0 0.0
        %2308 = vmatpush1.msra.mxu0 0.0
        %2309 = vmatprep.subr.mxu0 0.0
        %2310 = vmatpush1.msra.mxu0 0.0
        %2311 = vmatprep.subr.mxu0 0.0
        %2312 = vmatpush1.msra.mxu0 0.0
        %2313 = vmatprep.subr.mxu0 0.0
        %2314 = vmatpush1.msra.mxu0 0.0
        %2315 = vmatprep.subr.mxu0 0.0
        %2316 = vmatpush1.msra.mxu0 0.0
        %2317 = vmatprep.subr.mxu0 0.0
        %2318 = vmatpush1.msra.mxu0 0.0
        %2319 = vmatprep.subr.mxu0 0.0
        %2320 = vmatpush1.msra.mxu0 0.0
        %2321 = vmatprep.subr.mxu0 0.0
        %2322 = vmatpush1.msra.mxu0 0.0
        %2323 = vmatprep.mubr.f32.mxu0 0.0
        %v2324 = vand.u32 %v1995, 4294901760
        %v2325 = vsub.f32 %v1995, %v2324
        %v2326 = vand.u32 %v2325, 4294901760
        %2327 = vmatmul.mubr.f32.gmra.mrb[0].mxu0 %v2326
        %v2328 = vpop.f32.mrb[0].mxu0
        %v2329 = vadd.f32 %v2247, %v2328
        %v2330 = vpop.f32.mrb[0].mxu0
        %2331 = vmatprep.mubr.f32.mxu0 0.0
        %v2332 = vand.u32 %v1998, 4294901760
        %v2333 = vsub.f32 %v1998, %v2332
        %v2334 = vand.u32 %v2333, 4294901760
        %2335 = vmatmul.mubr.f32.gmra.mrb[0].mxu0 %v2334
        %v2336 = vpop.f32.mrb[0].mxu0
        %v2337 = vadd.f32 %v2254, %v2336
        %v2338 = vpop.f32.mrb[0].mxu0
        %2339 = vdwg.mxu0
        %2340 = vmatprep.subr.mxu0 0.0
        %v2341 = vand.u32 %v453, 4294901760
        %v2342 = vsub.f32 %v453, %v2341
        %v2343 = vand.u32 %v2342, 4294901760
        %2344 = vmatpush1.msra.mxu0 %v2343
        %2345 = vmatprep.subr.mxu0 0.0
        %v2346 = vand.u32 %v454, 4294901760
        %v2347 = vsub.f32 %v454, %v2346
        %v2348 = vand.u32 %v2347, 4294901760
        %2349 = vmatpush1.msra.mxu0 %v2348
        %2350 = vmatprep.subr.mxu0 0.0
        %2351 = vmatpush1.msra.mxu0 0.0
        %2352 = vmatprep.subr.mxu0 0.0
        %2353 = vmatpush1.msra.mxu0 0.0
        %2354 = vmatprep.subr.mxu0 0.0
        %2355 = vmatpush1.msra.mxu0 0.0
        %2356 = vmatprep.subr.mxu0 0.0
        %2357 = vmatpush1.msra.mxu0 0.0
        %2358 = vmatprep.subr.mxu0 0.0
        %2359 = vmatpush1.msra.mxu0 0.0
        %2360 = vmatprep.subr.mxu0 0.0
        %2361 = vmatpush1.msra.mxu0 0.0
        %2362 = vmatprep.subr.mxu0 0.0
        %2363 = vmatpush1.msra.mxu0 0.0
        %2364 = vmatprep.subr.mxu0 0.0
        %2365 = vmatpush1.msra.mxu0 0.0
        %2366 = vmatprep.subr.mxu0 0.0
        %2367 = vmatpush1.msra.mxu0 0.0
        %2368 = vmatprep.subr.mxu0 0.0
        %2369 = vmatpush1.msra.mxu0 0.0
        %2370 = vmatprep.subr.mxu0 0.0
        %2371 = vmatpush1.msra.mxu0 0.0
        %2372 = vmatprep.subr.mxu0 0.0
        %2373 = vmatpush1.msra.mxu0 0.0
        %2374 = vmatprep.subr.mxu0 0.0
        %2375 = vmatpush1.msra.mxu0 0.0
        %2376 = vmatprep.subr.mxu0 0.0
        %2377 = vmatpush1.msra.mxu0 0.0
        %2378 = vmatprep.subr.mxu0 0.0
        %2379 = vmatpush1.msra.mxu0 0.0
        %2380 = vmatprep.subr.mxu0 0.0
        %2381 = vmatpush1.msra.mxu0 0.0
        %2382 = vmatprep.subr.mxu0 0.0
        %2383 = vmatpush1.msra.mxu0 0.0
        %2384 = vmatprep.subr.mxu0 0.0
        %2385 = vmatpush1.msra.mxu0 0.0
        %2386 = vmatprep.subr.mxu0 0.0
        %2387 = vmatpush1.msra.mxu0 0.0
        %2388 = vmatprep.subr.mxu0 0.0
        %2389 = vmatpush1.msra.mxu0 0.0
        %2390 = vmatprep.subr.mxu0 0.0
        %2391 = vmatpush1.msra.mxu0 0.0
        %2392 = vmatprep.subr.mxu0 0.0
        %2393 = vmatpush1.msra.mxu0 0.0
        %2394 = vmatprep.subr.mxu0 0.0
        %2395 = vmatpush1.msra.mxu0 0.0
        %2396 = vmatprep.subr.mxu0 0.0
        %2397 = vmatpush1.msra.mxu0 0.0
        %2398 = vmatprep.subr.mxu0 0.0
        %2399 = vmatpush1.msra.mxu0 0.0
        %2400 = vmatprep.subr.mxu0 0.0
        %2401 = vmatpush1.msra.mxu0 0.0
        %2402 = vmatprep.subr.mxu0 0.0
        %2403 = vmatpush1.msra.mxu0 0.0
        %2404 = vmatprep.subr.mxu0 0.0
        %2405 = vmatpush1.msra.mxu0 0.0
        %2406 = vmatprep.subr.mxu0 0.0
        %2407 = vmatpush1.msra.mxu0 0.0
        %2408 = vmatprep.subr.mxu0 0.0
        %2409 = vmatpush1.msra.mxu0 0.0
        %2410 = vmatprep.mubr.f32.mxu0 0.0
        %v2411 = vand.u32 %v1995, 4294901760
        %2412 = vmatmul.mubr.f32.gmra.mrb[0].mxu0 %v2411
        %v2413 = vpop.f32.mrb[0].mxu0
        %v2414 = vadd.f32 %v2329, %v2413
        %v2415 = vpop.f32.mrb[0].mxu0
        %2416 = vmatprep.mubr.f32.mxu0 0.0
        %v2417 = vand.u32 %v1998, 4294901760
        %2418 = vmatmul.mubr.f32.gmra.mrb[0].mxu0 %v2417
        %v2419 = vpop.f32.mrb[0].mxu0
        %v2420 = vadd.f32 %v2337, %v2419
        %v2421 = vpop.f32.mrb[0].mxu0
        %2422 = vdwg.mxu0
        %2423 = vmatprep.subr.mxu0 0.0
        %v2424 = vand.u32 %v453, 4294901760
        %2425 = vmatpush1.msra.mxu0 %v2424
        %2426 = vmatprep.subr.mxu0 0.0
        %v2427 = vand.u32 %v454, 4294901760
        %2428 = vmatpush1.msra.mxu0 %v2427
        %2429 = vmatprep.subr.mxu0 0.0
        %2430 = vmatpush1.msra.mxu0 0.0
        %2431 = vmatprep.subr.mxu0 0.0
        %2432 = vmatpush1.msra.mxu0 0.0
        %2433 = vmatprep.subr.mxu0 0.0
        %2434 = vmatpush1.msra.mxu0 0.0
        %2435 = vmatprep.subr.mxu0 0.0
        %2436 = vmatpush1.msra.mxu0 0.0
        %2437 = vmatprep.subr.mxu0 0.0
        %2438 = vmatpush1.msra.mxu0 0.0
        %2439 = vmatprep.subr.mxu0 0.0
        %2440 = vmatpush1.msra.mxu0 0.0
        %2441 = vmatprep.subr.mxu0 0.0
        %2442 = vmatpush1.msra.mxu0 0.0
        %2443 = vmatprep.subr.mxu0 0.0
        %2444 = vmatpush1.msra.mxu0 0.0
        %2445 = vmatprep.subr.mxu0 0.0
        %2446 = vmatpush1.msra.mxu0 0.0
        %2447 = vmatprep.subr.mxu0 0.0
        %2448 = vmatpush1.msra.mxu0 0.0
        %2449 = vmatprep.subr.mxu0 0.0
        %2450 = vmatpush1.msra.mxu0 0.0
        %2451 = vmatprep.subr.mxu0 0.0
        %2452 = vmatpush1.msra.mxu0 0.0
        %2453 = vmatprep.subr.mxu0 0.0
        %2454 = vmatpush1.msra.mxu0 0.0
        %2455 = vmatprep.subr.mxu0 0.0
        %2456 = vmatpush1.msra.mxu0 0.0
        %2457 = vmatprep.subr.mxu0 0.0
        %2458 = vmatpush1.msra.mxu0 0.0
        %2459 = vmatprep.subr.mxu0 0.0
        %2460 = vmatpush1.msra.mxu0 0.0
        %2461 = vmatprep.subr.mxu0 0.0
        %2462 = vmatpush1.msra.mxu0 0.0
        %2463 = vmatprep.subr.mxu0 0.0
        %2464 = vmatpush1.msra.mxu0 0.0
        %2465 = vmatprep.subr.mxu0 0.0
        %2466 = vmatpush1.msra.mxu0 0.0
        %2467 = vmatprep.subr.mxu0 0.0
        %2468 = vmatpush1.msra.mxu0 0.0
        %2469 = vmatprep.subr.mxu0 0.0
        %2470 = vmatpush1.msra.mxu0 0.0
        %2471 = vmatprep.subr.mxu0 0.0
        %2472 = vmatpush1.msra.mxu0 0.0
        %2473 = vmatprep.subr.mxu0 0.0
        %2474 = vmatpush1.msra.mxu0 0.0
        %2475 = vmatprep.subr.mxu0 0.0
        %2476 = vmatpush1.msra.mxu0 0.0
        %2477 = vmatprep.subr.mxu0 0.0
        %2478 = vmatpush1.msra.mxu0 0.0
        %2479 = vmatprep.subr.mxu0 0.0
        %2480 = vmatpush1.msra.mxu0 0.0
        %2481 = vmatprep.subr.mxu0 0.0
        %2482 = vmatpush1.msra.mxu0 0.0
        %2483 = vmatprep.subr.mxu0 0.0
        %2484 = vmatpush1.msra.mxu0 0.0
        %2485 = vmatprep.subr.mxu0 0.0
        %2486 = vmatpush1.msra.mxu0 0.0
        %2487 = vmatprep.subr.mxu0 0.0
        %2488 = vmatpush1.msra.mxu0 0.0
        %2489 = vmatprep.mubr.f32.mxu0 0.0
        %v2490 = vand.u32 %v1995, 4294901760
        %2491 = vmatmul.mubr.f32.gmra.mrb[0].mxu0 %v2490
        %v2492 = vpop.f32.mrb[0].mxu0
        %v2493 = vadd.f32 %v2414, %v2492
        %v2494 = vpop.f32.mrb[0].mxu0
        %2495 = vmatprep.mubr.f32.mxu0 0.0
        %v2496 = vand.u32 %v1998, 4294901760
        %2497 = vmatmul.mubr.f32.gmra.mrb[0].mxu0 %v2496
        %v2498 = vpop.f32.mrb[0].mxu0
        %v2499 = vadd.f32 %v2420, %v2498
        %v2500 = vpop.f32.mrb[0].mxu0
        %2501 = vdwg.mxu0
        %v2502 = vmul.f32 %v455, %v455
        %v2503 = vmul.f32 %v456, %v456
        %2504 = vmatprep.subr.mxu0 0.0
        %v2505 = vand.u32 %v2502, 4294901760
        %2506 = vmatpush1.msra.mxu0 %v2505
        %2507 = vmatprep.subr.mxu0 0.0
        %v2508 = vand.u32 %v2503, 4294901760
        %2509 = vmatpush1.msra.mxu0 %v2508
        %2510 = vmatprep.subr.mxu0 0.0
        %2511 = vmatpush1.msra.mxu0 0.0
        %2512 = vmatprep.subr.mxu0 0.0
        %2513 = vmatpush1.msra.mxu0 0.0
        %2514 = vmatprep.subr.mxu0 0.0
        %2515 = vmatpush1.msra.mxu0 0.0
        %2516 = vmatprep.subr.mxu0 0.0
        %2517 = vmatpush1.msra.mxu0 0.0
        %2518 = vmatprep.subr.mxu0 0.0
        %2519 = vmatpush1.msra.mxu0 0.0
        %2520 = vmatprep.subr.mxu0 0.0
        %2521 = vmatpush1.msra.mxu0 0.0
        %2522 = vmatprep.subr.mxu0 0.0
        %2523 = vmatpush1.msra.mxu0 0.0
        %2524 = vmatprep.subr.mxu0 0.0
        %2525 = vmatpush1.msra.mxu0 0.0
        %2526 = vmatprep.subr.mxu0 0.0
        %2527 = vmatpush1.msra.mxu0 0.0
        %2528 = vmatprep.subr.mxu0 0.0
        %2529 = vmatpush1.msra.mxu0 0.0
        %2530 = vmatprep.subr.mxu0 0.0
        %2531 = vmatpush1.msra.mxu0 0.0
        %2532 = vmatprep.subr.mxu0 0.0
        %2533 = vmatpush1.msra.mxu0 0.0
        %2534 = vmatprep.subr.mxu0 0.0
        %2535 = vmatpush1.msra.mxu0 0.0
        %2536 = vmatprep.subr.mxu0 0.0
        %2537 = vmatpush1.msra.mxu0 0.0
        %2538 = vmatprep.subr.mxu0 0.0
        %2539 = vmatpush1.msra.mxu0 0.0
        %2540 = vmatprep.subr.mxu0 0.0
        %2541 = vmatpush1.msra.mxu0 0.0
        %2542 = vmatprep.subr.mxu0 0.0
        %2543 = vmatpush1.msra.mxu0 0.0
        %2544 = vmatprep.subr.mxu0 0.0
        %2545 = vmatpush1.msra.mxu0 0.0
        %2546 = vmatprep.subr.mxu0 0.0
        %2547 = vmatpush1.msra.mxu0 0.0
        %2548 = vmatprep.subr.mxu0 0.0
        %2549 = vmatpush1.msra.mxu0 0.0
        %2550 = vmatprep.subr.mxu0 0.0
        %2551 = vmatpush1.msra.mxu0 0.0
        %2552 = vmatprep.subr.mxu0 0.0
        %2553 = vmatpush1.msra.mxu0 0.0
        %2554 = vmatprep.subr.mxu0 0.0
        %2555 = vmatpush1.msra.mxu0 0.0
        %2556 = vmatprep.subr.mxu0 0.0
        %2557 = vmatpush1.msra.mxu0 0.0
        %2558 = vmatprep.subr.mxu0 0.0
        %2559 = vmatpush1.msra.mxu0 0.0
        %2560 = vmatprep.subr.mxu0 0.0
        %2561 = vmatpush1.msra.mxu0 0.0
        %2562 = vmatprep.subr.mxu0 0.0
        %2563 = vmatpush1.msra.mxu0 0.0
        %2564 = vmatprep.subr.mxu0 0.0
        %2565 = vmatpush1.msra.mxu0 0.0
        %2566 = vmatprep.subr.mxu0 0.0
        %2567 = vmatpush1.msra.mxu0 0.0
        %2568 = vmatprep.subr.mxu0 0.0
        %2569 = vmatpush1.msra.mxu0 0.0
        %2570 = vmatprep.mubr.f32.mxu0 0.0
        %v2571 = vand.u32 %v477, 4294901760
        %v2572 = vsub.f32 %v477, %v2571
        %v2573 = vand.u32 %v2572, 4294901760
        %v2574 = vsub.f32 %v2572, %v2573
        %v2575 = vand.u32 %v2574, 4294901760
        %2576 = vmatmul.mubr.f32.gmra.mrb[0].mxu0 %v2575
        %v2577 = vpop.f32.mrb[0].mxu0
        %v2578 = vadd.f32 0.0, %v2577
        %v2579 = vpop.f32.mrb[0].mxu0
        %2580 = vmatprep.mubr.f32.mxu0 0.0
        %v2581 = vand.u32 %v480, 4294901760
        %v2582 = vsub.f32 %v480, %v2581
        %v2583 = vand.u32 %v2582, 4294901760
        %v2584 = vsub.f32 %v2582, %v2583
        %v2585 = vand.u32 %v2584, 4294901760
        %2586 = vmatmul.mubr.f32.gmra.mrb[0].mxu0 %v2585
        %v2587 = vpop.f32.mrb[0].mxu0
        %v2588 = vadd.f32 0.0, %v2587
        %v2589 = vpop.f32.mrb[0].mxu0
        %2590 = vdwg.mxu0
        %2591 = vmatprep.subr.mxu0 0.0
        %v2592 = vand.u32 %v2502, 4294901760
        %v2593 = vsub.f32 %v2502, %v2592
        %v2594 = vand.u32 %v2593, 4294901760
        %v2595 = vsub.f32 %v2593, %v2594
        %v2596 = vand.u32 %v2595, 4294901760
        %2597 = vmatpush1.msra.mxu0 %v2596
        %2598 = vmatprep.subr.mxu0 0.0
        %v2599 = vand.u32 %v2503, 4294901760
        %v2600 = vsub.f32 %v2503, %v2599
        %v2601 = vand.u32 %v2600, 4294901760
        %v2602 = vsub.f32 %v2600, %v2601
        %v2603 = vand.u32 %v2602, 4294901760
        %2604 = vmatpush1.msra.mxu0 %v2603
        %2605 = vmatprep.subr.mxu0 0.0
        %2606 = vmatpush1.msra.mxu0 0.0
        %2607 = vmatprep.subr.mxu0 0.0
        %2608 = vmatpush1.msra.mxu0 0.0
        %2609 = vmatprep.subr.mxu0 0.0
        %2610 = vmatpush1.msra.mxu0 0.0
        %2611 = vmatprep.subr.mxu0 0.0
        %2612 = vmatpush1.msra.mxu0 0.0
        %2613 = vmatprep.subr.mxu0 0.0
        %2614 = vmatpush1.msra.mxu0 0.0
        %2615 = vmatprep.subr.mxu0 0.0
        %2616 = vmatpush1.msra.mxu0 0.0
        %2617 = vmatprep.subr.mxu0 0.0
        %2618 = vmatpush1.msra.mxu0 0.0
        %2619 = vmatprep.subr.mxu0 0.0
        %2620 = vmatpush1.msra.mxu0 0.0
        %2621 = vmatprep.subr.mxu0 0.0
        %2622 = vmatpush1.msra.mxu0 0.0
        %2623 = vmatprep.subr.mxu0 0.0
        %2624 = vmatpush1.msra.mxu0 0.0
        %2625 = vmatprep.subr.mxu0 0.0
        %2626 = vmatpush1.msra.mxu0 0.0
        %2627 = vmatprep.subr.mxu0 0.0
        %2628 = vmatpush1.msra.mxu0 0.0
        %2629 = vmatprep.subr.mxu0 0.0
        %2630 = vmatpush1.msra.mxu0 0.0
        %2631 = vmatprep.subr.mxu0 0.0
        %2632 = vmatpush1.msra.mxu0 0.0
        %2633 = vmatprep.subr.mxu0 0.0
        %2634 = vmatpush1.msra.mxu0 0.0
        %2635 = vmatprep.subr.mxu0 0.0
        %2636 = vmatpush1.msra.mxu0 0.0
        %2637 = vmatprep.subr.mxu0 0.0
        %2638 = vmatpush1.msra.mxu0 0.0
        %2639 = vmatprep.subr.mxu0 0.0
        %2640 = vmatpush1.msra.mxu0 0.0
        %2641 = vmatprep.subr.mxu0 0.0
        %2642 = vmatpush1.msra.mxu0 0.0
        %2643 = vmatprep.subr.mxu0 0.0
        %2644 = vmatpush1.msra.mxu0 0.0
        %2645 = vmatprep.subr.mxu0 0.0
        %2646 = vmatpush1.msra.mxu0 0.0
        %2647 = vmatprep.subr.mxu0 0.0
        %2648 = vmatpush1.msra.mxu0 0.0
        %2649 = vmatprep.subr.mxu0 0.0
        %2650 = vmatpush1.msra.mxu0 0.0
        %2651 = vmatprep.subr.mxu0 0.0
        %2652 = vmatpush1.msra.mxu0 0.0
        %2653 = vmatprep.subr.mxu0 0.0
        %2654 = vmatpush1.msra.mxu0 0.0
        %2655 = vmatprep.subr.mxu0 0.0
        %2656 = vmatpush1.msra.mxu0 0.0
        %2657 = vmatprep.subr.mxu0 0.0
        %2658 = vmatpush1.msra.mxu0 0.0
        %2659 = vmatprep.subr.mxu0 0.0
        %2660 = vmatpush1.msra.mxu0 0.0
        %2661 = vmatprep.subr.mxu0 0.0
        %2662 = vmatpush1.msra.mxu0 0.0
        %2663 = vmatprep.subr.mxu0 0.0
        %2664 = vmatpush1.msra.mxu0 0.0
        %2665 = vmatprep.mubr.f32.mxu0 0.0
        %v2666 = vand.u32 %v477, 4294901760
        %2667 = vmatmul.mubr.f32.gmra.mrb[0].mxu0 %v2666
        %v2668 = vpop.f32.mrb[0].mxu0
        %v2669 = vadd.f32 %v2578, %v2668
        %v2670 = vpop.f32.mrb[0].mxu0
        %2671 = vmatprep.mubr.f32.mxu0 0.0
        %v2672 = vand.u32 %v480, 4294901760
        %2673 = vmatmul.mubr.f32.gmra.mrb[0].mxu0 %v2672
        %v2674 = vpop.f32.mrb[0].mxu0
        %v2675 = vadd.f32 %v2588, %v2674
        %v2676 = vpop.f32.mrb[0].mxu0
        %2677 = vdwg.mxu0
        %2678 = vmatprep.subr.mxu0 0.0
        %v2679 = vand.u32 %v2502, 4294901760
        %v2680 = vsub.f32 %v2502, %v2679
        %2681 = vmatpush1.msra.mxu0 %v2680
        %2682 = vmatprep.subr.mxu0 0.0
        %v2683 = vand.u32 %v2503, 4294901760
        %v2684 = vsub.f32 %v2503, %v2683
        %2685 = vmatpush1.msra.mxu0 %v2684
        %2686 = vmatprep.subr.mxu0 0.0
        %2687 = vmatpush1.msra.mxu0 0.0
        %2688 = vmatprep.subr.mxu0 0.0
        %2689 = vmatpush1.msra.mxu0 0.0
        %2690 = vmatprep.subr.mxu0 0.0
        %2691 = vmatpush1.msra.mxu0 0.0
        %2692 = vmatprep.subr.mxu0 0.0
        %2693 = vmatpush1.msra.mxu0 0.0
        %2694 = vmatprep.subr.mxu0 0.0
        %2695 = vmatpush1.msra.mxu0 0.0
        %2696 = vmatprep.subr.mxu0 0.0
        %2697 = vmatpush1.msra.mxu0 0.0
        %2698 = vmatprep.subr.mxu0 0.0
        %2699 = vmatpush1.msra.mxu0 0.0
        %2700 = vmatprep.subr.mxu0 0.0
        %2701 = vmatpush1.msra.mxu0 0.0
        %2702 = vmatprep.subr.mxu0 0.0
        %2703 = vmatpush1.msra.mxu0 0.0
        %2704 = vmatprep.subr.mxu0 0.0
        %2705 = vmatpush1.msra.mxu0 0.0
        %2706 = vmatprep.subr.mxu0 0.0
        %2707 = vmatpush1.msra.mxu0 0.0
        %2708 = vmatprep.subr.mxu0 0.0
        %2709 = vmatpush1.msra.mxu0 0.0
        %2710 = vmatprep.subr.mxu0 0.0
        %2711 = vmatpush1.msra.mxu0 0.0
        %2712 = vmatprep.subr.mxu0 0.0
        %2713 = vmatpush1.msra.mxu0 0.0
        %2714 = vmatprep.subr.mxu0 0.0
        %2715 = vmatpush1.msra.mxu0 0.0
        %2716 = vmatprep.subr.mxu0 0.0
        %2717 = vmatpush1.msra.mxu0 0.0
        %2718 = vmatprep.subr.mxu0 0.0
        %2719 = vmatpush1.msra.mxu0 0.0
        %2720 = vmatprep.subr.mxu0 0.0
        %2721 = vmatpush1.msra.mxu0 0.0
        %2722 = vmatprep.subr.mxu0 0.0
        %2723 = vmatpush1.msra.mxu0 0.0
        %2724 = vmatprep.subr.mxu0 0.0
        %2725 = vmatpush1.msra.mxu0 0.0
        %2726 = vmatprep.subr.mxu0 0.0
        %2727 = vmatpush1.msra.mxu0 0.0
        %2728 = vmatprep.subr.mxu0 0.0
        %2729 = vmatpush1.msra.mxu0 0.0
        %2730 = vmatprep.subr.mxu0 0.0
        %2731 = vmatpush1.msra.mxu0 0.0
        %2732 = vmatprep.subr.mxu0 0.0
        %2733 = vmatpush1.msra.mxu0 0.0
        %2734 = vmatprep.subr.mxu0 0.0
        %2735 = vmatpush1.msra.mxu0 0.0
        %2736 = vmatprep.subr.mxu0 0.0
        %2737 = vmatpush1.msra.mxu0 0.0
        %2738 = vmatprep.subr.mxu0 0.0
        %2739 = vmatpush1.msra.mxu0 0.0
        %2740 = vmatprep.subr.mxu0 0.0
        %2741 = vmatpush1.msra.mxu0 0.0
        %2742 = vmatprep.subr.mxu0 0.0
        %2743 = vmatpush1.msra.mxu0 0.0
        %2744 = vmatprep.subr.mxu0 0.0
        %2745 = vmatpush1.msra.mxu0 0.0
        %2746 = vmatprep.mubr.f32.mxu0 0.0
        %v2747 = vand.u32 %v477, 4294901760
        %v2748 = vsub.f32 %v477, %v2747
        %2749 = vmatmul.mubr.f32.gmra.mrb[0].mxu0 %v2748
        %v2750 = vpop.f32.mrb[0].mxu0
        %v2751 = vadd.f32 %v2669, %v2750
        %v2752 = vpop.f32.mrb[0].mxu0
        %2753 = vmatprep.mubr.f32.mxu0 0.0
        %v2754 = vand.u32 %v480, 4294901760
        %v2755 = vsub.f32 %v480, %v2754
        %2756 = vmatmul.mubr.f32.gmra.mrb[0].mxu0 %v2755
        %v2757 = vpop.f32.mrb[0].mxu0
        %v2758 = vadd.f32 %v2675, %v2757
        %v2759 = vpop.f32.mrb[0].mxu0
        %2760 = vdwg.mxu0
        %2761 = vmatprep.subr.mxu0 0.0
        %v2762 = vand.u32 %v2502, 4294901760
        %2763 = vmatpush1.msra.mxu0 %v2762
        %2764 = vmatprep.subr.mxu0 0.0
        %v2765 = vand.u32 %v2503, 4294901760
        %2766 = vmatpush1.msra.mxu0 %v2765
        %2767 = vmatprep.subr.mxu0 0.0
        %2768 = vmatpush1.msra.mxu0 0.0
        %2769 = vmatprep.subr.mxu0 0.0
        %2770 = vmatpush1.msra.mxu0 0.0
        %2771 = vmatprep.subr.mxu0 0.0
        %2772 = vmatpush1.msra.mxu0 0.0
        %2773 = vmatprep.subr.mxu0 0.0
        %2774 = vmatpush1.msra.mxu0 0.0
        %2775 = vmatprep.subr.mxu0 0.0
        %2776 = vmatpush1.msra.mxu0 0.0
        %2777 = vmatprep.subr.mxu0 0.0
        %2778 = vmatpush1.msra.mxu0 0.0
        %2779 = vmatprep.subr.mxu0 0.0
        %2780 = vmatpush1.msra.mxu0 0.0
        %2781 = vmatprep.subr.mxu0 0.0
        %2782 = vmatpush1.msra.mxu0 0.0
        %2783 = vmatprep.subr.mxu0 0.0
        %2784 = vmatpush1.msra.mxu0 0.0
        %2785 = vmatprep.subr.mxu0 0.0
        %2786 = vmatpush1.msra.mxu0 0.0
        %2787 = vmatprep.subr.mxu0 0.0
        %2788 = vmatpush1.msra.mxu0 0.0
        %2789 = vmatprep.subr.mxu0 0.0
        %2790 = vmatpush1.msra.mxu0 0.0
        %2791 = vmatprep.subr.mxu0 0.0
        %2792 = vmatpush1.msra.mxu0 0.0
        %2793 = vmatprep.subr.mxu0 0.0
        %2794 = vmatpush1.msra.mxu0 0.0
        %2795 = vmatprep.subr.mxu0 0.0
        %2796 = vmatpush1.msra.mxu0 0.0
        %2797 = vmatprep.subr.mxu0 0.0
        %2798 = vmatpush1.msra.mxu0 0.0
        %2799 = vmatprep.subr.mxu0 0.0
        %2800 = vmatpush1.msra.mxu0 0.0
        %2801 = vmatprep.subr.mxu0 0.0
        %2802 = vmatpush1.msra.mxu0 0.0
        %2803 = vmatprep.subr.mxu0 0.0
        %2804 = vmatpush1.msra.mxu0 0.0
        %2805 = vmatprep.subr.mxu0 0.0
        %2806 = vmatpush1.msra.mxu0 0.0
        %2807 = vmatprep.subr.mxu0 0.0
        %2808 = vmatpush1.msra.mxu0 0.0
        %2809 = vmatprep.subr.mxu0 0.0
        %2810 = vmatpush1.msra.mxu0 0.0
        %2811 = vmatprep.subr.mxu0 0.0
        %2812 = vmatpush1.msra.mxu0 0.0
        %2813 = vmatprep.subr.mxu0 0.0
        %2814 = vmatpush1.msra.mxu0 0.0
        %2815 = vmatprep.subr.mxu0 0.0
        %2816 = vmatpush1.msra.mxu0 0.0
        %2817 = vmatprep.subr.mxu0 0.0
        %2818 = vmatpush1.msra.mxu0 0.0
        %2819 = vmatprep.subr.mxu0 0.0
        %2820 = vmatpush1.msra.mxu0 0.0
        %2821 = vmatprep.subr.mxu0 0.0
        %2822 = vmatpush1.msra.mxu0 0.0
        %2823 = vmatprep.subr.mxu0 0.0
        %2824 = vmatpush1.msra.mxu0 0.0
        %2825 = vmatprep.subr.mxu0 0.0
        %2826 = vmatpush1.msra.mxu0 0.0
        %2827 = vmatprep.mubr.f32.mxu0 0.0
        %v2828 = vand.u32 %v477, 4294901760
        %v2829 = vsub.f32 %v477, %v2828
        %v2830 = vand.u32 %v2829, 4294901760
        %2831 = vmatmul.mubr.f32.gmra.mrb[0].mxu0 %v2830
        %v2832 = vpop.f32.mrb[0].mxu0
        %v2833 = vadd.f32 %v2751, %v2832
        %v2834 = vpop.f32.mrb[0].mxu0
        %2835 = vmatprep.mubr.f32.mxu0 0.0
        %v2836 = vand.u32 %v480, 4294901760
        %v2837 = vsub.f32 %v480, %v2836
        %v2838 = vand.u32 %v2837, 4294901760
        %2839 = vmatmul.mubr.f32.gmra.mrb[0].mxu0 %v2838
        %v2840 = vpop.f32.mrb[0].mxu0
        %v2841 = vadd.f32 %v2758, %v2840
        %v2842 = vpop.f32.mrb[0].mxu0
        %2843 = vdwg.mxu0
        %2844 = vmatprep.subr.mxu0 0.0
        %v2845 = vand.u32 %v2502, 4294901760
        %v2846 = vsub.f32 %v2502, %v2845
        %v2847 = vand.u32 %v2846, 4294901760
        %2848 = vmatpush1.msra.mxu0 %v2847
        %2849 = vmatprep.subr.mxu0 0.0
        %v2850 = vand.u32 %v2503, 4294901760
        %v2851 = vsub.f32 %v2503, %v2850
        %v2852 = vand.u32 %v2851, 4294901760
        %2853 = vmatpush1.msra.mxu0 %v2852
        %2854 = vmatprep.subr.mxu0 0.0
        %2855 = vmatpush1.msra.mxu0 0.0
        %2856 = vmatprep.subr.mxu0 0.0
        %2857 = vmatpush1.msra.mxu0 0.0
        %2858 = vmatprep.subr.mxu0 0.0
        %2859 = vmatpush1.msra.mxu0 0.0
        %2860 = vmatprep.subr.mxu0 0.0
        %2861 = vmatpush1.msra.mxu0 0.0
        %2862 = vmatprep.subr.mxu0 0.0
        %2863 = vmatpush1.msra.mxu0 0.0
        %2864 = vmatprep.subr.mxu0 0.0
        %2865 = vmatpush1.msra.mxu0 0.0
        %2866 = vmatprep.subr.mxu0 0.0
        %2867 = vmatpush1.msra.mxu0 0.0
        %2868 = vmatprep.subr.mxu0 0.0
        %2869 = vmatpush1.msra.mxu0 0.0
        %2870 = vmatprep.subr.mxu0 0.0
        %2871 = vmatpush1.msra.mxu0 0.0
        %2872 = vmatprep.subr.mxu0 0.0
        %2873 = vmatpush1.msra.mxu0 0.0
        %2874 = vmatprep.subr.mxu0 0.0
        %2875 = vmatpush1.msra.mxu0 0.0
        %2876 = vmatprep.subr.mxu0 0.0
        %2877 = vmatpush1.msra.mxu0 0.0
        %2878 = vmatprep.subr.mxu0 0.0
        %2879 = vmatpush1.msra.mxu0 0.0
        %2880 = vmatprep.subr.mxu0 0.0
        %2881 = vmatpush1.msra.mxu0 0.0
        %2882 = vmatprep.subr.mxu0 0.0
        %2883 = vmatpush1.msra.mxu0 0.0
        %2884 = vmatprep.subr.mxu0 0.0
        %2885 = vmatpush1.msra.mxu0 0.0
        %2886 = vmatprep.subr.mxu0 0.0
        %2887 = vmatpush1.msra.mxu0 0.0
        %2888 = vmatprep.subr.mxu0 0.0
        %2889 = vmatpush1.msra.mxu0 0.0
        %2890 = vmatprep.subr.mxu0 0.0
        %2891 = vmatpush1.msra.mxu0 0.0
        %2892 = vmatprep.subr.mxu0 0.0
        %2893 = vmatpush1.msra.mxu0 0.0
        %2894 = vmatprep.subr.mxu0 0.0
        %2895 = vmatpush1.msra.mxu0 0.0
        %2896 = vmatprep.subr.mxu0 0.0
        %2897 = vmatpush1.msra.mxu0 0.0
        %2898 = vmatprep.subr.mxu0 0.0
        %2899 = vmatpush1.msra.mxu0 0.0
        %2900 = vmatprep.subr.mxu0 0.0
        %2901 = vmatpush1.msra.mxu0 0.0
        %2902 = vmatprep.subr.mxu0 0.0
        %2903 = vmatpush1.msra.mxu0 0.0
        %2904 = vmatprep.subr.mxu0 0.0
        %2905 = vmatpush1.msra.mxu0 0.0
        %2906 = vmatprep.subr.mxu0 0.0
        %2907 = vmatpush1.msra.mxu0 0.0
        %2908 = vmatprep.subr.mxu0 0.0
        %2909 = vmatpush1.msra.mxu0 0.0
        %2910 = vmatprep.subr.mxu0 0.0
        %2911 = vmatpush1.msra.mxu0 0.0
        %2912 = vmatprep.subr.mxu0 0.0
        %2913 = vmatpush1.msra.mxu0 0.0
        %2914 = vmatprep.mubr.f32.mxu0 0.0
        %v2915 = vand.u32 %v477, 4294901760
        %2916 = vmatmul.mubr.f32.gmra.mrb[0].mxu0 %v2915
        %v2917 = vpop.f32.mrb[0].mxu0
        %v2918 = vadd.f32 %v2833, %v2917
        %v2919 = vpop.f32.mrb[0].mxu0
        %2920 = vmatprep.mubr.f32.mxu0 0.0
        %v2921 = vand.u32 %v480, 4294901760
        %2922 = vmatmul.mubr.f32.gmra.mrb[0].mxu0 %v2921
        %v2923 = vpop.f32.mrb[0].mxu0
        %v2924 = vadd.f32 %v2841, %v2923
        %v2925 = vpop.f32.mrb[0].mxu0
        %2926 = vdwg.mxu0
        %2927 = vmatprep.subr.mxu0 0.0
        %v2928 = vand.u32 %v2502, 4294901760
        %2929 = vmatpush1.msra.mxu0 %v2928
        %2930 = vmatprep.subr.mxu0 0.0
        %v2931 = vand.u32 %v2503, 4294901760
        %2932 = vmatpush1.msra.mxu0 %v2931
        %2933 = vmatprep.subr.mxu0 0.0
        %2934 = vmatpush1.msra.mxu0 0.0
        %2935 = vmatprep.subr.mxu0 0.0
        %2936 = vmatpush1.msra.mxu0 0.0
        %2937 = vmatprep.subr.mxu0 0.0
        %2938 = vmatpush1.msra.mxu0 0.0
        %2939 = vmatprep.subr.mxu0 0.0
        %2940 = vmatpush1.msra.mxu0 0.0
        %2941 = vmatprep.subr.mxu0 0.0
        %2942 = vmatpush1.msra.mxu0 0.0
        %2943 = vmatprep.subr.mxu0 0.0
        %2944 = vmatpush1.msra.mxu0 0.0
        %2945 = vmatprep.subr.mxu0 0.0
        %2946 = vmatpush1.msra.mxu0 0.0
        %2947 = vmatprep.subr.mxu0 0.0
        %2948 = vmatpush1.msra.mxu0 0.0
        %2949 = vmatprep.subr.mxu0 0.0
        %2950 = vmatpush1.msra.mxu0 0.0
        %2951 = vmatprep.subr.mxu0 0.0
        %2952 = vmatpush1.msra.mxu0 0.0
        %2953 = vmatprep.subr.mxu0 0.0
        %2954 = vmatpush1.msra.mxu0 0.0
        %2955 = vmatprep.subr.mxu0 0.0
        %2956 = vmatpush1.msra.mxu0 0.0
        %2957 = vmatprep.subr.mxu0 0.0
        %2958 = vmatpush1.msra.mxu0 0.0
        %2959 = vmatprep.subr.mxu0 0.0
        %2960 = vmatpush1.msra.mxu0 0.0
        %2961 = vmatprep.subr.mxu0 0.0
        %2962 = vmatpush1.msra.mxu0 0.0
        %2963 = vmatprep.subr.mxu0 0.0
        %2964 = vmatpush1.msra.mxu0 0.0
        %2965 = vmatprep.subr.mxu0 0.0
        %2966 = vmatpush1.msra.mxu0 0.0
        %2967 = vmatprep.subr.mxu0 0.0
        %2968 = vmatpush1.msra.mxu0 0.0
        %2969 = vmatprep.subr.mxu0 0.0
        %2970 = vmatpush1.msra.mxu0 0.0
        %2971 = vmatprep.subr.mxu0 0.0
        %2972 = vmatpush1.msra.mxu0 0.0
        %2973 = vmatprep.subr.mxu0 0.0
        %2974 = vmatpush1.msra.mxu0 0.0
        %2975 = vmatprep.subr.mxu0 0.0
        %2976 = vmatpush1.msra.mxu0 0.0
        %2977 = vmatprep.subr.mxu0 0.0
        %2978 = vmatpush1.msra.mxu0 0.0
        %2979 = vmatprep.subr.mxu0 0.0
        %2980 = vmatpush1.msra.mxu0 0.0
        %2981 = vmatprep.subr.mxu0 0.0
        %2982 = vmatpush1.msra.mxu0 0.0
        %2983 = vmatprep.subr.mxu0 0.0
        %2984 = vmatpush1.msra.mxu0 0.0
        %2985 = vmatprep.subr.mxu0 0.0
        %2986 = vmatpush1.msra.mxu0 0.0
        %2987 = vmatprep.subr.mxu0 0.0
        %2988 = vmatpush1.msra.mxu0 0.0
        %2989 = vmatprep.subr.mxu0 0.0
        %2990 = vmatpush1.msra.mxu0 0.0
        %2991 = vmatprep.subr.mxu0 0.0
        %2992 = vmatpush1.msra.mxu0 0.0
        %2993 = vmatprep.mubr.f32.mxu0 0.0
        %v2994 = vand.u32 %v477, 4294901760
        %2995 = vmatmul.mubr.f32.gmra.mrb[0].mxu0 %v2994
        %v2996 = vpop.f32.mrb[0].mxu0
        %v2997 = vadd.f32 %v2918, %v2996
        %v2998 = vpop.f32.mrb[0].mxu0
        %2999 = vmatprep.mubr.f32.mxu0 0.0
        %v3000 = vand.u32 %v480, 4294901760
        %3001 = vmatmul.mubr.f32.gmra.mrb[0].mxu0 %v3000
        %v3002 = vpop.f32.mrb[0].mxu0
        %v3003 = vadd.f32 %v2924, %v3002
        %v3004 = vpop.f32.mrb[0].mxu0
        %3005 = vdwg.mxu0
        %v3007 = vsel %vm463, %v2997, 0
        %v3010 = vsel %vm463, %v3003, 0
        %3012 = vmatprep.subr.mxu0 0.0
        %v3013 = vand.u32 %v453, 4294901760
        %3014 = vmatpush1.msra.mxu0 %v3013
        %3015 = vmatprep.subr.mxu0 0.0
        %v3016 = vand.u32 %v454, 4294901760
        %3017 = vmatpush1.msra.mxu0 %v3016
        %3018 = vmatprep.subr.mxu0 0.0
        %3019 = vmatpush1.msra.mxu0 0.0
        %3020 = vmatprep.subr.mxu0 0.0
        %3021 = vmatpush1.msra.mxu0 0.0
        %3022 = vmatprep.subr.mxu0 0.0
        %3023 = vmatpush1.msra.mxu0 0.0
        %3024 = vmatprep.subr.mxu0 0.0
        %3025 = vmatpush1.msra.mxu0 0.0
        %3026 = vmatprep.subr.mxu0 0.0
        %3027 = vmatpush1.msra.mxu0 0.0
        %3028 = vmatprep.subr.mxu0 0.0
        %3029 = vmatpush1.msra.mxu0 0.0
        %3030 = vmatprep.subr.mxu0 0.0
        %3031 = vmatpush1.msra.mxu0 0.0
        %3032 = vmatprep.subr.mxu0 0.0
        %3033 = vmatpush1.msra.mxu0 0.0
        %3034 = vmatprep.subr.mxu0 0.0
        %3035 = vmatpush1.msra.mxu0 0.0
        %3036 = vmatprep.subr.mxu0 0.0
        %3037 = vmatpush1.msra.mxu0 0.0
        %3038 = vmatprep.subr.mxu0 0.0
        %3039 = vmatpush1.msra.mxu0 0.0
        %3040 = vmatprep.subr.mxu0 0.0
        %3041 = vmatpush1.msra.mxu0 0.0
        %3042 = vmatprep.subr.mxu0 0.0
        %3043 = vmatpush1.msra.mxu0 0.0
        %3044 = vmatprep.subr.mxu0 0.0
        %3045 = vmatpush1.msra.mxu0 0.0
        %3046 = vmatprep.subr.mxu0 0.0
        %3047 = vmatpush1.msra.mxu0 0.0
        %3048 = vmatprep.subr.mxu0 0.0
        %3049 = vmatpush1.msra.mxu0 0.0
        %3050 = vmatprep.subr.mxu0 0.0
        %3051 = vmatpush1.msra.mxu0 0.0
        %3052 = vmatprep.subr.mxu0 0.0
        %3053 = vmatpush1.msra.mxu0 0.0
        %3054 = vmatprep.subr.mxu0 0.0
        %3055 = vmatpush1.msra.mxu0 0.0
        %3056 = vmatprep.subr.mxu0 0.0
        %3057 = vmatpush1.msra.mxu0 0.0
        %3058 = vmatprep.subr.mxu0 0.0
        %3059 = vmatpush1.msra.mxu0 0.0
        %3060 = vmatprep.subr.mxu0 0.0
        %3061 = vmatpush1.msra.mxu0 0.0
        %3062 = vmatprep.subr.mxu0 0.0
        %3063 = vmatpush1.msra.mxu0 0.0
        %3064 = vmatprep.subr.mxu0 0.0
        %3065 = vmatpush1.msra.mxu0 0.0
        %3066 = vmatprep.subr.mxu0 0.0
        %3067 = vmatpush1.msra.mxu0 0.0
        %3068 = vmatprep.subr.mxu0 0.0
        %3069 = vmatpush1.msra.mxu0 0.0
        %3070 = vmatprep.subr.mxu0 0.0
        %3071 = vmatpush1.msra.mxu0 0.0
        %3072 = vmatprep.subr.mxu0 0.0
        %3073 = vmatpush1.msra.mxu0 0.0
        %3074 = vmatprep.subr.mxu0 0.0
        %3075 = vmatpush1.msra.mxu0 0.0
        %3076 = vmatprep.subr.mxu0 0.0
        %3077 = vmatpush1.msra.mxu0 0.0
        %3078 = vmatprep.mubr.f32.mxu0 0.0
        %v3079 = vand.u32 %v3007, 4294901760
        %v3080 = vsub.f32 %v3007, %v3079
        %v3081 = vand.u32 %v3080, 4294901760
        %v3082 = vsub.f32 %v3080, %v3081
        %v3083 = vand.u32 %v3082, 4294901760
        %3084 = vmatmul.mubr.f32.gmra.mrb[0].mxu0 %v3083
        %v3085 = vpop.f32.mrb[0].mxu0
        %v3086 = vadd.f32 0.0, %v3085
        %v3087 = vpop.f32.mrb[0].mxu0
        %3088 = vmatprep.mubr.f32.mxu0 0.0
        %v3089 = vand.u32 %v3010, 4294901760
        %v3090 = vsub.f32 %v3010, %v3089
        %v3091 = vand.u32 %v3090, 4294901760
        %v3092 = vsub.f32 %v3090, %v3091
        %v3093 = vand.u32 %v3092, 4294901760
        %3094 = vmatmul.mubr.f32.gmra.mrb[0].mxu0 %v3093
        %v3095 = vpop.f32.mrb[0].mxu0
        %v3096 = vadd.f32 0.0, %v3095
        %v3097 = vpop.f32.mrb[0].mxu0
        %3098 = vdwg.mxu0
        %3099 = vmatprep.subr.mxu0 0.0
        %v3100 = vand.u32 %v453, 4294901760
        %v3101 = vsub.f32 %v453, %v3100
        %v3102 = vand.u32 %v3101, 4294901760
        %v3103 = vsub.f32 %v3101, %v3102
        %v3104 = vand.u32 %v3103, 4294901760
        %3105 = vmatpush1.msra.mxu0 %v3104
        %3106 = vmatprep.subr.mxu0 0.0
        %v3107 = vand.u32 %v454, 4294901760
        %v3108 = vsub.f32 %v454, %v3107
        %v3109 = vand.u32 %v3108, 4294901760
        %v3110 = vsub.f32 %v3108, %v3109
        %v3111 = vand.u32 %v3110, 4294901760
        %3112 = vmatpush1.msra.mxu0 %v3111
        %3113 = vmatprep.subr.mxu0 0.0
        %3114 = vmatpush1.msra.mxu0 0.0
        %3115 = vmatprep.subr.mxu0 0.0
        %3116 = vmatpush1.msra.mxu0 0.0
        %3117 = vmatprep.subr.mxu0 0.0
        %3118 = vmatpush1.msra.mxu0 0.0
        %3119 = vmatprep.subr.mxu0 0.0
        %3120 = vmatpush1.msra.mxu0 0.0
        %3121 = vmatprep.subr.mxu0 0.0
        %3122 = vmatpush1.msra.mxu0 0.0
        %3123 = vmatprep.subr.mxu0 0.0
        %3124 = vmatpush1.msra.mxu0 0.0
        %3125 = vmatprep.subr.mxu0 0.0
        %3126 = vmatpush1.msra.mxu0 0.0
        %3127 = vmatprep.subr.mxu0 0.0
        %3128 = vmatpush1.msra.mxu0 0.0
        %3129 = vmatprep.subr.mxu0 0.0
        %3130 = vmatpush1.msra.mxu0 0.0
        %3131 = vmatprep.subr.mxu0 0.0
        %3132 = vmatpush1.msra.mxu0 0.0
        %3133 = vmatprep.subr.mxu0 0.0
        %3134 = vmatpush1.msra.mxu0 0.0
        %3135 = vmatprep.subr.mxu0 0.0
        %3136 = vmatpush1.msra.mxu0 0.0
        %3137 = vmatprep.subr.mxu0 0.0
        %3138 = vmatpush1.msra.mxu0 0.0
        %3139 = vmatprep.subr.mxu0 0.0
        %3140 = vmatpush1.msra.mxu0 0.0
        %3141 = vmatprep.subr.mxu0 0.0
        %3142 = vmatpush1.msra.mxu0 0.0
        %3143 = vmatprep.subr.mxu0 0.0
        %3144 = vmatpush1.msra.mxu0 0.0
        %3145 = vmatprep.subr.mxu0 0.0
        %3146 = vmatpush1.msra.mxu0 0.0
        %3147 = vmatprep.subr.mxu0 0.0
        %3148 = vmatpush1.msra.mxu0 0.0
        %3149 = vmatprep.subr.mxu0 0.0
        %3150 = vmatpush1.msra.mxu0 0.0
        %3151 = vmatprep.subr.mxu0 0.0
        %3152 = vmatpush1.msra.mxu0 0.0
        %3153 = vmatprep.subr.mxu0 0.0
        %3154 = vmatpush1.msra.mxu0 0.0
        %3155 = vmatprep.subr.mxu0 0.0
        %3156 = vmatpush1.msra.mxu0 0.0
        %3157 = vmatprep.subr.mxu0 0.0
        %3158 = vmatpush1.msra.mxu0 0.0
        %3159 = vmatprep.subr.mxu0 0.0
        %3160 = vmatpush1.msra.mxu0 0.0
        %3161 = vmatprep.subr.mxu0 0.0
        %3162 = vmatpush1.msra.mxu0 0.0
        %3163 = vmatprep.subr.mxu0 0.0
        %3164 = vmatpush1.msra.mxu0 0.0
        %3165 = vmatprep.subr.mxu0 0.0
        %3166 = vmatpush1.msra.mxu0 0.0
        %3167 = vmatprep.subr.mxu0 0.0
        %3168 = vmatpush1.msra.mxu0 0.0
        %3169 = vmatprep.subr.mxu0 0.0
        %3170 = vmatpush1.msra.mxu0 0.0
        %3171 = vmatprep.subr.mxu0 0.0
        %3172 = vmatpush1.msra.mxu0 0.0
        %3173 = vmatprep.mubr.f32.mxu0 0.0
        %v3174 = vand.u32 %v3007, 4294901760
        %3175 = vmatmul.mubr.f32.gmra.mrb[0].mxu0 %v3174
        %v3176 = vpop.f32.mrb[0].mxu0
        %v3177 = vadd.f32 %v3086, %v3176
        %v3178 = vpop.f32.mrb[0].mxu0
        %3179 = vmatprep.mubr.f32.mxu0 0.0
        %v3180 = vand.u32 %v3010, 4294901760
        %3181 = vmatmul.mubr.f32.gmra.mrb[0].mxu0 %v3180
        %v3182 = vpop.f32.mrb[0].mxu0
        %v3183 = vadd.f32 %v3096, %v3182
        %v3184 = vpop.f32.mrb[0].mxu0
        %3185 = vdwg.mxu0
        %3186 = vmatprep.subr.mxu0 0.0
        %v3187 = vand.u32 %v453, 4294901760
        %v3188 = vsub.f32 %v453, %v3187
        %3189 = vmatpush1.msra.mxu0 %v3188
        %3190 = vmatprep.subr.mxu0 0.0
        %v3191 = vand.u32 %v454, 4294901760
        %v3192 = vsub.f32 %v454, %v3191
        %3193 = vmatpush1.msra.mxu0 %v3192
        %3194 = vmatprep.subr.mxu0 0.0
        %3195 = vmatpush1.msra.mxu0 0.0
        %3196 = vmatprep.subr.mxu0 0.0
        %3197 = vmatpush1.msra.mxu0 0.0
        %3198 = vmatprep.subr.mxu0 0.0
        %3199 = vmatpush1.msra.mxu0 0.0
        %3200 = vmatprep.subr.mxu0 0.0
        %3201 = vmatpush1.msra.mxu0 0.0
        %3202 = vmatprep.subr.mxu0 0.0
        %3203 = vmatpush1.msra.mxu0 0.0
        %3204 = vmatprep.subr.mxu0 0.0
        %3205 = vmatpush1.msra.mxu0 0.0
        %3206 = vmatprep.subr.mxu0 0.0
        %3207 = vmatpush1.msra.mxu0 0.0
        %3208 = vmatprep.subr.mxu0 0.0
        %3209 = vmatpush1.msra.mxu0 0.0
        %3210 = vmatprep.subr.mxu0 0.0
        %3211 = vmatpush1.msra.mxu0 0.0
        %3212 = vmatprep.subr.mxu0 0.0
        %3213 = vmatpush1.msra.mxu0 0.0
        %3214 = vmatprep.subr.mxu0 0.0
        %3215 = vmatpush1.msra.mxu0 0.0
        %3216 = vmatprep.subr.mxu0 0.0
        %3217 = vmatpush1.msra.mxu0 0.0
        %3218 = vmatprep.subr.mxu0 0.0
        %3219 = vmatpush1.msra.mxu0 0.0
        %3220 = vmatprep.subr.mxu0 0.0
        %3221 = vmatpush1.msra.mxu0 0.0
        %3222 = vmatprep.subr.mxu0 0.0
        %3223 = vmatpush1.msra.mxu0 0.0
        %3224 = vmatprep.subr.mxu0 0.0
        %3225 = vmatpush1.msra.mxu0 0.0
        %3226 = vmatprep.subr.mxu0 0.0
        %3227 = vmatpush1.msra.mxu0 0.0
        %3228 = vmatprep.subr.mxu0 0.0
        %3229 = vmatpush1.msra.mxu0 0.0
        %3230 = vmatprep.subr.mxu0 0.0
        %3231 = vmatpush1.msra.mxu0 0.0
        %3232 = vmatprep.subr.mxu0 0.0
        %3233 = vmatpush1.msra.mxu0 0.0
        %3234 = vmatprep.subr.mxu0 0.0
        %3235 = vmatpush1.msra.mxu0 0.0
        %3236 = vmatprep.subr.mxu0 0.0
        %3237 = vmatpush1.msra.mxu0 0.0
        %3238 = vmatprep.subr.mxu0 0.0
        %3239 = vmatpush1.msra.mxu0 0.0
        %3240 = vmatprep.subr.mxu0 0.0
        %3241 = vmatpush1.msra.mxu0 0.0
        %3242 = vmatprep.subr.mxu0 0.0
        %3243 = vmatpush1.msra.mxu0 0.0
        %3244 = vmatprep.subr.mxu0 0.0
        %3245 = vmatpush1.msra.mxu0 0.0
        %3246 = vmatprep.subr.mxu0 0.0
        %3247 = vmatpush1.msra.mxu0 0.0
        %3248 = vmatprep.subr.mxu0 0.0
        %3249 = vmatpush1.msra.mxu0 0.0
        %3250 = vmatprep.subr.mxu0 0.0
        %3251 = vmatpush1.msra.mxu0 0.0
        %3252 = vmatprep.subr.mxu0 0.0
        %3253 = vmatpush1.msra.mxu0 0.0
        %3254 = vmatprep.mubr.f32.mxu0 0.0
        %v3255 = vand.u32 %v3007, 4294901760
        %v3256 = vsub.f32 %v3007, %v3255
        %3257 = vmatmul.mubr.f32.gmra.mrb[0].mxu0 %v3256
        %v3258 = vpop.f32.mrb[0].mxu0
        %v3259 = vadd.f32 %v3177, %v3258
        %v3260 = vpop.f32.mrb[0].mxu0
        %3261 = vmatprep.mubr.f32.mxu0 0.0
        %v3262 = vand.u32 %v3010, 4294901760
        %v3263 = vsub.f32 %v3010, %v3262
        %3264 = vmatmul.mubr.f32.gmra.mrb[0].mxu0 %v3263
        %v3265 = vpop.f32.mrb[0].mxu0
        %v3266 = vadd.f32 %v3183, %v3265
        %v3267 = vpop.f32.mrb[0].mxu0
        %3268 = vdwg.mxu0
        %3269 = vmatprep.subr.mxu0 0.0
        %v3270 = vand.u32 %v453, 4294901760
        %3271 = vmatpush1.msra.mxu0 %v3270
        %3272 = vmatprep.subr.mxu0 0.0
        %v3273 = vand.u32 %v454, 4294901760
        %3274 = vmatpush1.msra.mxu0 %v3273
        %3275 = vmatprep.subr.mxu0 0.0
        %3276 = vmatpush1.msra.mxu0 0.0
        %3277 = vmatprep.subr.mxu0 0.0
        %3278 = vmatpush1.msra.mxu0 0.0
        %3279 = vmatprep.subr.mxu0 0.0
        %3280 = vmatpush1.msra.mxu0 0.0
        %3281 = vmatprep.subr.mxu0 0.0
        %3282 = vmatpush1.msra.mxu0 0.0
        %3283 = vmatprep.subr.mxu0 0.0
        %3284 = vmatpush1.msra.mxu0 0.0
        %3285 = vmatprep.subr.mxu0 0.0
        %3286 = vmatpush1.msra.mxu0 0.0
        %3287 = vmatprep.subr.mxu0 0.0
        %3288 = vmatpush1.msra.mxu0 0.0
        %3289 = vmatprep.subr.mxu0 0.0
        %3290 = vmatpush1.msra.mxu0 0.0
        %3291 = vmatprep.subr.mxu0 0.0
        %3292 = vmatpush1.msra.mxu0 0.0
        %3293 = vmatprep.subr.mxu0 0.0
        %3294 = vmatpush1.msra.mxu0 0.0
        %3295 = vmatprep.subr.mxu0 0.0
        %3296 = vmatpush1.msra.mxu0 0.0
        %3297 = vmatprep.subr.mxu0 0.0
        %3298 = vmatpush1.msra.mxu0 0.0
        %3299 = vmatprep.subr.mxu0 0.0
        %3300 = vmatpush1.msra.mxu0 0.0
        %3301 = vmatprep.subr.mxu0 0.0
        %3302 = vmatpush1.msra.mxu0 0.0
        %3303 = vmatprep.subr.mxu0 0.0
        %3304 = vmatpush1.msra.mxu0 0.0
        %3305 = vmatprep.subr.mxu0 0.0
        %3306 = vmatpush1.msra.mxu0 0.0
        %3307 = vmatprep.subr.mxu0 0.0
        %3308 = vmatpush1.msra.mxu0 0.0
        %3309 = vmatprep.subr.mxu0 0.0
        %3310 = vmatpush1.msra.mxu0 0.0
        %3311 = vmatprep.subr.mxu0 0.0
        %3312 = vmatpush1.msra.mxu0 0.0
        %3313 = vmatprep.subr.mxu0 0.0
        %3314 = vmatpush1.msra.mxu0 0.0
        %3315 = vmatprep.subr.mxu0 0.0
        %3316 = vmatpush1.msra.mxu0 0.0
        %3317 = vmatprep.subr.mxu0 0.0
        %3318 = vmatpush1.msra.mxu0 0.0
        %3319 = vmatprep.subr.mxu0 0.0
        %3320 = vmatpush1.msra.mxu0 0.0
        %3321 = vmatprep.subr.mxu0 0.0
        %3322 = vmatpush1.msra.mxu0 0.0
        %3323 = vmatprep.subr.mxu0 0.0
        %3324 = vmatpush1.msra.mxu0 0.0
        %3325 = vmatprep.subr.mxu0 0.0
        %3326 = vmatpush1.msra.mxu0 0.0
        %3327 = vmatprep.subr.mxu0 0.0
        %3328 = vmatpush1.msra.mxu0 0.0
        %3329 = vmatprep.subr.mxu0 0.0
        %3330 = vmatpush1.msra.mxu0 0.0
        %3331 = vmatprep.subr.mxu0 0.0
        %3332 = vmatpush1.msra.mxu0 0.0
        %3333 = vmatprep.subr.mxu0 0.0
        %3334 = vmatpush1.msra.mxu0 0.0
        %3335 = vmatprep.mubr.f32.mxu0 0.0
        %v3336 = vand.u32 %v3007, 4294901760
        %v3337 = vsub.f32 %v3007, %v3336
        %v3338 = vand.u32 %v3337, 4294901760
        %3339 = vmatmul.mubr.f32.gmra.mrb[0].mxu0 %v3338
        %v3340 = vpop.f32.mrb[0].mxu0
        %v3341 = vadd.f32 %v3259, %v3340
        %v3342 = vpop.f32.mrb[0].mxu0
        %3343 = vmatprep.mubr.f32.mxu0 0.0
        %v3344 = vand.u32 %v3010, 4294901760
        %v3345 = vsub.f32 %v3010, %v3344
        %v3346 = vand.u32 %v3345, 4294901760
        %3347 = vmatmul.mubr.f32.gmra.mrb[0].mxu0 %v3346
        %v3348 = vpop.f32.mrb[0].mxu0
        %v3349 = vadd.f32 %v3266, %v3348
        %v3350 = vpop.f32.mrb[0].mxu0
        %3351 = vdwg.mxu0
        %3352 = vmatprep.subr.mxu0 0.0
        %v3353 = vand.u32 %v453, 4294901760
        %v3354 = vsub.f32 %v453, %v3353
        %v3355 = vand.u32 %v3354, 4294901760
        %3356 = vmatpush1.msra.mxu0 %v3355
        %3357 = vmatprep.subr.mxu0 0.0
        %v3358 = vand.u32 %v454, 4294901760
        %v3359 = vsub.f32 %v454, %v3358
        %v3360 = vand.u32 %v3359, 4294901760
        %3361 = vmatpush1.msra.mxu0 %v3360
        %3362 = vmatprep.subr.mxu0 0.0
        %3363 = vmatpush1.msra.mxu0 0.0
        %3364 = vmatprep.subr.mxu0 0.0
        %3365 = vmatpush1.msra.mxu0 0.0
        %3366 = vmatprep.subr.mxu0 0.0
        %3367 = vmatpush1.msra.mxu0 0.0
        %3368 = vmatprep.subr.mxu0 0.0
        %3369 = vmatpush1.msra.mxu0 0.0
        %3370 = vmatprep.subr.mxu0 0.0
        %3371 = vmatpush1.msra.mxu0 0.0
        %3372 = vmatprep.subr.mxu0 0.0
        %3373 = vmatpush1.msra.mxu0 0.0
        %3374 = vmatprep.subr.mxu0 0.0
        %3375 = vmatpush1.msra.mxu0 0.0
        %3376 = vmatprep.subr.mxu0 0.0
        %3377 = vmatpush1.msra.mxu0 0.0
        %3378 = vmatprep.subr.mxu0 0.0
        %3379 = vmatpush1.msra.mxu0 0.0
        %3380 = vmatprep.subr.mxu0 0.0
        %3381 = vmatpush1.msra.mxu0 0.0
        %3382 = vmatprep.subr.mxu0 0.0
        %3383 = vmatpush1.msra.mxu0 0.0
        %3384 = vmatprep.subr.mxu0 0.0
        %3385 = vmatpush1.msra.mxu0 0.0
        %3386 = vmatprep.subr.mxu0 0.0
        %3387 = vmatpush1.msra.mxu0 0.0
        %3388 = vmatprep.subr.mxu0 0.0
        %3389 = vmatpush1.msra.mxu0 0.0
        %3390 = vmatprep.subr.mxu0 0.0
        %3391 = vmatpush1.msra.mxu0 0.0
        %3392 = vmatprep.subr.mxu0 0.0
        %3393 = vmatpush1.msra.mxu0 0.0
        %3394 = vmatprep.subr.mxu0 0.0
        %3395 = vmatpush1.msra.mxu0 0.0
        %3396 = vmatprep.subr.mxu0 0.0
        %3397 = vmatpush1.msra.mxu0 0.0
        %3398 = vmatprep.subr.mxu0 0.0
        %3399 = vmatpush1.msra.mxu0 0.0
        %3400 = vmatprep.subr.mxu0 0.0
        %3401 = vmatpush1.msra.mxu0 0.0
        %3402 = vmatprep.subr.mxu0 0.0
        %3403 = vmatpush1.msra.mxu0 0.0
        %3404 = vmatprep.subr.mxu0 0.0
        %3405 = vmatpush1.msra.mxu0 0.0
        %3406 = vmatprep.subr.mxu0 0.0
        %3407 = vmatpush1.msra.mxu0 0.0
        %3408 = vmatprep.subr.mxu0 0.0
        %3409 = vmatpush1.msra.mxu0 0.0
        %3410 = vmatprep.subr.mxu0 0.0
        %3411 = vmatpush1.msra.mxu0 0.0
        %3412 = vmatprep.subr.mxu0 0.0
        %3413 = vmatpush1.msra.mxu0 0.0
        %3414 = vmatprep.subr.mxu0 0.0
        %3415 = vmatpush1.msra.mxu0 0.0
        %3416 = vmatprep.subr.mxu0 0.0
        %3417 = vmatpush1.msra.mxu0 0.0
        %3418 = vmatprep.subr.mxu0 0.0
        %3419 = vmatpush1.msra.mxu0 0.0
        %3420 = vmatprep.subr.mxu0 0.0
        %3421 = vmatpush1.msra.mxu0 0.0
        %3422 = vmatprep.mubr.f32.mxu0 0.0
        %v3423 = vand.u32 %v3007, 4294901760
        %3424 = vmatmul.mubr.f32.gmra.mrb[0].mxu0 %v3423
        %v3425 = vpop.f32.mrb[0].mxu0
        %v3426 = vadd.f32 %v3341, %v3425
        %v3427 = vpop.f32.mrb[0].mxu0
        %3428 = vmatprep.mubr.f32.mxu0 0.0
        %v3429 = vand.u32 %v3010, 4294901760
        %3430 = vmatmul.mubr.f32.gmra.mrb[0].mxu0 %v3429
        %v3431 = vpop.f32.mrb[0].mxu0
        %v3432 = vadd.f32 %v3349, %v3431
        %v3433 = vpop.f32.mrb[0].mxu0
        %3434 = vdwg.mxu0
        %3435 = vmatprep.subr.mxu0 0.0
        %v3436 = vand.u32 %v453, 4294901760
        %3437 = vmatpush1.msra.mxu0 %v3436
        %3438 = vmatprep.subr.mxu0 0.0
        %v3439 = vand.u32 %v454, 4294901760
        %3440 = vmatpush1.msra.mxu0 %v3439
        %3441 = vmatprep.subr.mxu0 0.0
        %3442 = vmatpush1.msra.mxu0 0.0
        %3443 = vmatprep.subr.mxu0 0.0
        %3444 = vmatpush1.msra.mxu0 0.0
        %3445 = vmatprep.subr.mxu0 0.0
        %3446 = vmatpush1.msra.mxu0 0.0
        %3447 = vmatprep.subr.mxu0 0.0
        %3448 = vmatpush1.msra.mxu0 0.0
        %3449 = vmatprep.subr.mxu0 0.0
        %3450 = vmatpush1.msra.mxu0 0.0
        %3451 = vmatprep.subr.mxu0 0.0
        %3452 = vmatpush1.msra.mxu0 0.0
        %3453 = vmatprep.subr.mxu0 0.0
        %3454 = vmatpush1.msra.mxu0 0.0
        %3455 = vmatprep.subr.mxu0 0.0
        %3456 = vmatpush1.msra.mxu0 0.0
        %3457 = vmatprep.subr.mxu0 0.0
        %3458 = vmatpush1.msra.mxu0 0.0
        %3459 = vmatprep.subr.mxu0 0.0
        %3460 = vmatpush1.msra.mxu0 0.0
        %3461 = vmatprep.subr.mxu0 0.0
        %3462 = vmatpush1.msra.mxu0 0.0
        %3463 = vmatprep.subr.mxu0 0.0
        %3464 = vmatpush1.msra.mxu0 0.0
        %3465 = vmatprep.subr.mxu0 0.0
        %3466 = vmatpush1.msra.mxu0 0.0
        %3467 = vmatprep.subr.mxu0 0.0
        %3468 = vmatpush1.msra.mxu0 0.0
        %3469 = vmatprep.subr.mxu0 0.0
        %3470 = vmatpush1.msra.mxu0 0.0
        %3471 = vmatprep.subr.mxu0 0.0
        %3472 = vmatpush1.msra.mxu0 0.0
        %3473 = vmatprep.subr.mxu0 0.0
        %3474 = vmatpush1.msra.mxu0 0.0
        %3475 = vmatprep.subr.mxu0 0.0
        %3476 = vmatpush1.msra.mxu0 0.0
        %3477 = vmatprep.subr.mxu0 0.0
        %3478 = vmatpush1.msra.mxu0 0.0
        %3479 = vmatprep.subr.mxu0 0.0
        %3480 = vmatpush1.msra.mxu0 0.0
        %3481 = vmatprep.subr.mxu0 0.0
        %3482 = vmatpush1.msra.mxu0 0.0
        %3483 = vmatprep.subr.mxu0 0.0
        %3484 = vmatpush1.msra.mxu0 0.0
        %3485 = vmatprep.subr.mxu0 0.0
        %3486 = vmatpush1.msra.mxu0 0.0
        %3487 = vmatprep.subr.mxu0 0.0
        %3488 = vmatpush1.msra.mxu0 0.0
        %3489 = vmatprep.subr.mxu0 0.0
        %3490 = vmatpush1.msra.mxu0 0.0
        %3491 = vmatprep.subr.mxu0 0.0
        %3492 = vmatpush1.msra.mxu0 0.0
        %3493 = vmatprep.subr.mxu0 0.0
        %3494 = vmatpush1.msra.mxu0 0.0
        %3495 = vmatprep.subr.mxu0 0.0
        %3496 = vmatpush1.msra.mxu0 0.0
        %3497 = vmatprep.subr.mxu0 0.0
        %3498 = vmatpush1.msra.mxu0 0.0
        %3499 = vmatprep.subr.mxu0 0.0
        %3500 = vmatpush1.msra.mxu0 0.0
        %3501 = vmatprep.mubr.f32.mxu0 0.0
        %v3502 = vand.u32 %v3007, 4294901760
        %3503 = vmatmul.mubr.f32.gmra.mrb[0].mxu0 %v3502
        %v3504 = vpop.f32.mrb[0].mxu0
        %v3505 = vadd.f32 %v3426, %v3504
        %v3506 = vpop.f32.mrb[0].mxu0
        %3507 = vmatprep.mubr.f32.mxu0 0.0
        %v3508 = vand.u32 %v3010, 4294901760
        %3509 = vmatmul.mubr.f32.gmra.mrb[0].mxu0 %v3508
        %v3510 = vpop.f32.mrb[0].mxu0
        %v3511 = vadd.f32 %v3432, %v3510
        %v3512 = vpop.f32.mrb[0].mxu0
        %3513 = vdwg.mxu0
        %v3514 = vmul.f32 %v457, %v457
        %v3515 = vmul.f32 %v458, %v458
        %3516 = vmatprep.subr.mxu0 0.0
        %v3517 = vand.u32 %v3514, 4294901760
        %3518 = vmatpush1.msra.mxu0 %v3517
        %3519 = vmatprep.subr.mxu0 0.0
        %v3520 = vand.u32 %v3515, 4294901760
        %3521 = vmatpush1.msra.mxu0 %v3520
        %3522 = vmatprep.subr.mxu0 0.0
        %3523 = vmatpush1.msra.mxu0 0.0
        %3524 = vmatprep.subr.mxu0 0.0
        %3525 = vmatpush1.msra.mxu0 0.0
        %3526 = vmatprep.subr.mxu0 0.0
        %3527 = vmatpush1.msra.mxu0 0.0
        %3528 = vmatprep.subr.mxu0 0.0
        %3529 = vmatpush1.msra.mxu0 0.0
        %3530 = vmatprep.subr.mxu0 0.0
        %3531 = vmatpush1.msra.mxu0 0.0
        %3532 = vmatprep.subr.mxu0 0.0
        %3533 = vmatpush1.msra.mxu0 0.0
        %3534 = vmatprep.subr.mxu0 0.0
        %3535 = vmatpush1.msra.mxu0 0.0
        %3536 = vmatprep.subr.mxu0 0.0
        %3537 = vmatpush1.msra.mxu0 0.0
        %3538 = vmatprep.subr.mxu0 0.0
        %3539 = vmatpush1.msra.mxu0 0.0
        %3540 = vmatprep.subr.mxu0 0.0
        %3541 = vmatpush1.msra.mxu0 0.0
        %3542 = vmatprep.subr.mxu0 0.0
        %3543 = vmatpush1.msra.mxu0 0.0
        %3544 = vmatprep.subr.mxu0 0.0
        %3545 = vmatpush1.msra.mxu0 0.0
        %3546 = vmatprep.subr.mxu0 0.0
        %3547 = vmatpush1.msra.mxu0 0.0
        %3548 = vmatprep.subr.mxu0 0.0
        %3549 = vmatpush1.msra.mxu0 0.0
        %3550 = vmatprep.subr.mxu0 0.0
        %3551 = vmatpush1.msra.mxu0 0.0
        %3552 = vmatprep.subr.mxu0 0.0
        %3553 = vmatpush1.msra.mxu0 0.0
        %3554 = vmatprep.subr.mxu0 0.0
        %3555 = vmatpush1.msra.mxu0 0.0
        %3556 = vmatprep.subr.mxu0 0.0
        %3557 = vmatpush1.msra.mxu0 0.0
        %3558 = vmatprep.subr.mxu0 0.0
        %3559 = vmatpush1.msra.mxu0 0.0
        %3560 = vmatprep.subr.mxu0 0.0
        %3561 = vmatpush1.msra.mxu0 0.0
        %3562 = vmatprep.subr.mxu0 0.0
        %3563 = vmatpush1.msra.mxu0 0.0
        %3564 = vmatprep.subr.mxu0 0.0
        %3565 = vmatpush1.msra.mxu0 0.0
        %3566 = vmatprep.subr.mxu0 0.0
        %3567 = vmatpush1.msra.mxu0 0.0
        %3568 = vmatprep.subr.mxu0 0.0
        %3569 = vmatpush1.msra.mxu0 0.0
        %3570 = vmatprep.subr.mxu0 0.0
        %3571 = vmatpush1.msra.mxu0 0.0
        %3572 = vmatprep.subr.mxu0 0.0
        %3573 = vmatpush1.msra.mxu0 0.0
        %3574 = vmatprep.subr.mxu0 0.0
        %3575 = vmatpush1.msra.mxu0 0.0
        %3576 = vmatprep.subr.mxu0 0.0
        %3577 = vmatpush1.msra.mxu0 0.0
        %3578 = vmatprep.subr.mxu0 0.0
        %3579 = vmatpush1.msra.mxu0 0.0
        %3580 = vmatprep.subr.mxu0 0.0
        %3581 = vmatpush1.msra.mxu0 0.0
        %3582 = vmatprep.mubr.f32.mxu0 0.0
        %v3583 = vand.u32 %v477, 4294901760
        %v3584 = vsub.f32 %v477, %v3583
        %v3585 = vand.u32 %v3584, 4294901760
        %v3586 = vsub.f32 %v3584, %v3585
        %v3587 = vand.u32 %v3586, 4294901760
        %3588 = vmatmul.mubr.f32.gmra.mrb[0].mxu0 %v3587
        %v3589 = vpop.f32.mrb[0].mxu0
        %v3590 = vadd.f32 0.0, %v3589
        %v3591 = vpop.f32.mrb[0].mxu0
        %3592 = vmatprep.mubr.f32.mxu0 0.0
        %v3593 = vand.u32 %v480, 4294901760
        %v3594 = vsub.f32 %v480, %v3593
        %v3595 = vand.u32 %v3594, 4294901760
        %v3596 = vsub.f32 %v3594, %v3595
        %v3597 = vand.u32 %v3596, 4294901760
        %3598 = vmatmul.mubr.f32.gmra.mrb[0].mxu0 %v3597
        %v3599 = vpop.f32.mrb[0].mxu0
        %v3600 = vadd.f32 0.0, %v3599
        %v3601 = vpop.f32.mrb[0].mxu0
        %3602 = vdwg.mxu0
        %3603 = vmatprep.subr.mxu0 0.0
        %v3604 = vand.u32 %v3514, 4294901760
        %v3605 = vsub.f32 %v3514, %v3604
        %v3606 = vand.u32 %v3605, 4294901760
        %v3607 = vsub.f32 %v3605, %v3606
        %v3608 = vand.u32 %v3607, 4294901760
        %3609 = vmatpush1.msra.mxu0 %v3608
        %3610 = vmatprep.subr.mxu0 0.0
        %v3611 = vand.u32 %v3515, 4294901760
        %v3612 = vsub.f32 %v3515, %v3611
        %v3613 = vand.u32 %v3612, 4294901760
        %v3614 = vsub.f32 %v3612, %v3613
        %v3615 = vand.u32 %v3614, 4294901760
        %3616 = vmatpush1.msra.mxu0 %v3615
        %3617 = vmatprep.subr.mxu0 0.0
        %3618 = vmatpush1.msra.mxu0 0.0
        %3619 = vmatprep.subr.mxu0 0.0
        %3620 = vmatpush1.msra.mxu0 0.0
        %3621 = vmatprep.subr.mxu0 0.0
        %3622 = vmatpush1.msra.mxu0 0.0
        %3623 = vmatprep.subr.mxu0 0.0
        %3624 = vmatpush1.msra.mxu0 0.0
        %3625 = vmatprep.subr.mxu0 0.0
        %3626 = vmatpush1.msra.mxu0 0.0
        %3627 = vmatprep.subr.mxu0 0.0
        %3628 = vmatpush1.msra.mxu0 0.0
        %3629 = vmatprep.subr.mxu0 0.0
        %3630 = vmatpush1.msra.mxu0 0.0
        %3631 = vmatprep.subr.mxu0 0.0
        %3632 = vmatpush1.msra.mxu0 0.0
        %3633 = vmatprep.subr.mxu0 0.0
        %3634 = vmatpush1.msra.mxu0 0.0
        %3635 = vmatprep.subr.mxu0 0.0
        %3636 = vmatpush1.msra.mxu0 0.0
        %3637 = vmatprep.subr.mxu0 0.0
        %3638 = vmatpush1.msra.mxu0 0.0
        %3639 = vmatprep.subr.mxu0 0.0
        %3640 = vmatpush1.msra.mxu0 0.0
        %3641 = vmatprep.subr.mxu0 0.0
        %3642 = vmatpush1.msra.mxu0 0.0
        %3643 = vmatprep.subr.mxu0 0.0
        %3644 = vmatpush1.msra.mxu0 0.0
        %3645 = vmatprep.subr.mxu0 0.0
        %3646 = vmatpush1.msra.mxu0 0.0
        %3647 = vmatprep.subr.mxu0 0.0
        %3648 = vmatpush1.msra.mxu0 0.0
        %3649 = vmatprep.subr.mxu0 0.0
        %3650 = vmatpush1.msra.mxu0 0.0
        %3651 = vmatprep.subr.mxu0 0.0
        %3652 = vmatpush1.msra.mxu0 0.0
        %3653 = vmatprep.subr.mxu0 0.0
        %3654 = vmatpush1.msra.mxu0 0.0
        %3655 = vmatprep.subr.mxu0 0.0
        %3656 = vmatpush1.msra.mxu0 0.0
        %3657 = vmatprep.subr.mxu0 0.0
        %3658 = vmatpush1.msra.mxu0 0.0
        %3659 = vmatprep.subr.mxu0 0.0
        %3660 = vmatpush1.msra.mxu0 0.0
        %3661 = vmatprep.subr.mxu0 0.0
        %3662 = vmatpush1.msra.mxu0 0.0
        %3663 = vmatprep.subr.mxu0 0.0
        %3664 = vmatpush1.msra.mxu0 0.0
        %3665 = vmatprep.subr.mxu0 0.0
        %3666 = vmatpush1.msra.mxu0 0.0
        %3667 = vmatprep.subr.mxu0 0.0
        %3668 = vmatpush1.msra.mxu0 0.0
        %3669 = vmatprep.subr.mxu0 0.0
        %3670 = vmatpush1.msra.mxu0 0.0
        %3671 = vmatprep.subr.mxu0 0.0
        %3672 = vmatpush1.msra.mxu0 0.0
        %3673 = vmatprep.subr.mxu0 0.0
        %3674 = vmatpush1.msra.mxu0 0.0
        %3675 = vmatprep.subr.mxu0 0.0
        %3676 = vmatpush1.msra.mxu0 0.0
        %3677 = vmatprep.mubr.f32.mxu0 0.0
        %v3678 = vand.u32 %v477, 4294901760
        %3679 = vmatmul.mubr.f32.gmra.mrb[0].mxu0 %v3678
        %v3680 = vpop.f32.mrb[0].mxu0
        %v3681 = vadd.f32 %v3590, %v3680
        %v3682 = vpop.f32.mrb[0].mxu0
        %3683 = vmatprep.mubr.f32.mxu0 0.0
        %v3684 = vand.u32 %v480, 4294901760
        %3685 = vmatmul.mubr.f32.gmra.mrb[0].mxu0 %v3684
        %v3686 = vpop.f32.mrb[0].mxu0
        %v3687 = vadd.f32 %v3600, %v3686
        %v3688 = vpop.f32.mrb[0].mxu0
        %3689 = vdwg.mxu0
        %3690 = vmatprep.subr.mxu0 0.0
        %v3691 = vand.u32 %v3514, 4294901760
        %v3692 = vsub.f32 %v3514, %v3691
        %3693 = vmatpush1.msra.mxu0 %v3692
        %3694 = vmatprep.subr.mxu0 0.0
        %v3695 = vand.u32 %v3515, 4294901760
        %v3696 = vsub.f32 %v3515, %v3695
        %3697 = vmatpush1.msra.mxu0 %v3696
        %3698 = vmatprep.subr.mxu0 0.0
        %3699 = vmatpush1.msra.mxu0 0.0
        %3700 = vmatprep.subr.mxu0 0.0
        %3701 = vmatpush1.msra.mxu0 0.0
        %3702 = vmatprep.subr.mxu0 0.0
        %3703 = vmatpush1.msra.mxu0 0.0
        %3704 = vmatprep.subr.mxu0 0.0
        %3705 = vmatpush1.msra.mxu0 0.0
        %3706 = vmatprep.subr.mxu0 0.0
        %3707 = vmatpush1.msra.mxu0 0.0
        %3708 = vmatprep.subr.mxu0 0.0
        %3709 = vmatpush1.msra.mxu0 0.0
        %3710 = vmatprep.subr.mxu0 0.0
        %3711 = vmatpush1.msra.mxu0 0.0
        %3712 = vmatprep.subr.mxu0 0.0
        %3713 = vmatpush1.msra.mxu0 0.0
        %3714 = vmatprep.subr.mxu0 0.0
        %3715 = vmatpush1.msra.mxu0 0.0
        %3716 = vmatprep.subr.mxu0 0.0
        %3717 = vmatpush1.msra.mxu0 0.0
        %3718 = vmatprep.subr.mxu0 0.0
        %3719 = vmatpush1.msra.mxu0 0.0
        %3720 = vmatprep.subr.mxu0 0.0
        %3721 = vmatpush1.msra.mxu0 0.0
        %3722 = vmatprep.subr.mxu0 0.0
        %3723 = vmatpush1.msra.mxu0 0.0
        %3724 = vmatprep.subr.mxu0 0.0
        %3725 = vmatpush1.msra.mxu0 0.0
        %3726 = vmatprep.subr.mxu0 0.0
        %3727 = vmatpush1.msra.mxu0 0.0
        %3728 = vmatprep.subr.mxu0 0.0
        %3729 = vmatpush1.msra.mxu0 0.0
        %3730 = vmatprep.subr.mxu0 0.0
        %3731 = vmatpush1.msra.mxu0 0.0
        %3732 = vmatprep.subr.mxu0 0.0
        %3733 = vmatpush1.msra.mxu0 0.0
        %3734 = vmatprep.subr.mxu0 0.0
        %3735 = vmatpush1.msra.mxu0 0.0
        %3736 = vmatprep.subr.mxu0 0.0
        %3737 = vmatpush1.msra.mxu0 0.0
        %3738 = vmatprep.subr.mxu0 0.0
        %3739 = vmatpush1.msra.mxu0 0.0
        %3740 = vmatprep.subr.mxu0 0.0
        %3741 = vmatpush1.msra.mxu0 0.0
        %3742 = vmatprep.subr.mxu0 0.0
        %3743 = vmatpush1.msra.mxu0 0.0
        %3744 = vmatprep.subr.mxu0 0.0
        %3745 = vmatpush1.msra.mxu0 0.0
        %3746 = vmatprep.subr.mxu0 0.0
        %3747 = vmatpush1.msra.mxu0 0.0
        %3748 = vmatprep.subr.mxu0 0.0
        %3749 = vmatpush1.msra.mxu0 0.0
        %3750 = vmatprep.subr.mxu0 0.0
        %3751 = vmatpush1.msra.mxu0 0.0
        %3752 = vmatprep.subr.mxu0 0.0
        %3753 = vmatpush1.msra.mxu0 0.0
        %3754 = vmatprep.subr.mxu0 0.0
        %3755 = vmatpush1.msra.mxu0 0.0
        %3756 = vmatprep.subr.mxu0 0.0
        %3757 = vmatpush1.msra.mxu0 0.0
        %3758 = vmatprep.mubr.f32.mxu0 0.0
        %v3759 = vand.u32 %v477, 4294901760
        %v3760 = vsub.f32 %v477, %v3759
        %3761 = vmatmul.mubr.f32.gmra.mrb[0].mxu0 %v3760
        %v3762 = vpop.f32.mrb[0].mxu0
        %v3763 = vadd.f32 %v3681, %v3762
        %v3764 = vpop.f32.mrb[0].mxu0
        %3765 = vmatprep.mubr.f32.mxu0 0.0
        %v3766 = vand.u32 %v480, 4294901760
        %v3767 = vsub.f32 %v480, %v3766
        %3768 = vmatmul.mubr.f32.gmra.mrb[0].mxu0 %v3767
        %v3769 = vpop.f32.mrb[0].mxu0
        %v3770 = vadd.f32 %v3687, %v3769
        %v3771 = vpop.f32.mrb[0].mxu0
        %3772 = vdwg.mxu0
        %3773 = vmatprep.subr.mxu0 0.0
        %v3774 = vand.u32 %v3514, 4294901760
        %3775 = vmatpush1.msra.mxu0 %v3774
        %3776 = vmatprep.subr.mxu0 0.0
        %v3777 = vand.u32 %v3515, 4294901760
        %3778 = vmatpush1.msra.mxu0 %v3777
        %3779 = vmatprep.subr.mxu0 0.0
        %3780 = vmatpush1.msra.mxu0 0.0
        %3781 = vmatprep.subr.mxu0 0.0
        %3782 = vmatpush1.msra.mxu0 0.0
        %3783 = vmatprep.subr.mxu0 0.0
        %3784 = vmatpush1.msra.mxu0 0.0
        %3785 = vmatprep.subr.mxu0 0.0
        %3786 = vmatpush1.msra.mxu0 0.0
        %3787 = vmatprep.subr.mxu0 0.0
        %3788 = vmatpush1.msra.mxu0 0.0
        %3789 = vmatprep.subr.mxu0 0.0
        %3790 = vmatpush1.msra.mxu0 0.0
        %3791 = vmatprep.subr.mxu0 0.0
        %3792 = vmatpush1.msra.mxu0 0.0
        %3793 = vmatprep.subr.mxu0 0.0
        %3794 = vmatpush1.msra.mxu0 0.0
        %3795 = vmatprep.subr.mxu0 0.0
        %3796 = vmatpush1.msra.mxu0 0.0
        %3797 = vmatprep.subr.mxu0 0.0
        %3798 = vmatpush1.msra.mxu0 0.0
        %3799 = vmatprep.subr.mxu0 0.0
        %3800 = vmatpush1.msra.mxu0 0.0
        %3801 = vmatprep.subr.mxu0 0.0
        %3802 = vmatpush1.msra.mxu0 0.0
        %3803 = vmatprep.subr.mxu0 0.0
        %3804 = vmatpush1.msra.mxu0 0.0
        %3805 = vmatprep.subr.mxu0 0.0
        %3806 = vmatpush1.msra.mxu0 0.0
        %3807 = vmatprep.subr.mxu0 0.0
        %3808 = vmatpush1.msra.mxu0 0.0
        %3809 = vmatprep.subr.mxu0 0.0
        %3810 = vmatpush1.msra.mxu0 0.0
        %3811 = vmatprep.subr.mxu0 0.0
        %3812 = vmatpush1.msra.mxu0 0.0
        %3813 = vmatprep.subr.mxu0 0.0
        %3814 = vmatpush1.msra.mxu0 0.0
        %3815 = vmatprep.subr.mxu0 0.0
        %3816 = vmatpush1.msra.mxu0 0.0
        %3817 = vmatprep.subr.mxu0 0.0
        %3818 = vmatpush1.msra.mxu0 0.0
        %3819 = vmatprep.subr.mxu0 0.0
        %3820 = vmatpush1.msra.mxu0 0.0
        %3821 = vmatprep.subr.mxu0 0.0
        %3822 = vmatpush1.msra.mxu0 0.0
        %3823 = vmatprep.subr.mxu0 0.0
        %3824 = vmatpush1.msra.mxu0 0.0
        %3825 = vmatprep.subr.mxu0 0.0
        %3826 = vmatpush1.msra.mxu0 0.0
        %3827 = vmatprep.subr.mxu0 0.0
        %3828 = vmatpush1.msra.mxu0 0.0
        %3829 = vmatprep.subr.mxu0 0.0
        %3830 = vmatpush1.msra.mxu0 0.0
        %3831 = vmatprep.subr.mxu0 0.0
        %3832 = vmatpush1.msra.mxu0 0.0
        %3833 = vmatprep.subr.mxu0 0.0
        %3834 = vmatpush1.msra.mxu0 0.0
        %3835 = vmatprep.subr.mxu0 0.0
        %3836 = vmatpush1.msra.mxu0 0.0
        %3837 = vmatprep.subr.mxu0 0.0
        %3838 = vmatpush1.msra.mxu0 0.0
        %3839 = vmatprep.mubr.f32.mxu0 0.0
        %v3840 = vand.u32 %v477, 4294901760
        %v3841 = vsub.f32 %v477, %v3840
        %v3842 = vand.u32 %v3841, 4294901760
        %3843 = vmatmul.mubr.f32.gmra.mrb[0].mxu0 %v3842
        %v3844 = vpop.f32.mrb[0].mxu0
        %v3845 = vadd.f32 %v3763, %v3844
        %v3846 = vpop.f32.mrb[0].mxu0
        %3847 = vmatprep.mubr.f32.mxu0 0.0
        %v3848 = vand.u32 %v480, 4294901760
        %v3849 = vsub.f32 %v480, %v3848
        %v3850 = vand.u32 %v3849, 4294901760
        %3851 = vmatmul.mubr.f32.gmra.mrb[0].mxu0 %v3850
        %v3852 = vpop.f32.mrb[0].mxu0
        %v3853 = vadd.f32 %v3770, %v3852
        %v3854 = vpop.f32.mrb[0].mxu0
        %3855 = vdwg.mxu0
        %3856 = vmatprep.subr.mxu0 0.0
        %v3857 = vand.u32 %v3514, 4294901760
        %v3858 = vsub.f32 %v3514, %v3857
        %v3859 = vand.u32 %v3858, 4294901760
        %3860 = vmatpush1.msra.mxu0 %v3859
        %3861 = vmatprep.subr.mxu0 0.0
        %v3862 = vand.u32 %v3515, 4294901760
        %v3863 = vsub.f32 %v3515, %v3862
        %v3864 = vand.u32 %v3863, 4294901760
        %3865 = vmatpush1.msra.mxu0 %v3864
        %3866 = vmatprep.subr.mxu0 0.0
        %3867 = vmatpush1.msra.mxu0 0.0
        %3868 = vmatprep.subr.mxu0 0.0
        %3869 = vmatpush1.msra.mxu0 0.0
        %3870 = vmatprep.subr.mxu0 0.0
        %3871 = vmatpush1.msra.mxu0 0.0
        %3872 = vmatprep.subr.mxu0 0.0
        %3873 = vmatpush1.msra.mxu0 0.0
        %3874 = vmatprep.subr.mxu0 0.0
        %3875 = vmatpush1.msra.mxu0 0.0
        %3876 = vmatprep.subr.mxu0 0.0
        %3877 = vmatpush1.msra.mxu0 0.0
        %3878 = vmatprep.subr.mxu0 0.0
        %3879 = vmatpush1.msra.mxu0 0.0
        %3880 = vmatprep.subr.mxu0 0.0
        %3881 = vmatpush1.msra.mxu0 0.0
        %3882 = vmatprep.subr.mxu0 0.0
        %3883 = vmatpush1.msra.mxu0 0.0
        %3884 = vmatprep.subr.mxu0 0.0
        %3885 = vmatpush1.msra.mxu0 0.0
        %3886 = vmatprep.subr.mxu0 0.0
        %3887 = vmatpush1.msra.mxu0 0.0
        %3888 = vmatprep.subr.mxu0 0.0
        %3889 = vmatpush1.msra.mxu0 0.0
        %3890 = vmatprep.subr.mxu0 0.0
        %3891 = vmatpush1.msra.mxu0 0.0
        %3892 = vmatprep.subr.mxu0 0.0
        %3893 = vmatpush1.msra.mxu0 0.0
        %3894 = vmatprep.subr.mxu0 0.0
        %3895 = vmatpush1.msra.mxu0 0.0
        %3896 = vmatprep.subr.mxu0 0.0
        %3897 = vmatpush1.msra.mxu0 0.0
        %3898 = vmatprep.subr.mxu0 0.0
        %3899 = vmatpush1.msra.mxu0 0.0
        %3900 = vmatprep.subr.mxu0 0.0
        %3901 = vmatpush1.msra.mxu0 0.0
        %3902 = vmatprep.subr.mxu0 0.0
        %3903 = vmatpush1.msra.mxu0 0.0
        %3904 = vmatprep.subr.mxu0 0.0
        %3905 = vmatpush1.msra.mxu0 0.0
        %3906 = vmatprep.subr.mxu0 0.0
        %3907 = vmatpush1.msra.mxu0 0.0
        %3908 = vmatprep.subr.mxu0 0.0
        %3909 = vmatpush1.msra.mxu0 0.0
        %3910 = vmatprep.subr.mxu0 0.0
        %3911 = vmatpush1.msra.mxu0 0.0
        %3912 = vmatprep.subr.mxu0 0.0
        %3913 = vmatpush1.msra.mxu0 0.0
        %3914 = vmatprep.subr.mxu0 0.0
        %3915 = vmatpush1.msra.mxu0 0.0
        %3916 = vmatprep.subr.mxu0 0.0
        %3917 = vmatpush1.msra.mxu0 0.0
        %3918 = vmatprep.subr.mxu0 0.0
        %3919 = vmatpush1.msra.mxu0 0.0
        %3920 = vmatprep.subr.mxu0 0.0
        %3921 = vmatpush1.msra.mxu0 0.0
        %3922 = vmatprep.subr.mxu0 0.0
        %3923 = vmatpush1.msra.mxu0 0.0
        %3924 = vmatprep.subr.mxu0 0.0
        %3925 = vmatpush1.msra.mxu0 0.0
        %3926 = vmatprep.mubr.f32.mxu0 0.0
        %v3927 = vand.u32 %v477, 4294901760
        %3928 = vmatmul.mubr.f32.gmra.mrb[0].mxu0 %v3927
        %v3929 = vpop.f32.mrb[0].mxu0
        %v3930 = vadd.f32 %v3845, %v3929
        %v3931 = vpop.f32.mrb[0].mxu0
        %3932 = vmatprep.mubr.f32.mxu0 0.0
        %v3933 = vand.u32 %v480, 4294901760
        %3934 = vmatmul.mubr.f32.gmra.mrb[0].mxu0 %v3933
        %v3935 = vpop.f32.mrb[0].mxu0
        %v3936 = vadd.f32 %v3853, %v3935
        %v3937 = vpop.f32.mrb[0].mxu0
        %3938 = vdwg.mxu0
        %3939 = vmatprep.subr.mxu0 0.0
        %v3940 = vand.u32 %v3514, 4294901760
        %3941 = vmatpush1.msra.mxu0 %v3940
        %3942 = vmatprep.subr.mxu0 0.0
        %v3943 = vand.u32 %v3515, 4294901760
        %3944 = vmatpush1.msra.mxu0 %v3943
        %3945 = vmatprep.subr.mxu0 0.0
        %3946 = vmatpush1.msra.mxu0 0.0
        %3947 = vmatprep.subr.mxu0 0.0
        %3948 = vmatpush1.msra.mxu0 0.0
        %3949 = vmatprep.subr.mxu0 0.0
        %3950 = vmatpush1.msra.mxu0 0.0
        %3951 = vmatprep.subr.mxu0 0.0
        %3952 = vmatpush1.msra.mxu0 0.0
        %3953 = vmatprep.subr.mxu0 0.0
        %3954 = vmatpush1.msra.mxu0 0.0
        %3955 = vmatprep.subr.mxu0 0.0
        %3956 = vmatpush1.msra.mxu0 0.0
        %3957 = vmatprep.subr.mxu0 0.0
        %3958 = vmatpush1.msra.mxu0 0.0
        %3959 = vmatprep.subr.mxu0 0.0
        %3960 = vmatpush1.msra.mxu0 0.0
        %3961 = vmatprep.subr.mxu0 0.0
        %3962 = vmatpush1.msra.mxu0 0.0
        %3963 = vmatprep.subr.mxu0 0.0
        %3964 = vmatpush1.msra.mxu0 0.0
        %3965 = vmatprep.subr.mxu0 0.0
        %3966 = vmatpush1.msra.mxu0 0.0
        %3967 = vmatprep.subr.mxu0 0.0
        %3968 = vmatpush1.msra.mxu0 0.0
        %3969 = vmatprep.subr.mxu0 0.0
        %3970 = vmatpush1.msra.mxu0 0.0
        %3971 = vmatprep.subr.mxu0 0.0
        %3972 = vmatpush1.msra.mxu0 0.0
        %3973 = vmatprep.subr.mxu0 0.0
        %3974 = vmatpush1.msra.mxu0 0.0
        %3975 = vmatprep.subr.mxu0 0.0
        %3976 = vmatpush1.msra.mxu0 0.0
        %3977 = vmatprep.subr.mxu0 0.0
        %3978 = vmatpush1.msra.mxu0 0.0
        %3979 = vmatprep.subr.mxu0 0.0
        %3980 = vmatpush1.msra.mxu0 0.0
        %3981 = vmatprep.subr.mxu0 0.0
        %3982 = vmatpush1.msra.mxu0 0.0
        %3983 = vmatprep.subr.mxu0 0.0
        %3984 = vmatpush1.msra.mxu0 0.0
        %3985 = vmatprep.subr.mxu0 0.0
        %3986 = vmatpush1.msra.mxu0 0.0
        %3987 = vmatprep.subr.mxu0 0.0
        %3988 = vmatpush1.msra.mxu0 0.0
        %3989 = vmatprep.subr.mxu0 0.0
        %3990 = vmatpush1.msra.mxu0 0.0
        %3991 = vmatprep.subr.mxu0 0.0
        %3992 = vmatpush1.msra.mxu0 0.0
        %3993 = vmatprep.subr.mxu0 0.0
        %3994 = vmatpush1.msra.mxu0 0.0
        %3995 = vmatprep.subr.mxu0 0.0
        %3996 = vmatpush1.msra.mxu0 0.0
        %3997 = vmatprep.subr.mxu0 0.0
        %3998 = vmatpush1.msra.mxu0 0.0
        %3999 = vmatprep.subr.mxu0 0.0
        %4000 = vmatpush1.msra.mxu0 0.0
        %4001 = vmatprep.subr.mxu0 0.0
        %4002 = vmatpush1.msra.mxu0 0.0
        %4003 = vmatprep.subr.mxu0 0.0
        %4004 = vmatpush1.msra.mxu0 0.0
        %4005 = vmatprep.mubr.f32.mxu0 0.0
        %v4006 = vand.u32 %v477, 4294901760
        %4007 = vmatmul.mubr.f32.gmra.mrb[0].mxu0 %v4006
        %v4008 = vpop.f32.mrb[0].mxu0
        %v4009 = vadd.f32 %v3930, %v4008
        %v4010 = vpop.f32.mrb[0].mxu0
        %4011 = vmatprep.mubr.f32.mxu0 0.0
        %v4012 = vand.u32 %v480, 4294901760
        %4013 = vmatmul.mubr.f32.gmra.mrb[0].mxu0 %v4012
        %v4014 = vpop.f32.mrb[0].mxu0
        %v4015 = vadd.f32 %v3936, %v4014
        %v4016 = vpop.f32.mrb[0].mxu0
        %4017 = vdwg.mxu0
        %v4019 = vsel %vm463, %v4009, 0
        %v4022 = vsel %vm463, %v4015, 0
        %4024 = vmatprep.subr.mxu0 0.0
        %v4025 = vand.u32 %v453, 4294901760
        %4026 = vmatpush1.msra.mxu0 %v4025
        %4027 = vmatprep.subr.mxu0 0.0
        %v4028 = vand.u32 %v454, 4294901760
        %4029 = vmatpush1.msra.mxu0 %v4028
        %4030 = vmatprep.subr.mxu0 0.0
        %4031 = vmatpush1.msra.mxu0 0.0
        %4032 = vmatprep.subr.mxu0 0.0
        %4033 = vmatpush1.msra.mxu0 0.0
        %4034 = vmatprep.subr.mxu0 0.0
        %4035 = vmatpush1.msra.mxu0 0.0
        %4036 = vmatprep.subr.mxu0 0.0
        %4037 = vmatpush1.msra.mxu0 0.0
        %4038 = vmatprep.subr.mxu0 0.0
        %4039 = vmatpush1.msra.mxu0 0.0
        %4040 = vmatprep.subr.mxu0 0.0
        %4041 = vmatpush1.msra.mxu0 0.0
        %4042 = vmatprep.subr.mxu0 0.0
        %4043 = vmatpush1.msra.mxu0 0.0
        %4044 = vmatprep.subr.mxu0 0.0
        %4045 = vmatpush1.msra.mxu0 0.0
        %4046 = vmatprep.subr.mxu0 0.0
        %4047 = vmatpush1.msra.mxu0 0.0
        %4048 = vmatprep.subr.mxu0 0.0
        %4049 = vmatpush1.msra.mxu0 0.0
        %4050 = vmatprep.subr.mxu0 0.0
        %4051 = vmatpush1.msra.mxu0 0.0
        %4052 = vmatprep.subr.mxu0 0.0
        %4053 = vmatpush1.msra.mxu0 0.0
        %4054 = vmatprep.subr.mxu0 0.0
        %4055 = vmatpush1.msra.mxu0 0.0
        %4056 = vmatprep.subr.mxu0 0.0
        %4057 = vmatpush1.msra.mxu0 0.0
        %4058 = vmatprep.subr.mxu0 0.0
        %4059 = vmatpush1.msra.mxu0 0.0
        %4060 = vmatprep.subr.mxu0 0.0
        %4061 = vmatpush1.msra.mxu0 0.0
        %4062 = vmatprep.subr.mxu0 0.0
        %4063 = vmatpush1.msra.mxu0 0.0
        %4064 = vmatprep.subr.mxu0 0.0
        %4065 = vmatpush1.msra.mxu0 0.0
        %4066 = vmatprep.subr.mxu0 0.0
        %4067 = vmatpush1.msra.mxu0 0.0
        %4068 = vmatprep.subr.mxu0 0.0
        %4069 = vmatpush1.msra.mxu0 0.0
        %4070 = vmatprep.subr.mxu0 0.0
        %4071 = vmatpush1.msra.mxu0 0.0
        %4072 = vmatprep.subr.mxu0 0.0
        %4073 = vmatpush1.msra.mxu0 0.0
        %4074 = vmatprep.subr.mxu0 0.0
        %4075 = vmatpush1.msra.mxu0 0.0
        %4076 = vmatprep.subr.mxu0 0.0
        %4077 = vmatpush1.msra.mxu0 0.0
        %4078 = vmatprep.subr.mxu0 0.0
        %4079 = vmatpush1.msra.mxu0 0.0
        %4080 = vmatprep.subr.mxu0 0.0
        %4081 = vmatpush1.msra.mxu0 0.0
        %4082 = vmatprep.subr.mxu0 0.0
        %4083 = vmatpush1.msra.mxu0 0.0
        %4084 = vmatprep.subr.mxu0 0.0
        %4085 = vmatpush1.msra.mxu0 0.0
        %4086 = vmatprep.subr.mxu0 0.0
        %4087 = vmatpush1.msra.mxu0 0.0
        %4088 = vmatprep.subr.mxu0 0.0
        %4089 = vmatpush1.msra.mxu0 0.0
        %4090 = vmatprep.mubr.f32.mxu0 0.0
        %v4091 = vand.u32 %v4019, 4294901760
        %v4092 = vsub.f32 %v4019, %v4091
        %v4093 = vand.u32 %v4092, 4294901760
        %v4094 = vsub.f32 %v4092, %v4093
        %v4095 = vand.u32 %v4094, 4294901760
        %4096 = vmatmul.mubr.f32.gmra.mrb[0].mxu0 %v4095
        %v4097 = vpop.f32.mrb[0].mxu0
        %v4098 = vadd.f32 0.0, %v4097
        %v4099 = vpop.f32.mrb[0].mxu0
        %4100 = vmatprep.mubr.f32.mxu0 0.0
        %v4101 = vand.u32 %v4022, 4294901760
        %v4102 = vsub.f32 %v4022, %v4101
        %v4103 = vand.u32 %v4102, 4294901760
        %v4104 = vsub.f32 %v4102, %v4103
        %v4105 = vand.u32 %v4104, 4294901760
        %4106 = vmatmul.mubr.f32.gmra.mrb[0].mxu0 %v4105
        %v4107 = vpop.f32.mrb[0].mxu0
        %v4108 = vadd.f32 0.0, %v4107
        %v4109 = vpop.f32.mrb[0].mxu0
        %4110 = vdwg.mxu0
        %4111 = vmatprep.subr.mxu0 0.0
        %v4112 = vand.u32 %v453, 4294901760
        %v4113 = vsub.f32 %v453, %v4112
        %v4114 = vand.u32 %v4113, 4294901760
        %v4115 = vsub.f32 %v4113, %v4114
        %v4116 = vand.u32 %v4115, 4294901760
        %4117 = vmatpush1.msra.mxu0 %v4116
        %4118 = vmatprep.subr.mxu0 0.0
        %v4119 = vand.u32 %v454, 4294901760
        %v4120 = vsub.f32 %v454, %v4119
        %v4121 = vand.u32 %v4120, 4294901760
        %v4122 = vsub.f32 %v4120, %v4121
        %v4123 = vand.u32 %v4122, 4294901760
        %4124 = vmatpush1.msra.mxu0 %v4123
        %4125 = vmatprep.subr.mxu0 0.0
        %4126 = vmatpush1.msra.mxu0 0.0
        %4127 = vmatprep.subr.mxu0 0.0
        %4128 = vmatpush1.msra.mxu0 0.0
        %4129 = vmatprep.subr.mxu0 0.0
        %4130 = vmatpush1.msra.mxu0 0.0
        %4131 = vmatprep.subr.mxu0 0.0
        %4132 = vmatpush1.msra.mxu0 0.0
        %4133 = vmatprep.subr.mxu0 0.0
        %4134 = vmatpush1.msra.mxu0 0.0
        %4135 = vmatprep.subr.mxu0 0.0
        %4136 = vmatpush1.msra.mxu0 0.0
        %4137 = vmatprep.subr.mxu0 0.0
        %4138 = vmatpush1.msra.mxu0 0.0
        %4139 = vmatprep.subr.mxu0 0.0
        %4140 = vmatpush1.msra.mxu0 0.0
        %4141 = vmatprep.subr.mxu0 0.0
        %4142 = vmatpush1.msra.mxu0 0.0
        %4143 = vmatprep.subr.mxu0 0.0
        %4144 = vmatpush1.msra.mxu0 0.0
        %4145 = vmatprep.subr.mxu0 0.0
        %4146 = vmatpush1.msra.mxu0 0.0
        %4147 = vmatprep.subr.mxu0 0.0
        %4148 = vmatpush1.msra.mxu0 0.0
        %4149 = vmatprep.subr.mxu0 0.0
        %4150 = vmatpush1.msra.mxu0 0.0
        %4151 = vmatprep.subr.mxu0 0.0
        %4152 = vmatpush1.msra.mxu0 0.0
        %4153 = vmatprep.subr.mxu0 0.0
        %4154 = vmatpush1.msra.mxu0 0.0
        %4155 = vmatprep.subr.mxu0 0.0
        %4156 = vmatpush1.msra.mxu0 0.0
        %4157 = vmatprep.subr.mxu0 0.0
        %4158 = vmatpush1.msra.mxu0 0.0
        %4159 = vmatprep.subr.mxu0 0.0
        %4160 = vmatpush1.msra.mxu0 0.0
        %4161 = vmatprep.subr.mxu0 0.0
        %4162 = vmatpush1.msra.mxu0 0.0
        %4163 = vmatprep.subr.mxu0 0.0
        %4164 = vmatpush1.msra.mxu0 0.0
        %4165 = vmatprep.subr.mxu0 0.0
        %4166 = vmatpush1.msra.mxu0 0.0
        %4167 = vmatprep.subr.mxu0 0.0
        %4168 = vmatpush1.msra.mxu0 0.0
        %4169 = vmatprep.subr.mxu0 0.0
        %4170 = vmatpush1.msra.mxu0 0.0
        %4171 = vmatprep.subr.mxu0 0.0
        %4172 = vmatpush1.msra.mxu0 0.0
        %4173 = vmatprep.subr.mxu0 0.0
        %4174 = vmatpush1.msra.mxu0 0.0
        %4175 = vmatprep.subr.mxu0 0.0
        %4176 = vmatpush1.msra.mxu0 0.0
        %4177 = vmatprep.subr.mxu0 0.0
        %4178 = vmatpush1.msra.mxu0 0.0
        %4179 = vmatprep.subr.mxu0 0.0
        %4180 = vmatpush1.msra.mxu0 0.0
        %4181 = vmatprep.subr.mxu0 0.0
        %4182 = vmatpush1.msra.mxu0 0.0
        %4183 = vmatprep.subr.mxu0 0.0
        %4184 = vmatpush1.msra.mxu0 0.0
        %4185 = vmatprep.mubr.f32.mxu0 0.0
        %v4186 = vand.u32 %v4019, 4294901760
        %4187 = vmatmul.mubr.f32.gmra.mrb[0].mxu0 %v4186
        %v4188 = vpop.f32.mrb[0].mxu0
        %v4189 = vadd.f32 %v4098, %v4188
        %v4190 = vpop.f32.mrb[0].mxu0
        %4191 = vmatprep.mubr.f32.mxu0 0.0
        %v4192 = vand.u32 %v4022, 4294901760
        %4193 = vmatmul.mubr.f32.gmra.mrb[0].mxu0 %v4192
        %v4194 = vpop.f32.mrb[0].mxu0
        %v4195 = vadd.f32 %v4108, %v4194
        %v4196 = vpop.f32.mrb[0].mxu0
        %4197 = vdwg.mxu0
        %4198 = vmatprep.subr.mxu0 0.0
        %v4199 = vand.u32 %v453, 4294901760
        %v4200 = vsub.f32 %v453, %v4199
        %4201 = vmatpush1.msra.mxu0 %v4200
        %4202 = vmatprep.subr.mxu0 0.0
        %v4203 = vand.u32 %v454, 4294901760
        %v4204 = vsub.f32 %v454, %v4203
        %4205 = vmatpush1.msra.mxu0 %v4204
        %4206 = vmatprep.subr.mxu0 0.0
        %4207 = vmatpush1.msra.mxu0 0.0
        %4208 = vmatprep.subr.mxu0 0.0
        %4209 = vmatpush1.msra.mxu0 0.0
        %4210 = vmatprep.subr.mxu0 0.0
        %4211 = vmatpush1.msra.mxu0 0.0
        %4212 = vmatprep.subr.mxu0 0.0
        %4213 = vmatpush1.msra.mxu0 0.0
        %4214 = vmatprep.subr.mxu0 0.0
        %4215 = vmatpush1.msra.mxu0 0.0
        %4216 = vmatprep.subr.mxu0 0.0
        %4217 = vmatpush1.msra.mxu0 0.0
        %4218 = vmatprep.subr.mxu0 0.0
        %4219 = vmatpush1.msra.mxu0 0.0
        %4220 = vmatprep.subr.mxu0 0.0
        %4221 = vmatpush1.msra.mxu0 0.0
        %4222 = vmatprep.subr.mxu0 0.0
        %4223 = vmatpush1.msra.mxu0 0.0
        %4224 = vmatprep.subr.mxu0 0.0
        %4225 = vmatpush1.msra.mxu0 0.0
        %4226 = vmatprep.subr.mxu0 0.0
        %4227 = vmatpush1.msra.mxu0 0.0
        %4228 = vmatprep.subr.mxu0 0.0
        %4229 = vmatpush1.msra.mxu0 0.0
        %4230 = vmatprep.subr.mxu0 0.0
        %4231 = vmatpush1.msra.mxu0 0.0
        %4232 = vmatprep.subr.mxu0 0.0
        %4233 = vmatpush1.msra.mxu0 0.0
        %4234 = vmatprep.subr.mxu0 0.0
        %4235 = vmatpush1.msra.mxu0 0.0
        %4236 = vmatprep.subr.mxu0 0.0
        %4237 = vmatpush1.msra.mxu0 0.0
        %4238 = vmatprep.subr.mxu0 0.0
        %4239 = vmatpush1.msra.mxu0 0.0
        %4240 = vmatprep.subr.mxu0 0.0
        %4241 = vmatpush1.msra.mxu0 0.0
        %4242 = vmatprep.subr.mxu0 0.0
        %4243 = vmatpush1.msra.mxu0 0.0
        %4244 = vmatprep.subr.mxu0 0.0
        %4245 = vmatpush1.msra.mxu0 0.0
        %4246 = vmatprep.subr.mxu0 0.0
        %4247 = vmatpush1.msra.mxu0 0.0
        %4248 = vmatprep.subr.mxu0 0.0
        %4249 = vmatpush1.msra.mxu0 0.0
        %4250 = vmatprep.subr.mxu0 0.0
        %4251 = vmatpush1.msra.mxu0 0.0
        %4252 = vmatprep.subr.mxu0 0.0
        %4253 = vmatpush1.msra.mxu0 0.0
        %4254 = vmatprep.subr.mxu0 0.0
        %4255 = vmatpush1.msra.mxu0 0.0
        %4256 = vmatprep.subr.mxu0 0.0
        %4257 = vmatpush1.msra.mxu0 0.0
        %4258 = vmatprep.subr.mxu0 0.0
        %4259 = vmatpush1.msra.mxu0 0.0
        %4260 = vmatprep.subr.mxu0 0.0
        %4261 = vmatpush1.msra.mxu0 0.0
        %4262 = vmatprep.subr.mxu0 0.0
        %4263 = vmatpush1.msra.mxu0 0.0
        %4264 = vmatprep.subr.mxu0 0.0
        %4265 = vmatpush1.msra.mxu0 0.0
        %4266 = vmatprep.mubr.f32.mxu0 0.0
        %v4267 = vand.u32 %v4019, 4294901760
        %v4268 = vsub.f32 %v4019, %v4267
        %4269 = vmatmul.mubr.f32.gmra.mrb[0].mxu0 %v4268
        %v4270 = vpop.f32.mrb[0].mxu0
        %v4271 = vadd.f32 %v4189, %v4270
        %v4272 = vpop.f32.mrb[0].mxu0
        %4273 = vmatprep.mubr.f32.mxu0 0.0
        %v4274 = vand.u32 %v4022, 4294901760
        %v4275 = vsub.f32 %v4022, %v4274
        %4276 = vmatmul.mubr.f32.gmra.mrb[0].mxu0 %v4275
        %v4277 = vpop.f32.mrb[0].mxu0
        %v4278 = vadd.f32 %v4195, %v4277
        %v4279 = vpop.f32.mrb[0].mxu0
        %4280 = vdwg.mxu0
        %4281 = vmatprep.subr.mxu0 0.0
        %v4282 = vand.u32 %v453, 4294901760
        %4283 = vmatpush1.msra.mxu0 %v4282
        %4284 = vmatprep.subr.mxu0 0.0
        %v4285 = vand.u32 %v454, 4294901760
        %4286 = vmatpush1.msra.mxu0 %v4285
        %4287 = vmatprep.subr.mxu0 0.0
        %4288 = vmatpush1.msra.mxu0 0.0
        %4289 = vmatprep.subr.mxu0 0.0
        %4290 = vmatpush1.msra.mxu0 0.0
        %4291 = vmatprep.subr.mxu0 0.0
        %4292 = vmatpush1.msra.mxu0 0.0
        %4293 = vmatprep.subr.mxu0 0.0
        %4294 = vmatpush1.msra.mxu0 0.0
        %4295 = vmatprep.subr.mxu0 0.0
        %4296 = vmatpush1.msra.mxu0 0.0
        %4297 = vmatprep.subr.mxu0 0.0
        %4298 = vmatpush1.msra.mxu0 0.0
        %4299 = vmatprep.subr.mxu0 0.0
        %4300 = vmatpush1.msra.mxu0 0.0
        %4301 = vmatprep.subr.mxu0 0.0
        %4302 = vmatpush1.msra.mxu0 0.0
        %4303 = vmatprep.subr.mxu0 0.0
        %4304 = vmatpush1.msra.mxu0 0.0
        %4305 = vmatprep.subr.mxu0 0.0
        %4306 = vmatpush1.msra.mxu0 0.0
        %4307 = vmatprep.subr.mxu0 0.0
        %4308 = vmatpush1.msra.mxu0 0.0
        %4309 = vmatprep.subr.mxu0 0.0
        %4310 = vmatpush1.msra.mxu0 0.0
        %4311 = vmatprep.subr.mxu0 0.0
        %4312 = vmatpush1.msra.mxu0 0.0
        %4313 = vmatprep.subr.mxu0 0.0
        %4314 = vmatpush1.msra.mxu0 0.0
        %4315 = vmatprep.subr.mxu0 0.0
        %4316 = vmatpush1.msra.mxu0 0.0
        %4317 = vmatprep.subr.mxu0 0.0
        %4318 = vmatpush1.msra.mxu0 0.0
        %4319 = vmatprep.subr.mxu0 0.0
        %4320 = vmatpush1.msra.mxu0 0.0
        %4321 = vmatprep.subr.mxu0 0.0
        %4322 = vmatpush1.msra.mxu0 0.0
        %4323 = vmatprep.subr.mxu0 0.0
        %4324 = vmatpush1.msra.mxu0 0.0
        %4325 = vmatprep.subr.mxu0 0.0
        %4326 = vmatpush1.msra.mxu0 0.0
        %4327 = vmatprep.subr.mxu0 0.0
        %4328 = vmatpush1.msra.mxu0 0.0
        %4329 = vmatprep.subr.mxu0 0.0
        %4330 = vmatpush1.msra.mxu0 0.0
        %4331 = vmatprep.subr.mxu0 0.0
        %4332 = vmatpush1.msra.mxu0 0.0
        %4333 = vmatprep.subr.mxu0 0.0
        %4334 = vmatpush1.msra.mxu0 0.0
        %4335 = vmatprep.subr.mxu0 0.0
        %4336 = vmatpush1.msra.mxu0 0.0
        %4337 = vmatprep.subr.mxu0 0.0
        %4338 = vmatpush1.msra.mxu0 0.0
        %4339 = vmatprep.subr.mxu0 0.0
        %4340 = vmatpush1.msra.mxu0 0.0
        %4341 = vmatprep.subr.mxu0 0.0
        %4342 = vmatpush1.msra.mxu0 0.0
        %4343 = vmatprep.subr.mxu0 0.0
        %4344 = vmatpush1.msra.mxu0 0.0
        %4345 = vmatprep.subr.mxu0 0.0
        %4346 = vmatpush1.msra.mxu0 0.0
        %4347 = vmatprep.mubr.f32.mxu0 0.0
        %v4348 = vand.u32 %v4019, 4294901760
        %v4349 = vsub.f32 %v4019, %v4348
        %v4350 = vand.u32 %v4349, 4294901760
        %4351 = vmatmul.mubr.f32.gmra.mrb[0].mxu0 %v4350
        %v4352 = vpop.f32.mrb[0].mxu0
        %v4353 = vadd.f32 %v4271, %v4352
        %v4354 = vpop.f32.mrb[0].mxu0
        %4355 = vmatprep.mubr.f32.mxu0 0.0
        %v4356 = vand.u32 %v4022, 4294901760
        %v4357 = vsub.f32 %v4022, %v4356
        %v4358 = vand.u32 %v4357, 4294901760
        %4359 = vmatmul.mubr.f32.gmra.mrb[0].mxu0 %v4358
        %v4360 = vpop.f32.mrb[0].mxu0
        %v4361 = vadd.f32 %v4278, %v4360
        %v4362 = vpop.f32.mrb[0].mxu0
        %4363 = vdwg.mxu0
        %4364 = vmatprep.subr.mxu0 0.0
        %v4365 = vand.u32 %v453, 4294901760
        %v4366 = vsub.f32 %v453, %v4365
        %v4367 = vand.u32 %v4366, 4294901760
        %4368 = vmatpush1.msra.mxu0 %v4367
        %4369 = vmatprep.subr.mxu0 0.0
        %v4370 = vand.u32 %v454, 4294901760
        %v4371 = vsub.f32 %v454, %v4370
        %v4372 = vand.u32 %v4371, 4294901760
        %4373 = vmatpush1.msra.mxu0 %v4372
        %4374 = vmatprep.subr.mxu0 0.0
        %4375 = vmatpush1.msra.mxu0 0.0
        %4376 = vmatprep.subr.mxu0 0.0
        %4377 = vmatpush1.msra.mxu0 0.0
        %4378 = vmatprep.subr.mxu0 0.0
        %4379 = vmatpush1.msra.mxu0 0.0
        %4380 = vmatprep.subr.mxu0 0.0
        %4381 = vmatpush1.msra.mxu0 0.0
        %4382 = vmatprep.subr.mxu0 0.0
        %4383 = vmatpush1.msra.mxu0 0.0
        %4384 = vmatprep.subr.mxu0 0.0
        %4385 = vmatpush1.msra.mxu0 0.0
        %4386 = vmatprep.subr.mxu0 0.0
        %4387 = vmatpush1.msra.mxu0 0.0
        %4388 = vmatprep.subr.mxu0 0.0
        %4389 = vmatpush1.msra.mxu0 0.0
        %4390 = vmatprep.subr.mxu0 0.0
        %4391 = vmatpush1.msra.mxu0 0.0
        %4392 = vmatprep.subr.mxu0 0.0
        %4393 = vmatpush1.msra.mxu0 0.0
        %4394 = vmatprep.subr.mxu0 0.0
        %4395 = vmatpush1.msra.mxu0 0.0
        %4396 = vmatprep.subr.mxu0 0.0
        %4397 = vmatpush1.msra.mxu0 0.0
        %4398 = vmatprep.subr.mxu0 0.0
        %4399 = vmatpush1.msra.mxu0 0.0
        %4400 = vmatprep.subr.mxu0 0.0
        %4401 = vmatpush1.msra.mxu0 0.0
        %4402 = vmatprep.subr.mxu0 0.0
        %4403 = vmatpush1.msra.mxu0 0.0
        %4404 = vmatprep.subr.mxu0 0.0
        %4405 = vmatpush1.msra.mxu0 0.0
        %4406 = vmatprep.subr.mxu0 0.0
        %4407 = vmatpush1.msra.mxu0 0.0
        %4408 = vmatprep.subr.mxu0 0.0
        %4409 = vmatpush1.msra.mxu0 0.0
        %4410 = vmatprep.subr.mxu0 0.0
        %4411 = vmatpush1.msra.mxu0 0.0
        %4412 = vmatprep.subr.mxu0 0.0
        %4413 = vmatpush1.msra.mxu0 0.0
        %4414 = vmatprep.subr.mxu0 0.0
        %4415 = vmatpush1.msra.mxu0 0.0
        %4416 = vmatprep.subr.mxu0 0.0
        %4417 = vmatpush1.msra.mxu0 0.0
        %4418 = vmatprep.subr.mxu0 0.0
        %4419 = vmatpush1.msra.mxu0 0.0
        %4420 = vmatprep.subr.mxu0 0.0
        %4421 = vmatpush1.msra.mxu0 0.0
        %4422 = vmatprep.subr.mxu0 0.0
        %4423 = vmatpush1.msra.mxu0 0.0
        %4424 = vmatprep.subr.mxu0 0.0
        %4425 = vmatpush1.msra.mxu0 0.0
        %4426 = vmatprep.subr.mxu0 0.0
        %4427 = vmatpush1.msra.mxu0 0.0
        %4428 = vmatprep.subr.mxu0 0.0
        %4429 = vmatpush1.msra.mxu0 0.0
        %4430 = vmatprep.subr.mxu0 0.0
        %4431 = vmatpush1.msra.mxu0 0.0
        %4432 = vmatprep.subr.mxu0 0.0
        %4433 = vmatpush1.msra.mxu0 0.0
        %4434 = vmatprep.mubr.f32.mxu0 0.0
        %v4435 = vand.u32 %v4019, 4294901760
        %4436 = vmatmul.mubr.f32.gmra.mrb[0].mxu0 %v4435
        %v4437 = vpop.f32.mrb[0].mxu0
        %v4438 = vadd.f32 %v4353, %v4437
        %v4439 = vpop.f32.mrb[0].mxu0
        %4440 = vmatprep.mubr.f32.mxu0 0.0
        %v4441 = vand.u32 %v4022, 4294901760
        %4442 = vmatmul.mubr.f32.gmra.mrb[0].mxu0 %v4441
        %v4443 = vpop.f32.mrb[0].mxu0
        %v4444 = vadd.f32 %v4361, %v4443
        %v4445 = vpop.f32.mrb[0].mxu0
        %4446 = vdwg.mxu0
        %4447 = vmatprep.subr.mxu0 0.0
        %v4448 = vand.u32 %v453, 4294901760
        %4449 = vmatpush1.msra.mxu0 %v4448
        %4450 = vmatprep.subr.mxu0 0.0
        %v4451 = vand.u32 %v454, 4294901760
        %4452 = vmatpush1.msra.mxu0 %v4451
        %4453 = vmatprep.subr.mxu0 0.0
        %4454 = vmatpush1.msra.mxu0 0.0
        %4455 = vmatprep.subr.mxu0 0.0
        %4456 = vmatpush1.msra.mxu0 0.0
        %4457 = vmatprep.subr.mxu0 0.0
        %4458 = vmatpush1.msra.mxu0 0.0
        %4459 = vmatprep.subr.mxu0 0.0
        %4460 = vmatpush1.msra.mxu0 0.0
        %4461 = vmatprep.subr.mxu0 0.0
        %4462 = vmatpush1.msra.mxu0 0.0
        %4463 = vmatprep.subr.mxu0 0.0
        %4464 = vmatpush1.msra.mxu0 0.0
        %4465 = vmatprep.subr.mxu0 0.0
        %4466 = vmatpush1.msra.mxu0 0.0
        %4467 = vmatprep.subr.mxu0 0.0
        %4468 = vmatpush1.msra.mxu0 0.0
        %4469 = vmatprep.subr.mxu0 0.0
        %4470 = vmatpush1.msra.mxu0 0.0
        %4471 = vmatprep.subr.mxu0 0.0
        %4472 = vmatpush1.msra.mxu0 0.0
        %4473 = vmatprep.subr.mxu0 0.0
        %4474 = vmatpush1.msra.mxu0 0.0
        %4475 = vmatprep.subr.mxu0 0.0
        %4476 = vmatpush1.msra.mxu0 0.0
        %4477 = vmatprep.subr.mxu0 0.0
        %4478 = vmatpush1.msra.mxu0 0.0
        %4479 = vmatprep.subr.mxu0 0.0
        %4480 = vmatpush1.msra.mxu0 0.0
        %4481 = vmatprep.subr.mxu0 0.0
        %4482 = vmatpush1.msra.mxu0 0.0
        %4483 = vmatprep.subr.mxu0 0.0
        %4484 = vmatpush1.msra.mxu0 0.0
        %4485 = vmatprep.subr.mxu0 0.0
        %4486 = vmatpush1.msra.mxu0 0.0
        %4487 = vmatprep.subr.mxu0 0.0
        %4488 = vmatpush1.msra.mxu0 0.0
        %4489 = vmatprep.subr.mxu0 0.0
        %4490 = vmatpush1.msra.mxu0 0.0
        %4491 = vmatprep.subr.mxu0 0.0
        %4492 = vmatpush1.msra.mxu0 0.0
        %4493 = vmatprep.subr.mxu0 0.0
        %4494 = vmatpush1.msra.mxu0 0.0
        %4495 = vmatprep.subr.mxu0 0.0
        %4496 = vmatpush1.msra.mxu0 0.0
        %4497 = vmatprep.subr.mxu0 0.0
        %4498 = vmatpush1.msra.mxu0 0.0
        %4499 = vmatprep.subr.mxu0 0.0
        %4500 = vmatpush1.msra.mxu0 0.0
        %4501 = vmatprep.subr.mxu0 0.0
        %4502 = vmatpush1.msra.mxu0 0.0
        %4503 = vmatprep.subr.mxu0 0.0
        %4504 = vmatpush1.msra.mxu0 0.0
        %4505 = vmatprep.subr.mxu0 0.0
        %4506 = vmatpush1.msra.mxu0 0.0
        %4507 = vmatprep.subr.mxu0 0.0
        %4508 = vmatpush1.msra.mxu0 0.0
        %4509 = vmatprep.subr.mxu0 0.0
        %4510 = vmatpush1.msra.mxu0 0.0
        %4511 = vmatprep.subr.mxu0 0.0
        %4512 = vmatpush1.msra.mxu0 0.0
        %4513 = vmatprep.mubr.f32.mxu0 0.0
        %v4514 = vand.u32 %v4019, 4294901760
        %4515 = vmatmul.mubr.f32.gmra.mrb[0].mxu0 %v4514
        %v4516 = vpop.f32.mrb[0].mxu0
        %v4517 = vadd.f32 %v4438, %v4516
        %v4518 = vpop.f32.mrb[0].mxu0
        %4519 = vmatprep.mubr.f32.mxu0 0.0
        %v4520 = vand.u32 %v4022, 4294901760
        %4521 = vmatmul.mubr.f32.gmra.mrb[0].mxu0 %v4520
        %v4522 = vpop.f32.mrb[0].mxu0
        %v4523 = vadd.f32 %v4444, %v4522
        %v4524 = vpop.f32.mrb[0].mxu0
        %4525 = vdwg.mxu0
        %v4526 = vmul.f32 %v455, %v457
        %v4527 = vmul.f32 %v456, %v458
        %4528 = vmatprep.subr.mxu0 0.0
        %v4529 = vand.u32 %v4526, 4294901760
        %4530 = vmatpush1.msra.mxu0 %v4529
        %4531 = vmatprep.subr.mxu0 0.0
        %v4532 = vand.u32 %v4527, 4294901760
        %4533 = vmatpush1.msra.mxu0 %v4532
        %4534 = vmatprep.subr.mxu0 0.0
        %4535 = vmatpush1.msra.mxu0 0.0
        %4536 = vmatprep.subr.mxu0 0.0
        %4537 = vmatpush1.msra.mxu0 0.0
        %4538 = vmatprep.subr.mxu0 0.0
        %4539 = vmatpush1.msra.mxu0 0.0
        %4540 = vmatprep.subr.mxu0 0.0
        %4541 = vmatpush1.msra.mxu0 0.0
        %4542 = vmatprep.subr.mxu0 0.0
        %4543 = vmatpush1.msra.mxu0 0.0
        %4544 = vmatprep.subr.mxu0 0.0
        %4545 = vmatpush1.msra.mxu0 0.0
        %4546 = vmatprep.subr.mxu0 0.0
        %4547 = vmatpush1.msra.mxu0 0.0
        %4548 = vmatprep.subr.mxu0 0.0
        %4549 = vmatpush1.msra.mxu0 0.0
        %4550 = vmatprep.subr.mxu0 0.0
        %4551 = vmatpush1.msra.mxu0 0.0
        %4552 = vmatprep.subr.mxu0 0.0
        %4553 = vmatpush1.msra.mxu0 0.0
        %4554 = vmatprep.subr.mxu0 0.0
        %4555 = vmatpush1.msra.mxu0 0.0
        %4556 = vmatprep.subr.mxu0 0.0
        %4557 = vmatpush1.msra.mxu0 0.0
        %4558 = vmatprep.subr.mxu0 0.0
        %4559 = vmatpush1.msra.mxu0 0.0
        %4560 = vmatprep.subr.mxu0 0.0
        %4561 = vmatpush1.msra.mxu0 0.0
        %4562 = vmatprep.subr.mxu0 0.0
        %4563 = vmatpush1.msra.mxu0 0.0
        %4564 = vmatprep.subr.mxu0 0.0
        %4565 = vmatpush1.msra.mxu0 0.0
        %4566 = vmatprep.subr.mxu0 0.0
        %4567 = vmatpush1.msra.mxu0 0.0
        %4568 = vmatprep.subr.mxu0 0.0
        %4569 = vmatpush1.msra.mxu0 0.0
        %4570 = vmatprep.subr.mxu0 0.0
        %4571 = vmatpush1.msra.mxu0 0.0
        %4572 = vmatprep.subr.mxu0 0.0
        %4573 = vmatpush1.msra.mxu0 0.0
        %4574 = vmatprep.subr.mxu0 0.0
        %4575 = vmatpush1.msra.mxu0 0.0
        %4576 = vmatprep.subr.mxu0 0.0
        %4577 = vmatpush1.msra.mxu0 0.0
        %4578 = vmatprep.subr.mxu0 0.0
        %4579 = vmatpush1.msra.mxu0 0.0
        %4580 = vmatprep.subr.mxu0 0.0
        %4581 = vmatpush1.msra.mxu0 0.0
        %4582 = vmatprep.subr.mxu0 0.0
        %4583 = vmatpush1.msra.mxu0 0.0
        %4584 = vmatprep.subr.mxu0 0.0
        %4585 = vmatpush1.msra.mxu0 0.0
        %4586 = vmatprep.subr.mxu0 0.0
        %4587 = vmatpush1.msra.mxu0 0.0
        %4588 = vmatprep.subr.mxu0 0.0
        %4589 = vmatpush1.msra.mxu0 0.0
        %4590 = vmatprep.subr.mxu0 0.0
        %4591 = vmatpush1.msra.mxu0 0.0
        %4592 = vmatprep.subr.mxu0 0.0
        %4593 = vmatpush1.msra.mxu0 0.0
        %4594 = vmatprep.mubr.f32.mxu0 0.0
        %v4595 = vand.u32 %v477, 4294901760
        %v4596 = vsub.f32 %v477, %v4595
        %v4597 = vand.u32 %v4596, 4294901760
        %v4598 = vsub.f32 %v4596, %v4597
        %v4599 = vand.u32 %v4598, 4294901760
        %4600 = vmatmul.mubr.f32.gmra.mrb[0].mxu0 %v4599
        %v4601 = vpop.f32.mrb[0].mxu0
        %v4602 = vadd.f32 0.0, %v4601
        %v4603 = vpop.f32.mrb[0].mxu0
        %4604 = vmatprep.mubr.f32.mxu0 0.0
        %v4605 = vand.u32 %v480, 4294901760
        %v4606 = vsub.f32 %v480, %v4605
        %v4607 = vand.u32 %v4606, 4294901760
        %v4608 = vsub.f32 %v4606, %v4607
        %v4609 = vand.u32 %v4608, 4294901760
        %4610 = vmatmul.mubr.f32.gmra.mrb[0].mxu0 %v4609
        %v4611 = vpop.f32.mrb[0].mxu0
        %v4612 = vadd.f32 0.0, %v4611
        %v4613 = vpop.f32.mrb[0].mxu0
        %4614 = vdwg.mxu0
        %4615 = vmatprep.subr.mxu0 0.0
        %v4616 = vand.u32 %v4526, 4294901760
        %v4617 = vsub.f32 %v4526, %v4616
        %v4618 = vand.u32 %v4617, 4294901760
        %v4619 = vsub.f32 %v4617, %v4618
        %v4620 = vand.u32 %v4619, 4294901760
        %4621 = vmatpush1.msra.mxu0 %v4620
        %4622 = vmatprep.subr.mxu0 0.0
        %v4623 = vand.u32 %v4527, 4294901760
        %v4624 = vsub.f32 %v4527, %v4623
        %v4625 = vand.u32 %v4624, 4294901760
        %v4626 = vsub.f32 %v4624, %v4625
        %v4627 = vand.u32 %v4626, 4294901760
        %4628 = vmatpush1.msra.mxu0 %v4627
        %4629 = vmatprep.subr.mxu0 0.0
        %4630 = vmatpush1.msra.mxu0 0.0
        %4631 = vmatprep.subr.mxu0 0.0
        %4632 = vmatpush1.msra.mxu0 0.0
        %4633 = vmatprep.subr.mxu0 0.0
        %4634 = vmatpush1.msra.mxu0 0.0
        %4635 = vmatprep.subr.mxu0 0.0
        %4636 = vmatpush1.msra.mxu0 0.0
        %4637 = vmatprep.subr.mxu0 0.0
        %4638 = vmatpush1.msra.mxu0 0.0
        %4639 = vmatprep.subr.mxu0 0.0
        %4640 = vmatpush1.msra.mxu0 0.0
        %4641 = vmatprep.subr.mxu0 0.0
        %4642 = vmatpush1.msra.mxu0 0.0
        %4643 = vmatprep.subr.mxu0 0.0
        %4644 = vmatpush1.msra.mxu0 0.0
        %4645 = vmatprep.subr.mxu0 0.0
        %4646 = vmatpush1.msra.mxu0 0.0
        %4647 = vmatprep.subr.mxu0 0.0
        %4648 = vmatpush1.msra.mxu0 0.0
        %4649 = vmatprep.subr.mxu0 0.0
        %4650 = vmatpush1.msra.mxu0 0.0
        %4651 = vmatprep.subr.mxu0 0.0
        %4652 = vmatpush1.msra.mxu0 0.0
        %4653 = vmatprep.subr.mxu0 0.0
        %4654 = vmatpush1.msra.mxu0 0.0
        %4655 = vmatprep.subr.mxu0 0.0
        %4656 = vmatpush1.msra.mxu0 0.0
        %4657 = vmatprep.subr.mxu0 0.0
        %4658 = vmatpush1.msra.mxu0 0.0
        %4659 = vmatprep.subr.mxu0 0.0
        %4660 = vmatpush1.msra.mxu0 0.0
        %4661 = vmatprep.subr.mxu0 0.0
        %4662 = vmatpush1.msra.mxu0 0.0
        %4663 = vmatprep.subr.mxu0 0.0
        %4664 = vmatpush1.msra.mxu0 0.0
        %4665 = vmatprep.subr.mxu0 0.0
        %4666 = vmatpush1.msra.mxu0 0.0
        %4667 = vmatprep.subr.mxu0 0.0
        %4668 = vmatpush1.msra.mxu0 0.0
        %4669 = vmatprep.subr.mxu0 0.0
        %4670 = vmatpush1.msra.mxu0 0.0
        %4671 = vmatprep.subr.mxu0 0.0
        %4672 = vmatpush1.msra.mxu0 0.0
        %4673 = vmatprep.subr.mxu0 0.0
        %4674 = vmatpush1.msra.mxu0 0.0
        %4675 = vmatprep.subr.mxu0 0.0
        %4676 = vmatpush1.msra.mxu0 0.0
        %4677 = vmatprep.subr.mxu0 0.0
        %4678 = vmatpush1.msra.mxu0 0.0
        %4679 = vmatprep.subr.mxu0 0.0
        %4680 = vmatpush1.msra.mxu0 0.0
        %4681 = vmatprep.subr.mxu0 0.0
        %4682 = vmatpush1.msra.mxu0 0.0
        %4683 = vmatprep.subr.mxu0 0.0
        %4684 = vmatpush1.msra.mxu0 0.0
        %4685 = vmatprep.subr.mxu0 0.0
        %4686 = vmatpush1.msra.mxu0 0.0
        %4687 = vmatprep.subr.mxu0 0.0
        %4688 = vmatpush1.msra.mxu0 0.0
        %4689 = vmatprep.mubr.f32.mxu0 0.0
        %v4690 = vand.u32 %v477, 4294901760
        %4691 = vmatmul.mubr.f32.gmra.mrb[0].mxu0 %v4690
        %v4692 = vpop.f32.mrb[0].mxu0
        %v4693 = vadd.f32 %v4602, %v4692
        %v4694 = vpop.f32.mrb[0].mxu0
        %4695 = vmatprep.mubr.f32.mxu0 0.0
        %v4696 = vand.u32 %v480, 4294901760
        %4697 = vmatmul.mubr.f32.gmra.mrb[0].mxu0 %v4696
        %v4698 = vpop.f32.mrb[0].mxu0
        %v4699 = vadd.f32 %v4612, %v4698
        %v4700 = vpop.f32.mrb[0].mxu0
        %4701 = vdwg.mxu0
        %4702 = vmatprep.subr.mxu0 0.0
        %v4703 = vand.u32 %v4526, 4294901760
        %v4704 = vsub.f32 %v4526, %v4703
        %4705 = vmatpush1.msra.mxu0 %v4704
        %4706 = vmatprep.subr.mxu0 0.0
        %v4707 = vand.u32 %v4527, 4294901760
        %v4708 = vsub.f32 %v4527, %v4707
        %4709 = vmatpush1.msra.mxu0 %v4708
        %4710 = vmatprep.subr.mxu0 0.0
        %4711 = vmatpush1.msra.mxu0 0.0
        %4712 = vmatprep.subr.mxu0 0.0
        %4713 = vmatpush1.msra.mxu0 0.0
        %4714 = vmatprep.subr.mxu0 0.0
        %4715 = vmatpush1.msra.mxu0 0.0
        %4716 = vmatprep.subr.mxu0 0.0
        %4717 = vmatpush1.msra.mxu0 0.0
        %4718 = vmatprep.subr.mxu0 0.0
        %4719 = vmatpush1.msra.mxu0 0.0
        %4720 = vmatprep.subr.mxu0 0.0
        %4721 = vmatpush1.msra.mxu0 0.0
        %4722 = vmatprep.subr.mxu0 0.0
        %4723 = vmatpush1.msra.mxu0 0.0
        %4724 = vmatprep.subr.mxu0 0.0
        %4725 = vmatpush1.msra.mxu0 0.0
        %4726 = vmatprep.subr.mxu0 0.0
        %4727 = vmatpush1.msra.mxu0 0.0
        %4728 = vmatprep.subr.mxu0 0.0
        %4729 = vmatpush1.msra.mxu0 0.0
        %4730 = vmatprep.subr.mxu0 0.0
        %4731 = vmatpush1.msra.mxu0 0.0
        %4732 = vmatprep.subr.mxu0 0.0
        %4733 = vmatpush1.msra.mxu0 0.0
        %4734 = vmatprep.subr.mxu0 0.0
        %4735 = vmatpush1.msra.mxu0 0.0
        %4736 = vmatprep.subr.mxu0 0.0
        %4737 = vmatpush1.msra.mxu0 0.0
        %4738 = vmatprep.subr.mxu0 0.0
        %4739 = vmatpush1.msra.mxu0 0.0
        %4740 = vmatprep.subr.mxu0 0.0
        %4741 = vmatpush1.msra.mxu0 0.0
        %4742 = vmatprep.subr.mxu0 0.0
        %4743 = vmatpush1.msra.mxu0 0.0
        %4744 = vmatprep.subr.mxu0 0.0
        %4745 = vmatpush1.msra.mxu0 0.0
        %4746 = vmatprep.subr.mxu0 0.0
        %4747 = vmatpush1.msra.mxu0 0.0
        %4748 = vmatprep.subr.mxu0 0.0
        %4749 = vmatpush1.msra.mxu0 0.0
        %4750 = vmatprep.subr.mxu0 0.0
        %4751 = vmatpush1.msra.mxu0 0.0
        %4752 = vmatprep.subr.mxu0 0.0
        %4753 = vmatpush1.msra.mxu0 0.0
        %4754 = vmatprep.subr.mxu0 0.0
        %4755 = vmatpush1.msra.mxu0 0.0
        %4756 = vmatprep.subr.mxu0 0.0
        %4757 = vmatpush1.msra.mxu0 0.0
        %4758 = vmatprep.subr.mxu0 0.0
        %4759 = vmatpush1.msra.mxu0 0.0
        %4760 = vmatprep.subr.mxu0 0.0
        %4761 = vmatpush1.msra.mxu0 0.0
        %4762 = vmatprep.subr.mxu0 0.0
        %4763 = vmatpush1.msra.mxu0 0.0
        %4764 = vmatprep.subr.mxu0 0.0
        %4765 = vmatpush1.msra.mxu0 0.0
        %4766 = vmatprep.subr.mxu0 0.0
        %4767 = vmatpush1.msra.mxu0 0.0
        %4768 = vmatprep.subr.mxu0 0.0
        %4769 = vmatpush1.msra.mxu0 0.0
        %4770 = vmatprep.mubr.f32.mxu0 0.0
        %v4771 = vand.u32 %v477, 4294901760
        %v4772 = vsub.f32 %v477, %v4771
        %4773 = vmatmul.mubr.f32.gmra.mrb[0].mxu0 %v4772
        %v4774 = vpop.f32.mrb[0].mxu0
        %v4775 = vadd.f32 %v4693, %v4774
        %v4776 = vpop.f32.mrb[0].mxu0
        %4777 = vmatprep.mubr.f32.mxu0 0.0
        %v4778 = vand.u32 %v480, 4294901760
        %v4779 = vsub.f32 %v480, %v4778
        %4780 = vmatmul.mubr.f32.gmra.mrb[0].mxu0 %v4779
        %v4781 = vpop.f32.mrb[0].mxu0
        %v4782 = vadd.f32 %v4699, %v4781
        %v4783 = vpop.f32.mrb[0].mxu0
        %4784 = vdwg.mxu0
        %4785 = vmatprep.subr.mxu0 0.0
        %v4786 = vand.u32 %v4526, 4294901760
        %4787 = vmatpush1.msra.mxu0 %v4786
        %4788 = vmatprep.subr.mxu0 0.0
        %v4789 = vand.u32 %v4527, 4294901760
        %4790 = vmatpush1.msra.mxu0 %v4789
        %4791 = vmatprep.subr.mxu0 0.0
        %4792 = vmatpush1.msra.mxu0 0.0
        %4793 = vmatprep.subr.mxu0 0.0
        %4794 = vmatpush1.msra.mxu0 0.0
        %4795 = vmatprep.subr.mxu0 0.0
        %4796 = vmatpush1.msra.mxu0 0.0
        %4797 = vmatprep.subr.mxu0 0.0
        %4798 = vmatpush1.msra.mxu0 0.0
        %4799 = vmatprep.subr.mxu0 0.0
        %4800 = vmatpush1.msra.mxu0 0.0
        %4801 = vmatprep.subr.mxu0 0.0
        %4802 = vmatpush1.msra.mxu0 0.0
        %4803 = vmatprep.subr.mxu0 0.0
        %4804 = vmatpush1.msra.mxu0 0.0
        %4805 = vmatprep.subr.mxu0 0.0
        %4806 = vmatpush1.msra.mxu0 0.0
        %4807 = vmatprep.subr.mxu0 0.0
        %4808 = vmatpush1.msra.mxu0 0.0
        %4809 = vmatprep.subr.mxu0 0.0
        %4810 = vmatpush1.msra.mxu0 0.0
        %4811 = vmatprep.subr.mxu0 0.0
        %4812 = vmatpush1.msra.mxu0 0.0
        %4813 = vmatprep.subr.mxu0 0.0
        %4814 = vmatpush1.msra.mxu0 0.0
        %4815 = vmatprep.subr.mxu0 0.0
        %4816 = vmatpush1.msra.mxu0 0.0
        %4817 = vmatprep.subr.mxu0 0.0
        %4818 = vmatpush1.msra.mxu0 0.0
        %4819 = vmatprep.subr.mxu0 0.0
        %4820 = vmatpush1.msra.mxu0 0.0
        %4821 = vmatprep.subr.mxu0 0.0
        %4822 = vmatpush1.msra.mxu0 0.0
        %4823 = vmatprep.subr.mxu0 0.0
        %4824 = vmatpush1.msra.mxu0 0.0
        %4825 = vmatprep.subr.mxu0 0.0
        %4826 = vmatpush1.msra.mxu0 0.0
        %4827 = vmatprep.subr.mxu0 0.0
        %4828 = vmatpush1.msra.mxu0 0.0
        %4829 = vmatprep.subr.mxu0 0.0
        %4830 = vmatpush1.msra.mxu0 0.0
        %4831 = vmatprep.subr.mxu0 0.0
        %4832 = vmatpush1.msra.mxu0 0.0
        %4833 = vmatprep.subr.mxu0 0.0
        %4834 = vmatpush1.msra.mxu0 0.0
        %4835 = vmatprep.subr.mxu0 0.0
        %4836 = vmatpush1.msra.mxu0 0.0
        %4837 = vmatprep.subr.mxu0 0.0
        %4838 = vmatpush1.msra.mxu0 0.0
        %4839 = vmatprep.subr.mxu0 0.0
        %4840 = vmatpush1.msra.mxu0 0.0
        %4841 = vmatprep.subr.mxu0 0.0
        %4842 = vmatpush1.msra.mxu0 0.0
        %4843 = vmatprep.subr.mxu0 0.0
        %4844 = vmatpush1.msra.mxu0 0.0
        %4845 = vmatprep.subr.mxu0 0.0
        %4846 = vmatpush1.msra.mxu0 0.0
        %4847 = vmatprep.subr.mxu0 0.0
        %4848 = vmatpush1.msra.mxu0 0.0
        %4849 = vmatprep.subr.mxu0 0.0
        %4850 = vmatpush1.msra.mxu0 0.0
        %4851 = vmatprep.mubr.f32.mxu0 0.0
        %v4852 = vand.u32 %v477, 4294901760
        %v4853 = vsub.f32 %v477, %v4852
        %v4854 = vand.u32 %v4853, 4294901760
        %4855 = vmatmul.mubr.f32.gmra.mrb[0].mxu0 %v4854
        %v4856 = vpop.f32.mrb[0].mxu0
        %v4857 = vadd.f32 %v4775, %v4856
        %v4858 = vpop.f32.mrb[0].mxu0
        %4859 = vmatprep.mubr.f32.mxu0 0.0
        %v4860 = vand.u32 %v480, 4294901760
        %v4861 = vsub.f32 %v480, %v4860
        %v4862 = vand.u32 %v4861, 4294901760
        %4863 = vmatmul.mubr.f32.gmra.mrb[0].mxu0 %v4862
        %v4864 = vpop.f32.mrb[0].mxu0
        %v4865 = vadd.f32 %v4782, %v4864
        %v4866 = vpop.f32.mrb[0].mxu0
        %4867 = vdwg.mxu0
        %4868 = vmatprep.subr.mxu0 0.0
        %v4869 = vand.u32 %v4526, 4294901760
        %v4870 = vsub.f32 %v4526, %v4869
        %v4871 = vand.u32 %v4870, 4294901760
        %4872 = vmatpush1.msra.mxu0 %v4871
        %4873 = vmatprep.subr.mxu0 0.0
        %v4874 = vand.u32 %v4527, 4294901760
        %v4875 = vsub.f32 %v4527, %v4874
        %v4876 = vand.u32 %v4875, 4294901760
        %4877 = vmatpush1.msra.mxu0 %v4876
        %4878 = vmatprep.subr.mxu0 0.0
        %4879 = vmatpush1.msra.mxu0 0.0
        %4880 = vmatprep.subr.mxu0 0.0
        %4881 = vmatpush1.msra.mxu0 0.0
        %4882 = vmatprep.subr.mxu0 0.0
        %4883 = vmatpush1.msra.mxu0 0.0
        %4884 = vmatprep.subr.mxu0 0.0
        %4885 = vmatpush1.msra.mxu0 0.0
        %4886 = vmatprep.subr.mxu0 0.0
        %4887 = vmatpush1.msra.mxu0 0.0
        %4888 = vmatprep.subr.mxu0 0.0
        %4889 = vmatpush1.msra.mxu0 0.0
        %4890 = vmatprep.subr.mxu0 0.0
        %4891 = vmatpush1.msra.mxu0 0.0
        %4892 = vmatprep.subr.mxu0 0.0
        %4893 = vmatpush1.msra.mxu0 0.0
        %4894 = vmatprep.subr.mxu0 0.0
        %4895 = vmatpush1.msra.mxu0 0.0
        %4896 = vmatprep.subr.mxu0 0.0
        %4897 = vmatpush1.msra.mxu0 0.0
        %4898 = vmatprep.subr.mxu0 0.0
        %4899 = vmatpush1.msra.mxu0 0.0
        %4900 = vmatprep.subr.mxu0 0.0
        %4901 = vmatpush1.msra.mxu0 0.0
        %4902 = vmatprep.subr.mxu0 0.0
        %4903 = vmatpush1.msra.mxu0 0.0
        %4904 = vmatprep.subr.mxu0 0.0
        %4905 = vmatpush1.msra.mxu0 0.0
        %4906 = vmatprep.subr.mxu0 0.0
        %4907 = vmatpush1.msra.mxu0 0.0
        %4908 = vmatprep.subr.mxu0 0.0
        %4909 = vmatpush1.msra.mxu0 0.0
        %4910 = vmatprep.subr.mxu0 0.0
        %4911 = vmatpush1.msra.mxu0 0.0
        %4912 = vmatprep.subr.mxu0 0.0
        %4913 = vmatpush1.msra.mxu0 0.0
        %4914 = vmatprep.subr.mxu0 0.0
        %4915 = vmatpush1.msra.mxu0 0.0
        %4916 = vmatprep.subr.mxu0 0.0
        %4917 = vmatpush1.msra.mxu0 0.0
        %4918 = vmatprep.subr.mxu0 0.0
        %4919 = vmatpush1.msra.mxu0 0.0
        %4920 = vmatprep.subr.mxu0 0.0
        %4921 = vmatpush1.msra.mxu0 0.0
        %4922 = vmatprep.subr.mxu0 0.0
        %4923 = vmatpush1.msra.mxu0 0.0
        %4924 = vmatprep.subr.mxu0 0.0
        %4925 = vmatpush1.msra.mxu0 0.0
        %4926 = vmatprep.subr.mxu0 0.0
        %4927 = vmatpush1.msra.mxu0 0.0
        %4928 = vmatprep.subr.mxu0 0.0
        %4929 = vmatpush1.msra.mxu0 0.0
        %4930 = vmatprep.subr.mxu0 0.0
        %4931 = vmatpush1.msra.mxu0 0.0
        %4932 = vmatprep.subr.mxu0 0.0
        %4933 = vmatpush1.msra.mxu0 0.0
        %4934 = vmatprep.subr.mxu0 0.0
        %4935 = vmatpush1.msra.mxu0 0.0
        %4936 = vmatprep.subr.mxu0 0.0
        %4937 = vmatpush1.msra.mxu0 0.0
        %4938 = vmatprep.mubr.f32.mxu0 0.0
        %v4939 = vand.u32 %v477, 4294901760
        %4940 = vmatmul.mubr.f32.gmra.mrb[0].mxu0 %v4939
        %v4941 = vpop.f32.mrb[0].mxu0
        %v4942 = vadd.f32 %v4857, %v4941
        %v4943 = vpop.f32.mrb[0].mxu0
        %4944 = vmatprep.mubr.f32.mxu0 0.0
        %v4945 = vand.u32 %v480, 4294901760
        %4946 = vmatmul.mubr.f32.gmra.mrb[0].mxu0 %v4945
        %v4947 = vpop.f32.mrb[0].mxu0
        %v4948 = vadd.f32 %v4865, %v4947
        %v4949 = vpop.f32.mrb[0].mxu0
        %4950 = vdwg.mxu0
        %4951 = vmatprep.subr.mxu0 0.0
        %v4952 = vand.u32 %v4526, 4294901760
        %4953 = vmatpush1.msra.mxu0 %v4952
        %4954 = vmatprep.subr.mxu0 0.0
        %v4955 = vand.u32 %v4527, 4294901760
        %4956 = vmatpush1.msra.mxu0 %v4955
        %4957 = vmatprep.subr.mxu0 0.0
        %4958 = vmatpush1.msra.mxu0 0.0
        %4959 = vmatprep.subr.mxu0 0.0
        %4960 = vmatpush1.msra.mxu0 0.0
        %4961 = vmatprep.subr.mxu0 0.0
        %4962 = vmatpush1.msra.mxu0 0.0
        %4963 = vmatprep.subr.mxu0 0.0
        %4964 = vmatpush1.msra.mxu0 0.0
        %4965 = vmatprep.subr.mxu0 0.0
        %4966 = vmatpush1.msra.mxu0 0.0
        %4967 = vmatprep.subr.mxu0 0.0
        %4968 = vmatpush1.msra.mxu0 0.0
        %4969 = vmatprep.subr.mxu0 0.0
        %4970 = vmatpush1.msra.mxu0 0.0
        %4971 = vmatprep.subr.mxu0 0.0
        %4972 = vmatpush1.msra.mxu0 0.0
        %4973 = vmatprep.subr.mxu0 0.0
        %4974 = vmatpush1.msra.mxu0 0.0
        %4975 = vmatprep.subr.mxu0 0.0
        %4976 = vmatpush1.msra.mxu0 0.0
        %4977 = vmatprep.subr.mxu0 0.0
        %4978 = vmatpush1.msra.mxu0 0.0
        %4979 = vmatprep.subr.mxu0 0.0
        %4980 = vmatpush1.msra.mxu0 0.0
        %4981 = vmatprep.subr.mxu0 0.0
        %4982 = vmatpush1.msra.mxu0 0.0
        %4983 = vmatprep.subr.mxu0 0.0
        %4984 = vmatpush1.msra.mxu0 0.0
        %4985 = vmatprep.subr.mxu0 0.0
        %4986 = vmatpush1.msra.mxu0 0.0
        %4987 = vmatprep.subr.mxu0 0.0
        %4988 = vmatpush1.msra.mxu0 0.0
        %4989 = vmatprep.subr.mxu0 0.0
        %4990 = vmatpush1.msra.mxu0 0.0
        %4991 = vmatprep.subr.mxu0 0.0
        %4992 = vmatpush1.msra.mxu0 0.0
        %4993 = vmatprep.subr.mxu0 0.0
        %4994 = vmatpush1.msra.mxu0 0.0
        %4995 = vmatprep.subr.mxu0 0.0
        %4996 = vmatpush1.msra.mxu0 0.0
        %4997 = vmatprep.subr.mxu0 0.0
        %4998 = vmatpush1.msra.mxu0 0.0
        %4999 = vmatprep.subr.mxu0 0.0
        %5000 = vmatpush1.msra.mxu0 0.0
        %5001 = vmatprep.subr.mxu0 0.0
        %5002 = vmatpush1.msra.mxu0 0.0
        %5003 = vmatprep.subr.mxu0 0.0
        %5004 = vmatpush1.msra.mxu0 0.0
        %5005 = vmatprep.subr.mxu0 0.0
        %5006 = vmatpush1.msra.mxu0 0.0
        %5007 = vmatprep.subr.mxu0 0.0
        %5008 = vmatpush1.msra.mxu0 0.0
        %5009 = vmatprep.subr.mxu0 0.0
        %5010 = vmatpush1.msra.mxu0 0.0
        %5011 = vmatprep.subr.mxu0 0.0
        %5012 = vmatpush1.msra.mxu0 0.0
        %5013 = vmatprep.subr.mxu0 0.0
        %5014 = vmatpush1.msra.mxu0 0.0
        %5015 = vmatprep.subr.mxu0 0.0
        %5016 = vmatpush1.msra.mxu0 0.0
        %5017 = vmatprep.mubr.f32.mxu0 0.0
        %v5018 = vand.u32 %v477, 4294901760
        %5019 = vmatmul.mubr.f32.gmra.mrb[0].mxu0 %v5018
        %v5020 = vpop.f32.mrb[0].mxu0
        %v5021 = vadd.f32 %v4942, %v5020
        %v5022 = vpop.f32.mrb[0].mxu0
        %5023 = vmatprep.mubr.f32.mxu0 0.0
        %v5024 = vand.u32 %v480, 4294901760
        %5025 = vmatmul.mubr.f32.gmra.mrb[0].mxu0 %v5024
        %v5026 = vpop.f32.mrb[0].mxu0
        %v5027 = vadd.f32 %v4948, %v5026
        %v5028 = vpop.f32.mrb[0].mxu0
        %5029 = vdwg.mxu0
        %v5031 = vsel %vm463, %v5021, 0
        %v5034 = vsel %vm463, %v5027, 0
        %5036 = vmatprep.subr.mxu0 0.0
        %v5037 = vand.u32 %v453, 4294901760
        %5038 = vmatpush1.msra.mxu0 %v5037
        %5039 = vmatprep.subr.mxu0 0.0
        %v5040 = vand.u32 %v454, 4294901760
        %5041 = vmatpush1.msra.mxu0 %v5040
        %5042 = vmatprep.subr.mxu0 0.0
        %5043 = vmatpush1.msra.mxu0 0.0
        %5044 = vmatprep.subr.mxu0 0.0
        %5045 = vmatpush1.msra.mxu0 0.0
        %5046 = vmatprep.subr.mxu0 0.0
        %5047 = vmatpush1.msra.mxu0 0.0
        %5048 = vmatprep.subr.mxu0 0.0
        %5049 = vmatpush1.msra.mxu0 0.0
        %5050 = vmatprep.subr.mxu0 0.0
        %5051 = vmatpush1.msra.mxu0 0.0
        %5052 = vmatprep.subr.mxu0 0.0
        %5053 = vmatpush1.msra.mxu0 0.0
        %5054 = vmatprep.subr.mxu0 0.0
        %5055 = vmatpush1.msra.mxu0 0.0
        %5056 = vmatprep.subr.mxu0 0.0
        %5057 = vmatpush1.msra.mxu0 0.0
        %5058 = vmatprep.subr.mxu0 0.0
        %5059 = vmatpush1.msra.mxu0 0.0
        %5060 = vmatprep.subr.mxu0 0.0
        %5061 = vmatpush1.msra.mxu0 0.0
        %5062 = vmatprep.subr.mxu0 0.0
        %5063 = vmatpush1.msra.mxu0 0.0
        %5064 = vmatprep.subr.mxu0 0.0
        %5065 = vmatpush1.msra.mxu0 0.0
        %5066 = vmatprep.subr.mxu0 0.0
        %5067 = vmatpush1.msra.mxu0 0.0
        %5068 = vmatprep.subr.mxu0 0.0
        %5069 = vmatpush1.msra.mxu0 0.0
        %5070 = vmatprep.subr.mxu0 0.0
        %5071 = vmatpush1.msra.mxu0 0.0
        %5072 = vmatprep.subr.mxu0 0.0
        %5073 = vmatpush1.msra.mxu0 0.0
        %5074 = vmatprep.subr.mxu0 0.0
        %5075 = vmatpush1.msra.mxu0 0.0
        %5076 = vmatprep.subr.mxu0 0.0
        %5077 = vmatpush1.msra.mxu0 0.0
        %5078 = vmatprep.subr.mxu0 0.0
        %5079 = vmatpush1.msra.mxu0 0.0
        %5080 = vmatprep.subr.mxu0 0.0
        %5081 = vmatpush1.msra.mxu0 0.0
        %5082 = vmatprep.subr.mxu0 0.0
        %5083 = vmatpush1.msra.mxu0 0.0
        %5084 = vmatprep.subr.mxu0 0.0
        %5085 = vmatpush1.msra.mxu0 0.0
        %5086 = vmatprep.subr.mxu0 0.0
        %5087 = vmatpush1.msra.mxu0 0.0
        %5088 = vmatprep.subr.mxu0 0.0
        %5089 = vmatpush1.msra.mxu0 0.0
        %5090 = vmatprep.subr.mxu0 0.0
        %5091 = vmatpush1.msra.mxu0 0.0
        %5092 = vmatprep.subr.mxu0 0.0
        %5093 = vmatpush1.msra.mxu0 0.0
        %5094 = vmatprep.subr.mxu0 0.0
        %5095 = vmatpush1.msra.mxu0 0.0
        %5096 = vmatprep.subr.mxu0 0.0
        %5097 = vmatpush1.msra.mxu0 0.0
        %5098 = vmatprep.subr.mxu0 0.0
        %5099 = vmatpush1.msra.mxu0 0.0
        %5100 = vmatprep.subr.mxu0 0.0
        %5101 = vmatpush1.msra.mxu0 0.0
        %5102 = vmatprep.mubr.f32.mxu0 0.0
        %v5103 = vand.u32 %v5031, 4294901760
        %v5104 = vsub.f32 %v5031, %v5103
        %v5105 = vand.u32 %v5104, 4294901760
        %v5106 = vsub.f32 %v5104, %v5105
        %v5107 = vand.u32 %v5106, 4294901760
        %5108 = vmatmul.mubr.f32.gmra.mrb[0].mxu0 %v5107
        %v5109 = vpop.f32.mrb[0].mxu0
        %v5110 = vadd.f32 0.0, %v5109
        %v5111 = vpop.f32.mrb[0].mxu0
        %5112 = vmatprep.mubr.f32.mxu0 0.0
        %v5113 = vand.u32 %v5034, 4294901760
        %v5114 = vsub.f32 %v5034, %v5113
        %v5115 = vand.u32 %v5114, 4294901760
        %v5116 = vsub.f32 %v5114, %v5115
        %v5117 = vand.u32 %v5116, 4294901760
        %5118 = vmatmul.mubr.f32.gmra.mrb[0].mxu0 %v5117
        %v5119 = vpop.f32.mrb[0].mxu0
        %v5120 = vadd.f32 0.0, %v5119
        %v5121 = vpop.f32.mrb[0].mxu0
        %5122 = vdwg.mxu0
        %5123 = vmatprep.subr.mxu0 0.0
        %v5124 = vand.u32 %v453, 4294901760
        %v5125 = vsub.f32 %v453, %v5124
        %v5126 = vand.u32 %v5125, 4294901760
        %v5127 = vsub.f32 %v5125, %v5126
        %v5128 = vand.u32 %v5127, 4294901760
        %5129 = vmatpush1.msra.mxu0 %v5128
        %5130 = vmatprep.subr.mxu0 0.0
        %v5131 = vand.u32 %v454, 4294901760
        %v5132 = vsub.f32 %v454, %v5131
        %v5133 = vand.u32 %v5132, 4294901760
        %v5134 = vsub.f32 %v5132, %v5133
        %v5135 = vand.u32 %v5134, 4294901760
        %5136 = vmatpush1.msra.mxu0 %v5135
        %5137 = vmatprep.subr.mxu0 0.0
        %5138 = vmatpush1.msra.mxu0 0.0
        %5139 = vmatprep.subr.mxu0 0.0
        %5140 = vmatpush1.msra.mxu0 0.0
        %5141 = vmatprep.subr.mxu0 0.0
        %5142 = vmatpush1.msra.mxu0 0.0
        %5143 = vmatprep.subr.mxu0 0.0
        %5144 = vmatpush1.msra.mxu0 0.0
        %5145 = vmatprep.subr.mxu0 0.0
        %5146 = vmatpush1.msra.mxu0 0.0
        %5147 = vmatprep.subr.mxu0 0.0
        %5148 = vmatpush1.msra.mxu0 0.0
        %5149 = vmatprep.subr.mxu0 0.0
        %5150 = vmatpush1.msra.mxu0 0.0
        %5151 = vmatprep.subr.mxu0 0.0
        %5152 = vmatpush1.msra.mxu0 0.0
        %5153 = vmatprep.subr.mxu0 0.0
        %5154 = vmatpush1.msra.mxu0 0.0
        %5155 = vmatprep.subr.mxu0 0.0
        %5156 = vmatpush1.msra.mxu0 0.0
        %5157 = vmatprep.subr.mxu0 0.0
        %5158 = vmatpush1.msra.mxu0 0.0
        %5159 = vmatprep.subr.mxu0 0.0
        %5160 = vmatpush1.msra.mxu0 0.0
        %5161 = vmatprep.subr.mxu0 0.0
        %5162 = vmatpush1.msra.mxu0 0.0
        %5163 = vmatprep.subr.mxu0 0.0
        %5164 = vmatpush1.msra.mxu0 0.0
        %5165 = vmatprep.subr.mxu0 0.0
        %5166 = vmatpush1.msra.mxu0 0.0
        %5167 = vmatprep.subr.mxu0 0.0
        %5168 = vmatpush1.msra.mxu0 0.0
        %5169 = vmatprep.subr.mxu0 0.0
        %5170 = vmatpush1.msra.mxu0 0.0
        %5171 = vmatprep.subr.mxu0 0.0
        %5172 = vmatpush1.msra.mxu0 0.0
        %5173 = vmatprep.subr.mxu0 0.0
        %5174 = vmatpush1.msra.mxu0 0.0
        %5175 = vmatprep.subr.mxu0 0.0
        %5176 = vmatpush1.msra.mxu0 0.0
        %5177 = vmatprep.subr.mxu0 0.0
        %5178 = vmatpush1.msra.mxu0 0.0
        %5179 = vmatprep.subr.mxu0 0.0
        %5180 = vmatpush1.msra.mxu0 0.0
        %5181 = vmatprep.subr.mxu0 0.0
        %5182 = vmatpush1.msra.mxu0 0.0
        %5183 = vmatprep.subr.mxu0 0.0
        %5184 = vmatpush1.msra.mxu0 0.0
        %5185 = vmatprep.subr.mxu0 0.0
        %5186 = vmatpush1.msra.mxu0 0.0
        %5187 = vmatprep.subr.mxu0 0.0
        %5188 = vmatpush1.msra.mxu0 0.0
        %5189 = vmatprep.subr.mxu0 0.0
        %5190 = vmatpush1.msra.mxu0 0.0
        %5191 = vmatprep.subr.mxu0 0.0
        %5192 = vmatpush1.msra.mxu0 0.0
        %5193 = vmatprep.subr.mxu0 0.0
        %5194 = vmatpush1.msra.mxu0 0.0
        %5195 = vmatprep.subr.mxu0 0.0
        %5196 = vmatpush1.msra.mxu0 0.0
        %5197 = vmatprep.mubr.f32.mxu0 0.0
        %v5198 = vand.u32 %v5031, 4294901760
        %5199 = vmatmul.mubr.f32.gmra.mrb[0].mxu0 %v5198
        %v5200 = vpop.f32.mrb[0].mxu0
        %v5201 = vadd.f32 %v5110, %v5200
        %v5202 = vpop.f32.mrb[0].mxu0
        %5203 = vmatprep.mubr.f32.mxu0 0.0
        %v5204 = vand.u32 %v5034, 4294901760
        %5205 = vmatmul.mubr.f32.gmra.mrb[0].mxu0 %v5204
        %v5206 = vpop.f32.mrb[0].mxu0
        %v5207 = vadd.f32 %v5120, %v5206
        %v5208 = vpop.f32.mrb[0].mxu0
        %5209 = vdwg.mxu0
        %5210 = vmatprep.subr.mxu0 0.0
        %v5211 = vand.u32 %v453, 4294901760
        %v5212 = vsub.f32 %v453, %v5211
        %5213 = vmatpush1.msra.mxu0 %v5212
        %5214 = vmatprep.subr.mxu0 0.0
        %v5215 = vand.u32 %v454, 4294901760
        %v5216 = vsub.f32 %v454, %v5215
        %5217 = vmatpush1.msra.mxu0 %v5216
        %5218 = vmatprep.subr.mxu0 0.0
        %5219 = vmatpush1.msra.mxu0 0.0
        %5220 = vmatprep.subr.mxu0 0.0
        %5221 = vmatpush1.msra.mxu0 0.0
        %5222 = vmatprep.subr.mxu0 0.0
        %5223 = vmatpush1.msra.mxu0 0.0
        %5224 = vmatprep.subr.mxu0 0.0
        %5225 = vmatpush1.msra.mxu0 0.0
        %5226 = vmatprep.subr.mxu0 0.0
        %5227 = vmatpush1.msra.mxu0 0.0
        %5228 = vmatprep.subr.mxu0 0.0
        %5229 = vmatpush1.msra.mxu0 0.0
        %5230 = vmatprep.subr.mxu0 0.0
        %5231 = vmatpush1.msra.mxu0 0.0
        %5232 = vmatprep.subr.mxu0 0.0
        %5233 = vmatpush1.msra.mxu0 0.0
        %5234 = vmatprep.subr.mxu0 0.0
        %5235 = vmatpush1.msra.mxu0 0.0
        %5236 = vmatprep.subr.mxu0 0.0
        %5237 = vmatpush1.msra.mxu0 0.0
        %5238 = vmatprep.subr.mxu0 0.0
        %5239 = vmatpush1.msra.mxu0 0.0
        %5240 = vmatprep.subr.mxu0 0.0
        %5241 = vmatpush1.msra.mxu0 0.0
        %5242 = vmatprep.subr.mxu0 0.0
        %5243 = vmatpush1.msra.mxu0 0.0
        %5244 = vmatprep.subr.mxu0 0.0
        %5245 = vmatpush1.msra.mxu0 0.0
        %5246 = vmatprep.subr.mxu0 0.0
        %5247 = vmatpush1.msra.mxu0 0.0
        %5248 = vmatprep.subr.mxu0 0.0
        %5249 = vmatpush1.msra.mxu0 0.0
        %5250 = vmatprep.subr.mxu0 0.0
        %5251 = vmatpush1.msra.mxu0 0.0
        %5252 = vmatprep.subr.mxu0 0.0
        %5253 = vmatpush1.msra.mxu0 0.0
        %5254 = vmatprep.subr.mxu0 0.0
        %5255 = vmatpush1.msra.mxu0 0.0
        %5256 = vmatprep.subr.mxu0 0.0
        %5257 = vmatpush1.msra.mxu0 0.0
        %5258 = vmatprep.subr.mxu0 0.0
        %5259 = vmatpush1.msra.mxu0 0.0
        %5260 = vmatprep.subr.mxu0 0.0
        %5261 = vmatpush1.msra.mxu0 0.0
        %5262 = vmatprep.subr.mxu0 0.0
        %5263 = vmatpush1.msra.mxu0 0.0
        %5264 = vmatprep.subr.mxu0 0.0
        %5265 = vmatpush1.msra.mxu0 0.0
        %5266 = vmatprep.subr.mxu0 0.0
        %5267 = vmatpush1.msra.mxu0 0.0
        %5268 = vmatprep.subr.mxu0 0.0
        %5269 = vmatpush1.msra.mxu0 0.0
        %5270 = vmatprep.subr.mxu0 0.0
        %5271 = vmatpush1.msra.mxu0 0.0
        %5272 = vmatprep.subr.mxu0 0.0
        %5273 = vmatpush1.msra.mxu0 0.0
        %5274 = vmatprep.subr.mxu0 0.0
        %5275 = vmatpush1.msra.mxu0 0.0
        %5276 = vmatprep.subr.mxu0 0.0
        %5277 = vmatpush1.msra.mxu0 0.0
        %5278 = vmatprep.mubr.f32.mxu0 0.0
        %v5279 = vand.u32 %v5031, 4294901760
        %v5280 = vsub.f32 %v5031, %v5279
        %5281 = vmatmul.mubr.f32.gmra.mrb[0].mxu0 %v5280
        %v5282 = vpop.f32.mrb[0].mxu0
        %v5283 = vadd.f32 %v5201, %v5282
        %v5284 = vpop.f32.mrb[0].mxu0
        %5285 = vmatprep.mubr.f32.mxu0 0.0
        %v5286 = vand.u32 %v5034, 4294901760
        %v5287 = vsub.f32 %v5034, %v5286
        %5288 = vmatmul.mubr.f32.gmra.mrb[0].mxu0 %v5287
        %v5289 = vpop.f32.mrb[0].mxu0
        %v5290 = vadd.f32 %v5207, %v5289
        %v5291 = vpop.f32.mrb[0].mxu0
        %5292 = vdwg.mxu0
        %5293 = vmatprep.subr.mxu0 0.0
        %v5294 = vand.u32 %v453, 4294901760
        %5295 = vmatpush1.msra.mxu0 %v5294
        %5296 = vmatprep.subr.mxu0 0.0
        %v5297 = vand.u32 %v454, 4294901760
        %5298 = vmatpush1.msra.mxu0 %v5297
        %5299 = vmatprep.subr.mxu0 0.0
        %5300 = vmatpush1.msra.mxu0 0.0
        %5301 = vmatprep.subr.mxu0 0.0
        %5302 = vmatpush1.msra.mxu0 0.0
        %5303 = vmatprep.subr.mxu0 0.0
        %5304 = vmatpush1.msra.mxu0 0.0
        %5305 = vmatprep.subr.mxu0 0.0
        %5306 = vmatpush1.msra.mxu0 0.0
        %5307 = vmatprep.subr.mxu0 0.0
        %5308 = vmatpush1.msra.mxu0 0.0
        %5309 = vmatprep.subr.mxu0 0.0
        %5310 = vmatpush1.msra.mxu0 0.0
        %5311 = vmatprep.subr.mxu0 0.0
        %5312 = vmatpush1.msra.mxu0 0.0
        %5313 = vmatprep.subr.mxu0 0.0
        %5314 = vmatpush1.msra.mxu0 0.0
        %5315 = vmatprep.subr.mxu0 0.0
        %5316 = vmatpush1.msra.mxu0 0.0
        %5317 = vmatprep.subr.mxu0 0.0
        %5318 = vmatpush1.msra.mxu0 0.0
        %5319 = vmatprep.subr.mxu0 0.0
        %5320 = vmatpush1.msra.mxu0 0.0
        %5321 = vmatprep.subr.mxu0 0.0
        %5322 = vmatpush1.msra.mxu0 0.0
        %5323 = vmatprep.subr.mxu0 0.0
        %5324 = vmatpush1.msra.mxu0 0.0
        %5325 = vmatprep.subr.mxu0 0.0
        %5326 = vmatpush1.msra.mxu0 0.0
        %5327 = vmatprep.subr.mxu0 0.0
        %5328 = vmatpush1.msra.mxu0 0.0
        %5329 = vmatprep.subr.mxu0 0.0
        %5330 = vmatpush1.msra.mxu0 0.0
        %5331 = vmatprep.subr.mxu0 0.0
        %5332 = vmatpush1.msra.mxu0 0.0
        %5333 = vmatprep.subr.mxu0 0.0
        %5334 = vmatpush1.msra.mxu0 0.0
        %5335 = vmatprep.subr.mxu0 0.0
        %5336 = vmatpush1.msra.mxu0 0.0
        %5337 = vmatprep.subr.mxu0 0.0
        %5338 = vmatpush1.msra.mxu0 0.0
        %5339 = vmatprep.subr.mxu0 0.0
        %5340 = vmatpush1.msra.mxu0 0.0
        %5341 = vmatprep.subr.mxu0 0.0
        %5342 = vmatpush1.msra.mxu0 0.0
        %5343 = vmatprep.subr.mxu0 0.0
        %5344 = vmatpush1.msra.mxu0 0.0
        %5345 = vmatprep.subr.mxu0 0.0
        %5346 = vmatpush1.msra.mxu0 0.0
        %5347 = vmatprep.subr.mxu0 0.0
        %5348 = vmatpush1.msra.mxu0 0.0
        %5349 = vmatprep.subr.mxu0 0.0
        %5350 = vmatpush1.msra.mxu0 0.0
        %5351 = vmatprep.subr.mxu0 0.0
        %5352 = vmatpush1.msra.mxu0 0.0
        %5353 = vmatprep.subr.mxu0 0.0
        %5354 = vmatpush1.msra.mxu0 0.0
        %5355 = vmatprep.subr.mxu0 0.0
        %5356 = vmatpush1.msra.mxu0 0.0
        %5357 = vmatprep.subr.mxu0 0.0
        %5358 = vmatpush1.msra.mxu0 0.0
        %5359 = vmatprep.mubr.f32.mxu0 0.0
        %v5360 = vand.u32 %v5031, 4294901760
        %v5361 = vsub.f32 %v5031, %v5360
        %v5362 = vand.u32 %v5361, 4294901760
        %5363 = vmatmul.mubr.f32.gmra.mrb[0].mxu0 %v5362
        %v5364 = vpop.f32.mrb[0].mxu0
        %v5365 = vadd.f32 %v5283, %v5364
        %v5366 = vpop.f32.mrb[0].mxu0
        %5367 = vmatprep.mubr.f32.mxu0 0.0
        %v5368 = vand.u32 %v5034, 4294901760
        %v5369 = vsub.f32 %v5034, %v5368
        %v5370 = vand.u32 %v5369, 4294901760
        %5371 = vmatmul.mubr.f32.gmra.mrb[0].mxu0 %v5370
        %v5372 = vpop.f32.mrb[0].mxu0
        %v5373 = vadd.f32 %v5290, %v5372
        %v5374 = vpop.f32.mrb[0].mxu0
        %5375 = vdwg.mxu0
        %5376 = vmatprep.subr.mxu0 0.0
        %v5377 = vand.u32 %v453, 4294901760
        %v5378 = vsub.f32 %v453, %v5377
        %v5379 = vand.u32 %v5378, 4294901760
        %5380 = vmatpush1.msra.mxu0 %v5379
        %5381 = vmatprep.subr.mxu0 0.0
        %v5382 = vand.u32 %v454, 4294901760
        %v5383 = vsub.f32 %v454, %v5382
        %v5384 = vand.u32 %v5383, 4294901760
        %5385 = vmatpush1.msra.mxu0 %v5384
        %5386 = vmatprep.subr.mxu0 0.0
        %5387 = vmatpush1.msra.mxu0 0.0
        %5388 = vmatprep.subr.mxu0 0.0
        %5389 = vmatpush1.msra.mxu0 0.0
        %5390 = vmatprep.subr.mxu0 0.0
        %5391 = vmatpush1.msra.mxu0 0.0
        %5392 = vmatprep.subr.mxu0 0.0
        %5393 = vmatpush1.msra.mxu0 0.0
        %5394 = vmatprep.subr.mxu0 0.0
        %5395 = vmatpush1.msra.mxu0 0.0
        %5396 = vmatprep.subr.mxu0 0.0
        %5397 = vmatpush1.msra.mxu0 0.0
        %5398 = vmatprep.subr.mxu0 0.0
        %5399 = vmatpush1.msra.mxu0 0.0
        %5400 = vmatprep.subr.mxu0 0.0
        %5401 = vmatpush1.msra.mxu0 0.0
        %5402 = vmatprep.subr.mxu0 0.0
        %5403 = vmatpush1.msra.mxu0 0.0
        %5404 = vmatprep.subr.mxu0 0.0
        %5405 = vmatpush1.msra.mxu0 0.0
        %5406 = vmatprep.subr.mxu0 0.0
        %5407 = vmatpush1.msra.mxu0 0.0
        %5408 = vmatprep.subr.mxu0 0.0
        %5409 = vmatpush1.msra.mxu0 0.0
        %5410 = vmatprep.subr.mxu0 0.0
        %5411 = vmatpush1.msra.mxu0 0.0
        %5412 = vmatprep.subr.mxu0 0.0
        %5413 = vmatpush1.msra.mxu0 0.0
        %5414 = vmatprep.subr.mxu0 0.0
        %5415 = vmatpush1.msra.mxu0 0.0
        %5416 = vmatprep.subr.mxu0 0.0
        %5417 = vmatpush1.msra.mxu0 0.0
        %5418 = vmatprep.subr.mxu0 0.0
        %5419 = vmatpush1.msra.mxu0 0.0
        %5420 = vmatprep.subr.mxu0 0.0
        %5421 = vmatpush1.msra.mxu0 0.0
        %5422 = vmatprep.subr.mxu0 0.0
        %5423 = vmatpush1.msra.mxu0 0.0
        %5424 = vmatprep.subr.mxu0 0.0
        %5425 = vmatpush1.msra.mxu0 0.0
        %5426 = vmatprep.subr.mxu0 0.0
        %5427 = vmatpush1.msra.mxu0 0.0
        %5428 = vmatprep.subr.mxu0 0.0
        %5429 = vmatpush1.msra.mxu0 0.0
        %5430 = vmatprep.subr.mxu0 0.0
        %5431 = vmatpush1.msra.mxu0 0.0
        %5432 = vmatprep.subr.mxu0 0.0
        %5433 = vmatpush1.msra.mxu0 0.0
        %5434 = vmatprep.subr.mxu0 0.0
        %5435 = vmatpush1.msra.mxu0 0.0
        %5436 = vmatprep.subr.mxu0 0.0
        %5437 = vmatpush1.msra.mxu0 0.0
        %5438 = vmatprep.subr.mxu0 0.0
        %5439 = vmatpush1.msra.mxu0 0.0
        %5440 = vmatprep.subr.mxu0 0.0
        %5441 = vmatpush1.msra.mxu0 0.0
        %5442 = vmatprep.subr.mxu0 0.0
        %5443 = vmatpush1.msra.mxu0 0.0
        %5444 = vmatprep.subr.mxu0 0.0
        %5445 = vmatpush1.msra.mxu0 0.0
        %5446 = vmatprep.mubr.f32.mxu0 0.0
        %v5447 = vand.u32 %v5031, 4294901760
        %5448 = vmatmul.mubr.f32.gmra.mrb[0].mxu0 %v5447
        %v5449 = vpop.f32.mrb[0].mxu0
        %v5450 = vadd.f32 %v5365, %v5449
        %v5451 = vpop.f32.mrb[0].mxu0
        %5452 = vmatprep.mubr.f32.mxu0 0.0
        %v5453 = vand.u32 %v5034, 4294901760
        %5454 = vmatmul.mubr.f32.gmra.mrb[0].mxu0 %v5453
        %v5455 = vpop.f32.mrb[0].mxu0
        %v5456 = vadd.f32 %v5373, %v5455
        %v5457 = vpop.f32.mrb[0].mxu0
        %5458 = vdwg.mxu0
        %5459 = vmatprep.subr.mxu0 0.0
        %v5460 = vand.u32 %v453, 4294901760
        %5461 = vmatpush1.msra.mxu0 %v5460
        %5462 = vmatprep.subr.mxu0 0.0
        %v5463 = vand.u32 %v454, 4294901760
        %5464 = vmatpush1.msra.mxu0 %v5463
        %5465 = vmatprep.subr.mxu0 0.0
        %5466 = vmatpush1.msra.mxu0 0.0
        %5467 = vmatprep.subr.mxu0 0.0
        %5468 = vmatpush1.msra.mxu0 0.0
        %5469 = vmatprep.subr.mxu0 0.0
        %5470 = vmatpush1.msra.mxu0 0.0
        %5471 = vmatprep.subr.mxu0 0.0
        %5472 = vmatpush1.msra.mxu0 0.0
        %5473 = vmatprep.subr.mxu0 0.0
        %5474 = vmatpush1.msra.mxu0 0.0
        %5475 = vmatprep.subr.mxu0 0.0
        %5476 = vmatpush1.msra.mxu0 0.0
        %5477 = vmatprep.subr.mxu0 0.0
        %5478 = vmatpush1.msra.mxu0 0.0
        %5479 = vmatprep.subr.mxu0 0.0
        %5480 = vmatpush1.msra.mxu0 0.0
        %5481 = vmatprep.subr.mxu0 0.0
        %5482 = vmatpush1.msra.mxu0 0.0
        %5483 = vmatprep.subr.mxu0 0.0
        %5484 = vmatpush1.msra.mxu0 0.0
        %5485 = vmatprep.subr.mxu0 0.0
        %5486 = vmatpush1.msra.mxu0 0.0
        %5487 = vmatprep.subr.mxu0 0.0
        %5488 = vmatpush1.msra.mxu0 0.0
        %5489 = vmatprep.subr.mxu0 0.0
        %5490 = vmatpush1.msra.mxu0 0.0
        %5491 = vmatprep.subr.mxu0 0.0
        %5492 = vmatpush1.msra.mxu0 0.0
        %5493 = vmatprep.subr.mxu0 0.0
        %5494 = vmatpush1.msra.mxu0 0.0
        %5495 = vmatprep.subr.mxu0 0.0
        %5496 = vmatpush1.msra.mxu0 0.0
        %5497 = vmatprep.subr.mxu0 0.0
        %5498 = vmatpush1.msra.mxu0 0.0
        %5499 = vmatprep.subr.mxu0 0.0
        %5500 = vmatpush1.msra.mxu0 0.0
        %5501 = vmatprep.subr.mxu0 0.0
        %5502 = vmatpush1.msra.mxu0 0.0
        %5503 = vmatprep.subr.mxu0 0.0
        %5504 = vmatpush1.msra.mxu0 0.0
        %5505 = vmatprep.subr.mxu0 0.0
        %5506 = vmatpush1.msra.mxu0 0.0
        %5507 = vmatprep.subr.mxu0 0.0
        %5508 = vmatpush1.msra.mxu0 0.0
        %5509 = vmatprep.subr.mxu0 0.0
        %5510 = vmatpush1.msra.mxu0 0.0
        %5511 = vmatprep.subr.mxu0 0.0
        %5512 = vmatpush1.msra.mxu0 0.0
        %5513 = vmatprep.subr.mxu0 0.0
        %5514 = vmatpush1.msra.mxu0 0.0
        %5515 = vmatprep.subr.mxu0 0.0
        %5516 = vmatpush1.msra.mxu0 0.0
        %5517 = vmatprep.subr.mxu0 0.0
        %5518 = vmatpush1.msra.mxu0 0.0
        %5519 = vmatprep.subr.mxu0 0.0
        %5520 = vmatpush1.msra.mxu0 0.0
        %5521 = vmatprep.subr.mxu0 0.0
        %5522 = vmatpush1.msra.mxu0 0.0
        %5523 = vmatprep.subr.mxu0 0.0
        %5524 = vmatpush1.msra.mxu0 0.0
        %5525 = vmatprep.mubr.f32.mxu0 0.0
        %v5526 = vand.u32 %v5031, 4294901760
        %5527 = vmatmul.mubr.f32.gmra.mrb[0].mxu0 %v5526
        %v5528 = vpop.f32.mrb[0].mxu0
        %v5529 = vadd.f32 %v5450, %v5528
        %v5530 = vpop.f32.mrb[0].mxu0
        %5531 = vmatprep.mubr.f32.mxu0 0.0
        %v5532 = vand.u32 %v5034, 4294901760
        %5533 = vmatmul.mubr.f32.gmra.mrb[0].mxu0 %v5532
        %v5534 = vpop.f32.mrb[0].mxu0
        %v5535 = vadd.f32 %v5456, %v5534
        %v5536 = vpop.f32.mrb[0].mxu0
        %5537 = vdwg.mxu0
        %v5538 = vmul.f32 %v1483, %v1483
        %v5539 = vmul.f32 %v1489, %v1489
        %v5540 = vmul.f32 %v2493, %v2493
        %v5541 = vmul.f32 %v2499, %v2499
        %v5542 = vmul.f32 %v1483, %v2493
        %v5543 = vmul.f32 %v1489, %v2499
        %v5544 = vmul.f32 %v5542, 2.0
        %v5545 = vmul.f32 %v5543, 2.0
        %v5546 = vadd.f32 %v5544, 0.0001
        %v5547 = vadd.f32 %v5545, 0.0001
        %v5548 = vsub.f32 %v5529, %v5542
        %v5549 = vsub.f32 %v5535, %v5543
        %v5550 = vmul.f32 %v5548, 2.0
        %v5551 = vmul.f32 %v5549, 2.0
        %v5552 = vadd.f32 %v5550, 0.0009
        %v5553 = vadd.f32 %v5551, 0.0009
        %v5554 = vadd.f32 %v5538, %v5540
        %v5555 = vadd.f32 %v5539, %v5541
        %v5556 = vadd.f32 %v5554, 0.0001
        %v5557 = vadd.f32 %v5555, 0.0001
        %v5558 = vsub.f32 %v3505, %v5538
        %v5559 = vsub.f32 %v3511, %v5539
        %v5560 = vsub.f32 %v4517, %v5540
        %v5561 = vsub.f32 %v4523, %v5541
        %v5562 = vadd.f32 %v5558, %v5560
        %v5563 = vadd.f32 %v5559, %v5561
        %v5564 = vadd.f32 %v5562, 0.0009
        %v5565 = vadd.f32 %v5563, 0.0009
        %v5566 = vmul.f32 %v5546, %v5552
        %v5567 = vmul.f32 %v5547, %v5553
        %v5568 = vmul.f32 %v5556, %v5564
        %v5569 = vmul.f32 %v5557, %v5565
        %v5570 = vrcp.pop %v5568
        %v5571 = vrcp.pop %v5569
        %v5572 = vmul.f32 %v5566, %v5570
        %v5573 = vmul.f32 %v5567, %v5571
        %v5574 = vsel %vm463, %v5572, 0.0
        %v5575 = vsel %vm463, %v5573, 0.0
        %v5576 = vadd.f32 %v5574, %v5575
        %5577 = vadd.xlane.f32.xlu0 %v5576
        %v5578 = vpop.xlane.xlu0 %5577
        %v5579 = vrot.slane %v5578, 4
        %v5580 = vadd.f32 %v5578, %v5579
        %v5581 = vrot.slane %v5580, 2
        %v5582 = vadd.f32 %v5580, %v5581
        %v5583 = vrot.slane %v5582, 1
        %v5584 = vadd.f32 %v5582, %v5583
        %s5585 = vtos %v5584
        %v5586 = vld [vmem:[%s391] sm:$0xff]
        %v5587 = vld [vmem:[%s391 + $0x8] sm:$0xff]
        %v5588 = vld [vmem:[%s400] sm:$0xff]
        %v5589 = vld [vmem:[%s400 + $0x8] sm:$0xff]
        %v5590 = vsub.f32 %v5586, %v5588
        %v5591 = vsub.f32 %v5587, %v5589
        %v5592 = vmul.f32 %v5590, %v5590
        %v5593 = vmul.f32 %v5591, %v5591
        %v5594 = vsel %vm463, %v5592, 0.0
        %v5595 = vsel %vm463, %v5593, 0.0
        %v5596 = vadd.f32 %v5594, %v5595
        %5597 = vadd.xlane.f32.xlu0 %v5596
        %v5598 = vpop.xlane.xlu0 %5597
        %v5599 = vrot.slane %v5598, 4
        %v5600 = vadd.f32 %v5598, %v5599
        %v5601 = vrot.slane %v5600, 2
        %v5602 = vadd.f32 %v5600, %v5601
        %v5603 = vrot.slane %v5602, 1
        %v5604 = vadd.f32 %v5602, %v5603
        %s5605 = vtos %v5604
        %5606 = vmatprep.subr.mxu0 0.0
        %v5607 = vand.u32 %v5586, 4294901760
        %5608 = vmatpush1.msra.mxu0 %v5607
        %5609 = vmatprep.subr.mxu0 0.0
        %v5610 = vand.u32 %v5587, 4294901760
        %5611 = vmatpush1.msra.mxu0 %v5610
        %5612 = vmatprep.subr.mxu0 0.0
        %5613 = vmatpush1.msra.mxu0 0.0
        %5614 = vmatprep.subr.mxu0 0.0
        %5615 = vmatpush1.msra.mxu0 0.0
        %5616 = vmatprep.subr.mxu0 0.0
        %5617 = vmatpush1.msra.mxu0 0.0
        %5618 = vmatprep.subr.mxu0 0.0
        %5619 = vmatpush1.msra.mxu0 0.0
        %5620 = vmatprep.subr.mxu0 0.0
        %5621 = vmatpush1.msra.mxu0 0.0
        %5622 = vmatprep.subr.mxu0 0.0
        %5623 = vmatpush1.msra.mxu0 0.0
        %5624 = vmatprep.subr.mxu0 0.0
        %5625 = vmatpush1.msra.mxu0 0.0
        %5626 = vmatprep.subr.mxu0 0.0
        %5627 = vmatpush1.msra.mxu0 0.0
        %5628 = vmatprep.subr.mxu0 0.0
        %5629 = vmatpush1.msra.mxu0 0.0
        %5630 = vmatprep.subr.mxu0 0.0
        %5631 = vmatpush1.msra.mxu0 0.0
        %5632 = vmatprep.subr.mxu0 0.0
        %5633 = vmatpush1.msra.mxu0 0.0
        %5634 = vmatprep.subr.mxu0 0.0
        %5635 = vmatpush1.msra.mxu0 0.0
        %5636 = vmatprep.subr.mxu0 0.0
        %5637 = vmatpush1.msra.mxu0 0.0
        %5638 = vmatprep.subr.mxu0 0.0
        %5639 = vmatpush1.msra.mxu0 0.0
        %5640 = vmatprep.subr.mxu0 0.0
        %5641 = vmatpush1.msra.mxu0 0.0
        %5642 = vmatprep.subr.mxu0 0.0
        %5643 = vmatpush1.msra.mxu0 0.0
        %5644 = vmatprep.subr.mxu0 0.0
        %5645 = vmatpush1.msra.mxu0 0.0
        %5646 = vmatprep.subr.mxu0 0.0
        %5647 = vmatpush1.msra.mxu0 0.0
        %5648 = vmatprep.subr.mxu0 0.0
        %5649 = vmatpush1.msra.mxu0 0.0
        %5650 = vmatprep.subr.mxu0 0.0
        %5651 = vmatpush1.msra.mxu0 0.0
        %5652 = vmatprep.subr.mxu0 0.0
        %5653 = vmatpush1.msra.mxu0 0.0
        %5654 = vmatprep.subr.mxu0 0.0
        %5655 = vmatpush1.msra.mxu0 0.0
        %5656 = vmatprep.subr.mxu0 0.0
        %5657 = vmatpush1.msra.mxu0 0.0
        %5658 = vmatprep.subr.mxu0 0.0
        %5659 = vmatpush1.msra.mxu0 0.0
        %5660 = vmatprep.subr.mxu0 0.0
        %5661 = vmatpush1.msra.mxu0 0.0
        %5662 = vmatprep.subr.mxu0 0.0
        %5663 = vmatpush1.msra.mxu0 0.0
        %5664 = vmatprep.subr.mxu0 0.0
        %5665 = vmatpush1.msra.mxu0 0.0
        %5666 = vmatprep.subr.mxu0 0.0
        %5667 = vmatpush1.msra.mxu0 0.0
        %5668 = vmatprep.subr.mxu0 0.0
        %5669 = vmatpush1.msra.mxu0 0.0
        %5670 = vmatprep.subr.mxu0 0.0
        %5671 = vmatpush1.msra.mxu0 0.0
        %5672 = vmatprep.mubr.f32.mxu0 0.0
        %v5673 = vand.u32 %v477, 4294901760
        %v5674 = vsub.f32 %v477, %v5673
        %v5675 = vand.u32 %v5674, 4294901760
        %v5676 = vsub.f32 %v5674, %v5675
        %v5677 = vand.u32 %v5676, 4294901760
        %5678 = vmatmul.mubr.f32.gmra.mrb[0].mxu0 %v5677
        %v5679 = vpop.f32.mrb[0].mxu0
        %v5680 = vadd.f32 0.0, %v5679
        %v5681 = vpop.f32.mrb[0].mxu0
        %5682 = vmatprep.mubr.f32.mxu0 0.0
        %v5683 = vand.u32 %v480, 4294901760
        %v5684 = vsub.f32 %v480, %v5683
        %v5685 = vand.u32 %v5684, 4294901760
        %v5686 = vsub.f32 %v5684, %v5685
        %v5687 = vand.u32 %v5686, 4294901760
        %5688 = vmatmul.mubr.f32.gmra.mrb[0].mxu0 %v5687
        %v5689 = vpop.f32.mrb[0].mxu0
        %v5690 = vadd.f32 0.0, %v5689
        %v5691 = vpop.f32.mrb[0].mxu0
        %5692 = vdwg.mxu0
        %5693 = vmatprep.subr.mxu0 0.0
        %v5694 = vand.u32 %v5586, 4294901760
        %v5695 = vsub.f32 %v5586, %v5694
        %v5696 = vand.u32 %v5695, 4294901760
        %v5697 = vsub.f32 %v5695, %v5696
        %v5698 = vand.u32 %v5697, 4294901760
        %5699 = vmatpush1.msra.mxu0 %v5698
        %5700 = vmatprep.subr.mxu0 0.0
        %v5701 = vand.u32 %v5587, 4294901760
        %v5702 = vsub.f32 %v5587, %v5701
        %v5703 = vand.u32 %v5702, 4294901760
        %v5704 = vsub.f32 %v5702, %v5703
        %v5705 = vand.u32 %v5704, 4294901760
        %5706 = vmatpush1.msra.mxu0 %v5705
        %5707 = vmatprep.subr.mxu0 0.0
        %5708 = vmatpush1.msra.mxu0 0.0
        %5709 = vmatprep.subr.mxu0 0.0
        %5710 = vmatpush1.msra.mxu0 0.0
        %5711 = vmatprep.subr.mxu0 0.0
        %5712 = vmatpush1.msra.mxu0 0.0
        %5713 = vmatprep.subr.mxu0 0.0
        %5714 = vmatpush1.msra.mxu0 0.0
        %5715 = vmatprep.subr.mxu0 0.0
        %5716 = vmatpush1.msra.mxu0 0.0
        %5717 = vmatprep.subr.mxu0 0.0
        %5718 = vmatpush1.msra.mxu0 0.0
        %5719 = vmatprep.subr.mxu0 0.0
        %5720 = vmatpush1.msra.mxu0 0.0
        %5721 = vmatprep.subr.mxu0 0.0
        %5722 = vmatpush1.msra.mxu0 0.0
        %5723 = vmatprep.subr.mxu0 0.0
        %5724 = vmatpush1.msra.mxu0 0.0
        %5725 = vmatprep.subr.mxu0 0.0
        %5726 = vmatpush1.msra.mxu0 0.0
        %5727 = vmatprep.subr.mxu0 0.0
        %5728 = vmatpush1.msra.mxu0 0.0
        %5729 = vmatprep.subr.mxu0 0.0
        %5730 = vmatpush1.msra.mxu0 0.0
        %5731 = vmatprep.subr.mxu0 0.0
        %5732 = vmatpush1.msra.mxu0 0.0
        %5733 = vmatprep.subr.mxu0 0.0
        %5734 = vmatpush1.msra.mxu0 0.0
        %5735 = vmatprep.subr.mxu0 0.0
        %5736 = vmatpush1.msra.mxu0 0.0
        %5737 = vmatprep.subr.mxu0 0.0
        %5738 = vmatpush1.msra.mxu0 0.0
        %5739 = vmatprep.subr.mxu0 0.0
        %5740 = vmatpush1.msra.mxu0 0.0
        %5741 = vmatprep.subr.mxu0 0.0
        %5742 = vmatpush1.msra.mxu0 0.0
        %5743 = vmatprep.subr.mxu0 0.0
        %5744 = vmatpush1.msra.mxu0 0.0
        %5745 = vmatprep.subr.mxu0 0.0
        %5746 = vmatpush1.msra.mxu0 0.0
        %5747 = vmatprep.subr.mxu0 0.0
        %5748 = vmatpush1.msra.mxu0 0.0
        %5749 = vmatprep.subr.mxu0 0.0
        %5750 = vmatpush1.msra.mxu0 0.0
        %5751 = vmatprep.subr.mxu0 0.0
        %5752 = vmatpush1.msra.mxu0 0.0
        %5753 = vmatprep.subr.mxu0 0.0
        %5754 = vmatpush1.msra.mxu0 0.0
        %5755 = vmatprep.subr.mxu0 0.0
        %5756 = vmatpush1.msra.mxu0 0.0
        %5757 = vmatprep.subr.mxu0 0.0
        %5758 = vmatpush1.msra.mxu0 0.0
        %5759 = vmatprep.subr.mxu0 0.0
        %5760 = vmatpush1.msra.mxu0 0.0
        %5761 = vmatprep.subr.mxu0 0.0
        %5762 = vmatpush1.msra.mxu0 0.0
        %5763 = vmatprep.subr.mxu0 0.0
        %5764 = vmatpush1.msra.mxu0 0.0
        %5765 = vmatprep.subr.mxu0 0.0
        %5766 = vmatpush1.msra.mxu0 0.0
        %5767 = vmatprep.mubr.f32.mxu0 0.0
        %v5768 = vand.u32 %v477, 4294901760
        %5769 = vmatmul.mubr.f32.gmra.mrb[0].mxu0 %v5768
        %v5770 = vpop.f32.mrb[0].mxu0
        %v5771 = vadd.f32 %v5680, %v5770
        %v5772 = vpop.f32.mrb[0].mxu0
        %5773 = vmatprep.mubr.f32.mxu0 0.0
        %v5774 = vand.u32 %v480, 4294901760
        %5775 = vmatmul.mubr.f32.gmra.mrb[0].mxu0 %v5774
        %v5776 = vpop.f32.mrb[0].mxu0
        %v5777 = vadd.f32 %v5690, %v5776
        %v5778 = vpop.f32.mrb[0].mxu0
        %5779 = vdwg.mxu0
        %5780 = vmatprep.subr.mxu0 0.0
        %v5781 = vand.u32 %v5586, 4294901760
        %v5782 = vsub.f32 %v5586, %v5781
        %5783 = vmatpush1.msra.mxu0 %v5782
        %5784 = vmatprep.subr.mxu0 0.0
        %v5785 = vand.u32 %v5587, 4294901760
        %v5786 = vsub.f32 %v5587, %v5785
        %5787 = vmatpush1.msra.mxu0 %v5786
        %5788 = vmatprep.subr.mxu0 0.0
        %5789 = vmatpush1.msra.mxu0 0.0
        %5790 = vmatprep.subr.mxu0 0.0
        %5791 = vmatpush1.msra.mxu0 0.0
        %5792 = vmatprep.subr.mxu0 0.0
        %5793 = vmatpush1.msra.mxu0 0.0
        %5794 = vmatprep.subr.mxu0 0.0
        %5795 = vmatpush1.msra.mxu0 0.0
        %5796 = vmatprep.subr.mxu0 0.0
        %5797 = vmatpush1.msra.mxu0 0.0
        %5798 = vmatprep.subr.mxu0 0.0
        %5799 = vmatpush1.msra.mxu0 0.0
        %5800 = vmatprep.subr.mxu0 0.0
        %5801 = vmatpush1.msra.mxu0 0.0
        %5802 = vmatprep.subr.mxu0 0.0
        %5803 = vmatpush1.msra.mxu0 0.0
        %5804 = vmatprep.subr.mxu0 0.0
        %5805 = vmatpush1.msra.mxu0 0.0
        %5806 = vmatprep.subr.mxu0 0.0
        %5807 = vmatpush1.msra.mxu0 0.0
        %5808 = vmatprep.subr.mxu0 0.0
        %5809 = vmatpush1.msra.mxu0 0.0
        %5810 = vmatprep.subr.mxu0 0.0
        %5811 = vmatpush1.msra.mxu0 0.0
        %5812 = vmatprep.subr.mxu0 0.0
        %5813 = vmatpush1.msra.mxu0 0.0
        %5814 = vmatprep.subr.mxu0 0.0
        %5815 = vmatpush1.msra.mxu0 0.0
        %5816 = vmatprep.subr.mxu0 0.0
        %5817 = vmatpush1.msra.mxu0 0.0
        %5818 = vmatprep.subr.mxu0 0.0
        %5819 = vmatpush1.msra.mxu0 0.0
        %5820 = vmatprep.subr.mxu0 0.0
        %5821 = vmatpush1.msra.mxu0 0.0
        %5822 = vmatprep.subr.mxu0 0.0
        %5823 = vmatpush1.msra.mxu0 0.0
        %5824 = vmatprep.subr.mxu0 0.0
        %5825 = vmatpush1.msra.mxu0 0.0
        %5826 = vmatprep.subr.mxu0 0.0
        %5827 = vmatpush1.msra.mxu0 0.0
        %5828 = vmatprep.subr.mxu0 0.0
        %5829 = vmatpush1.msra.mxu0 0.0
        %5830 = vmatprep.subr.mxu0 0.0
        %5831 = vmatpush1.msra.mxu0 0.0
        %5832 = vmatprep.subr.mxu0 0.0
        %5833 = vmatpush1.msra.mxu0 0.0
        %5834 = vmatprep.subr.mxu0 0.0
        %5835 = vmatpush1.msra.mxu0 0.0
        %5836 = vmatprep.subr.mxu0 0.0
        %5837 = vmatpush1.msra.mxu0 0.0
        %5838 = vmatprep.subr.mxu0 0.0
        %5839 = vmatpush1.msra.mxu0 0.0
        %5840 = vmatprep.subr.mxu0 0.0
        %5841 = vmatpush1.msra.mxu0 0.0
        %5842 = vmatprep.subr.mxu0 0.0
        %5843 = vmatpush1.msra.mxu0 0.0
        %5844 = vmatprep.subr.mxu0 0.0
        %5845 = vmatpush1.msra.mxu0 0.0
        %5846 = vmatprep.subr.mxu0 0.0
        %5847 = vmatpush1.msra.mxu0 0.0
        %5848 = vmatprep.mubr.f32.mxu0 0.0
        %v5849 = vand.u32 %v477, 4294901760
        %v5850 = vsub.f32 %v477, %v5849
        %5851 = vmatmul.mubr.f32.gmra.mrb[0].mxu0 %v5850
        %v5852 = vpop.f32.mrb[0].mxu0
        %v5853 = vadd.f32 %v5771, %v5852
        %v5854 = vpop.f32.mrb[0].mxu0
        %5855 = vmatprep.mubr.f32.mxu0 0.0
        %v5856 = vand.u32 %v480, 4294901760
        %v5857 = vsub.f32 %v480, %v5856
        %5858 = vmatmul.mubr.f32.gmra.mrb[0].mxu0 %v5857
        %v5859 = vpop.f32.mrb[0].mxu0
        %v5860 = vadd.f32 %v5777, %v5859
        %v5861 = vpop.f32.mrb[0].mxu0
        %5862 = vdwg.mxu0
        %5863 = vmatprep.subr.mxu0 0.0
        %v5864 = vand.u32 %v5586, 4294901760
        %5865 = vmatpush1.msra.mxu0 %v5864
        %5866 = vmatprep.subr.mxu0 0.0
        %v5867 = vand.u32 %v5587, 4294901760
        %5868 = vmatpush1.msra.mxu0 %v5867
        %5869 = vmatprep.subr.mxu0 0.0
        %5870 = vmatpush1.msra.mxu0 0.0
        %5871 = vmatprep.subr.mxu0 0.0
        %5872 = vmatpush1.msra.mxu0 0.0
        %5873 = vmatprep.subr.mxu0 0.0
        %5874 = vmatpush1.msra.mxu0 0.0
        %5875 = vmatprep.subr.mxu0 0.0
        %5876 = vmatpush1.msra.mxu0 0.0
        %5877 = vmatprep.subr.mxu0 0.0
        %5878 = vmatpush1.msra.mxu0 0.0
        %5879 = vmatprep.subr.mxu0 0.0
        %5880 = vmatpush1.msra.mxu0 0.0
        %5881 = vmatprep.subr.mxu0 0.0
        %5882 = vmatpush1.msra.mxu0 0.0
        %5883 = vmatprep.subr.mxu0 0.0
        %5884 = vmatpush1.msra.mxu0 0.0
        %5885 = vmatprep.subr.mxu0 0.0
        %5886 = vmatpush1.msra.mxu0 0.0
        %5887 = vmatprep.subr.mxu0 0.0
        %5888 = vmatpush1.msra.mxu0 0.0
        %5889 = vmatprep.subr.mxu0 0.0
        %5890 = vmatpush1.msra.mxu0 0.0
        %5891 = vmatprep.subr.mxu0 0.0
        %5892 = vmatpush1.msra.mxu0 0.0
        %5893 = vmatprep.subr.mxu0 0.0
        %5894 = vmatpush1.msra.mxu0 0.0
        %5895 = vmatprep.subr.mxu0 0.0
        %5896 = vmatpush1.msra.mxu0 0.0
        %5897 = vmatprep.subr.mxu0 0.0
        %5898 = vmatpush1.msra.mxu0 0.0
        %5899 = vmatprep.subr.mxu0 0.0
        %5900 = vmatpush1.msra.mxu0 0.0
        %5901 = vmatprep.subr.mxu0 0.0
        %5902 = vmatpush1.msra.mxu0 0.0
        %5903 = vmatprep.subr.mxu0 0.0
        %5904 = vmatpush1.msra.mxu0 0.0
        %5905 = vmatprep.subr.mxu0 0.0
        %5906 = vmatpush1.msra.mxu0 0.0
        %5907 = vmatprep.subr.mxu0 0.0
        %5908 = vmatpush1.msra.mxu0 0.0
        %5909 = vmatprep.subr.mxu0 0.0
        %5910 = vmatpush1.msra.mxu0 0.0
        %5911 = vmatprep.subr.mxu0 0.0
        %5912 = vmatpush1.msra.mxu0 0.0
        %5913 = vmatprep.subr.mxu0 0.0
        %5914 = vmatpush1.msra.mxu0 0.0
        %5915 = vmatprep.subr.mxu0 0.0
        %5916 = vmatpush1.msra.mxu0 0.0
        %5917 = vmatprep.subr.mxu0 0.0
        %5918 = vmatpush1.msra.mxu0 0.0
        %5919 = vmatprep.subr.mxu0 0.0
        %5920 = vmatpush1.msra.mxu0 0.0
        %5921 = vmatprep.subr.mxu0 0.0
        %5922 = vmatpush1.msra.mxu0 0.0
        %5923 = vmatprep.subr.mxu0 0.0
        %5924 = vmatpush1.msra.mxu0 0.0
        %5925 = vmatprep.subr.mxu0 0.0
        %5926 = vmatpush1.msra.mxu0 0.0
        %5927 = vmatprep.subr.mxu0 0.0
        %5928 = vmatpush1.msra.mxu0 0.0
        %5929 = vmatprep.mubr.f32.mxu0 0.0
        %v5930 = vand.u32 %v477, 4294901760
        %v5931 = vsub.f32 %v477, %v5930
        %v5932 = vand.u32 %v5931, 4294901760
        %5933 = vmatmul.mubr.f32.gmra.mrb[0].mxu0 %v5932
        %v5934 = vpop.f32.mrb[0].mxu0
        %v5935 = vadd.f32 %v5853, %v5934
        %v5936 = vpop.f32.mrb[0].mxu0
        %5937 = vmatprep.mubr.f32.mxu0 0.0
        %v5938 = vand.u32 %v480, 4294901760
        %v5939 = vsub.f32 %v480, %v5938
        %v5940 = vand.u32 %v5939, 4294901760
        %5941 = vmatmul.mubr.f32.gmra.mrb[0].mxu0 %v5940
        %v5942 = vpop.f32.mrb[0].mxu0
        %v5943 = vadd.f32 %v5860, %v5942
        %v5944 = vpop.f32.mrb[0].mxu0
        %5945 = vdwg.mxu0
        %5946 = vmatprep.subr.mxu0 0.0
        %v5947 = vand.u32 %v5586, 4294901760
        %v5948 = vsub.f32 %v5586, %v5947
        %v5949 = vand.u32 %v5948, 4294901760
        %5950 = vmatpush1.msra.mxu0 %v5949
        %5951 = vmatprep.subr.mxu0 0.0
        %v5952 = vand.u32 %v5587, 4294901760
        %v5953 = vsub.f32 %v5587, %v5952
        %v5954 = vand.u32 %v5953, 4294901760
        %5955 = vmatpush1.msra.mxu0 %v5954
        %5956 = vmatprep.subr.mxu0 0.0
        %5957 = vmatpush1.msra.mxu0 0.0
        %5958 = vmatprep.subr.mxu0 0.0
        %5959 = vmatpush1.msra.mxu0 0.0
        %5960 = vmatprep.subr.mxu0 0.0
        %5961 = vmatpush1.msra.mxu0 0.0
        %5962 = vmatprep.subr.mxu0 0.0
        %5963 = vmatpush1.msra.mxu0 0.0
        %5964 = vmatprep.subr.mxu0 0.0
        %5965 = vmatpush1.msra.mxu0 0.0
        %5966 = vmatprep.subr.mxu0 0.0
        %5967 = vmatpush1.msra.mxu0 0.0
        %5968 = vmatprep.subr.mxu0 0.0
        %5969 = vmatpush1.msra.mxu0 0.0
        %5970 = vmatprep.subr.mxu0 0.0
        %5971 = vmatpush1.msra.mxu0 0.0
        %5972 = vmatprep.subr.mxu0 0.0
        %5973 = vmatpush1.msra.mxu0 0.0
        %5974 = vmatprep.subr.mxu0 0.0
        %5975 = vmatpush1.msra.mxu0 0.0
        %5976 = vmatprep.subr.mxu0 0.0
        %5977 = vmatpush1.msra.mxu0 0.0
        %5978 = vmatprep.subr.mxu0 0.0
        %5979 = vmatpush1.msra.mxu0 0.0
        %5980 = vmatprep.subr.mxu0 0.0
        %5981 = vmatpush1.msra.mxu0 0.0
        %5982 = vmatprep.subr.mxu0 0.0
        %5983 = vmatpush1.msra.mxu0 0.0
        %5984 = vmatprep.subr.mxu0 0.0
        %5985 = vmatpush1.msra.mxu0 0.0
        %5986 = vmatprep.subr.mxu0 0.0
        %5987 = vmatpush1.msra.mxu0 0.0
        %5988 = vmatprep.subr.mxu0 0.0
        %5989 = vmatpush1.msra.mxu0 0.0
        %5990 = vmatprep.subr.mxu0 0.0
        %5991 = vmatpush1.msra.mxu0 0.0
        %5992 = vmatprep.subr.mxu0 0.0
        %5993 = vmatpush1.msra.mxu0 0.0
        %5994 = vmatprep.subr.mxu0 0.0
        %5995 = vmatpush1.msra.mxu0 0.0
        %5996 = vmatprep.subr.mxu0 0.0
        %5997 = vmatpush1.msra.mxu0 0.0
        %5998 = vmatprep.subr.mxu0 0.0
        %5999 = vmatpush1.msra.mxu0 0.0
        %6000 = vmatprep.subr.mxu0 0.0
        %6001 = vmatpush1.msra.mxu0 0.0
        %6002 = vmatprep.subr.mxu0 0.0
        %6003 = vmatpush1.msra.mxu0 0.0
        %6004 = vmatprep.subr.mxu0 0.0
        %6005 = vmatpush1.msra.mxu0 0.0
        %6006 = vmatprep.subr.mxu0 0.0
        %6007 = vmatpush1.msra.mxu0 0.0
        %6008 = vmatprep.subr.mxu0 0.0
        %6009 = vmatpush1.msra.mxu0 0.0
        %6010 = vmatprep.subr.mxu0 0.0
        %6011 = vmatpush1.msra.mxu0 0.0
        %6012 = vmatprep.subr.mxu0 0.0
        %6013 = vmatpush1.msra.mxu0 0.0
        %6014 = vmatprep.subr.mxu0 0.0
        %6015 = vmatpush1.msra.mxu0 0.0
        %6016 = vmatprep.mubr.f32.mxu0 0.0
        %v6017 = vand.u32 %v477, 4294901760
        %6018 = vmatmul.mubr.f32.gmra.mrb[0].mxu0 %v6017
        %v6019 = vpop.f32.mrb[0].mxu0
        %v6020 = vadd.f32 %v5935, %v6019
        %v6021 = vpop.f32.mrb[0].mxu0
        %6022 = vmatprep.mubr.f32.mxu0 0.0
        %v6023 = vand.u32 %v480, 4294901760
        %6024 = vmatmul.mubr.f32.gmra.mrb[0].mxu0 %v6023
        %v6025 = vpop.f32.mrb[0].mxu0
        %v6026 = vadd.f32 %v5943, %v6025
        %v6027 = vpop.f32.mrb[0].mxu0
        %6028 = vdwg.mxu0
        %6029 = vmatprep.subr.mxu0 0.0
        %v6030 = vand.u32 %v5586, 4294901760
        %6031 = vmatpush1.msra.mxu0 %v6030
        %6032 = vmatprep.subr.mxu0 0.0
        %v6033 = vand.u32 %v5587, 4294901760
        %6034 = vmatpush1.msra.mxu0 %v6033
        %6035 = vmatprep.subr.mxu0 0.0
        %6036 = vmatpush1.msra.mxu0 0.0
        %6037 = vmatprep.subr.mxu0 0.0
        %6038 = vmatpush1.msra.mxu0 0.0
        %6039 = vmatprep.subr.mxu0 0.0
        %6040 = vmatpush1.msra.mxu0 0.0
        %6041 = vmatprep.subr.mxu0 0.0
        %6042 = vmatpush1.msra.mxu0 0.0
        %6043 = vmatprep.subr.mxu0 0.0
        %6044 = vmatpush1.msra.mxu0 0.0
        %6045 = vmatprep.subr.mxu0 0.0
        %6046 = vmatpush1.msra.mxu0 0.0
        %6047 = vmatprep.subr.mxu0 0.0
        %6048 = vmatpush1.msra.mxu0 0.0
        %6049 = vmatprep.subr.mxu0 0.0
        %6050 = vmatpush1.msra.mxu0 0.0
        %6051 = vmatprep.subr.mxu0 0.0
        %6052 = vmatpush1.msra.mxu0 0.0
        %6053 = vmatprep.subr.mxu0 0.0
        %6054 = vmatpush1.msra.mxu0 0.0
        %6055 = vmatprep.subr.mxu0 0.0
        %6056 = vmatpush1.msra.mxu0 0.0
        %6057 = vmatprep.subr.mxu0 0.0
        %6058 = vmatpush1.msra.mxu0 0.0
        %6059 = vmatprep.subr.mxu0 0.0
        %6060 = vmatpush1.msra.mxu0 0.0
        %6061 = vmatprep.subr.mxu0 0.0
        %6062 = vmatpush1.msra.mxu0 0.0
        %6063 = vmatprep.subr.mxu0 0.0
        %6064 = vmatpush1.msra.mxu0 0.0
        %6065 = vmatprep.subr.mxu0 0.0
        %6066 = vmatpush1.msra.mxu0 0.0
        %6067 = vmatprep.subr.mxu0 0.0
        %6068 = vmatpush1.msra.mxu0 0.0
        %6069 = vmatprep.subr.mxu0 0.0
        %6070 = vmatpush1.msra.mxu0 0.0
        %6071 = vmatprep.subr.mxu0 0.0
        %6072 = vmatpush1.msra.mxu0 0.0
        %6073 = vmatprep.subr.mxu0 0.0
        %6074 = vmatpush1.msra.mxu0 0.0
        %6075 = vmatprep.subr.mxu0 0.0
        %6076 = vmatpush1.msra.mxu0 0.0
        %6077 = vmatprep.subr.mxu0 0.0
        %6078 = vmatpush1.msra.mxu0 0.0
        %6079 = vmatprep.subr.mxu0 0.0
        %6080 = vmatpush1.msra.mxu0 0.0
        %6081 = vmatprep.subr.mxu0 0.0
        %6082 = vmatpush1.msra.mxu0 0.0
        %6083 = vmatprep.subr.mxu0 0.0
        %6084 = vmatpush1.msra.mxu0 0.0
        %6085 = vmatprep.subr.mxu0 0.0
        %6086 = vmatpush1.msra.mxu0 0.0
        %6087 = vmatprep.subr.mxu0 0.0
        %6088 = vmatpush1.msra.mxu0 0.0
        %6089 = vmatprep.subr.mxu0 0.0
        %6090 = vmatpush1.msra.mxu0 0.0
        %6091 = vmatprep.subr.mxu0 0.0
        %6092 = vmatpush1.msra.mxu0 0.0
        %6093 = vmatprep.subr.mxu0 0.0
        %6094 = vmatpush1.msra.mxu0 0.0
        %6095 = vmatprep.mubr.f32.mxu0 0.0
        %v6096 = vand.u32 %v477, 4294901760
        %6097 = vmatmul.mubr.f32.gmra.mrb[0].mxu0 %v6096
        %v6098 = vpop.f32.mrb[0].mxu0
        %v6099 = vadd.f32 %v6020, %v6098
        %v6100 = vpop.f32.mrb[0].mxu0
        %6101 = vmatprep.mubr.f32.mxu0 0.0
        %v6102 = vand.u32 %v480, 4294901760
        %6103 = vmatmul.mubr.f32.gmra.mrb[0].mxu0 %v6102
        %v6104 = vpop.f32.mrb[0].mxu0
        %v6105 = vadd.f32 %v6026, %v6104
        %v6106 = vpop.f32.mrb[0].mxu0
        %6107 = vdwg.mxu0
        %v6109 = vsel %vm463, %v6099, 0
        %v6112 = vsel %vm463, %v6105, 0
        %6114 = vmatprep.subr.mxu0 0.0
        %v6115 = vand.u32 %v453, 4294901760
        %6116 = vmatpush1.msra.mxu0 %v6115
        %6117 = vmatprep.subr.mxu0 0.0
        %v6118 = vand.u32 %v454, 4294901760
        %6119 = vmatpush1.msra.mxu0 %v6118
        %6120 = vmatprep.subr.mxu0 0.0
        %6121 = vmatpush1.msra.mxu0 0.0
        %6122 = vmatprep.subr.mxu0 0.0
        %6123 = vmatpush1.msra.mxu0 0.0
        %6124 = vmatprep.subr.mxu0 0.0
        %6125 = vmatpush1.msra.mxu0 0.0
        %6126 = vmatprep.subr.mxu0 0.0
        %6127 = vmatpush1.msra.mxu0 0.0
        %6128 = vmatprep.subr.mxu0 0.0
        %6129 = vmatpush1.msra.mxu0 0.0
        %6130 = vmatprep.subr.mxu0 0.0
        %6131 = vmatpush1.msra.mxu0 0.0
        %6132 = vmatprep.subr.mxu0 0.0
        %6133 = vmatpush1.msra.mxu0 0.0
        %6134 = vmatprep.subr.mxu0 0.0
        %6135 = vmatpush1.msra.mxu0 0.0
        %6136 = vmatprep.subr.mxu0 0.0
        %6137 = vmatpush1.msra.mxu0 0.0
        %6138 = vmatprep.subr.mxu0 0.0
        %6139 = vmatpush1.msra.mxu0 0.0
        %6140 = vmatprep.subr.mxu0 0.0
        %6141 = vmatpush1.msra.mxu0 0.0
        %6142 = vmatprep.subr.mxu0 0.0
        %6143 = vmatpush1.msra.mxu0 0.0
        %6144 = vmatprep.subr.mxu0 0.0
        %6145 = vmatpush1.msra.mxu0 0.0
        %6146 = vmatprep.subr.mxu0 0.0
        %6147 = vmatpush1.msra.mxu0 0.0
        %6148 = vmatprep.subr.mxu0 0.0
        %6149 = vmatpush1.msra.mxu0 0.0
        %6150 = vmatprep.subr.mxu0 0.0
        %6151 = vmatpush1.msra.mxu0 0.0
        %6152 = vmatprep.subr.mxu0 0.0
        %6153 = vmatpush1.msra.mxu0 0.0
        %6154 = vmatprep.subr.mxu0 0.0
        %6155 = vmatpush1.msra.mxu0 0.0
        %6156 = vmatprep.subr.mxu0 0.0
        %6157 = vmatpush1.msra.mxu0 0.0
        %6158 = vmatprep.subr.mxu0 0.0
        %6159 = vmatpush1.msra.mxu0 0.0
        %6160 = vmatprep.subr.mxu0 0.0
        %6161 = vmatpush1.msra.mxu0 0.0
        %6162 = vmatprep.subr.mxu0 0.0
        %6163 = vmatpush1.msra.mxu0 0.0
        %6164 = vmatprep.subr.mxu0 0.0
        %6165 = vmatpush1.msra.mxu0 0.0
        %6166 = vmatprep.subr.mxu0 0.0
        %6167 = vmatpush1.msra.mxu0 0.0
        %6168 = vmatprep.subr.mxu0 0.0
        %6169 = vmatpush1.msra.mxu0 0.0
        %6170 = vmatprep.subr.mxu0 0.0
        %6171 = vmatpush1.msra.mxu0 0.0
        %6172 = vmatprep.subr.mxu0 0.0
        %6173 = vmatpush1.msra.mxu0 0.0
        %6174 = vmatprep.subr.mxu0 0.0
        %6175 = vmatpush1.msra.mxu0 0.0
        %6176 = vmatprep.subr.mxu0 0.0
        %6177 = vmatpush1.msra.mxu0 0.0
        %6178 = vmatprep.subr.mxu0 0.0
        %6179 = vmatpush1.msra.mxu0 0.0
        %6180 = vmatprep.mubr.f32.mxu0 0.0
        %v6181 = vand.u32 %v6109, 4294901760
        %v6182 = vsub.f32 %v6109, %v6181
        %v6183 = vand.u32 %v6182, 4294901760
        %v6184 = vsub.f32 %v6182, %v6183
        %v6185 = vand.u32 %v6184, 4294901760
        %6186 = vmatmul.mubr.f32.gmra.mrb[0].mxu0 %v6185
        %v6187 = vpop.f32.mrb[0].mxu0
        %v6188 = vadd.f32 0.0, %v6187
        %v6189 = vpop.f32.mrb[0].mxu0
        %6190 = vmatprep.mubr.f32.mxu0 0.0
        %v6191 = vand.u32 %v6112, 4294901760
        %v6192 = vsub.f32 %v6112, %v6191
        %v6193 = vand.u32 %v6192, 4294901760
        %v6194 = vsub.f32 %v6192, %v6193
        %v6195 = vand.u32 %v6194, 4294901760
        %6196 = vmatmul.mubr.f32.gmra.mrb[0].mxu0 %v6195
        %v6197 = vpop.f32.mrb[0].mxu0
        %v6198 = vadd.f32 0.0, %v6197
        %v6199 = vpop.f32.mrb[0].mxu0
        %6200 = vdwg.mxu0
        %6201 = vmatprep.subr.mxu0 0.0
        %v6202 = vand.u32 %v453, 4294901760
        %v6203 = vsub.f32 %v453, %v6202
        %v6204 = vand.u32 %v6203, 4294901760
        %v6205 = vsub.f32 %v6203, %v6204
        %v6206 = vand.u32 %v6205, 4294901760
        %6207 = vmatpush1.msra.mxu0 %v6206
        %6208 = vmatprep.subr.mxu0 0.0
        %v6209 = vand.u32 %v454, 4294901760
        %v6210 = vsub.f32 %v454, %v6209
        %v6211 = vand.u32 %v6210, 4294901760
        %v6212 = vsub.f32 %v6210, %v6211
        %v6213 = vand.u32 %v6212, 4294901760
        %6214 = vmatpush1.msra.mxu0 %v6213
        %6215 = vmatprep.subr.mxu0 0.0
        %6216 = vmatpush1.msra.mxu0 0.0
        %6217 = vmatprep.subr.mxu0 0.0
        %6218 = vmatpush1.msra.mxu0 0.0
        %6219 = vmatprep.subr.mxu0 0.0
        %6220 = vmatpush1.msra.mxu0 0.0
        %6221 = vmatprep.subr.mxu0 0.0
        %6222 = vmatpush1.msra.mxu0 0.0
        %6223 = vmatprep.subr.mxu0 0.0
        %6224 = vmatpush1.msra.mxu0 0.0
        %6225 = vmatprep.subr.mxu0 0.0
        %6226 = vmatpush1.msra.mxu0 0.0
        %6227 = vmatprep.subr.mxu0 0.0
        %6228 = vmatpush1.msra.mxu0 0.0
        %6229 = vmatprep.subr.mxu0 0.0
        %6230 = vmatpush1.msra.mxu0 0.0
        %6231 = vmatprep.subr.mxu0 0.0
        %6232 = vmatpush1.msra.mxu0 0.0
        %6233 = vmatprep.subr.mxu0 0.0
        %6234 = vmatpush1.msra.mxu0 0.0
        %6235 = vmatprep.subr.mxu0 0.0
        %6236 = vmatpush1.msra.mxu0 0.0
        %6237 = vmatprep.subr.mxu0 0.0
        %6238 = vmatpush1.msra.mxu0 0.0
        %6239 = vmatprep.subr.mxu0 0.0
        %6240 = vmatpush1.msra.mxu0 0.0
        %6241 = vmatprep.subr.mxu0 0.0
        %6242 = vmatpush1.msra.mxu0 0.0
        %6243 = vmatprep.subr.mxu0 0.0
        %6244 = vmatpush1.msra.mxu0 0.0
        %6245 = vmatprep.subr.mxu0 0.0
        %6246 = vmatpush1.msra.mxu0 0.0
        %6247 = vmatprep.subr.mxu0 0.0
        %6248 = vmatpush1.msra.mxu0 0.0
        %6249 = vmatprep.subr.mxu0 0.0
        %6250 = vmatpush1.msra.mxu0 0.0
        %6251 = vmatprep.subr.mxu0 0.0
        %6252 = vmatpush1.msra.mxu0 0.0
        %6253 = vmatprep.subr.mxu0 0.0
        %6254 = vmatpush1.msra.mxu0 0.0
        %6255 = vmatprep.subr.mxu0 0.0
        %6256 = vmatpush1.msra.mxu0 0.0
        %6257 = vmatprep.subr.mxu0 0.0
        %6258 = vmatpush1.msra.mxu0 0.0
        %6259 = vmatprep.subr.mxu0 0.0
        %6260 = vmatpush1.msra.mxu0 0.0
        %6261 = vmatprep.subr.mxu0 0.0
        %6262 = vmatpush1.msra.mxu0 0.0
        %6263 = vmatprep.subr.mxu0 0.0
        %6264 = vmatpush1.msra.mxu0 0.0
        %6265 = vmatprep.subr.mxu0 0.0
        %6266 = vmatpush1.msra.mxu0 0.0
        %6267 = vmatprep.subr.mxu0 0.0
        %6268 = vmatpush1.msra.mxu0 0.0
        %6269 = vmatprep.subr.mxu0 0.0
        %6270 = vmatpush1.msra.mxu0 0.0
        %6271 = vmatprep.subr.mxu0 0.0
        %6272 = vmatpush1.msra.mxu0 0.0
        %6273 = vmatprep.subr.mxu0 0.0
        %6274 = vmatpush1.msra.mxu0 0.0
        %6275 = vmatprep.mubr.f32.mxu0 0.0
        %v6276 = vand.u32 %v6109, 4294901760
        %6277 = vmatmul.mubr.f32.gmra.mrb[0].mxu0 %v6276
        %v6278 = vpop.f32.mrb[0].mxu0
        %v6279 = vadd.f32 %v6188, %v6278
        %v6280 = vpop.f32.mrb[0].mxu0
        %6281 = vmatprep.mubr.f32.mxu0 0.0
        %v6282 = vand.u32 %v6112, 4294901760
        %6283 = vmatmul.mubr.f32.gmra.mrb[0].mxu0 %v6282
        %v6284 = vpop.f32.mrb[0].mxu0
        %v6285 = vadd.f32 %v6198, %v6284
        %v6286 = vpop.f32.mrb[0].mxu0
        %6287 = vdwg.mxu0
        %6288 = vmatprep.subr.mxu0 0.0
        %v6289 = vand.u32 %v453, 4294901760
        %v6290 = vsub.f32 %v453, %v6289
        %6291 = vmatpush1.msra.mxu0 %v6290
        %6292 = vmatprep.subr.mxu0 0.0
        %v6293 = vand.u32 %v454, 4294901760
        %v6294 = vsub.f32 %v454, %v6293
        %6295 = vmatpush1.msra.mxu0 %v6294
        %6296 = vmatprep.subr.mxu0 0.0
        %6297 = vmatpush1.msra.mxu0 0.0
        %6298 = vmatprep.subr.mxu0 0.0
        %6299 = vmatpush1.msra.mxu0 0.0
        %6300 = vmatprep.subr.mxu0 0.0
        %6301 = vmatpush1.msra.mxu0 0.0
        %6302 = vmatprep.subr.mxu0 0.0
        %6303 = vmatpush1.msra.mxu0 0.0
        %6304 = vmatprep.subr.mxu0 0.0
        %6305 = vmatpush1.msra.mxu0 0.0
        %6306 = vmatprep.subr.mxu0 0.0
        %6307 = vmatpush1.msra.mxu0 0.0
        %6308 = vmatprep.subr.mxu0 0.0
        %6309 = vmatpush1.msra.mxu0 0.0
        %6310 = vmatprep.subr.mxu0 0.0
        %6311 = vmatpush1.msra.mxu0 0.0
        %6312 = vmatprep.subr.mxu0 0.0
        %6313 = vmatpush1.msra.mxu0 0.0
        %6314 = vmatprep.subr.mxu0 0.0
        %6315 = vmatpush1.msra.mxu0 0.0
        %6316 = vmatprep.subr.mxu0 0.0
        %6317 = vmatpush1.msra.mxu0 0.0
        %6318 = vmatprep.subr.mxu0 0.0
        %6319 = vmatpush1.msra.mxu0 0.0
        %6320 = vmatprep.subr.mxu0 0.0
        %6321 = vmatpush1.msra.mxu0 0.0
        %6322 = vmatprep.subr.mxu0 0.0
        %6323 = vmatpush1.msra.mxu0 0.0
        %6324 = vmatprep.subr.mxu0 0.0
        %6325 = vmatpush1.msra.mxu0 0.0
        %6326 = vmatprep.subr.mxu0 0.0
        %6327 = vmatpush1.msra.mxu0 0.0
        %6328 = vmatprep.subr.mxu0 0.0
        %6329 = vmatpush1.msra.mxu0 0.0
        %6330 = vmatprep.subr.mxu0 0.0
        %6331 = vmatpush1.msra.mxu0 0.0
        %6332 = vmatprep.subr.mxu0 0.0
        %6333 = vmatpush1.msra.mxu0 0.0
        %6334 = vmatprep.subr.mxu0 0.0
        %6335 = vmatpush1.msra.mxu0 0.0
        %6336 = vmatprep.subr.mxu0 0.0
        %6337 = vmatpush1.msra.mxu0 0.0
        %6338 = vmatprep.subr.mxu0 0.0
        %6339 = vmatpush1.msra.mxu0 0.0
        %6340 = vmatprep.subr.mxu0 0.0
        %6341 = vmatpush1.msra.mxu0 0.0
        %6342 = vmatprep.subr.mxu0 0.0
        %6343 = vmatpush1.msra.mxu0 0.0
        %6344 = vmatprep.subr.mxu0 0.0
        %6345 = vmatpush1.msra.mxu0 0.0
        %6346 = vmatprep.subr.mxu0 0.0
        %6347 = vmatpush1.msra.mxu0 0.0
        %6348 = vmatprep.subr.mxu0 0.0
        %6349 = vmatpush1.msra.mxu0 0.0
        %6350 = vmatprep.subr.mxu0 0.0
        %6351 = vmatpush1.msra.mxu0 0.0
        %6352 = vmatprep.subr.mxu0 0.0
        %6353 = vmatpush1.msra.mxu0 0.0
        %6354 = vmatprep.subr.mxu0 0.0
        %6355 = vmatpush1.msra.mxu0 0.0
        %6356 = vmatprep.mubr.f32.mxu0 0.0
        %v6357 = vand.u32 %v6109, 4294901760
        %v6358 = vsub.f32 %v6109, %v6357
        %6359 = vmatmul.mubr.f32.gmra.mrb[0].mxu0 %v6358
        %v6360 = vpop.f32.mrb[0].mxu0
        %v6361 = vadd.f32 %v6279, %v6360
        %v6362 = vpop.f32.mrb[0].mxu0
        %6363 = vmatprep.mubr.f32.mxu0 0.0
        %v6364 = vand.u32 %v6112, 4294901760
        %v6365 = vsub.f32 %v6112, %v6364
        %6366 = vmatmul.mubr.f32.gmra.mrb[0].mxu0 %v6365
        %v6367 = vpop.f32.mrb[0].mxu0
        %v6368 = vadd.f32 %v6285, %v6367
        %v6369 = vpop.f32.mrb[0].mxu0
        %6370 = vdwg.mxu0
        %6371 = vmatprep.subr.mxu0 0.0
        %v6372 = vand.u32 %v453, 4294901760
        %6373 = vmatpush1.msra.mxu0 %v6372
        %6374 = vmatprep.subr.mxu0 0.0
        %v6375 = vand.u32 %v454, 4294901760
        %6376 = vmatpush1.msra.mxu0 %v6375
        %6377 = vmatprep.subr.mxu0 0.0
        %6378 = vmatpush1.msra.mxu0 0.0
        %6379 = vmatprep.subr.mxu0 0.0
        %6380 = vmatpush1.msra.mxu0 0.0
        %6381 = vmatprep.subr.mxu0 0.0
        %6382 = vmatpush1.msra.mxu0 0.0
        %6383 = vmatprep.subr.mxu0 0.0
        %6384 = vmatpush1.msra.mxu0 0.0
        %6385 = vmatprep.subr.mxu0 0.0
        %6386 = vmatpush1.msra.mxu0 0.0
        %6387 = vmatprep.subr.mxu0 0.0
        %6388 = vmatpush1.msra.mxu0 0.0
        %6389 = vmatprep.subr.mxu0 0.0
        %6390 = vmatpush1.msra.mxu0 0.0
        %6391 = vmatprep.subr.mxu0 0.0
        %6392 = vmatpush1.msra.mxu0 0.0
        %6393 = vmatprep.subr.mxu0 0.0
        %6394 = vmatpush1.msra.mxu0 0.0
        %6395 = vmatprep.subr.mxu0 0.0
        %6396 = vmatpush1.msra.mxu0 0.0
        %6397 = vmatprep.subr.mxu0 0.0
        %6398 = vmatpush1.msra.mxu0 0.0
        %6399 = vmatprep.subr.mxu0 0.0
        %6400 = vmatpush1.msra.mxu0 0.0
        %6401 = vmatprep.subr.mxu0 0.0
        %6402 = vmatpush1.msra.mxu0 0.0
        %6403 = vmatprep.subr.mxu0 0.0
        %6404 = vmatpush1.msra.mxu0 0.0
        %6405 = vmatprep.subr.mxu0 0.0
        %6406 = vmatpush1.msra.mxu0 0.0
        %6407 = vmatprep.subr.mxu0 0.0
        %6408 = vmatpush1.msra.mxu0 0.0
        %6409 = vmatprep.subr.mxu0 0.0
        %6410 = vmatpush1.msra.mxu0 0.0
        %6411 = vmatprep.subr.mxu0 0.0
        %6412 = vmatpush1.msra.mxu0 0.0
        %6413 = vmatprep.subr.mxu0 0.0
        %6414 = vmatpush1.msra.mxu0 0.0
        %6415 = vmatprep.subr.mxu0 0.0
        %6416 = vmatpush1.msra.mxu0 0.0
        %6417 = vmatprep.subr.mxu0 0.0
        %6418 = vmatpush1.msra.mxu0 0.0
        %6419 = vmatprep.subr.mxu0 0.0
        %6420 = vmatpush1.msra.mxu0 0.0
        %6421 = vmatprep.subr.mxu0 0.0
        %6422 = vmatpush1.msra.mxu0 0.0
        %6423 = vmatprep.subr.mxu0 0.0
        %6424 = vmatpush1.msra.mxu0 0.0
        %6425 = vmatprep.subr.mxu0 0.0
        %6426 = vmatpush1.msra.mxu0 0.0
        %6427 = vmatprep.subr.mxu0 0.0
        %6428 = vmatpush1.msra.mxu0 0.0
        %6429 = vmatprep.subr.mxu0 0.0
        %6430 = vmatpush1.msra.mxu0 0.0
        %6431 = vmatprep.subr.mxu0 0.0
        %6432 = vmatpush1.msra.mxu0 0.0
        %6433 = vmatprep.subr.mxu0 0.0
        %6434 = vmatpush1.msra.mxu0 0.0
        %6435 = vmatprep.subr.mxu0 0.0
        %6436 = vmatpush1.msra.mxu0 0.0
        %6437 = vmatprep.mubr.f32.mxu0 0.0
        %v6438 = vand.u32 %v6109, 4294901760
        %v6439 = vsub.f32 %v6109, %v6438
        %v6440 = vand.u32 %v6439, 4294901760
        %6441 = vmatmul.mubr.f32.gmra.mrb[0].mxu0 %v6440
        %v6442 = vpop.f32.mrb[0].mxu0
        %v6443 = vadd.f32 %v6361, %v6442
        %v6444 = vpop.f32.mrb[0].mxu0
        %6445 = vmatprep.mubr.f32.mxu0 0.0
        %v6446 = vand.u32 %v6112, 4294901760
        %v6447 = vsub.f32 %v6112, %v6446
        %v6448 = vand.u32 %v6447, 4294901760
        %6449 = vmatmul.mubr.f32.gmra.mrb[0].mxu0 %v6448
        %v6450 = vpop.f32.mrb[0].mxu0
        %v6451 = vadd.f32 %v6368, %v6450
        %v6452 = vpop.f32.mrb[0].mxu0
        %6453 = vdwg.mxu0
        %6454 = vmatprep.subr.mxu0 0.0
        %v6455 = vand.u32 %v453, 4294901760
        %v6456 = vsub.f32 %v453, %v6455
        %v6457 = vand.u32 %v6456, 4294901760
        %6458 = vmatpush1.msra.mxu0 %v6457
        %6459 = vmatprep.subr.mxu0 0.0
        %v6460 = vand.u32 %v454, 4294901760
        %v6461 = vsub.f32 %v454, %v6460
        %v6462 = vand.u32 %v6461, 4294901760
        %6463 = vmatpush1.msra.mxu0 %v6462
        %6464 = vmatprep.subr.mxu0 0.0
        %6465 = vmatpush1.msra.mxu0 0.0
        %6466 = vmatprep.subr.mxu0 0.0
        %6467 = vmatpush1.msra.mxu0 0.0
        %6468 = vmatprep.subr.mxu0 0.0
        %6469 = vmatpush1.msra.mxu0 0.0
        %6470 = vmatprep.subr.mxu0 0.0
        %6471 = vmatpush1.msra.mxu0 0.0
        %6472 = vmatprep.subr.mxu0 0.0
        %6473 = vmatpush1.msra.mxu0 0.0
        %6474 = vmatprep.subr.mxu0 0.0
        %6475 = vmatpush1.msra.mxu0 0.0
        %6476 = vmatprep.subr.mxu0 0.0
        %6477 = vmatpush1.msra.mxu0 0.0
        %6478 = vmatprep.subr.mxu0 0.0
        %6479 = vmatpush1.msra.mxu0 0.0
        %6480 = vmatprep.subr.mxu0 0.0
        %6481 = vmatpush1.msra.mxu0 0.0
        %6482 = vmatprep.subr.mxu0 0.0
        %6483 = vmatpush1.msra.mxu0 0.0
        %6484 = vmatprep.subr.mxu0 0.0
        %6485 = vmatpush1.msra.mxu0 0.0
        %6486 = vmatprep.subr.mxu0 0.0
        %6487 = vmatpush1.msra.mxu0 0.0
        %6488 = vmatprep.subr.mxu0 0.0
        %6489 = vmatpush1.msra.mxu0 0.0
        %6490 = vmatprep.subr.mxu0 0.0
        %6491 = vmatpush1.msra.mxu0 0.0
        %6492 = vmatprep.subr.mxu0 0.0
        %6493 = vmatpush1.msra.mxu0 0.0
        %6494 = vmatprep.subr.mxu0 0.0
        %6495 = vmatpush1.msra.mxu0 0.0
        %6496 = vmatprep.subr.mxu0 0.0
        %6497 = vmatpush1.msra.mxu0 0.0
        %6498 = vmatprep.subr.mxu0 0.0
        %6499 = vmatpush1.msra.mxu0 0.0
        %6500 = vmatprep.subr.mxu0 0.0
        %6501 = vmatpush1.msra.mxu0 0.0
        %6502 = vmatprep.subr.mxu0 0.0
        %6503 = vmatpush1.msra.mxu0 0.0
        %6504 = vmatprep.subr.mxu0 0.0
        %6505 = vmatpush1.msra.mxu0 0.0
        %6506 = vmatprep.subr.mxu0 0.0
        %6507 = vmatpush1.msra.mxu0 0.0
        %6508 = vmatprep.subr.mxu0 0.0
        %6509 = vmatpush1.msra.mxu0 0.0
        %6510 = vmatprep.subr.mxu0 0.0
        %6511 = vmatpush1.msra.mxu0 0.0
        %6512 = vmatprep.subr.mxu0 0.0
        %6513 = vmatpush1.msra.mxu0 0.0
        %6514 = vmatprep.subr.mxu0 0.0
        %6515 = vmatpush1.msra.mxu0 0.0
        %6516 = vmatprep.subr.mxu0 0.0
        %6517 = vmatpush1.msra.mxu0 0.0
        %6518 = vmatprep.subr.mxu0 0.0
        %6519 = vmatpush1.msra.mxu0 0.0
        %6520 = vmatprep.subr.mxu0 0.0
        %6521 = vmatpush1.msra.mxu0 0.0
        %6522 = vmatprep.subr.mxu0 0.0
        %6523 = vmatpush1.msra.mxu0 0.0
        %6524 = vmatprep.mubr.f32.mxu0 0.0
        %v6525 = vand.u32 %v6109, 4294901760
        %6526 = vmatmul.mubr.f32.gmra.mrb[0].mxu0 %v6525
        %v6527 = vpop.f32.mrb[0].mxu0
        %v6528 = vadd.f32 %v6443, %v6527
        %v6529 = vpop.f32.mrb[0].mxu0
        %6530 = vmatprep.mubr.f32.mxu0 0.0
        %v6531 = vand.u32 %v6112, 4294901760
        %6532 = vmatmul.mubr.f32.gmra.mrb[0].mxu0 %v6531
        %v6533 = vpop.f32.mrb[0].mxu0
        %v6534 = vadd.f32 %v6451, %v6533
        %v6535 = vpop.f32.mrb[0].mxu0
        %6536 = vdwg.mxu0
        %6537 = vmatprep.subr.mxu0 0.0
        %v6538 = vand.u32 %v453, 4294901760
        %6539 = vmatpush1.msra.mxu0 %v6538
        %6540 = vmatprep.subr.mxu0 0.0
        %v6541 = vand.u32 %v454, 4294901760
        %6542 = vmatpush1.msra.mxu0 %v6541
        %6543 = vmatprep.subr.mxu0 0.0
        %6544 = vmatpush1.msra.mxu0 0.0
        %6545 = vmatprep.subr.mxu0 0.0
        %6546 = vmatpush1.msra.mxu0 0.0
        %6547 = vmatprep.subr.mxu0 0.0
        %6548 = vmatpush1.msra.mxu0 0.0
        %6549 = vmatprep.subr.mxu0 0.0
        %6550 = vmatpush1.msra.mxu0 0.0
        %6551 = vmatprep.subr.mxu0 0.0
        %6552 = vmatpush1.msra.mxu0 0.0
        %6553 = vmatprep.subr.mxu0 0.0
        %6554 = vmatpush1.msra.mxu0 0.0
        %6555 = vmatprep.subr.mxu0 0.0
        %6556 = vmatpush1.msra.mxu0 0.0
        %6557 = vmatprep.subr.mxu0 0.0
        %6558 = vmatpush1.msra.mxu0 0.0
        %6559 = vmatprep.subr.mxu0 0.0
        %6560 = vmatpush1.msra.mxu0 0.0
        %6561 = vmatprep.subr.mxu0 0.0
        %6562 = vmatpush1.msra.mxu0 0.0
        %6563 = vmatprep.subr.mxu0 0.0
        %6564 = vmatpush1.msra.mxu0 0.0
        %6565 = vmatprep.subr.mxu0 0.0
        %6566 = vmatpush1.msra.mxu0 0.0
        %6567 = vmatprep.subr.mxu0 0.0
        %6568 = vmatpush1.msra.mxu0 0.0
        %6569 = vmatprep.subr.mxu0 0.0
        %6570 = vmatpush1.msra.mxu0 0.0
        %6571 = vmatprep.subr.mxu0 0.0
        %6572 = vmatpush1.msra.mxu0 0.0
        %6573 = vmatprep.subr.mxu0 0.0
        %6574 = vmatpush1.msra.mxu0 0.0
        %6575 = vmatprep.subr.mxu0 0.0
        %6576 = vmatpush1.msra.mxu0 0.0
        %6577 = vmatprep.subr.mxu0 0.0
        %6578 = vmatpush1.msra.mxu0 0.0
        %6579 = vmatprep.subr.mxu0 0.0
        %6580 = vmatpush1.msra.mxu0 0.0
        %6581 = vmatprep.subr.mxu0 0.0
        %6582 = vmatpush1.msra.mxu0 0.0
        %6583 = vmatprep.subr.mxu0 0.0
        %6584 = vmatpush1.msra.mxu0 0.0
        %6585 = vmatprep.subr.mxu0 0.0
        %6586 = vmatpush1.msra.mxu0 0.0
        %6587 = vmatprep.subr.mxu0 0.0
        %6588 = vmatpush1.msra.mxu0 0.0
        %6589 = vmatprep.subr.mxu0 0.0
        %6590 = vmatpush1.msra.mxu0 0.0
        %6591 = vmatprep.subr.mxu0 0.0
        %6592 = vmatpush1.msra.mxu0 0.0
        %6593 = vmatprep.subr.mxu0 0.0
        %6594 = vmatpush1.msra.mxu0 0.0
        %6595 = vmatprep.subr.mxu0 0.0
        %6596 = vmatpush1.msra.mxu0 0.0
        %6597 = vmatprep.subr.mxu0 0.0
        %6598 = vmatpush1.msra.mxu0 0.0
        %6599 = vmatprep.subr.mxu0 0.0
        %6600 = vmatpush1.msra.mxu0 0.0
        %6601 = vmatprep.subr.mxu0 0.0
        %6602 = vmatpush1.msra.mxu0 0.0
        %6603 = vmatprep.mubr.f32.mxu0 0.0
        %v6604 = vand.u32 %v6109, 4294901760
        %6605 = vmatmul.mubr.f32.gmra.mrb[0].mxu0 %v6604
        %v6606 = vpop.f32.mrb[0].mxu0
        %v6607 = vadd.f32 %v6528, %v6606
        %v6608 = vpop.f32.mrb[0].mxu0
        %6609 = vmatprep.mubr.f32.mxu0 0.0
        %v6610 = vand.u32 %v6112, 4294901760
        %6611 = vmatmul.mubr.f32.gmra.mrb[0].mxu0 %v6610
        %v6612 = vpop.f32.mrb[0].mxu0
        %v6613 = vadd.f32 %v6534, %v6612
        %v6614 = vpop.f32.mrb[0].mxu0
        %6615 = vdwg.mxu0
        %6616 = vmatprep.subr.mxu0 0.0
        %v6617 = vand.u32 %v5588, 4294901760
        %6618 = vmatpush1.msra.mxu0 %v6617
        %6619 = vmatprep.subr.mxu0 0.0
        %v6620 = vand.u32 %v5589, 4294901760
        %6621 = vmatpush1.msra.mxu0 %v6620
        %6622 = vmatprep.subr.mxu0 0.0
        %6623 = vmatpush1.msra.mxu0 0.0
        %6624 = vmatprep.subr.mxu0 0.0
        %6625 = vmatpush1.msra.mxu0 0.0
        %6626 = vmatprep.subr.mxu0 0.0
        %6627 = vmatpush1.msra.mxu0 0.0
        %6628 = vmatprep.subr.mxu0 0.0
        %6629 = vmatpush1.msra.mxu0 0.0
        %6630 = vmatprep.subr.mxu0 0.0
        %6631 = vmatpush1.msra.mxu0 0.0
        %6632 = vmatprep.subr.mxu0 0.0
        %6633 = vmatpush1.msra.mxu0 0.0
        %6634 = vmatprep.subr.mxu0 0.0
        %6635 = vmatpush1.msra.mxu0 0.0
        %6636 = vmatprep.subr.mxu0 0.0
        %6637 = vmatpush1.msra.mxu0 0.0
        %6638 = vmatprep.subr.mxu0 0.0
        %6639 = vmatpush1.msra.mxu0 0.0
        %6640 = vmatprep.subr.mxu0 0.0
        %6641 = vmatpush1.msra.mxu0 0.0
        %6642 = vmatprep.subr.mxu0 0.0
        %6643 = vmatpush1.msra.mxu0 0.0
        %6644 = vmatprep.subr.mxu0 0.0
        %6645 = vmatpush1.msra.mxu0 0.0
        %6646 = vmatprep.subr.mxu0 0.0
        %6647 = vmatpush1.msra.mxu0 0.0
        %6648 = vmatprep.subr.mxu0 0.0
        %6649 = vmatpush1.msra.mxu0 0.0
        %6650 = vmatprep.subr.mxu0 0.0
        %6651 = vmatpush1.msra.mxu0 0.0
        %6652 = vmatprep.subr.mxu0 0.0
        %6653 = vmatpush1.msra.mxu0 0.0
        %6654 = vmatprep.subr.mxu0 0.0
        %6655 = vmatpush1.msra.mxu0 0.0
        %6656 = vmatprep.subr.mxu0 0.0
        %6657 = vmatpush1.msra.mxu0 0.0
        %6658 = vmatprep.subr.mxu0 0.0
        %6659 = vmatpush1.msra.mxu0 0.0
        %6660 = vmatprep.subr.mxu0 0.0
        %6661 = vmatpush1.msra.mxu0 0.0
        %6662 = vmatprep.subr.mxu0 0.0
        %6663 = vmatpush1.msra.mxu0 0.0
        %6664 = vmatprep.subr.mxu0 0.0
        %6665 = vmatpush1.msra.mxu0 0.0
        %6666 = vmatprep.subr.mxu0 0.0
        %6667 = vmatpush1.msra.mxu0 0.0
        %6668 = vmatprep.subr.mxu0 0.0
        %6669 = vmatpush1.msra.mxu0 0.0
        %6670 = vmatprep.subr.mxu0 0.0
        %6671 = vmatpush1.msra.mxu0 0.0
        %6672 = vmatprep.subr.mxu0 0.0
        %6673 = vmatpush1.msra.mxu0 0.0
        %6674 = vmatprep.subr.mxu0 0.0
        %6675 = vmatpush1.msra.mxu0 0.0
        %6676 = vmatprep.subr.mxu0 0.0
        %6677 = vmatpush1.msra.mxu0 0.0
        %6678 = vmatprep.subr.mxu0 0.0
        %6679 = vmatpush1.msra.mxu0 0.0
        %6680 = vmatprep.subr.mxu0 0.0
        %6681 = vmatpush1.msra.mxu0 0.0
        %6682 = vmatprep.mubr.f32.mxu0 0.0
        %v6683 = vand.u32 %v477, 4294901760
        %v6684 = vsub.f32 %v477, %v6683
        %v6685 = vand.u32 %v6684, 4294901760
        %v6686 = vsub.f32 %v6684, %v6685
        %v6687 = vand.u32 %v6686, 4294901760
        %6688 = vmatmul.mubr.f32.gmra.mrb[0].mxu0 %v6687
        %v6689 = vpop.f32.mrb[0].mxu0
        %v6690 = vadd.f32 0.0, %v6689
        %v6691 = vpop.f32.mrb[0].mxu0
        %6692 = vmatprep.mubr.f32.mxu0 0.0
        %v6693 = vand.u32 %v480, 4294901760
        %v6694 = vsub.f32 %v480, %v6693
        %v6695 = vand.u32 %v6694, 4294901760
        %v6696 = vsub.f32 %v6694, %v6695
        %v6697 = vand.u32 %v6696, 4294901760
        %6698 = vmatmul.mubr.f32.gmra.mrb[0].mxu0 %v6697
        %v6699 = vpop.f32.mrb[0].mxu0
        %v6700 = vadd.f32 0.0, %v6699
        %v6701 = vpop.f32.mrb[0].mxu0
        %6702 = vdwg.mxu0
        %6703 = vmatprep.subr.mxu0 0.0
        %v6704 = vand.u32 %v5588, 4294901760
        %v6705 = vsub.f32 %v5588, %v6704
        %v6706 = vand.u32 %v6705, 4294901760
        %v6707 = vsub.f32 %v6705, %v6706
        %v6708 = vand.u32 %v6707, 4294901760
        %6709 = vmatpush1.msra.mxu0 %v6708
        %6710 = vmatprep.subr.mxu0 0.0
        %v6711 = vand.u32 %v5589, 4294901760
        %v6712 = vsub.f32 %v5589, %v6711
        %v6713 = vand.u32 %v6712, 4294901760
        %v6714 = vsub.f32 %v6712, %v6713
        %v6715 = vand.u32 %v6714, 4294901760
        %6716 = vmatpush1.msra.mxu0 %v6715
        %6717 = vmatprep.subr.mxu0 0.0
        %6718 = vmatpush1.msra.mxu0 0.0
        %6719 = vmatprep.subr.mxu0 0.0
        %6720 = vmatpush1.msra.mxu0 0.0
        %6721 = vmatprep.subr.mxu0 0.0
        %6722 = vmatpush1.msra.mxu0 0.0
        %6723 = vmatprep.subr.mxu0 0.0
        %6724 = vmatpush1.msra.mxu0 0.0
        %6725 = vmatprep.subr.mxu0 0.0
        %6726 = vmatpush1.msra.mxu0 0.0
        %6727 = vmatprep.subr.mxu0 0.0
        %6728 = vmatpush1.msra.mxu0 0.0
        %6729 = vmatprep.subr.mxu0 0.0
        %6730 = vmatpush1.msra.mxu0 0.0
        %6731 = vmatprep.subr.mxu0 0.0
        %6732 = vmatpush1.msra.mxu0 0.0
        %6733 = vmatprep.subr.mxu0 0.0
        %6734 = vmatpush1.msra.mxu0 0.0
        %6735 = vmatprep.subr.mxu0 0.0
        %6736 = vmatpush1.msra.mxu0 0.0
        %6737 = vmatprep.subr.mxu0 0.0
        %6738 = vmatpush1.msra.mxu0 0.0
        %6739 = vmatprep.subr.mxu0 0.0
        %6740 = vmatpush1.msra.mxu0 0.0
        %6741 = vmatprep.subr.mxu0 0.0
        %6742 = vmatpush1.msra.mxu0 0.0
        %6743 = vmatprep.subr.mxu0 0.0
        %6744 = vmatpush1.msra.mxu0 0.0
        %6745 = vmatprep.subr.mxu0 0.0
        %6746 = vmatpush1.msra.mxu0 0.0
        %6747 = vmatprep.subr.mxu0 0.0
        %6748 = vmatpush1.msra.mxu0 0.0
        %6749 = vmatprep.subr.mxu0 0.0
        %6750 = vmatpush1.msra.mxu0 0.0
        %6751 = vmatprep.subr.mxu0 0.0
        %6752 = vmatpush1.msra.mxu0 0.0
        %6753 = vmatprep.subr.mxu0 0.0
        %6754 = vmatpush1.msra.mxu0 0.0
        %6755 = vmatprep.subr.mxu0 0.0
        %6756 = vmatpush1.msra.mxu0 0.0
        %6757 = vmatprep.subr.mxu0 0.0
        %6758 = vmatpush1.msra.mxu0 0.0
        %6759 = vmatprep.subr.mxu0 0.0
        %6760 = vmatpush1.msra.mxu0 0.0
        %6761 = vmatprep.subr.mxu0 0.0
        %6762 = vmatpush1.msra.mxu0 0.0
        %6763 = vmatprep.subr.mxu0 0.0
        %6764 = vmatpush1.msra.mxu0 0.0
        %6765 = vmatprep.subr.mxu0 0.0
        %6766 = vmatpush1.msra.mxu0 0.0
        %6767 = vmatprep.subr.mxu0 0.0
        %6768 = vmatpush1.msra.mxu0 0.0
        %6769 = vmatprep.subr.mxu0 0.0
        %6770 = vmatpush1.msra.mxu0 0.0
        %6771 = vmatprep.subr.mxu0 0.0
        %6772 = vmatpush1.msra.mxu0 0.0
        %6773 = vmatprep.subr.mxu0 0.0
        %6774 = vmatpush1.msra.mxu0 0.0
        %6775 = vmatprep.subr.mxu0 0.0
        %6776 = vmatpush1.msra.mxu0 0.0
        %6777 = vmatprep.mubr.f32.mxu0 0.0
        %v6778 = vand.u32 %v477, 4294901760
        %6779 = vmatmul.mubr.f32.gmra.mrb[0].mxu0 %v6778
        %v6780 = vpop.f32.mrb[0].mxu0
        %v6781 = vadd.f32 %v6690, %v6780
        %v6782 = vpop.f32.mrb[0].mxu0
        %6783 = vmatprep.mubr.f32.mxu0 0.0
        %v6784 = vand.u32 %v480, 4294901760
        %6785 = vmatmul.mubr.f32.gmra.mrb[0].mxu0 %v6784
        %v6786 = vpop.f32.mrb[0].mxu0
        %v6787 = vadd.f32 %v6700, %v6786
        %v6788 = vpop.f32.mrb[0].mxu0
        %6789 = vdwg.mxu0
        %6790 = vmatprep.subr.mxu0 0.0
        %v6791 = vand.u32 %v5588, 4294901760
        %v6792 = vsub.f32 %v5588, %v6791
        %6793 = vmatpush1.msra.mxu0 %v6792
        %6794 = vmatprep.subr.mxu0 0.0
        %v6795 = vand.u32 %v5589, 4294901760
        %v6796 = vsub.f32 %v5589, %v6795
        %6797 = vmatpush1.msra.mxu0 %v6796
        %6798 = vmatprep.subr.mxu0 0.0
        %6799 = vmatpush1.msra.mxu0 0.0
        %6800 = vmatprep.subr.mxu0 0.0
        %6801 = vmatpush1.msra.mxu0 0.0
        %6802 = vmatprep.subr.mxu0 0.0
        %6803 = vmatpush1.msra.mxu0 0.0
        %6804 = vmatprep.subr.mxu0 0.0
        %6805 = vmatpush1.msra.mxu0 0.0
        %6806 = vmatprep.subr.mxu0 0.0
        %6807 = vmatpush1.msra.mxu0 0.0
        %6808 = vmatprep.subr.mxu0 0.0
        %6809 = vmatpush1.msra.mxu0 0.0
        %6810 = vmatprep.subr.mxu0 0.0
        %6811 = vmatpush1.msra.mxu0 0.0
        %6812 = vmatprep.subr.mxu0 0.0
        %6813 = vmatpush1.msra.mxu0 0.0
        %6814 = vmatprep.subr.mxu0 0.0
        %6815 = vmatpush1.msra.mxu0 0.0
        %6816 = vmatprep.subr.mxu0 0.0
        %6817 = vmatpush1.msra.mxu0 0.0
        %6818 = vmatprep.subr.mxu0 0.0
        %6819 = vmatpush1.msra.mxu0 0.0
        %6820 = vmatprep.subr.mxu0 0.0
        %6821 = vmatpush1.msra.mxu0 0.0
        %6822 = vmatprep.subr.mxu0 0.0
        %6823 = vmatpush1.msra.mxu0 0.0
        %6824 = vmatprep.subr.mxu0 0.0
        %6825 = vmatpush1.msra.mxu0 0.0
        %6826 = vmatprep.subr.mxu0 0.0
        %6827 = vmatpush1.msra.mxu0 0.0
        %6828 = vmatprep.subr.mxu0 0.0
        %6829 = vmatpush1.msra.mxu0 0.0
        %6830 = vmatprep.subr.mxu0 0.0
        %6831 = vmatpush1.msra.mxu0 0.0
        %6832 = vmatprep.subr.mxu0 0.0
        %6833 = vmatpush1.msra.mxu0 0.0
        %6834 = vmatprep.subr.mxu0 0.0
        %6835 = vmatpush1.msra.mxu0 0.0
        %6836 = vmatprep.subr.mxu0 0.0
        %6837 = vmatpush1.msra.mxu0 0.0
        %6838 = vmatprep.subr.mxu0 0.0
        %6839 = vmatpush1.msra.mxu0 0.0
        %6840 = vmatprep.subr.mxu0 0.0
        %6841 = vmatpush1.msra.mxu0 0.0
        %6842 = vmatprep.subr.mxu0 0.0
        %6843 = vmatpush1.msra.mxu0 0.0
        %6844 = vmatprep.subr.mxu0 0.0
        %6845 = vmatpush1.msra.mxu0 0.0
        %6846 = vmatprep.subr.mxu0 0.0
        %6847 = vmatpush1.msra.mxu0 0.0
        %6848 = vmatprep.subr.mxu0 0.0
        %6849 = vmatpush1.msra.mxu0 0.0
        %6850 = vmatprep.subr.mxu0 0.0
        %6851 = vmatpush1.msra.mxu0 0.0
        %6852 = vmatprep.subr.mxu0 0.0
        %6853 = vmatpush1.msra.mxu0 0.0
        %6854 = vmatprep.subr.mxu0 0.0
        %6855 = vmatpush1.msra.mxu0 0.0
        %6856 = vmatprep.subr.mxu0 0.0
        %6857 = vmatpush1.msra.mxu0 0.0
        %6858 = vmatprep.mubr.f32.mxu0 0.0
        %v6859 = vand.u32 %v477, 4294901760
        %v6860 = vsub.f32 %v477, %v6859
        %6861 = vmatmul.mubr.f32.gmra.mrb[0].mxu0 %v6860
        %v6862 = vpop.f32.mrb[0].mxu0
        %v6863 = vadd.f32 %v6781, %v6862
        %v6864 = vpop.f32.mrb[0].mxu0
        %6865 = vmatprep.mubr.f32.mxu0 0.0
        %v6866 = vand.u32 %v480, 4294901760
        %v6867 = vsub.f32 %v480, %v6866
        %6868 = vmatmul.mubr.f32.gmra.mrb[0].mxu0 %v6867
        %v6869 = vpop.f32.mrb[0].mxu0
        %v6870 = vadd.f32 %v6787, %v6869
        %v6871 = vpop.f32.mrb[0].mxu0
        %6872 = vdwg.mxu0
        %6873 = vmatprep.subr.mxu0 0.0
        %v6874 = vand.u32 %v5588, 4294901760
        %6875 = vmatpush1.msra.mxu0 %v6874
        %6876 = vmatprep.subr.mxu0 0.0
        %v6877 = vand.u32 %v5589, 4294901760
        %6878 = vmatpush1.msra.mxu0 %v6877
        %6879 = vmatprep.subr.mxu0 0.0
        %6880 = vmatpush1.msra.mxu0 0.0
        %6881 = vmatprep.subr.mxu0 0.0
        %6882 = vmatpush1.msra.mxu0 0.0
        %6883 = vmatprep.subr.mxu0 0.0
        %6884 = vmatpush1.msra.mxu0 0.0
        %6885 = vmatprep.subr.mxu0 0.0
        %6886 = vmatpush1.msra.mxu0 0.0
        %6887 = vmatprep.subr.mxu0 0.0
        %6888 = vmatpush1.msra.mxu0 0.0
        %6889 = vmatprep.subr.mxu0 0.0
        %6890 = vmatpush1.msra.mxu0 0.0
        %6891 = vmatprep.subr.mxu0 0.0
        %6892 = vmatpush1.msra.mxu0 0.0
        %6893 = vmatprep.subr.mxu0 0.0
        %6894 = vmatpush1.msra.mxu0 0.0
        %6895 = vmatprep.subr.mxu0 0.0
        %6896 = vmatpush1.msra.mxu0 0.0
        %6897 = vmatprep.subr.mxu0 0.0
        %6898 = vmatpush1.msra.mxu0 0.0
        %6899 = vmatprep.subr.mxu0 0.0
        %6900 = vmatpush1.msra.mxu0 0.0
        %6901 = vmatprep.subr.mxu0 0.0
        %6902 = vmatpush1.msra.mxu0 0.0
        %6903 = vmatprep.subr.mxu0 0.0
        %6904 = vmatpush1.msra.mxu0 0.0
        %6905 = vmatprep.subr.mxu0 0.0
        %6906 = vmatpush1.msra.mxu0 0.0
        %6907 = vmatprep.subr.mxu0 0.0
        %6908 = vmatpush1.msra.mxu0 0.0
        %6909 = vmatprep.subr.mxu0 0.0
        %6910 = vmatpush1.msra.mxu0 0.0
        %6911 = vmatprep.subr.mxu0 0.0
        %6912 = vmatpush1.msra.mxu0 0.0
        %6913 = vmatprep.subr.mxu0 0.0
        %6914 = vmatpush1.msra.mxu0 0.0
        %6915 = vmatprep.subr.mxu0 0.0
        %6916 = vmatpush1.msra.mxu0 0.0
        %6917 = vmatprep.subr.mxu0 0.0
        %6918 = vmatpush1.msra.mxu0 0.0
        %6919 = vmatprep.subr.mxu0 0.0
        %6920 = vmatpush1.msra.mxu0 0.0
        %6921 = vmatprep.subr.mxu0 0.0
        %6922 = vmatpush1.msra.mxu0 0.0
        %6923 = vmatprep.subr.mxu0 0.0
        %6924 = vmatpush1.msra.mxu0 0.0
        %6925 = vmatprep.subr.mxu0 0.0
        %6926 = vmatpush1.msra.mxu0 0.0
        %6927 = vmatprep.subr.mxu0 0.0
        %6928 = vmatpush1.msra.mxu0 0.0
        %6929 = vmatprep.subr.mxu0 0.0
        %6930 = vmatpush1.msra.mxu0 0.0
        %6931 = vmatprep.subr.mxu0 0.0
        %6932 = vmatpush1.msra.mxu0 0.0
        %6933 = vmatprep.subr.mxu0 0.0
        %6934 = vmatpush1.msra.mxu0 0.0
        %6935 = vmatprep.subr.mxu0 0.0
        %6936 = vmatpush1.msra.mxu0 0.0
        %6937 = vmatprep.subr.mxu0 0.0
        %6938 = vmatpush1.msra.mxu0 0.0
        %6939 = vmatprep.mubr.f32.mxu0 0.0
        %v6940 = vand.u32 %v477, 4294901760
        %v6941 = vsub.f32 %v477, %v6940
        %v6942 = vand.u32 %v6941, 4294901760
        %6943 = vmatmul.mubr.f32.gmra.mrb[0].mxu0 %v6942
        %v6944 = vpop.f32.mrb[0].mxu0
        %v6945 = vadd.f32 %v6863, %v6944
        %v6946 = vpop.f32.mrb[0].mxu0
        %6947 = vmatprep.mubr.f32.mxu0 0.0
        %v6948 = vand.u32 %v480, 4294901760
        %v6949 = vsub.f32 %v480, %v6948
        %v6950 = vand.u32 %v6949, 4294901760
        %6951 = vmatmul.mubr.f32.gmra.mrb[0].mxu0 %v6950
        %v6952 = vpop.f32.mrb[0].mxu0
        %v6953 = vadd.f32 %v6870, %v6952
        %v6954 = vpop.f32.mrb[0].mxu0
        %6955 = vdwg.mxu0
        %6956 = vmatprep.subr.mxu0 0.0
        %v6957 = vand.u32 %v5588, 4294901760
        %v6958 = vsub.f32 %v5588, %v6957
        %v6959 = vand.u32 %v6958, 4294901760
        %6960 = vmatpush1.msra.mxu0 %v6959
        %6961 = vmatprep.subr.mxu0 0.0
        %v6962 = vand.u32 %v5589, 4294901760
        %v6963 = vsub.f32 %v5589, %v6962
        %v6964 = vand.u32 %v6963, 4294901760
        %6965 = vmatpush1.msra.mxu0 %v6964
        %6966 = vmatprep.subr.mxu0 0.0
        %6967 = vmatpush1.msra.mxu0 0.0
        %6968 = vmatprep.subr.mxu0 0.0
        %6969 = vmatpush1.msra.mxu0 0.0
        %6970 = vmatprep.subr.mxu0 0.0
        %6971 = vmatpush1.msra.mxu0 0.0
        %6972 = vmatprep.subr.mxu0 0.0
        %6973 = vmatpush1.msra.mxu0 0.0
        %6974 = vmatprep.subr.mxu0 0.0
        %6975 = vmatpush1.msra.mxu0 0.0
        %6976 = vmatprep.subr.mxu0 0.0
        %6977 = vmatpush1.msra.mxu0 0.0
        %6978 = vmatprep.subr.mxu0 0.0
        %6979 = vmatpush1.msra.mxu0 0.0
        %6980 = vmatprep.subr.mxu0 0.0
        %6981 = vmatpush1.msra.mxu0 0.0
        %6982 = vmatprep.subr.mxu0 0.0
        %6983 = vmatpush1.msra.mxu0 0.0
        %6984 = vmatprep.subr.mxu0 0.0
        %6985 = vmatpush1.msra.mxu0 0.0
        %6986 = vmatprep.subr.mxu0 0.0
        %6987 = vmatpush1.msra.mxu0 0.0
        %6988 = vmatprep.subr.mxu0 0.0
        %6989 = vmatpush1.msra.mxu0 0.0
        %6990 = vmatprep.subr.mxu0 0.0
        %6991 = vmatpush1.msra.mxu0 0.0
        %6992 = vmatprep.subr.mxu0 0.0
        %6993 = vmatpush1.msra.mxu0 0.0
        %6994 = vmatprep.subr.mxu0 0.0
        %6995 = vmatpush1.msra.mxu0 0.0
        %6996 = vmatprep.subr.mxu0 0.0
        %6997 = vmatpush1.msra.mxu0 0.0
        %6998 = vmatprep.subr.mxu0 0.0
        %6999 = vmatpush1.msra.mxu0 0.0
        %7000 = vmatprep.subr.mxu0 0.0
        %7001 = vmatpush1.msra.mxu0 0.0
        %7002 = vmatprep.subr.mxu0 0.0
        %7003 = vmatpush1.msra.mxu0 0.0
        %7004 = vmatprep.subr.mxu0 0.0
        %7005 = vmatpush1.msra.mxu0 0.0
        %7006 = vmatprep.subr.mxu0 0.0
        %7007 = vmatpush1.msra.mxu0 0.0
        %7008 = vmatprep.subr.mxu0 0.0
        %7009 = vmatpush1.msra.mxu0 0.0
        %7010 = vmatprep.subr.mxu0 0.0
        %7011 = vmatpush1.msra.mxu0 0.0
        %7012 = vmatprep.subr.mxu0 0.0
        %7013 = vmatpush1.msra.mxu0 0.0
        %7014 = vmatprep.subr.mxu0 0.0
        %7015 = vmatpush1.msra.mxu0 0.0
        %7016 = vmatprep.subr.mxu0 0.0
        %7017 = vmatpush1.msra.mxu0 0.0
        %7018 = vmatprep.subr.mxu0 0.0
        %7019 = vmatpush1.msra.mxu0 0.0
        %7020 = vmatprep.subr.mxu0 0.0
        %7021 = vmatpush1.msra.mxu0 0.0
        %7022 = vmatprep.subr.mxu0 0.0
        %7023 = vmatpush1.msra.mxu0 0.0
        %7024 = vmatprep.subr.mxu0 0.0
        %7025 = vmatpush1.msra.mxu0 0.0
        %7026 = vmatprep.mubr.f32.mxu0 0.0
        %v7027 = vand.u32 %v477, 4294901760
        %7028 = vmatmul.mubr.f32.gmra.mrb[0].mxu0 %v7027
        %v7029 = vpop.f32.mrb[0].mxu0
        %v7030 = vadd.f32 %v6945, %v7029
        %v7031 = vpop.f32.mrb[0].mxu0
        %7032 = vmatprep.mubr.f32.mxu0 0.0
        %v7033 = vand.u32 %v480, 4294901760
        %7034 = vmatmul.mubr.f32.gmra.mrb[0].mxu0 %v7033
        %v7035 = vpop.f32.mrb[0].mxu0
        %v7036 = vadd.f32 %v6953, %v7035
        %v7037 = vpop.f32.mrb[0].mxu0
        %7038 = vdwg.mxu0
        %7039 = vmatprep.subr.mxu0 0.0
        %v7040 = vand.u32 %v5588, 4294901760
        %7041 = vmatpush1.msra.mxu0 %v7040
        %7042 = vmatprep.subr.mxu0 0.0
        %v7043 = vand.u32 %v5589, 4294901760
        %7044 = vmatpush1.msra.mxu0 %v7043
        %7045 = vmatprep.subr.mxu0 0.0
        %7046 = vmatpush1.msra.mxu0 0.0
        %7047 = vmatprep.subr.mxu0 0.0
        %7048 = vmatpush1.msra.mxu0 0.0
        %7049 = vmatprep.subr.mxu0 0.0
        %7050 = vmatpush1.msra.mxu0 0.0
        %7051 = vmatprep.subr.mxu0 0.0
        %7052 = vmatpush1.msra.mxu0 0.0
        %7053 = vmatprep.subr.mxu0 0.0
        %7054 = vmatpush1.msra.mxu0 0.0
        %7055 = vmatprep.subr.mxu0 0.0
        %7056 = vmatpush1.msra.mxu0 0.0
        %7057 = vmatprep.subr.mxu0 0.0
        %7058 = vmatpush1.msra.mxu0 0.0
        %7059 = vmatprep.subr.mxu0 0.0
        %7060 = vmatpush1.msra.mxu0 0.0
        %7061 = vmatprep.subr.mxu0 0.0
        %7062 = vmatpush1.msra.mxu0 0.0
        %7063 = vmatprep.subr.mxu0 0.0
        %7064 = vmatpush1.msra.mxu0 0.0
        %7065 = vmatprep.subr.mxu0 0.0
        %7066 = vmatpush1.msra.mxu0 0.0
        %7067 = vmatprep.subr.mxu0 0.0
        %7068 = vmatpush1.msra.mxu0 0.0
        %7069 = vmatprep.subr.mxu0 0.0
        %7070 = vmatpush1.msra.mxu0 0.0
        %7071 = vmatprep.subr.mxu0 0.0
        %7072 = vmatpush1.msra.mxu0 0.0
        %7073 = vmatprep.subr.mxu0 0.0
        %7074 = vmatpush1.msra.mxu0 0.0
        %7075 = vmatprep.subr.mxu0 0.0
        %7076 = vmatpush1.msra.mxu0 0.0
        %7077 = vmatprep.subr.mxu0 0.0
        %7078 = vmatpush1.msra.mxu0 0.0
        %7079 = vmatprep.subr.mxu0 0.0
        %7080 = vmatpush1.msra.mxu0 0.0
        %7081 = vmatprep.subr.mxu0 0.0
        %7082 = vmatpush1.msra.mxu0 0.0
        %7083 = vmatprep.subr.mxu0 0.0
        %7084 = vmatpush1.msra.mxu0 0.0
        %7085 = vmatprep.subr.mxu0 0.0
        %7086 = vmatpush1.msra.mxu0 0.0
        %7087 = vmatprep.subr.mxu0 0.0
        %7088 = vmatpush1.msra.mxu0 0.0
        %7089 = vmatprep.subr.mxu0 0.0
        %7090 = vmatpush1.msra.mxu0 0.0
        %7091 = vmatprep.subr.mxu0 0.0
        %7092 = vmatpush1.msra.mxu0 0.0
        %7093 = vmatprep.subr.mxu0 0.0
        %7094 = vmatpush1.msra.mxu0 0.0
        %7095 = vmatprep.subr.mxu0 0.0
        %7096 = vmatpush1.msra.mxu0 0.0
        %7097 = vmatprep.subr.mxu0 0.0
        %7098 = vmatpush1.msra.mxu0 0.0
        %7099 = vmatprep.subr.mxu0 0.0
        %7100 = vmatpush1.msra.mxu0 0.0
        %7101 = vmatprep.subr.mxu0 0.0
        %7102 = vmatpush1.msra.mxu0 0.0
        %7103 = vmatprep.subr.mxu0 0.0
        %7104 = vmatpush1.msra.mxu0 0.0
        %7105 = vmatprep.mubr.f32.mxu0 0.0
        %v7106 = vand.u32 %v477, 4294901760
        %7107 = vmatmul.mubr.f32.gmra.mrb[0].mxu0 %v7106
        %v7108 = vpop.f32.mrb[0].mxu0
        %v7109 = vadd.f32 %v7030, %v7108
        %v7110 = vpop.f32.mrb[0].mxu0
        %7111 = vmatprep.mubr.f32.mxu0 0.0
        %v7112 = vand.u32 %v480, 4294901760
        %7113 = vmatmul.mubr.f32.gmra.mrb[0].mxu0 %v7112
        %v7114 = vpop.f32.mrb[0].mxu0
        %v7115 = vadd.f32 %v7036, %v7114
        %v7116 = vpop.f32.mrb[0].mxu0
        %7117 = vdwg.mxu0
        %v7119 = vsel %vm463, %v7109, 0
        %v7122 = vsel %vm463, %v7115, 0
        %7124 = vmatprep.subr.mxu0 0.0
        %v7125 = vand.u32 %v453, 4294901760
        %7126 = vmatpush1.msra.mxu0 %v7125
        %7127 = vmatprep.subr.mxu0 0.0
        %v7128 = vand.u32 %v454, 4294901760
        %7129 = vmatpush1.msra.mxu0 %v7128
        %7130 = vmatprep.subr.mxu0 0.0
        %7131 = vmatpush1.msra.mxu0 0.0
        %7132 = vmatprep.subr.mxu0 0.0
        %7133 = vmatpush1.msra.mxu0 0.0
        %7134 = vmatprep.subr.mxu0 0.0
        %7135 = vmatpush1.msra.mxu0 0.0
        %7136 = vmatprep.subr.mxu0 0.0
        %7137 = vmatpush1.msra.mxu0 0.0
        %7138 = vmatprep.subr.mxu0 0.0
        %7139 = vmatpush1.msra.mxu0 0.0
        %7140 = vmatprep.subr.mxu0 0.0
        %7141 = vmatpush1.msra.mxu0 0.0
        %7142 = vmatprep.subr.mxu0 0.0
        %7143 = vmatpush1.msra.mxu0 0.0
        %7144 = vmatprep.subr.mxu0 0.0
        %7145 = vmatpush1.msra.mxu0 0.0
        %7146 = vmatprep.subr.mxu0 0.0
        %7147 = vmatpush1.msra.mxu0 0.0
        %7148 = vmatprep.subr.mxu0 0.0
        %7149 = vmatpush1.msra.mxu0 0.0
        %7150 = vmatprep.subr.mxu0 0.0
        %7151 = vmatpush1.msra.mxu0 0.0
        %7152 = vmatprep.subr.mxu0 0.0
        %7153 = vmatpush1.msra.mxu0 0.0
        %7154 = vmatprep.subr.mxu0 0.0
        %7155 = vmatpush1.msra.mxu0 0.0
        %7156 = vmatprep.subr.mxu0 0.0
        %7157 = vmatpush1.msra.mxu0 0.0
        %7158 = vmatprep.subr.mxu0 0.0
        %7159 = vmatpush1.msra.mxu0 0.0
        %7160 = vmatprep.subr.mxu0 0.0
        %7161 = vmatpush1.msra.mxu0 0.0
        %7162 = vmatprep.subr.mxu0 0.0
        %7163 = vmatpush1.msra.mxu0 0.0
        %7164 = vmatprep.subr.mxu0 0.0
        %7165 = vmatpush1.msra.mxu0 0.0
        %7166 = vmatprep.subr.mxu0 0.0
        %7167 = vmatpush1.msra.mxu0 0.0
        %7168 = vmatprep.subr.mxu0 0.0
        %7169 = vmatpush1.msra.mxu0 0.0
        %7170 = vmatprep.subr.mxu0 0.0
        %7171 = vmatpush1.msra.mxu0 0.0
        %7172 = vmatprep.subr.mxu0 0.0
        %7173 = vmatpush1.msra.mxu0 0.0
        %7174 = vmatprep.subr.mxu0 0.0
        %7175 = vmatpush1.msra.mxu0 0.0
        %7176 = vmatprep.subr.mxu0 0.0
        %7177 = vmatpush1.msra.mxu0 0.0
        %7178 = vmatprep.subr.mxu0 0.0
        %7179 = vmatpush1.msra.mxu0 0.0
        %7180 = vmatprep.subr.mxu0 0.0
        %7181 = vmatpush1.msra.mxu0 0.0
        %7182 = vmatprep.subr.mxu0 0.0
        %7183 = vmatpush1.msra.mxu0 0.0
        %7184 = vmatprep.subr.mxu0 0.0
        %7185 = vmatpush1.msra.mxu0 0.0
        %7186 = vmatprep.subr.mxu0 0.0
        %7187 = vmatpush1.msra.mxu0 0.0
        %7188 = vmatprep.subr.mxu0 0.0
        %7189 = vmatpush1.msra.mxu0 0.0
        %7190 = vmatprep.mubr.f32.mxu0 0.0
        %v7191 = vand.u32 %v7119, 4294901760
        %v7192 = vsub.f32 %v7119, %v7191
        %v7193 = vand.u32 %v7192, 4294901760
        %v7194 = vsub.f32 %v7192, %v7193
        %v7195 = vand.u32 %v7194, 4294901760
        %7196 = vmatmul.mubr.f32.gmra.mrb[0].mxu0 %v7195
        %v7197 = vpop.f32.mrb[0].mxu0
        %v7198 = vadd.f32 0.0, %v7197
        %v7199 = vpop.f32.mrb[0].mxu0
        %7200 = vmatprep.mubr.f32.mxu0 0.0
        %v7201 = vand.u32 %v7122, 4294901760
        %v7202 = vsub.f32 %v7122, %v7201
        %v7203 = vand.u32 %v7202, 4294901760
        %v7204 = vsub.f32 %v7202, %v7203
        %v7205 = vand.u32 %v7204, 4294901760
        %7206 = vmatmul.mubr.f32.gmra.mrb[0].mxu0 %v7205
        %v7207 = vpop.f32.mrb[0].mxu0
        %v7208 = vadd.f32 0.0, %v7207
        %v7209 = vpop.f32.mrb[0].mxu0
        %7210 = vdwg.mxu0
        %7211 = vmatprep.subr.mxu0 0.0
        %v7212 = vand.u32 %v453, 4294901760
        %v7213 = vsub.f32 %v453, %v7212
        %v7214 = vand.u32 %v7213, 4294901760
        %v7215 = vsub.f32 %v7213, %v7214
        %v7216 = vand.u32 %v7215, 4294901760
        %7217 = vmatpush1.msra.mxu0 %v7216
        %7218 = vmatprep.subr.mxu0 0.0
        %v7219 = vand.u32 %v454, 4294901760
        %v7220 = vsub.f32 %v454, %v7219
        %v7221 = vand.u32 %v7220, 4294901760
        %v7222 = vsub.f32 %v7220, %v7221
        %v7223 = vand.u32 %v7222, 4294901760
        %7224 = vmatpush1.msra.mxu0 %v7223
        %7225 = vmatprep.subr.mxu0 0.0
        %7226 = vmatpush1.msra.mxu0 0.0
        %7227 = vmatprep.subr.mxu0 0.0
        %7228 = vmatpush1.msra.mxu0 0.0
        %7229 = vmatprep.subr.mxu0 0.0
        %7230 = vmatpush1.msra.mxu0 0.0
        %7231 = vmatprep.subr.mxu0 0.0
        %7232 = vmatpush1.msra.mxu0 0.0
        %7233 = vmatprep.subr.mxu0 0.0
        %7234 = vmatpush1.msra.mxu0 0.0
        %7235 = vmatprep.subr.mxu0 0.0
        %7236 = vmatpush1.msra.mxu0 0.0
        %7237 = vmatprep.subr.mxu0 0.0
        %7238 = vmatpush1.msra.mxu0 0.0
        %7239 = vmatprep.subr.mxu0 0.0
        %7240 = vmatpush1.msra.mxu0 0.0
        %7241 = vmatprep.subr.mxu0 0.0
        %7242 = vmatpush1.msra.mxu0 0.0
        %7243 = vmatprep.subr.mxu0 0.0
        %7244 = vmatpush1.msra.mxu0 0.0
        %7245 = vmatprep.subr.mxu0 0.0
        %7246 = vmatpush1.msra.mxu0 0.0
        %7247 = vmatprep.subr.mxu0 0.0
        %7248 = vmatpush1.msra.mxu0 0.0
        %7249 = vmatprep.subr.mxu0 0.0
        %7250 = vmatpush1.msra.mxu0 0.0
        %7251 = vmatprep.subr.mxu0 0.0
        %7252 = vmatpush1.msra.mxu0 0.0
        %7253 = vmatprep.subr.mxu0 0.0
        %7254 = vmatpush1.msra.mxu0 0.0
        %7255 = vmatprep.subr.mxu0 0.0
        %7256 = vmatpush1.msra.mxu0 0.0
        %7257 = vmatprep.subr.mxu0 0.0
        %7258 = vmatpush1.msra.mxu0 0.0
        %7259 = vmatprep.subr.mxu0 0.0
        %7260 = vmatpush1.msra.mxu0 0.0
        %7261 = vmatprep.subr.mxu0 0.0
        %7262 = vmatpush1.msra.mxu0 0.0
        %7263 = vmatprep.subr.mxu0 0.0
        %7264 = vmatpush1.msra.mxu0 0.0
        %7265 = vmatprep.subr.mxu0 0.0
        %7266 = vmatpush1.msra.mxu0 0.0
        %7267 = vmatprep.subr.mxu0 0.0
        %7268 = vmatpush1.msra.mxu0 0.0
        %7269 = vmatprep.subr.mxu0 0.0
        %7270 = vmatpush1.msra.mxu0 0.0
        %7271 = vmatprep.subr.mxu0 0.0
        %7272 = vmatpush1.msra.mxu0 0.0
        %7273 = vmatprep.subr.mxu0 0.0
        %7274 = vmatpush1.msra.mxu0 0.0
        %7275 = vmatprep.subr.mxu0 0.0
        %7276 = vmatpush1.msra.mxu0 0.0
        %7277 = vmatprep.subr.mxu0 0.0
        %7278 = vmatpush1.msra.mxu0 0.0
        %7279 = vmatprep.subr.mxu0 0.0
        %7280 = vmatpush1.msra.mxu0 0.0
        %7281 = vmatprep.subr.mxu0 0.0
        %7282 = vmatpush1.msra.mxu0 0.0
        %7283 = vmatprep.subr.mxu0 0.0
        %7284 = vmatpush1.msra.mxu0 0.0
        %7285 = vmatprep.mubr.f32.mxu0 0.0
        %v7286 = vand.u32 %v7119, 4294901760
        %7287 = vmatmul.mubr.f32.gmra.mrb[0].mxu0 %v7286
        %v7288 = vpop.f32.mrb[0].mxu0
        %v7289 = vadd.f32 %v7198, %v7288
        %v7290 = vpop.f32.mrb[0].mxu0
        %7291 = vmatprep.mubr.f32.mxu0 0.0
        %v7292 = vand.u32 %v7122, 4294901760
        %7293 = vmatmul.mubr.f32.gmra.mrb[0].mxu0 %v7292
        %v7294 = vpop.f32.mrb[0].mxu0
        %v7295 = vadd.f32 %v7208, %v7294
        %v7296 = vpop.f32.mrb[0].mxu0
        %7297 = vdwg.mxu0
        %7298 = vmatprep.subr.mxu0 0.0
        %v7299 = vand.u32 %v453, 4294901760
        %v7300 = vsub.f32 %v453, %v7299
        %7301 = vmatpush1.msra.mxu0 %v7300
        %7302 = vmatprep.subr.mxu0 0.0
        %v7303 = vand.u32 %v454, 4294901760
        %v7304 = vsub.f32 %v454, %v7303
        %7305 = vmatpush1.msra.mxu0 %v7304
        %7306 = vmatprep.subr.mxu0 0.0
        %7307 = vmatpush1.msra.mxu0 0.0
        %7308 = vmatprep.subr.mxu0 0.0
        %7309 = vmatpush1.msra.mxu0 0.0
        %7310 = vmatprep.subr.mxu0 0.0
        %7311 = vmatpush1.msra.mxu0 0.0
        %7312 = vmatprep.subr.mxu0 0.0
        %7313 = vmatpush1.msra.mxu0 0.0
        %7314 = vmatprep.subr.mxu0 0.0
        %7315 = vmatpush1.msra.mxu0 0.0
        %7316 = vmatprep.subr.mxu0 0.0
        %7317 = vmatpush1.msra.mxu0 0.0
        %7318 = vmatprep.subr.mxu0 0.0
        %7319 = vmatpush1.msra.mxu0 0.0
        %7320 = vmatprep.subr.mxu0 0.0
        %7321 = vmatpush1.msra.mxu0 0.0
        %7322 = vmatprep.subr.mxu0 0.0
        %7323 = vmatpush1.msra.mxu0 0.0
        %7324 = vmatprep.subr.mxu0 0.0
        %7325 = vmatpush1.msra.mxu0 0.0
        %7326 = vmatprep.subr.mxu0 0.0
        %7327 = vmatpush1.msra.mxu0 0.0
        %7328 = vmatprep.subr.mxu0 0.0
        %7329 = vmatpush1.msra.mxu0 0.0
        %7330 = vmatprep.subr.mxu0 0.0
        %7331 = vmatpush1.msra.mxu0 0.0
        %7332 = vmatprep.subr.mxu0 0.0
        %7333 = vmatpush1.msra.mxu0 0.0
        %7334 = vmatprep.subr.mxu0 0.0
        %7335 = vmatpush1.msra.mxu0 0.0
        %7336 = vmatprep.subr.mxu0 0.0
        %7337 = vmatpush1.msra.mxu0 0.0
        %7338 = vmatprep.subr.mxu0 0.0
        %7339 = vmatpush1.msra.mxu0 0.0
        %7340 = vmatprep.subr.mxu0 0.0
        %7341 = vmatpush1.msra.mxu0 0.0
        %7342 = vmatprep.subr.mxu0 0.0
        %7343 = vmatpush1.msra.mxu0 0.0
        %7344 = vmatprep.subr.mxu0 0.0
        %7345 = vmatpush1.msra.mxu0 0.0
        %7346 = vmatprep.subr.mxu0 0.0
        %7347 = vmatpush1.msra.mxu0 0.0
        %7348 = vmatprep.subr.mxu0 0.0
        %7349 = vmatpush1.msra.mxu0 0.0
        %7350 = vmatprep.subr.mxu0 0.0
        %7351 = vmatpush1.msra.mxu0 0.0
        %7352 = vmatprep.subr.mxu0 0.0
        %7353 = vmatpush1.msra.mxu0 0.0
        %7354 = vmatprep.subr.mxu0 0.0
        %7355 = vmatpush1.msra.mxu0 0.0
        %7356 = vmatprep.subr.mxu0 0.0
        %7357 = vmatpush1.msra.mxu0 0.0
        %7358 = vmatprep.subr.mxu0 0.0
        %7359 = vmatpush1.msra.mxu0 0.0
        %7360 = vmatprep.subr.mxu0 0.0
        %7361 = vmatpush1.msra.mxu0 0.0
        %7362 = vmatprep.subr.mxu0 0.0
        %7363 = vmatpush1.msra.mxu0 0.0
        %7364 = vmatprep.subr.mxu0 0.0
        %7365 = vmatpush1.msra.mxu0 0.0
        %7366 = vmatprep.mubr.f32.mxu0 0.0
        %v7367 = vand.u32 %v7119, 4294901760
        %v7368 = vsub.f32 %v7119, %v7367
        %7369 = vmatmul.mubr.f32.gmra.mrb[0].mxu0 %v7368
        %v7370 = vpop.f32.mrb[0].mxu0
        %v7371 = vadd.f32 %v7289, %v7370
        %v7372 = vpop.f32.mrb[0].mxu0
        %7373 = vmatprep.mubr.f32.mxu0 0.0
        %v7374 = vand.u32 %v7122, 4294901760
        %v7375 = vsub.f32 %v7122, %v7374
        %7376 = vmatmul.mubr.f32.gmra.mrb[0].mxu0 %v7375
        %v7377 = vpop.f32.mrb[0].mxu0
        %v7378 = vadd.f32 %v7295, %v7377
        %v7379 = vpop.f32.mrb[0].mxu0
        %7380 = vdwg.mxu0
        %7381 = vmatprep.subr.mxu0 0.0
        %v7382 = vand.u32 %v453, 4294901760
        %7383 = vmatpush1.msra.mxu0 %v7382
        %7384 = vmatprep.subr.mxu0 0.0
        %v7385 = vand.u32 %v454, 4294901760
        %7386 = vmatpush1.msra.mxu0 %v7385
        %7387 = vmatprep.subr.mxu0 0.0
        %7388 = vmatpush1.msra.mxu0 0.0
        %7389 = vmatprep.subr.mxu0 0.0
        %7390 = vmatpush1.msra.mxu0 0.0
        %7391 = vmatprep.subr.mxu0 0.0
        %7392 = vmatpush1.msra.mxu0 0.0
        %7393 = vmatprep.subr.mxu0 0.0
        %7394 = vmatpush1.msra.mxu0 0.0
        %7395 = vmatprep.subr.mxu0 0.0
        %7396 = vmatpush1.msra.mxu0 0.0
        %7397 = vmatprep.subr.mxu0 0.0
        %7398 = vmatpush1.msra.mxu0 0.0
        %7399 = vmatprep.subr.mxu0 0.0
        %7400 = vmatpush1.msra.mxu0 0.0
        %7401 = vmatprep.subr.mxu0 0.0
        %7402 = vmatpush1.msra.mxu0 0.0
        %7403 = vmatprep.subr.mxu0 0.0
        %7404 = vmatpush1.msra.mxu0 0.0
        %7405 = vmatprep.subr.mxu0 0.0
        %7406 = vmatpush1.msra.mxu0 0.0
        %7407 = vmatprep.subr.mxu0 0.0
        %7408 = vmatpush1.msra.mxu0 0.0
        %7409 = vmatprep.subr.mxu0 0.0
        %7410 = vmatpush1.msra.mxu0 0.0
        %7411 = vmatprep.subr.mxu0 0.0
        %7412 = vmatpush1.msra.mxu0 0.0
        %7413 = vmatprep.subr.mxu0 0.0
        %7414 = vmatpush1.msra.mxu0 0.0
        %7415 = vmatprep.subr.mxu0 0.0
        %7416 = vmatpush1.msra.mxu0 0.0
        %7417 = vmatprep.subr.mxu0 0.0
        %7418 = vmatpush1.msra.mxu0 0.0
        %7419 = vmatprep.subr.mxu0 0.0
        %7420 = vmatpush1.msra.mxu0 0.0
        %7421 = vmatprep.subr.mxu0 0.0
        %7422 = vmatpush1.msra.mxu0 0.0
        %7423 = vmatprep.subr.mxu0 0.0
        %7424 = vmatpush1.msra.mxu0 0.0
        %7425 = vmatprep.subr.mxu0 0.0
        %7426 = vmatpush1.msra.mxu0 0.0
        %7427 = vmatprep.subr.mxu0 0.0
        %7428 = vmatpush1.msra.mxu0 0.0
        %7429 = vmatprep.subr.mxu0 0.0
        %7430 = vmatpush1.msra.mxu0 0.0
        %7431 = vmatprep.subr.mxu0 0.0
        %7432 = vmatpush1.msra.mxu0 0.0
        %7433 = vmatprep.subr.mxu0 0.0
        %7434 = vmatpush1.msra.mxu0 0.0
        %7435 = vmatprep.subr.mxu0 0.0
        %7436 = vmatpush1.msra.mxu0 0.0
        %7437 = vmatprep.subr.mxu0 0.0
        %7438 = vmatpush1.msra.mxu0 0.0
        %7439 = vmatprep.subr.mxu0 0.0
        %7440 = vmatpush1.msra.mxu0 0.0
        %7441 = vmatprep.subr.mxu0 0.0
        %7442 = vmatpush1.msra.mxu0 0.0
        %7443 = vmatprep.subr.mxu0 0.0
        %7444 = vmatpush1.msra.mxu0 0.0
        %7445 = vmatprep.subr.mxu0 0.0
        %7446 = vmatpush1.msra.mxu0 0.0
        %7447 = vmatprep.mubr.f32.mxu0 0.0
        %v7448 = vand.u32 %v7119, 4294901760
        %v7449 = vsub.f32 %v7119, %v7448
        %v7450 = vand.u32 %v7449, 4294901760
        %7451 = vmatmul.mubr.f32.gmra.mrb[0].mxu0 %v7450
        %v7452 = vpop.f32.mrb[0].mxu0
        %v7453 = vadd.f32 %v7371, %v7452
        %v7454 = vpop.f32.mrb[0].mxu0
        %7455 = vmatprep.mubr.f32.mxu0 0.0
        %v7456 = vand.u32 %v7122, 4294901760
        %v7457 = vsub.f32 %v7122, %v7456
        %v7458 = vand.u32 %v7457, 4294901760
        %7459 = vmatmul.mubr.f32.gmra.mrb[0].mxu0 %v7458
        %v7460 = vpop.f32.mrb[0].mxu0
        %v7461 = vadd.f32 %v7378, %v7460
        %v7462 = vpop.f32.mrb[0].mxu0
        %7463 = vdwg.mxu0
        %7464 = vmatprep.subr.mxu0 0.0
        %v7465 = vand.u32 %v453, 4294901760
        %v7466 = vsub.f32 %v453, %v7465
        %v7467 = vand.u32 %v7466, 4294901760
        %7468 = vmatpush1.msra.mxu0 %v7467
        %7469 = vmatprep.subr.mxu0 0.0
        %v7470 = vand.u32 %v454, 4294901760
        %v7471 = vsub.f32 %v454, %v7470
        %v7472 = vand.u32 %v7471, 4294901760
        %7473 = vmatpush1.msra.mxu0 %v7472
        %7474 = vmatprep.subr.mxu0 0.0
        %7475 = vmatpush1.msra.mxu0 0.0
        %7476 = vmatprep.subr.mxu0 0.0
        %7477 = vmatpush1.msra.mxu0 0.0
        %7478 = vmatprep.subr.mxu0 0.0
        %7479 = vmatpush1.msra.mxu0 0.0
        %7480 = vmatprep.subr.mxu0 0.0
        %7481 = vmatpush1.msra.mxu0 0.0
        %7482 = vmatprep.subr.mxu0 0.0
        %7483 = vmatpush1.msra.mxu0 0.0
        %7484 = vmatprep.subr.mxu0 0.0
        %7485 = vmatpush1.msra.mxu0 0.0
        %7486 = vmatprep.subr.mxu0 0.0
        %7487 = vmatpush1.msra.mxu0 0.0
        %7488 = vmatprep.subr.mxu0 0.0
        %7489 = vmatpush1.msra.mxu0 0.0
        %7490 = vmatprep.subr.mxu0 0.0
        %7491 = vmatpush1.msra.mxu0 0.0
        %7492 = vmatprep.subr.mxu0 0.0
        %7493 = vmatpush1.msra.mxu0 0.0
        %7494 = vmatprep.subr.mxu0 0.0
        %7495 = vmatpush1.msra.mxu0 0.0
        %7496 = vmatprep.subr.mxu0 0.0
        %7497 = vmatpush1.msra.mxu0 0.0
        %7498 = vmatprep.subr.mxu0 0.0
        %7499 = vmatpush1.msra.mxu0 0.0
        %7500 = vmatprep.subr.mxu0 0.0
        %7501 = vmatpush1.msra.mxu0 0.0
        %7502 = vmatprep.subr.mxu0 0.0
        %7503 = vmatpush1.msra.mxu0 0.0
        %7504 = vmatprep.subr.mxu0 0.0
        %7505 = vmatpush1.msra.mxu0 0.0
        %7506 = vmatprep.subr.mxu0 0.0
        %7507 = vmatpush1.msra.mxu0 0.0
        %7508 = vmatprep.subr.mxu0 0.0
        %7509 = vmatpush1.msra.mxu0 0.0
        %7510 = vmatprep.subr.mxu0 0.0
        %7511 = vmatpush1.msra.mxu0 0.0
        %7512 = vmatprep.subr.mxu0 0.0
        %7513 = vmatpush1.msra.mxu0 0.0
        %7514 = vmatprep.subr.mxu0 0.0
        %7515 = vmatpush1.msra.mxu0 0.0
        %7516 = vmatprep.subr.mxu0 0.0
        %7517 = vmatpush1.msra.mxu0 0.0
        %7518 = vmatprep.subr.mxu0 0.0
        %7519 = vmatpush1.msra.mxu0 0.0
        %7520 = vmatprep.subr.mxu0 0.0
        %7521 = vmatpush1.msra.mxu0 0.0
        %7522 = vmatprep.subr.mxu0 0.0
        %7523 = vmatpush1.msra.mxu0 0.0
        %7524 = vmatprep.subr.mxu0 0.0
        %7525 = vmatpush1.msra.mxu0 0.0
        %7526 = vmatprep.subr.mxu0 0.0
        %7527 = vmatpush1.msra.mxu0 0.0
        %7528 = vmatprep.subr.mxu0 0.0
        %7529 = vmatpush1.msra.mxu0 0.0
        %7530 = vmatprep.subr.mxu0 0.0
        %7531 = vmatpush1.msra.mxu0 0.0
        %7532 = vmatprep.subr.mxu0 0.0
        %7533 = vmatpush1.msra.mxu0 0.0
        %7534 = vmatprep.mubr.f32.mxu0 0.0
        %v7535 = vand.u32 %v7119, 4294901760
        %7536 = vmatmul.mubr.f32.gmra.mrb[0].mxu0 %v7535
        %v7537 = vpop.f32.mrb[0].mxu0
        %v7538 = vadd.f32 %v7453, %v7537
        %v7539 = vpop.f32.mrb[0].mxu0
        %7540 = vmatprep.mubr.f32.mxu0 0.0
        %v7541 = vand.u32 %v7122, 4294901760
        %7542 = vmatmul.mubr.f32.gmra.mrb[0].mxu0 %v7541
        %v7543 = vpop.f32.mrb[0].mxu0
        %v7544 = vadd.f32 %v7461, %v7543
        %v7545 = vpop.f32.mrb[0].mxu0
        %7546 = vdwg.mxu0
        %7547 = vmatprep.subr.mxu0 0.0
        %v7548 = vand.u32 %v453, 4294901760
        %7549 = vmatpush1.msra.mxu0 %v7548
        %7550 = vmatprep.subr.mxu0 0.0
        %v7551 = vand.u32 %v454, 4294901760
        %7552 = vmatpush1.msra.mxu0 %v7551
        %7553 = vmatprep.subr.mxu0 0.0
        %7554 = vmatpush1.msra.mxu0 0.0
        %7555 = vmatprep.subr.mxu0 0.0
        %7556 = vmatpush1.msra.mxu0 0.0
        %7557 = vmatprep.subr.mxu0 0.0
        %7558 = vmatpush1.msra.mxu0 0.0
        %7559 = vmatprep.subr.mxu0 0.0
        %7560 = vmatpush1.msra.mxu0 0.0
        %7561 = vmatprep.subr.mxu0 0.0
        %7562 = vmatpush1.msra.mxu0 0.0
        %7563 = vmatprep.subr.mxu0 0.0
        %7564 = vmatpush1.msra.mxu0 0.0
        %7565 = vmatprep.subr.mxu0 0.0
        %7566 = vmatpush1.msra.mxu0 0.0
        %7567 = vmatprep.subr.mxu0 0.0
        %7568 = vmatpush1.msra.mxu0 0.0
        %7569 = vmatprep.subr.mxu0 0.0
        %7570 = vmatpush1.msra.mxu0 0.0
        %7571 = vmatprep.subr.mxu0 0.0
        %7572 = vmatpush1.msra.mxu0 0.0
        %7573 = vmatprep.subr.mxu0 0.0
        %7574 = vmatpush1.msra.mxu0 0.0
        %7575 = vmatprep.subr.mxu0 0.0
        %7576 = vmatpush1.msra.mxu0 0.0
        %7577 = vmatprep.subr.mxu0 0.0
        %7578 = vmatpush1.msra.mxu0 0.0
        %7579 = vmatprep.subr.mxu0 0.0
        %7580 = vmatpush1.msra.mxu0 0.0
        %7581 = vmatprep.subr.mxu0 0.0
        %7582 = vmatpush1.msra.mxu0 0.0
        %7583 = vmatprep.subr.mxu0 0.0
        %7584 = vmatpush1.msra.mxu0 0.0
        %7585 = vmatprep.subr.mxu0 0.0
        %7586 = vmatpush1.msra.mxu0 0.0
        %7587 = vmatprep.subr.mxu0 0.0
        %7588 = vmatpush1.msra.mxu0 0.0
        %7589 = vmatprep.subr.mxu0 0.0
        %7590 = vmatpush1.msra.mxu0 0.0
        %7591 = vmatprep.subr.mxu0 0.0
        %7592 = vmatpush1.msra.mxu0 0.0
        %7593 = vmatprep.subr.mxu0 0.0
        %7594 = vmatpush1.msra.mxu0 0.0
        %7595 = vmatprep.subr.mxu0 0.0
        %7596 = vmatpush1.msra.mxu0 0.0
        %7597 = vmatprep.subr.mxu0 0.0
        %7598 = vmatpush1.msra.mxu0 0.0
        %7599 = vmatprep.subr.mxu0 0.0
        %7600 = vmatpush1.msra.mxu0 0.0
        %7601 = vmatprep.subr.mxu0 0.0
        %7602 = vmatpush1.msra.mxu0 0.0
        %7603 = vmatprep.subr.mxu0 0.0
        %7604 = vmatpush1.msra.mxu0 0.0
        %7605 = vmatprep.subr.mxu0 0.0
        %7606 = vmatpush1.msra.mxu0 0.0
        %7607 = vmatprep.subr.mxu0 0.0
        %7608 = vmatpush1.msra.mxu0 0.0
        %7609 = vmatprep.subr.mxu0 0.0
        %7610 = vmatpush1.msra.mxu0 0.0
        %7611 = vmatprep.subr.mxu0 0.0
        %7612 = vmatpush1.msra.mxu0 0.0
        %7613 = vmatprep.mubr.f32.mxu0 0.0
        %v7614 = vand.u32 %v7119, 4294901760
        %7615 = vmatmul.mubr.f32.gmra.mrb[0].mxu0 %v7614
        %v7616 = vpop.f32.mrb[0].mxu0
        %v7617 = vadd.f32 %v7538, %v7616
        %v7618 = vpop.f32.mrb[0].mxu0
        %7619 = vmatprep.mubr.f32.mxu0 0.0
        %v7620 = vand.u32 %v7122, 4294901760
        %7621 = vmatmul.mubr.f32.gmra.mrb[0].mxu0 %v7620
        %v7622 = vpop.f32.mrb[0].mxu0
        %v7623 = vadd.f32 %v7544, %v7622
        %v7624 = vpop.f32.mrb[0].mxu0
        %7625 = vdwg.mxu0
        %v7626 = vmul.f32 %v5586, %v5586
        %v7627 = vmul.f32 %v5587, %v5587
        %7628 = vmatprep.subr.mxu0 0.0
        %v7629 = vand.u32 %v7626, 4294901760
        %7630 = vmatpush1.msra.mxu0 %v7629
        %7631 = vmatprep.subr.mxu0 0.0
        %v7632 = vand.u32 %v7627, 4294901760
        %7633 = vmatpush1.msra.mxu0 %v7632
        %7634 = vmatprep.subr.mxu0 0.0
        %7635 = vmatpush1.msra.mxu0 0.0
        %7636 = vmatprep.subr.mxu0 0.0
        %7637 = vmatpush1.msra.mxu0 0.0
        %7638 = vmatprep.subr.mxu0 0.0
        %7639 = vmatpush1.msra.mxu0 0.0
        %7640 = vmatprep.subr.mxu0 0.0
        %7641 = vmatpush1.msra.mxu0 0.0
        %7642 = vmatprep.subr.mxu0 0.0
        %7643 = vmatpush1.msra.mxu0 0.0
        %7644 = vmatprep.subr.mxu0 0.0
        %7645 = vmatpush1.msra.mxu0 0.0
        %7646 = vmatprep.subr.mxu0 0.0
        %7647 = vmatpush1.msra.mxu0 0.0
        %7648 = vmatprep.subr.mxu0 0.0
        %7649 = vmatpush1.msra.mxu0 0.0
        %7650 = vmatprep.subr.mxu0 0.0
        %7651 = vmatpush1.msra.mxu0 0.0
        %7652 = vmatprep.subr.mxu0 0.0
        %7653 = vmatpush1.msra.mxu0 0.0
        %7654 = vmatprep.subr.mxu0 0.0
        %7655 = vmatpush1.msra.mxu0 0.0
        %7656 = vmatprep.subr.mxu0 0.0
        %7657 = vmatpush1.msra.mxu0 0.0
        %7658 = vmatprep.subr.mxu0 0.0
        %7659 = vmatpush1.msra.mxu0 0.0
        %7660 = vmatprep.subr.mxu0 0.0
        %7661 = vmatpush1.msra.mxu0 0.0
        %7662 = vmatprep.subr.mxu0 0.0
        %7663 = vmatpush1.msra.mxu0 0.0
        %7664 = vmatprep.subr.mxu0 0.0
        %7665 = vmatpush1.msra.mxu0 0.0
        %7666 = vmatprep.subr.mxu0 0.0
        %7667 = vmatpush1.msra.mxu0 0.0
        %7668 = vmatprep.subr.mxu0 0.0
        %7669 = vmatpush1.msra.mxu0 0.0
        %7670 = vmatprep.subr.mxu0 0.0
        %7671 = vmatpush1.msra.mxu0 0.0
        %7672 = vmatprep.subr.mxu0 0.0
        %7673 = vmatpush1.msra.mxu0 0.0
        %7674 = vmatprep.subr.mxu0 0.0
        %7675 = vmatpush1.msra.mxu0 0.0
        %7676 = vmatprep.subr.mxu0 0.0
        %7677 = vmatpush1.msra.mxu0 0.0
        %7678 = vmatprep.subr.mxu0 0.0
        %7679 = vmatpush1.msra.mxu0 0.0
        %7680 = vmatprep.subr.mxu0 0.0
        %7681 = vmatpush1.msra.mxu0 0.0
        %7682 = vmatprep.subr.mxu0 0.0
        %7683 = vmatpush1.msra.mxu0 0.0
        %7684 = vmatprep.subr.mxu0 0.0
        %7685 = vmatpush1.msra.mxu0 0.0
        %7686 = vmatprep.subr.mxu0 0.0
        %7687 = vmatpush1.msra.mxu0 0.0
        %7688 = vmatprep.subr.mxu0 0.0
        %7689 = vmatpush1.msra.mxu0 0.0
        %7690 = vmatprep.subr.mxu0 0.0
        %7691 = vmatpush1.msra.mxu0 0.0
        %7692 = vmatprep.subr.mxu0 0.0
        %7693 = vmatpush1.msra.mxu0 0.0
        %7694 = vmatprep.mubr.f32.mxu0 0.0
        %v7695 = vand.u32 %v477, 4294901760
        %v7696 = vsub.f32 %v477, %v7695
        %v7697 = vand.u32 %v7696, 4294901760
        %v7698 = vsub.f32 %v7696, %v7697
        %v7699 = vand.u32 %v7698, 4294901760
        %7700 = vmatmul.mubr.f32.gmra.mrb[0].mxu0 %v7699
        %v7701 = vpop.f32.mrb[0].mxu0
        %v7702 = vadd.f32 0.0, %v7701
        %v7703 = vpop.f32.mrb[0].mxu0
        %7704 = vmatprep.mubr.f32.mxu0 0.0
        %v7705 = vand.u32 %v480, 4294901760
        %v7706 = vsub.f32 %v480, %v7705
        %v7707 = vand.u32 %v7706, 4294901760
        %v7708 = vsub.f32 %v7706, %v7707
        %v7709 = vand.u32 %v7708, 4294901760
        %7710 = vmatmul.mubr.f32.gmra.mrb[0].mxu0 %v7709
        %v7711 = vpop.f32.mrb[0].mxu0
        %v7712 = vadd.f32 0.0, %v7711
        %v7713 = vpop.f32.mrb[0].mxu0
        %7714 = vdwg.mxu0
        %7715 = vmatprep.subr.mxu0 0.0
        %v7716 = vand.u32 %v7626, 4294901760
        %v7717 = vsub.f32 %v7626, %v7716
        %v7718 = vand.u32 %v7717, 4294901760
        %v7719 = vsub.f32 %v7717, %v7718
        %v7720 = vand.u32 %v7719, 4294901760
        %7721 = vmatpush1.msra.mxu0 %v7720
        %7722 = vmatprep.subr.mxu0 0.0
        %v7723 = vand.u32 %v7627, 4294901760
        %v7724 = vsub.f32 %v7627, %v7723
        %v7725 = vand.u32 %v7724, 4294901760
        %v7726 = vsub.f32 %v7724, %v7725
        %v7727 = vand.u32 %v7726, 4294901760
        %7728 = vmatpush1.msra.mxu0 %v7727
        %7729 = vmatprep.subr.mxu0 0.0
        %7730 = vmatpush1.msra.mxu0 0.0
        %7731 = vmatprep.subr.mxu0 0.0
        %7732 = vmatpush1.msra.mxu0 0.0
        %7733 = vmatprep.subr.mxu0 0.0
        %7734 = vmatpush1.msra.mxu0 0.0
        %7735 = vmatprep.subr.mxu0 0.0
        %7736 = vmatpush1.msra.mxu0 0.0
        %7737 = vmatprep.subr.mxu0 0.0
        %7738 = vmatpush1.msra.mxu0 0.0
        %7739 = vmatprep.subr.mxu0 0.0
        %7740 = vmatpush1.msra.mxu0 0.0
        %7741 = vmatprep.subr.mxu0 0.0
        %7742 = vmatpush1.msra.mxu0 0.0
        %7743 = vmatprep.subr.mxu0 0.0
        %7744 = vmatpush1.msra.mxu0 0.0
        %7745 = vmatprep.subr.mxu0 0.0
        %7746 = vmatpush1.msra.mxu0 0.0
        %7747 = vmatprep.subr.mxu0 0.0
        %7748 = vmatpush1.msra.mxu0 0.0
        %7749 = vmatprep.subr.mxu0 0.0
        %7750 = vmatpush1.msra.mxu0 0.0
        %7751 = vmatprep.subr.mxu0 0.0
        %7752 = vmatpush1.msra.mxu0 0.0
        %7753 = vmatprep.subr.mxu0 0.0
        %7754 = vmatpush1.msra.mxu0 0.0
        %7755 = vmatprep.subr.mxu0 0.0
        %7756 = vmatpush1.msra.mxu0 0.0
        %7757 = vmatprep.subr.mxu0 0.0
        %7758 = vmatpush1.msra.mxu0 0.0
        %7759 = vmatprep.subr.mxu0 0.0
        %7760 = vmatpush1.msra.mxu0 0.0
        %7761 = vmatprep.subr.mxu0 0.0
        %7762 = vmatpush1.msra.mxu0 0.0
        %7763 = vmatprep.subr.mxu0 0.0
        %7764 = vmatpush1.msra.mxu0 0.0
        %7765 = vmatprep.subr.mxu0 0.0
        %7766 = vmatpush1.msra.mxu0 0.0
        %7767 = vmatprep.subr.mxu0 0.0
        %7768 = vmatpush1.msra.mxu0 0.0
        %7769 = vmatprep.subr.mxu0 0.0
        %7770 = vmatpush1.msra.mxu0 0.0
        %7771 = vmatprep.subr.mxu0 0.0
        %7772 = vmatpush1.msra.mxu0 0.0
        %7773 = vmatprep.subr.mxu0 0.0
        %7774 = vmatpush1.msra.mxu0 0.0
        %7775 = vmatprep.subr.mxu0 0.0
        %7776 = vmatpush1.msra.mxu0 0.0
        %7777 = vmatprep.subr.mxu0 0.0
        %7778 = vmatpush1.msra.mxu0 0.0
        %7779 = vmatprep.subr.mxu0 0.0
        %7780 = vmatpush1.msra.mxu0 0.0
        %7781 = vmatprep.subr.mxu0 0.0
        %7782 = vmatpush1.msra.mxu0 0.0
        %7783 = vmatprep.subr.mxu0 0.0
        %7784 = vmatpush1.msra.mxu0 0.0
        %7785 = vmatprep.subr.mxu0 0.0
        %7786 = vmatpush1.msra.mxu0 0.0
        %7787 = vmatprep.subr.mxu0 0.0
        %7788 = vmatpush1.msra.mxu0 0.0
        %7789 = vmatprep.mubr.f32.mxu0 0.0
        %v7790 = vand.u32 %v477, 4294901760
        %7791 = vmatmul.mubr.f32.gmra.mrb[0].mxu0 %v7790
        %v7792 = vpop.f32.mrb[0].mxu0
        %v7793 = vadd.f32 %v7702, %v7792
        %v7794 = vpop.f32.mrb[0].mxu0
        %7795 = vmatprep.mubr.f32.mxu0 0.0
        %v7796 = vand.u32 %v480, 4294901760
        %7797 = vmatmul.mubr.f32.gmra.mrb[0].mxu0 %v7796
        %v7798 = vpop.f32.mrb[0].mxu0
        %v7799 = vadd.f32 %v7712, %v7798
        %v7800 = vpop.f32.mrb[0].mxu0
        %7801 = vdwg.mxu0
        %7802 = vmatprep.subr.mxu0 0.0
        %v7803 = vand.u32 %v7626, 4294901760
        %v7804 = vsub.f32 %v7626, %v7803
        %7805 = vmatpush1.msra.mxu0 %v7804
        %7806 = vmatprep.subr.mxu0 0.0
        %v7807 = vand.u32 %v7627, 4294901760
        %v7808 = vsub.f32 %v7627, %v7807
        %7809 = vmatpush1.msra.mxu0 %v7808
        %7810 = vmatprep.subr.mxu0 0.0
        %7811 = vmatpush1.msra.mxu0 0.0
        %7812 = vmatprep.subr.mxu0 0.0
        %7813 = vmatpush1.msra.mxu0 0.0
        %7814 = vmatprep.subr.mxu0 0.0
        %7815 = vmatpush1.msra.mxu0 0.0
        %7816 = vmatprep.subr.mxu0 0.0
        %7817 = vmatpush1.msra.mxu0 0.0
        %7818 = vmatprep.subr.mxu0 0.0
        %7819 = vmatpush1.msra.mxu0 0.0
        %7820 = vmatprep.subr.mxu0 0.0
        %7821 = vmatpush1.msra.mxu0 0.0
        %7822 = vmatprep.subr.mxu0 0.0
        %7823 = vmatpush1.msra.mxu0 0.0
        %7824 = vmatprep.subr.mxu0 0.0
        %7825 = vmatpush1.msra.mxu0 0.0
        %7826 = vmatprep.subr.mxu0 0.0
        %7827 = vmatpush1.msra.mxu0 0.0
        %7828 = vmatprep.subr.mxu0 0.0
        %7829 = vmatpush1.msra.mxu0 0.0
        %7830 = vmatprep.subr.mxu0 0.0
        %7831 = vmatpush1.msra.mxu0 0.0
        %7832 = vmatprep.subr.mxu0 0.0
        %7833 = vmatpush1.msra.mxu0 0.0
        %7834 = vmatprep.subr.mxu0 0.0
        %7835 = vmatpush1.msra.mxu0 0.0
        %7836 = vmatprep.subr.mxu0 0.0
        %7837 = vmatpush1.msra.mxu0 0.0
        %7838 = vmatprep.subr.mxu0 0.0
        %7839 = vmatpush1.msra.mxu0 0.0
        %7840 = vmatprep.subr.mxu0 0.0
        %7841 = vmatpush1.msra.mxu0 0.0
        %7842 = vmatprep.subr.mxu0 0.0
        %7843 = vmatpush1.msra.mxu0 0.0
        %7844 = vmatprep.subr.mxu0 0.0
        %7845 = vmatpush1.msra.mxu0 0.0
        %7846 = vmatprep.subr.mxu0 0.0
        %7847 = vmatpush1.msra.mxu0 0.0
        %7848 = vmatprep.subr.mxu0 0.0
        %7849 = vmatpush1.msra.mxu0 0.0
        %7850 = vmatprep.subr.mxu0 0.0
        %7851 = vmatpush1.msra.mxu0 0.0
        %7852 = vmatprep.subr.mxu0 0.0
        %7853 = vmatpush1.msra.mxu0 0.0
        %7854 = vmatprep.subr.mxu0 0.0
        %7855 = vmatpush1.msra.mxu0 0.0
        %7856 = vmatprep.subr.mxu0 0.0
        %7857 = vmatpush1.msra.mxu0 0.0
        %7858 = vmatprep.subr.mxu0 0.0
        %7859 = vmatpush1.msra.mxu0 0.0
        %7860 = vmatprep.subr.mxu0 0.0
        %7861 = vmatpush1.msra.mxu0 0.0
        %7862 = vmatprep.subr.mxu0 0.0
        %7863 = vmatpush1.msra.mxu0 0.0
        %7864 = vmatprep.subr.mxu0 0.0
        %7865 = vmatpush1.msra.mxu0 0.0
        %7866 = vmatprep.subr.mxu0 0.0
        %7867 = vmatpush1.msra.mxu0 0.0
        %7868 = vmatprep.subr.mxu0 0.0
        %7869 = vmatpush1.msra.mxu0 0.0
        %7870 = vmatprep.mubr.f32.mxu0 0.0
        %v7871 = vand.u32 %v477, 4294901760
        %v7872 = vsub.f32 %v477, %v7871
        %7873 = vmatmul.mubr.f32.gmra.mrb[0].mxu0 %v7872
        %v7874 = vpop.f32.mrb[0].mxu0
        %v7875 = vadd.f32 %v7793, %v7874
        %v7876 = vpop.f32.mrb[0].mxu0
        %7877 = vmatprep.mubr.f32.mxu0 0.0
        %v7878 = vand.u32 %v480, 4294901760
        %v7879 = vsub.f32 %v480, %v7878
        %7880 = vmatmul.mubr.f32.gmra.mrb[0].mxu0 %v7879
        %v7881 = vpop.f32.mrb[0].mxu0
        %v7882 = vadd.f32 %v7799, %v7881
        %v7883 = vpop.f32.mrb[0].mxu0
        %7884 = vdwg.mxu0
        %7885 = vmatprep.subr.mxu0 0.0
        %v7886 = vand.u32 %v7626, 4294901760
        %7887 = vmatpush1.msra.mxu0 %v7886
        %7888 = vmatprep.subr.mxu0 0.0
        %v7889 = vand.u32 %v7627, 4294901760
        %7890 = vmatpush1.msra.mxu0 %v7889
        %7891 = vmatprep.subr.mxu0 0.0
        %7892 = vmatpush1.msra.mxu0 0.0
        %7893 = vmatprep.subr.mxu0 0.0
        %7894 = vmatpush1.msra.mxu0 0.0
        %7895 = vmatprep.subr.mxu0 0.0
        %7896 = vmatpush1.msra.mxu0 0.0
        %7897 = vmatprep.subr.mxu0 0.0
        %7898 = vmatpush1.msra.mxu0 0.0
        %7899 = vmatprep.subr.mxu0 0.0
        %7900 = vmatpush1.msra.mxu0 0.0
        %7901 = vmatprep.subr.mxu0 0.0
        %7902 = vmatpush1.msra.mxu0 0.0
        %7903 = vmatprep.subr.mxu0 0.0
        %7904 = vmatpush1.msra.mxu0 0.0
        %7905 = vmatprep.subr.mxu0 0.0
        %7906 = vmatpush1.msra.mxu0 0.0
        %7907 = vmatprep.subr.mxu0 0.0
        %7908 = vmatpush1.msra.mxu0 0.0
        %7909 = vmatprep.subr.mxu0 0.0
        %7910 = vmatpush1.msra.mxu0 0.0
        %7911 = vmatprep.subr.mxu0 0.0
        %7912 = vmatpush1.msra.mxu0 0.0
        %7913 = vmatprep.subr.mxu0 0.0
        %7914 = vmatpush1.msra.mxu0 0.0
        %7915 = vmatprep.subr.mxu0 0.0
        %7916 = vmatpush1.msra.mxu0 0.0
        %7917 = vmatprep.subr.mxu0 0.0
        %7918 = vmatpush1.msra.mxu0 0.0
        %7919 = vmatprep.subr.mxu0 0.0
        %7920 = vmatpush1.msra.mxu0 0.0
        %7921 = vmatprep.subr.mxu0 0.0
        %7922 = vmatpush1.msra.mxu0 0.0
        %7923 = vmatprep.subr.mxu0 0.0
        %7924 = vmatpush1.msra.mxu0 0.0
        %7925 = vmatprep.subr.mxu0 0.0
        %7926 = vmatpush1.msra.mxu0 0.0
        %7927 = vmatprep.subr.mxu0 0.0
        %7928 = vmatpush1.msra.mxu0 0.0
        %7929 = vmatprep.subr.mxu0 0.0
        %7930 = vmatpush1.msra.mxu0 0.0
        %7931 = vmatprep.subr.mxu0 0.0
        %7932 = vmatpush1.msra.mxu0 0.0
        %7933 = vmatprep.subr.mxu0 0.0
        %7934 = vmatpush1.msra.mxu0 0.0
        %7935 = vmatprep.subr.mxu0 0.0
        %7936 = vmatpush1.msra.mxu0 0.0
        %7937 = vmatprep.subr.mxu0 0.0
        %7938 = vmatpush1.msra.mxu0 0.0
        %7939 = vmatprep.subr.mxu0 0.0
        %7940 = vmatpush1.msra.mxu0 0.0
        %7941 = vmatprep.subr.mxu0 0.0
        %7942 = vmatpush1.msra.mxu0 0.0
        %7943 = vmatprep.subr.mxu0 0.0
        %7944 = vmatpush1.msra.mxu0 0.0
        %7945 = vmatprep.subr.mxu0 0.0
        %7946 = vmatpush1.msra.mxu0 0.0
        %7947 = vmatprep.subr.mxu0 0.0
        %7948 = vmatpush1.msra.mxu0 0.0
        %7949 = vmatprep.subr.mxu0 0.0
        %7950 = vmatpush1.msra.mxu0 0.0
        %7951 = vmatprep.mubr.f32.mxu0 0.0
        %v7952 = vand.u32 %v477, 4294901760
        %v7953 = vsub.f32 %v477, %v7952
        %v7954 = vand.u32 %v7953, 4294901760
        %7955 = vmatmul.mubr.f32.gmra.mrb[0].mxu0 %v7954
        %v7956 = vpop.f32.mrb[0].mxu0
        %v7957 = vadd.f32 %v7875, %v7956
        %v7958 = vpop.f32.mrb[0].mxu0
        %7959 = vmatprep.mubr.f32.mxu0 0.0
        %v7960 = vand.u32 %v480, 4294901760
        %v7961 = vsub.f32 %v480, %v7960
        %v7962 = vand.u32 %v7961, 4294901760
        %7963 = vmatmul.mubr.f32.gmra.mrb[0].mxu0 %v7962
        %v7964 = vpop.f32.mrb[0].mxu0
        %v7965 = vadd.f32 %v7882, %v7964
        %v7966 = vpop.f32.mrb[0].mxu0
        %7967 = vdwg.mxu0
        %7968 = vmatprep.subr.mxu0 0.0
        %v7969 = vand.u32 %v7626, 4294901760
        %v7970 = vsub.f32 %v7626, %v7969
        %v7971 = vand.u32 %v7970, 4294901760
        %7972 = vmatpush1.msra.mxu0 %v7971
        %7973 = vmatprep.subr.mxu0 0.0
        %v7974 = vand.u32 %v7627, 4294901760
        %v7975 = vsub.f32 %v7627, %v7974
        %v7976 = vand.u32 %v7975, 4294901760
        %7977 = vmatpush1.msra.mxu0 %v7976
        %7978 = vmatprep.subr.mxu0 0.0
        %7979 = vmatpush1.msra.mxu0 0.0
        %7980 = vmatprep.subr.mxu0 0.0
        %7981 = vmatpush1.msra.mxu0 0.0
        %7982 = vmatprep.subr.mxu0 0.0
        %7983 = vmatpush1.msra.mxu0 0.0
        %7984 = vmatprep.subr.mxu0 0.0
        %7985 = vmatpush1.msra.mxu0 0.0
        %7986 = vmatprep.subr.mxu0 0.0
        %7987 = vmatpush1.msra.mxu0 0.0
        %7988 = vmatprep.subr.mxu0 0.0
        %7989 = vmatpush1.msra.mxu0 0.0
        %7990 = vmatprep.subr.mxu0 0.0
        %7991 = vmatpush1.msra.mxu0 0.0
        %7992 = vmatprep.subr.mxu0 0.0
        %7993 = vmatpush1.msra.mxu0 0.0
        %7994 = vmatprep.subr.mxu0 0.0
        %7995 = vmatpush1.msra.mxu0 0.0
        %7996 = vmatprep.subr.mxu0 0.0
        %7997 = vmatpush1.msra.mxu0 0.0
        %7998 = vmatprep.subr.mxu0 0.0
        %7999 = vmatpush1.msra.mxu0 0.0
        %8000 = vmatprep.subr.mxu0 0.0
        %8001 = vmatpush1.msra.mxu0 0.0
        %8002 = vmatprep.subr.mxu0 0.0
        %8003 = vmatpush1.msra.mxu0 0.0
        %8004 = vmatprep.subr.mxu0 0.0
        %8005 = vmatpush1.msra.mxu0 0.0
        %8006 = vmatprep.subr.mxu0 0.0
        %8007 = vmatpush1.msra.mxu0 0.0
        %8008 = vmatprep.subr.mxu0 0.0
        %8009 = vmatpush1.msra.mxu0 0.0
        %8010 = vmatprep.subr.mxu0 0.0
        %8011 = vmatpush1.msra.mxu0 0.0
        %8012 = vmatprep.subr.mxu0 0.0
        %8013 = vmatpush1.msra.mxu0 0.0
        %8014 = vmatprep.subr.mxu0 0.0
        %8015 = vmatpush1.msra.mxu0 0.0
        %8016 = vmatprep.subr.mxu0 0.0
        %8017 = vmatpush1.msra.mxu0 0.0
        %8018 = vmatprep.subr.mxu0 0.0
        %8019 = vmatpush1.msra.mxu0 0.0
        %8020 = vmatprep.subr.mxu0 0.0
        %8021 = vmatpush1.msra.mxu0 0.0
        %8022 = vmatprep.subr.mxu0 0.0
        %8023 = vmatpush1.msra.mxu0 0.0
        %8024 = vmatprep.subr.mxu0 0.0
        %8025 = vmatpush1.msra.mxu0 0.0
        %8026 = vmatprep.subr.mxu0 0.0
        %8027 = vmatpush1.msra.mxu0 0.0
        %8028 = vmatprep.subr.mxu0 0.0
        %8029 = vmatpush1.msra.mxu0 0.0
        %8030 = vmatprep.subr.mxu0 0.0
        %8031 = vmatpush1.msra.mxu0 0.0
        %8032 = vmatprep.subr.mxu0 0.0
        %8033 = vmatpush1.msra.mxu0 0.0
        %8034 = vmatprep.subr.mxu0 0.0
        %8035 = vmatpush1.msra.mxu0 0.0
        %8036 = vmatprep.subr.mxu0 0.0
        %8037 = vmatpush1.msra.mxu0 0.0
        %8038 = vmatprep.mubr.f32.mxu0 0.0
        %v8039 = vand.u32 %v477, 4294901760
        %8040 = vmatmul.mubr.f32.gmra.mrb[0].mxu0 %v8039
        %v8041 = vpop.f32.mrb[0].mxu0
        %v8042 = vadd.f32 %v7957, %v8041
        %v8043 = vpop.f32.mrb[0].mxu0
        %8044 = vmatprep.mubr.f32.mxu0 0.0
        %v8045 = vand.u32 %v480, 4294901760
        %8046 = vmatmul.mubr.f32.gmra.mrb[0].mxu0 %v8045
        %v8047 = vpop.f32.mrb[0].mxu0
        %v8048 = vadd.f32 %v7965, %v8047
        %v8049 = vpop.f32.mrb[0].mxu0
        %8050 = vdwg.mxu0
        %8051 = vmatprep.subr.mxu0 0.0
        %v8052 = vand.u32 %v7626, 4294901760
        %8053 = vmatpush1.msra.mxu0 %v8052
        %8054 = vmatprep.subr.mxu0 0.0
        %v8055 = vand.u32 %v7627, 4294901760
        %8056 = vmatpush1.msra.mxu0 %v8055
        %8057 = vmatprep.subr.mxu0 0.0
        %8058 = vmatpush1.msra.mxu0 0.0
        %8059 = vmatprep.subr.mxu0 0.0
        %8060 = vmatpush1.msra.mxu0 0.0
        %8061 = vmatprep.subr.mxu0 0.0
        %8062 = vmatpush1.msra.mxu0 0.0
        %8063 = vmatprep.subr.mxu0 0.0
        %8064 = vmatpush1.msra.mxu0 0.0
        %8065 = vmatprep.subr.mxu0 0.0
        %8066 = vmatpush1.msra.mxu0 0.0
        %8067 = vmatprep.subr.mxu0 0.0
        %8068 = vmatpush1.msra.mxu0 0.0
        %8069 = vmatprep.subr.mxu0 0.0
        %8070 = vmatpush1.msra.mxu0 0.0
        %8071 = vmatprep.subr.mxu0 0.0
        %8072 = vmatpush1.msra.mxu0 0.0
        %8073 = vmatprep.subr.mxu0 0.0
        %8074 = vmatpush1.msra.mxu0 0.0
        %8075 = vmatprep.subr.mxu0 0.0
        %8076 = vmatpush1.msra.mxu0 0.0
        %8077 = vmatprep.subr.mxu0 0.0
        %8078 = vmatpush1.msra.mxu0 0.0
        %8079 = vmatprep.subr.mxu0 0.0
        %8080 = vmatpush1.msra.mxu0 0.0
        %8081 = vmatprep.subr.mxu0 0.0
        %8082 = vmatpush1.msra.mxu0 0.0
        %8083 = vmatprep.subr.mxu0 0.0
        %8084 = vmatpush1.msra.mxu0 0.0
        %8085 = vmatprep.subr.mxu0 0.0
        %8086 = vmatpush1.msra.mxu0 0.0
        %8087 = vmatprep.subr.mxu0 0.0
        %8088 = vmatpush1.msra.mxu0 0.0
        %8089 = vmatprep.subr.mxu0 0.0
        %8090 = vmatpush1.msra.mxu0 0.0
        %8091 = vmatprep.subr.mxu0 0.0
        %8092 = vmatpush1.msra.mxu0 0.0
        %8093 = vmatprep.subr.mxu0 0.0
        %8094 = vmatpush1.msra.mxu0 0.0
        %8095 = vmatprep.subr.mxu0 0.0
        %8096 = vmatpush1.msra.mxu0 0.0
        %8097 = vmatprep.subr.mxu0 0.0
        %8098 = vmatpush1.msra.mxu0 0.0
        %8099 = vmatprep.subr.mxu0 0.0
        %8100 = vmatpush1.msra.mxu0 0.0
        %8101 = vmatprep.subr.mxu0 0.0
        %8102 = vmatpush1.msra.mxu0 0.0
        %8103 = vmatprep.subr.mxu0 0.0
        %8104 = vmatpush1.msra.mxu0 0.0
        %8105 = vmatprep.subr.mxu0 0.0
        %8106 = vmatpush1.msra.mxu0 0.0
        %8107 = vmatprep.subr.mxu0 0.0
        %8108 = vmatpush1.msra.mxu0 0.0
        %8109 = vmatprep.subr.mxu0 0.0
        %8110 = vmatpush1.msra.mxu0 0.0
        %8111 = vmatprep.subr.mxu0 0.0
        %8112 = vmatpush1.msra.mxu0 0.0
        %8113 = vmatprep.subr.mxu0 0.0
        %8114 = vmatpush1.msra.mxu0 0.0
        %8115 = vmatprep.subr.mxu0 0.0
        %8116 = vmatpush1.msra.mxu0 0.0
        %8117 = vmatprep.mubr.f32.mxu0 0.0
        %v8118 = vand.u32 %v477, 4294901760
        %8119 = vmatmul.mubr.f32.gmra.mrb[0].mxu0 %v8118
        %v8120 = vpop.f32.mrb[0].mxu0
        %v8121 = vadd.f32 %v8042, %v8120
        %v8122 = vpop.f32.mrb[0].mxu0
        %8123 = vmatprep.mubr.f32.mxu0 0.0
        %v8124 = vand.u32 %v480, 4294901760
        %8125 = vmatmul.mubr.f32.gmra.mrb[0].mxu0 %v8124
        %v8126 = vpop.f32.mrb[0].mxu0
        %v8127 = vadd.f32 %v8048, %v8126
        %v8128 = vpop.f32.mrb[0].mxu0
        %8129 = vdwg.mxu0
        %v8131 = vsel %vm463, %v8121, 0
        %v8134 = vsel %vm463, %v8127, 0
        %8136 = vmatprep.subr.mxu0 0.0
        %v8137 = vand.u32 %v453, 4294901760
        %8138 = vmatpush1.msra.mxu0 %v8137
        %8139 = vmatprep.subr.mxu0 0.0
        %v8140 = vand.u32 %v454, 4294901760
        %8141 = vmatpush1.msra.mxu0 %v8140
        %8142 = vmatprep.subr.mxu0 0.0
        %8143 = vmatpush1.msra.mxu0 0.0
        %8144 = vmatprep.subr.mxu0 0.0
        %8145 = vmatpush1.msra.mxu0 0.0
        %8146 = vmatprep.subr.mxu0 0.0
        %8147 = vmatpush1.msra.mxu0 0.0
        %8148 = vmatprep.subr.mxu0 0.0
        %8149 = vmatpush1.msra.mxu0 0.0
        %8150 = vmatprep.subr.mxu0 0.0
        %8151 = vmatpush1.msra.mxu0 0.0
        %8152 = vmatprep.subr.mxu0 0.0
        %8153 = vmatpush1.msra.mxu0 0.0
        %8154 = vmatprep.subr.mxu0 0.0
        %8155 = vmatpush1.msra.mxu0 0.0
        %8156 = vmatprep.subr.mxu0 0.0
        %8157 = vmatpush1.msra.mxu0 0.0
        %8158 = vmatprep.subr.mxu0 0.0
        %8159 = vmatpush1.msra.mxu0 0.0
        %8160 = vmatprep.subr.mxu0 0.0
        %8161 = vmatpush1.msra.mxu0 0.0
        %8162 = vmatprep.subr.mxu0 0.0
        %8163 = vmatpush1.msra.mxu0 0.0
        %8164 = vmatprep.subr.mxu0 0.0
        %8165 = vmatpush1.msra.mxu0 0.0
        %8166 = vmatprep.subr.mxu0 0.0
        %8167 = vmatpush1.msra.mxu0 0.0
        %8168 = vmatprep.subr.mxu0 0.0
        %8169 = vmatpush1.msra.mxu0 0.0
        %8170 = vmatprep.subr.mxu0 0.0
        %8171 = vmatpush1.msra.mxu0 0.0
        %8172 = vmatprep.subr.mxu0 0.0
        %8173 = vmatpush1.msra.mxu0 0.0
        %8174 = vmatprep.subr.mxu0 0.0
        %8175 = vmatpush1.msra.mxu0 0.0
        %8176 = vmatprep.subr.mxu0 0.0
        %8177 = vmatpush1.msra.mxu0 0.0
        %8178 = vmatprep.subr.mxu0 0.0
        %8179 = vmatpush1.msra.mxu0 0.0
        %8180 = vmatprep.subr.mxu0 0.0
        %8181 = vmatpush1.msra.mxu0 0.0
        %8182 = vmatprep.subr.mxu0 0.0
        %8183 = vmatpush1.msra.mxu0 0.0
        %8184 = vmatprep.subr.mxu0 0.0
        %8185 = vmatpush1.msra.mxu0 0.0
        %8186 = vmatprep.subr.mxu0 0.0
        %8187 = vmatpush1.msra.mxu0 0.0
        %8188 = vmatprep.subr.mxu0 0.0
        %8189 = vmatpush1.msra.mxu0 0.0
        %8190 = vmatprep.subr.mxu0 0.0
        %8191 = vmatpush1.msra.mxu0 0.0
        %8192 = vmatprep.subr.mxu0 0.0
        %8193 = vmatpush1.msra.mxu0 0.0
        %8194 = vmatprep.subr.mxu0 0.0
        %8195 = vmatpush1.msra.mxu0 0.0
        %8196 = vmatprep.subr.mxu0 0.0
        %8197 = vmatpush1.msra.mxu0 0.0
        %8198 = vmatprep.subr.mxu0 0.0
        %8199 = vmatpush1.msra.mxu0 0.0
        %8200 = vmatprep.subr.mxu0 0.0
        %8201 = vmatpush1.msra.mxu0 0.0
        %8202 = vmatprep.mubr.f32.mxu0 0.0
        %v8203 = vand.u32 %v8131, 4294901760
        %v8204 = vsub.f32 %v8131, %v8203
        %v8205 = vand.u32 %v8204, 4294901760
        %v8206 = vsub.f32 %v8204, %v8205
        %v8207 = vand.u32 %v8206, 4294901760
        %8208 = vmatmul.mubr.f32.gmra.mrb[0].mxu0 %v8207
        %v8209 = vpop.f32.mrb[0].mxu0
        %v8210 = vadd.f32 0.0, %v8209
        %v8211 = vpop.f32.mrb[0].mxu0
        %8212 = vmatprep.mubr.f32.mxu0 0.0
        %v8213 = vand.u32 %v8134, 4294901760
        %v8214 = vsub.f32 %v8134, %v8213
        %v8215 = vand.u32 %v8214, 4294901760
        %v8216 = vsub.f32 %v8214, %v8215
        %v8217 = vand.u32 %v8216, 4294901760
        %8218 = vmatmul.mubr.f32.gmra.mrb[0].mxu0 %v8217
        %v8219 = vpop.f32.mrb[0].mxu0
        %v8220 = vadd.f32 0.0, %v8219
        %v8221 = vpop.f32.mrb[0].mxu0
        %8222 = vdwg.mxu0
        %8223 = vmatprep.subr.mxu0 0.0
        %v8224 = vand.u32 %v453, 4294901760
        %v8225 = vsub.f32 %v453, %v8224
        %v8226 = vand.u32 %v8225, 4294901760
        %v8227 = vsub.f32 %v8225, %v8226
        %v8228 = vand.u32 %v8227, 4294901760
        %8229 = vmatpush1.msra.mxu0 %v8228
        %8230 = vmatprep.subr.mxu0 0.0
        %v8231 = vand.u32 %v454, 4294901760
        %v8232 = vsub.f32 %v454, %v8231
        %v8233 = vand.u32 %v8232, 4294901760
        %v8234 = vsub.f32 %v8232, %v8233
        %v8235 = vand.u32 %v8234, 4294901760
        %8236 = vmatpush1.msra.mxu0 %v8235
        %8237 = vmatprep.subr.mxu0 0.0
        %8238 = vmatpush1.msra.mxu0 0.0
        %8239 = vmatprep.subr.mxu0 0.0
        %8240 = vmatpush1.msra.mxu0 0.0
        %8241 = vmatprep.subr.mxu0 0.0
        %8242 = vmatpush1.msra.mxu0 0.0
        %8243 = vmatprep.subr.mxu0 0.0
        %8244 = vmatpush1.msra.mxu0 0.0
        %8245 = vmatprep.subr.mxu0 0.0
        %8246 = vmatpush1.msra.mxu0 0.0
        %8247 = vmatprep.subr.mxu0 0.0
        %8248 = vmatpush1.msra.mxu0 0.0
        %8249 = vmatprep.subr.mxu0 0.0
        %8250 = vmatpush1.msra.mxu0 0.0
        %8251 = vmatprep.subr.mxu0 0.0
        %8252 = vmatpush1.msra.mxu0 0.0
        %8253 = vmatprep.subr.mxu0 0.0
        %8254 = vmatpush1.msra.mxu0 0.0
        %8255 = vmatprep.subr.mxu0 0.0
        %8256 = vmatpush1.msra.mxu0 0.0
        %8257 = vmatprep.subr.mxu0 0.0
        %8258 = vmatpush1.msra.mxu0 0.0
        %8259 = vmatprep.subr.mxu0 0.0
        %8260 = vmatpush1.msra.mxu0 0.0
        %8261 = vmatprep.subr.mxu0 0.0
        %8262 = vmatpush1.msra.mxu0 0.0
        %8263 = vmatprep.subr.mxu0 0.0
        %8264 = vmatpush1.msra.mxu0 0.0
        %8265 = vmatprep.subr.mxu0 0.0
        %8266 = vmatpush1.msra.mxu0 0.0
        %8267 = vmatprep.subr.mxu0 0.0
        %8268 = vmatpush1.msra.mxu0 0.0
        %8269 = vmatprep.subr.mxu0 0.0
        %8270 = vmatpush1.msra.mxu0 0.0
        %8271 = vmatprep.subr.mxu0 0.0
        %8272 = vmatpush1.msra.mxu0 0.0
        %8273 = vmatprep.subr.mxu0 0.0
        %8274 = vmatpush1.msra.mxu0 0.0
        %8275 = vmatprep.subr.mxu0 0.0
        %8276 = vmatpush1.msra.mxu0 0.0
        %8277 = vmatprep.subr.mxu0 0.0
        %8278 = vmatpush1.msra.mxu0 0.0
        %8279 = vmatprep.subr.mxu0 0.0
        %8280 = vmatpush1.msra.mxu0 0.0
        %8281 = vmatprep.subr.mxu0 0.0
        %8282 = vmatpush1.msra.mxu0 0.0
        %8283 = vmatprep.subr.mxu0 0.0
        %8284 = vmatpush1.msra.mxu0 0.0
        %8285 = vmatprep.subr.mxu0 0.0
        %8286 = vmatpush1.msra.mxu0 0.0
        %8287 = vmatprep.subr.mxu0 0.0
        %8288 = vmatpush1.msra.mxu0 0.0
        %8289 = vmatprep.subr.mxu0 0.0
        %8290 = vmatpush1.msra.mxu0 0.0
        %8291 = vmatprep.subr.mxu0 0.0
        %8292 = vmatpush1.msra.mxu0 0.0
        %8293 = vmatprep.subr.mxu0 0.0
        %8294 = vmatpush1.msra.mxu0 0.0
        %8295 = vmatprep.subr.mxu0 0.0
        %8296 = vmatpush1.msra.mxu0 0.0
        %8297 = vmatprep.mubr.f32.mxu0 0.0
        %v8298 = vand.u32 %v8131, 4294901760
        %8299 = vmatmul.mubr.f32.gmra.mrb[0].mxu0 %v8298
        %v8300 = vpop.f32.mrb[0].mxu0
        %v8301 = vadd.f32 %v8210, %v8300
        %v8302 = vpop.f32.mrb[0].mxu0
        %8303 = vmatprep.mubr.f32.mxu0 0.0
        %v8304 = vand.u32 %v8134, 4294901760
        %8305 = vmatmul.mubr.f32.gmra.mrb[0].mxu0 %v8304
        %v8306 = vpop.f32.mrb[0].mxu0
        %v8307 = vadd.f32 %v8220, %v8306
        %v8308 = vpop.f32.mrb[0].mxu0
        %8309 = vdwg.mxu0
        %8310 = vmatprep.subr.mxu0 0.0
        %v8311 = vand.u32 %v453, 4294901760
        %v8312 = vsub.f32 %v453, %v8311
        %8313 = vmatpush1.msra.mxu0 %v8312
        %8314 = vmatprep.subr.mxu0 0.0
        %v8315 = vand.u32 %v454, 4294901760
        %v8316 = vsub.f32 %v454, %v8315
        %8317 = vmatpush1.msra.mxu0 %v8316
        %8318 = vmatprep.subr.mxu0 0.0
        %8319 = vmatpush1.msra.mxu0 0.0
        %8320 = vmatprep.subr.mxu0 0.0
        %8321 = vmatpush1.msra.mxu0 0.0
        %8322 = vmatprep.subr.mxu0 0.0
        %8323 = vmatpush1.msra.mxu0 0.0
        %8324 = vmatprep.subr.mxu0 0.0
        %8325 = vmatpush1.msra.mxu0 0.0
        %8326 = vmatprep.subr.mxu0 0.0
        %8327 = vmatpush1.msra.mxu0 0.0
        %8328 = vmatprep.subr.mxu0 0.0
        %8329 = vmatpush1.msra.mxu0 0.0
        %8330 = vmatprep.subr.mxu0 0.0
        %8331 = vmatpush1.msra.mxu0 0.0
        %8332 = vmatprep.subr.mxu0 0.0
        %8333 = vmatpush1.msra.mxu0 0.0
        %8334 = vmatprep.subr.mxu0 0.0
        %8335 = vmatpush1.msra.mxu0 0.0
        %8336 = vmatprep.subr.mxu0 0.0
        %8337 = vmatpush1.msra.mxu0 0.0
        %8338 = vmatprep.subr.mxu0 0.0
        %8339 = vmatpush1.msra.mxu0 0.0
        %8340 = vmatprep.subr.mxu0 0.0
        %8341 = vmatpush1.msra.mxu0 0.0
        %8342 = vmatprep.subr.mxu0 0.0
        %8343 = vmatpush1.msra.mxu0 0.0
        %8344 = vmatprep.subr.mxu0 0.0
        %8345 = vmatpush1.msra.mxu0 0.0
        %8346 = vmatprep.subr.mxu0 0.0
        %8347 = vmatpush1.msra.mxu0 0.0
        %8348 = vmatprep.subr.mxu0 0.0
        %8349 = vmatpush1.msra.mxu0 0.0
        %8350 = vmatprep.subr.mxu0 0.0
        %8351 = vmatpush1.msra.mxu0 0.0
        %8352 = vmatprep.subr.mxu0 0.0
        %8353 = vmatpush1.msra.mxu0 0.0
        %8354 = vmatprep.subr.mxu0 0.0
        %8355 = vmatpush1.msra.mxu0 0.0
        %8356 = vmatprep.subr.mxu0 0.0
        %8357 = vmatpush1.msra.mxu0 0.0
        %8358 = vmatprep.subr.mxu0 0.0
        %8359 = vmatpush1.msra.mxu0 0.0
        %8360 = vmatprep.subr.mxu0 0.0
        %8361 = vmatpush1.msra.mxu0 0.0
        %8362 = vmatprep.subr.mxu0 0.0
        %8363 = vmatpush1.msra.mxu0 0.0
        %8364 = vmatprep.subr.mxu0 0.0
        %8365 = vmatpush1.msra.mxu0 0.0
        %8366 = vmatprep.subr.mxu0 0.0
        %8367 = vmatpush1.msra.mxu0 0.0
        %8368 = vmatprep.subr.mxu0 0.0
        %8369 = vmatpush1.msra.mxu0 0.0
        %8370 = vmatprep.subr.mxu0 0.0
        %8371 = vmatpush1.msra.mxu0 0.0
        %8372 = vmatprep.subr.mxu0 0.0
        %8373 = vmatpush1.msra.mxu0 0.0
        %8374 = vmatprep.subr.mxu0 0.0
        %8375 = vmatpush1.msra.mxu0 0.0
        %8376 = vmatprep.subr.mxu0 0.0
        %8377 = vmatpush1.msra.mxu0 0.0
        %8378 = vmatprep.mubr.f32.mxu0 0.0
        %v8379 = vand.u32 %v8131, 4294901760
        %v8380 = vsub.f32 %v8131, %v8379
        %8381 = vmatmul.mubr.f32.gmra.mrb[0].mxu0 %v8380
        %v8382 = vpop.f32.mrb[0].mxu0
        %v8383 = vadd.f32 %v8301, %v8382
        %v8384 = vpop.f32.mrb[0].mxu0
        %8385 = vmatprep.mubr.f32.mxu0 0.0
        %v8386 = vand.u32 %v8134, 4294901760
        %v8387 = vsub.f32 %v8134, %v8386
        %8388 = vmatmul.mubr.f32.gmra.mrb[0].mxu0 %v8387
        %v8389 = vpop.f32.mrb[0].mxu0
        %v8390 = vadd.f32 %v8307, %v8389
        %v8391 = vpop.f32.mrb[0].mxu0
        %8392 = vdwg.mxu0
        %8393 = vmatprep.subr.mxu0 0.0
        %v8394 = vand.u32 %v453, 4294901760
        %8395 = vmatpush1.msra.mxu0 %v8394
        %8396 = vmatprep.subr.mxu0 0.0
        %v8397 = vand.u32 %v454, 4294901760
        %8398 = vmatpush1.msra.mxu0 %v8397
        %8399 = vmatprep.subr.mxu0 0.0
        %8400 = vmatpush1.msra.mxu0 0.0
        %8401 = vmatprep.subr.mxu0 0.0
        %8402 = vmatpush1.msra.mxu0 0.0
        %8403 = vmatprep.subr.mxu0 0.0
        %8404 = vmatpush1.msra.mxu0 0.0
        %8405 = vmatprep.subr.mxu0 0.0
        %8406 = vmatpush1.msra.mxu0 0.0
        %8407 = vmatprep.subr.mxu0 0.0
        %8408 = vmatpush1.msra.mxu0 0.0
        %8409 = vmatprep.subr.mxu0 0.0
        %8410 = vmatpush1.msra.mxu0 0.0
        %8411 = vmatprep.subr.mxu0 0.0
        %8412 = vmatpush1.msra.mxu0 0.0
        %8413 = vmatprep.subr.mxu0 0.0
        %8414 = vmatpush1.msra.mxu0 0.0
        %8415 = vmatprep.subr.mxu0 0.0
        %8416 = vmatpush1.msra.mxu0 0.0
        %8417 = vmatprep.subr.mxu0 0.0
        %8418 = vmatpush1.msra.mxu0 0.0
        %8419 = vmatprep.subr.mxu0 0.0
        %8420 = vmatpush1.msra.mxu0 0.0
        %8421 = vmatprep.subr.mxu0 0.0
        %8422 = vmatpush1.msra.mxu0 0.0
        %8423 = vmatprep.subr.mxu0 0.0
        %8424 = vmatpush1.msra.mxu0 0.0
        %8425 = vmatprep.subr.mxu0 0.0
        %8426 = vmatpush1.msra.mxu0 0.0
        %8427 = vmatprep.subr.mxu0 0.0
        %8428 = vmatpush1.msra.mxu0 0.0
        %8429 = vmatprep.subr.mxu0 0.0
        %8430 = vmatpush1.msra.mxu0 0.0
        %8431 = vmatprep.subr.mxu0 0.0
        %8432 = vmatpush1.msra.mxu0 0.0
        %8433 = vmatprep.subr.mxu0 0.0
        %8434 = vmatpush1.msra.mxu0 0.0
        %8435 = vmatprep.subr.mxu0 0.0
        %8436 = vmatpush1.msra.mxu0 0.0
        %8437 = vmatprep.subr.mxu0 0.0
        %8438 = vmatpush1.msra.mxu0 0.0
        %8439 = vmatprep.subr.mxu0 0.0
        %8440 = vmatpush1.msra.mxu0 0.0
        %8441 = vmatprep.subr.mxu0 0.0
        %8442 = vmatpush1.msra.mxu0 0.0
        %8443 = vmatprep.subr.mxu0 0.0
        %8444 = vmatpush1.msra.mxu0 0.0
        %8445 = vmatprep.subr.mxu0 0.0
        %8446 = vmatpush1.msra.mxu0 0.0
        %8447 = vmatprep.subr.mxu0 0.0
        %8448 = vmatpush1.msra.mxu0 0.0
        %8449 = vmatprep.subr.mxu0 0.0
        %8450 = vmatpush1.msra.mxu0 0.0
        %8451 = vmatprep.subr.mxu0 0.0
        %8452 = vmatpush1.msra.mxu0 0.0
        %8453 = vmatprep.subr.mxu0 0.0
        %8454 = vmatpush1.msra.mxu0 0.0
        %8455 = vmatprep.subr.mxu0 0.0
        %8456 = vmatpush1.msra.mxu0 0.0
        %8457 = vmatprep.subr.mxu0 0.0
        %8458 = vmatpush1.msra.mxu0 0.0
        %8459 = vmatprep.mubr.f32.mxu0 0.0
        %v8460 = vand.u32 %v8131, 4294901760
        %v8461 = vsub.f32 %v8131, %v8460
        %v8462 = vand.u32 %v8461, 4294901760
        %8463 = vmatmul.mubr.f32.gmra.mrb[0].mxu0 %v8462
        %v8464 = vpop.f32.mrb[0].mxu0
        %v8465 = vadd.f32 %v8383, %v8464
        %v8466 = vpop.f32.mrb[0].mxu0
        %8467 = vmatprep.mubr.f32.mxu0 0.0
        %v8468 = vand.u32 %v8134, 4294901760
        %v8469 = vsub.f32 %v8134, %v8468
        %v8470 = vand.u32 %v8469, 4294901760
        %8471 = vmatmul.mubr.f32.gmra.mrb[0].mxu0 %v8470
        %v8472 = vpop.f32.mrb[0].mxu0
        %v8473 = vadd.f32 %v8390, %v8472
        %v8474 = vpop.f32.mrb[0].mxu0
        %8475 = vdwg.mxu0
        %8476 = vmatprep.subr.mxu0 0.0
        %v8477 = vand.u32 %v453, 4294901760
        %v8478 = vsub.f32 %v453, %v8477
        %v8479 = vand.u32 %v8478, 4294901760
        %8480 = vmatpush1.msra.mxu0 %v8479
        %8481 = vmatprep.subr.mxu0 0.0
        %v8482 = vand.u32 %v454, 4294901760
        %v8483 = vsub.f32 %v454, %v8482
        %v8484 = vand.u32 %v8483, 4294901760
        %8485 = vmatpush1.msra.mxu0 %v8484
        %8486 = vmatprep.subr.mxu0 0.0
        %8487 = vmatpush1.msra.mxu0 0.0
        %8488 = vmatprep.subr.mxu0 0.0
        %8489 = vmatpush1.msra.mxu0 0.0
        %8490 = vmatprep.subr.mxu0 0.0
        %8491 = vmatpush1.msra.mxu0 0.0
        %8492 = vmatprep.subr.mxu0 0.0
        %8493 = vmatpush1.msra.mxu0 0.0
        %8494 = vmatprep.subr.mxu0 0.0
        %8495 = vmatpush1.msra.mxu0 0.0
        %8496 = vmatprep.subr.mxu0 0.0
        %8497 = vmatpush1.msra.mxu0 0.0
        %8498 = vmatprep.subr.mxu0 0.0
        %8499 = vmatpush1.msra.mxu0 0.0
        %8500 = vmatprep.subr.mxu0 0.0
        %8501 = vmatpush1.msra.mxu0 0.0
        %8502 = vmatprep.subr.mxu0 0.0
        %8503 = vmatpush1.msra.mxu0 0.0
        %8504 = vmatprep.subr.mxu0 0.0
        %8505 = vmatpush1.msra.mxu0 0.0
        %8506 = vmatprep.subr.mxu0 0.0
        %8507 = vmatpush1.msra.mxu0 0.0
        %8508 = vmatprep.subr.mxu0 0.0
        %8509 = vmatpush1.msra.mxu0 0.0
        %8510 = vmatprep.subr.mxu0 0.0
        %8511 = vmatpush1.msra.mxu0 0.0
        %8512 = vmatprep.subr.mxu0 0.0
        %8513 = vmatpush1.msra.mxu0 0.0
        %8514 = vmatprep.subr.mxu0 0.0
        %8515 = vmatpush1.msra.mxu0 0.0
        %8516 = vmatprep.subr.mxu0 0.0
        %8517 = vmatpush1.msra.mxu0 0.0
        %8518 = vmatprep.subr.mxu0 0.0
        %8519 = vmatpush1.msra.mxu0 0.0
        %8520 = vmatprep.subr.mxu0 0.0
        %8521 = vmatpush1.msra.mxu0 0.0
        %8522 = vmatprep.subr.mxu0 0.0
        %8523 = vmatpush1.msra.mxu0 0.0
        %8524 = vmatprep.subr.mxu0 0.0
        %8525 = vmatpush1.msra.mxu0 0.0
        %8526 = vmatprep.subr.mxu0 0.0
        %8527 = vmatpush1.msra.mxu0 0.0
        %8528 = vmatprep.subr.mxu0 0.0
        %8529 = vmatpush1.msra.mxu0 0.0
        %8530 = vmatprep.subr.mxu0 0.0
        %8531 = vmatpush1.msra.mxu0 0.0
        %8532 = vmatprep.subr.mxu0 0.0
        %8533 = vmatpush1.msra.mxu0 0.0
        %8534 = vmatprep.subr.mxu0 0.0
        %8535 = vmatpush1.msra.mxu0 0.0
        %8536 = vmatprep.subr.mxu0 0.0
        %8537 = vmatpush1.msra.mxu0 0.0
        %8538 = vmatprep.subr.mxu0 0.0
        %8539 = vmatpush1.msra.mxu0 0.0
        %8540 = vmatprep.subr.mxu0 0.0
        %8541 = vmatpush1.msra.mxu0 0.0
        %8542 = vmatprep.subr.mxu0 0.0
        %8543 = vmatpush1.msra.mxu0 0.0
        %8544 = vmatprep.subr.mxu0 0.0
        %8545 = vmatpush1.msra.mxu0 0.0
        %8546 = vmatprep.mubr.f32.mxu0 0.0
        %v8547 = vand.u32 %v8131, 4294901760
        %8548 = vmatmul.mubr.f32.gmra.mrb[0].mxu0 %v8547
        %v8549 = vpop.f32.mrb[0].mxu0
        %v8550 = vadd.f32 %v8465, %v8549
        %v8551 = vpop.f32.mrb[0].mxu0
        %8552 = vmatprep.mubr.f32.mxu0 0.0
        %v8553 = vand.u32 %v8134, 4294901760
        %8554 = vmatmul.mubr.f32.gmra.mrb[0].mxu0 %v8553
        %v8555 = vpop.f32.mrb[0].mxu0
        %v8556 = vadd.f32 %v8473, %v8555
        %v8557 = vpop.f32.mrb[0].mxu0
        %8558 = vdwg.mxu0
        %8559 = vmatprep.subr.mxu0 0.0
        %v8560 = vand.u32 %v453, 4294901760
        %8561 = vmatpush1.msra.mxu0 %v8560
        %8562 = vmatprep.subr.mxu0 0.0
        %v8563 = vand.u32 %v454, 4294901760
        %8564 = vmatpush1.msra.mxu0 %v8563
        %8565 = vmatprep.subr.mxu0 0.0
        %8566 = vmatpush1.msra.mxu0 0.0
        %8567 = vmatprep.subr.mxu0 0.0
        %8568 = vmatpush1.msra.mxu0 0.0
        %8569 = vmatprep.subr.mxu0 0.0
        %8570 = vmatpush1.msra.mxu0 0.0
        %8571 = vmatprep.subr.mxu0 0.0
        %8572 = vmatpush1.msra.mxu0 0.0
        %8573 = vmatprep.subr.mxu0 0.0
        %8574 = vmatpush1.msra.mxu0 0.0
        %8575 = vmatprep.subr.mxu0 0.0
        %8576 = vmatpush1.msra.mxu0 0.0
        %8577 = vmatprep.subr.mxu0 0.0
        %8578 = vmatpush1.msra.mxu0 0.0
        %8579 = vmatprep.subr.mxu0 0.0
        %8580 = vmatpush1.msra.mxu0 0.0
        %8581 = vmatprep.subr.mxu0 0.0
        %8582 = vmatpush1.msra.mxu0 0.0
        %8583 = vmatprep.subr.mxu0 0.0
        %8584 = vmatpush1.msra.mxu0 0.0
        %8585 = vmatprep.subr.mxu0 0.0
        %8586 = vmatpush1.msra.mxu0 0.0
        %8587 = vmatprep.subr.mxu0 0.0
        %8588 = vmatpush1.msra.mxu0 0.0
        %8589 = vmatprep.subr.mxu0 0.0
        %8590 = vmatpush1.msra.mxu0 0.0
        %8591 = vmatprep.subr.mxu0 0.0
        %8592 = vmatpush1.msra.mxu0 0.0
        %8593 = vmatprep.subr.mxu0 0.0
        %8594 = vmatpush1.msra.mxu0 0.0
        %8595 = vmatprep.subr.mxu0 0.0
        %8596 = vmatpush1.msra.mxu0 0.0
        %8597 = vmatprep.subr.mxu0 0.0
        %8598 = vmatpush1.msra.mxu0 0.0
        %8599 = vmatprep.subr.mxu0 0.0
        %8600 = vmatpush1.msra.mxu0 0.0
        %8601 = vmatprep.subr.mxu0 0.0
        %8602 = vmatpush1.msra.mxu0 0.0
        %8603 = vmatprep.subr.mxu0 0.0
        %8604 = vmatpush1.msra.mxu0 0.0
        %8605 = vmatprep.subr.mxu0 0.0
        %8606 = vmatpush1.msra.mxu0 0.0
        %8607 = vmatprep.subr.mxu0 0.0
        %8608 = vmatpush1.msra.mxu0 0.0
        %8609 = vmatprep.subr.mxu0 0.0
        %8610 = vmatpush1.msra.mxu0 0.0
        %8611 = vmatprep.subr.mxu0 0.0
        %8612 = vmatpush1.msra.mxu0 0.0
        %8613 = vmatprep.subr.mxu0 0.0
        %8614 = vmatpush1.msra.mxu0 0.0
        %8615 = vmatprep.subr.mxu0 0.0
        %8616 = vmatpush1.msra.mxu0 0.0
        %8617 = vmatprep.subr.mxu0 0.0
        %8618 = vmatpush1.msra.mxu0 0.0
        %8619 = vmatprep.subr.mxu0 0.0
        %8620 = vmatpush1.msra.mxu0 0.0
        %8621 = vmatprep.subr.mxu0 0.0
        %8622 = vmatpush1.msra.mxu0 0.0
        %8623 = vmatprep.subr.mxu0 0.0
        %8624 = vmatpush1.msra.mxu0 0.0
        %8625 = vmatprep.mubr.f32.mxu0 0.0
        %v8626 = vand.u32 %v8131, 4294901760
        %8627 = vmatmul.mubr.f32.gmra.mrb[0].mxu0 %v8626
        %v8628 = vpop.f32.mrb[0].mxu0
        %v8629 = vadd.f32 %v8550, %v8628
        %v8630 = vpop.f32.mrb[0].mxu0
        %8631 = vmatprep.mubr.f32.mxu0 0.0
        %v8632 = vand.u32 %v8134, 4294901760
        %8633 = vmatmul.mubr.f32.gmra.mrb[0].mxu0 %v8632
        %v8634 = vpop.f32.mrb[0].mxu0
        %v8635 = vadd.f32 %v8556, %v8634
        %v8636 = vpop.f32.mrb[0].mxu0
        %8637 = vdwg.mxu0
        %v8638 = vmul.f32 %v5588, %v5588
        %v8639 = vmul.f32 %v5589, %v5589
        %8640 = vmatprep.subr.mxu0 0.0
        %v8641 = vand.u32 %v8638, 4294901760
        %8642 = vmatpush1.msra.mxu0 %v8641
        %8643 = vmatprep.subr.mxu0 0.0
        %v8644 = vand.u32 %v8639, 4294901760
        %8645 = vmatpush1.msra.mxu0 %v8644
        %8646 = vmatprep.subr.mxu0 0.0
        %8647 = vmatpush1.msra.mxu0 0.0
        %8648 = vmatprep.subr.mxu0 0.0
        %8649 = vmatpush1.msra.mxu0 0.0
        %8650 = vmatprep.subr.mxu0 0.0
        %8651 = vmatpush1.msra.mxu0 0.0
        %8652 = vmatprep.subr.mxu0 0.0
        %8653 = vmatpush1.msra.mxu0 0.0
        %8654 = vmatprep.subr.mxu0 0.0
        %8655 = vmatpush1.msra.mxu0 0.0
        %8656 = vmatprep.subr.mxu0 0.0
        %8657 = vmatpush1.msra.mxu0 0.0
        %8658 = vmatprep.subr.mxu0 0.0
        %8659 = vmatpush1.msra.mxu0 0.0
        %8660 = vmatprep.subr.mxu0 0.0
        %8661 = vmatpush1.msra.mxu0 0.0
        %8662 = vmatprep.subr.mxu0 0.0
        %8663 = vmatpush1.msra.mxu0 0.0
        %8664 = vmatprep.subr.mxu0 0.0
        %8665 = vmatpush1.msra.mxu0 0.0
        %8666 = vmatprep.subr.mxu0 0.0
        %8667 = vmatpush1.msra.mxu0 0.0
        %8668 = vmatprep.subr.mxu0 0.0
        %8669 = vmatpush1.msra.mxu0 0.0
        %8670 = vmatprep.subr.mxu0 0.0
        %8671 = vmatpush1.msra.mxu0 0.0
        %8672 = vmatprep.subr.mxu0 0.0
        %8673 = vmatpush1.msra.mxu0 0.0
        %8674 = vmatprep.subr.mxu0 0.0
        %8675 = vmatpush1.msra.mxu0 0.0
        %8676 = vmatprep.subr.mxu0 0.0
        %8677 = vmatpush1.msra.mxu0 0.0
        %8678 = vmatprep.subr.mxu0 0.0
        %8679 = vmatpush1.msra.mxu0 0.0
        %8680 = vmatprep.subr.mxu0 0.0
        %8681 = vmatpush1.msra.mxu0 0.0
        %8682 = vmatprep.subr.mxu0 0.0
        %8683 = vmatpush1.msra.mxu0 0.0
        %8684 = vmatprep.subr.mxu0 0.0
        %8685 = vmatpush1.msra.mxu0 0.0
        %8686 = vmatprep.subr.mxu0 0.0
        %8687 = vmatpush1.msra.mxu0 0.0
        %8688 = vmatprep.subr.mxu0 0.0
        %8689 = vmatpush1.msra.mxu0 0.0
        %8690 = vmatprep.subr.mxu0 0.0
        %8691 = vmatpush1.msra.mxu0 0.0
        %8692 = vmatprep.subr.mxu0 0.0
        %8693 = vmatpush1.msra.mxu0 0.0
        %8694 = vmatprep.subr.mxu0 0.0
        %8695 = vmatpush1.msra.mxu0 0.0
        %8696 = vmatprep.subr.mxu0 0.0
        %8697 = vmatpush1.msra.mxu0 0.0
        %8698 = vmatprep.subr.mxu0 0.0
        %8699 = vmatpush1.msra.mxu0 0.0
        %8700 = vmatprep.subr.mxu0 0.0
        %8701 = vmatpush1.msra.mxu0 0.0
        %8702 = vmatprep.subr.mxu0 0.0
        %8703 = vmatpush1.msra.mxu0 0.0
        %8704 = vmatprep.subr.mxu0 0.0
        %8705 = vmatpush1.msra.mxu0 0.0
        %8706 = vmatprep.mubr.f32.mxu0 0.0
        %v8707 = vand.u32 %v477, 4294901760
        %v8708 = vsub.f32 %v477, %v8707
        %v8709 = vand.u32 %v8708, 4294901760
        %v8710 = vsub.f32 %v8708, %v8709
        %v8711 = vand.u32 %v8710, 4294901760
        %8712 = vmatmul.mubr.f32.gmra.mrb[0].mxu0 %v8711
        %v8713 = vpop.f32.mrb[0].mxu0
        %v8714 = vadd.f32 0.0, %v8713
        %v8715 = vpop.f32.mrb[0].mxu0
        %8716 = vmatprep.mubr.f32.mxu0 0.0
        %v8717 = vand.u32 %v480, 4294901760
        %v8718 = vsub.f32 %v480, %v8717
        %v8719 = vand.u32 %v8718, 4294901760
        %v8720 = vsub.f32 %v8718, %v8719
        %v8721 = vand.u32 %v8720, 4294901760
        %8722 = vmatmul.mubr.f32.gmra.mrb[0].mxu0 %v8721
        %v8723 = vpop.f32.mrb[0].mxu0
        %v8724 = vadd.f32 0.0, %v8723
        %v8725 = vpop.f32.mrb[0].mxu0
        %8726 = vdwg.mxu0
        %8727 = vmatprep.subr.mxu0 0.0
        %v8728 = vand.u32 %v8638, 4294901760
        %v8729 = vsub.f32 %v8638, %v8728
        %v8730 = vand.u32 %v8729, 4294901760
        %v8731 = vsub.f32 %v8729, %v8730
        %v8732 = vand.u32 %v8731, 4294901760
        %8733 = vmatpush1.msra.mxu0 %v8732
        %8734 = vmatprep.subr.mxu0 0.0
        %v8735 = vand.u32 %v8639, 4294901760
        %v8736 = vsub.f32 %v8639, %v8735
        %v8737 = vand.u32 %v8736, 4294901760
        %v8738 = vsub.f32 %v8736, %v8737
        %v8739 = vand.u32 %v8738, 4294901760
        %8740 = vmatpush1.msra.mxu0 %v8739
        %8741 = vmatprep.subr.mxu0 0.0
        %8742 = vmatpush1.msra.mxu0 0.0
        %8743 = vmatprep.subr.mxu0 0.0
        %8744 = vmatpush1.msra.mxu0 0.0
        %8745 = vmatprep.subr.mxu0 0.0
        %8746 = vmatpush1.msra.mxu0 0.0
        %8747 = vmatprep.subr.mxu0 0.0
        %8748 = vmatpush1.msra.mxu0 0.0
        %8749 = vmatprep.subr.mxu0 0.0
        %8750 = vmatpush1.msra.mxu0 0.0
        %8751 = vmatprep.subr.mxu0 0.0
        %8752 = vmatpush1.msra.mxu0 0.0
        %8753 = vmatprep.subr.mxu0 0.0
        %8754 = vmatpush1.msra.mxu0 0.0
        %8755 = vmatprep.subr.mxu0 0.0
        %8756 = vmatpush1.msra.mxu0 0.0
        %8757 = vmatprep.subr.mxu0 0.0
        %8758 = vmatpush1.msra.mxu0 0.0
        %8759 = vmatprep.subr.mxu0 0.0
        %8760 = vmatpush1.msra.mxu0 0.0
        %8761 = vmatprep.subr.mxu0 0.0
        %8762 = vmatpush1.msra.mxu0 0.0
        %8763 = vmatprep.subr.mxu0 0.0
        %8764 = vmatpush1.msra.mxu0 0.0
        %8765 = vmatprep.subr.mxu0 0.0
        %8766 = vmatpush1.msra.mxu0 0.0
        %8767 = vmatprep.subr.mxu0 0.0
        %8768 = vmatpush1.msra.mxu0 0.0
        %8769 = vmatprep.subr.mxu0 0.0
        %8770 = vmatpush1.msra.mxu0 0.0
        %8771 = vmatprep.subr.mxu0 0.0
        %8772 = vmatpush1.msra.mxu0 0.0
        %8773 = vmatprep.subr.mxu0 0.0
        %8774 = vmatpush1.msra.mxu0 0.0
        %8775 = vmatprep.subr.mxu0 0.0
        %8776 = vmatpush1.msra.mxu0 0.0
        %8777 = vmatprep.subr.mxu0 0.0
        %8778 = vmatpush1.msra.mxu0 0.0
        %8779 = vmatprep.subr.mxu0 0.0
        %8780 = vmatpush1.msra.mxu0 0.0
        %8781 = vmatprep.subr.mxu0 0.0
        %8782 = vmatpush1.msra.mxu0 0.0
        %8783 = vmatprep.subr.mxu0 0.0
        %8784 = vmatpush1.msra.mxu0 0.0
        %8785 = vmatprep.subr.mxu0 0.0
        %8786 = vmatpush1.msra.mxu0 0.0
        %8787 = vmatprep.subr.mxu0 0.0
        %8788 = vmatpush1.msra.mxu0 0.0
        %8789 = vmatprep.subr.mxu0 0.0
        %8790 = vmatpush1.msra.mxu0 0.0
        %8791 = vmatprep.subr.mxu0 0.0
        %8792 = vmatpush1.msra.mxu0 0.0
        %8793 = vmatprep.subr.mxu0 0.0
        %8794 = vmatpush1.msra.mxu0 0.0
        %8795 = vmatprep.subr.mxu0 0.0
        %8796 = vmatpush1.msra.mxu0 0.0
        %8797 = vmatprep.subr.mxu0 0.0
        %8798 = vmatpush1.msra.mxu0 0.0
        %8799 = vmatprep.subr.mxu0 0.0
        %8800 = vmatpush1.msra.mxu0 0.0
        %8801 = vmatprep.mubr.f32.mxu0 0.0
        %v8802 = vand.u32 %v477, 4294901760
        %8803 = vmatmul.mubr.f32.gmra.mrb[0].mxu0 %v8802
        %v8804 = vpop.f32.mrb[0].mxu0
        %v8805 = vadd.f32 %v8714, %v8804
        %v8806 = vpop.f32.mrb[0].mxu0
        %8807 = vmatprep.mubr.f32.mxu0 0.0
        %v8808 = vand.u32 %v480, 4294901760
        %8809 = vmatmul.mubr.f32.gmra.mrb[0].mxu0 %v8808
        %v8810 = vpop.f32.mrb[0].mxu0
        %v8811 = vadd.f32 %v8724, %v8810
        %v8812 = vpop.f32.mrb[0].mxu0
        %8813 = vdwg.mxu0
        %8814 = vmatprep.subr.mxu0 0.0
        %v8815 = vand.u32 %v8638, 4294901760
        %v8816 = vsub.f32 %v8638, %v8815
        %8817 = vmatpush1.msra.mxu0 %v8816
        %8818 = vmatprep.subr.mxu0 0.0
        %v8819 = vand.u32 %v8639, 4294901760
        %v8820 = vsub.f32 %v8639, %v8819
        %8821 = vmatpush1.msra.mxu0 %v8820
        %8822 = vmatprep.subr.mxu0 0.0
        %8823 = vmatpush1.msra.mxu0 0.0
        %8824 = vmatprep.subr.mxu0 0.0
        %8825 = vmatpush1.msra.mxu0 0.0
        %8826 = vmatprep.subr.mxu0 0.0
        %8827 = vmatpush1.msra.mxu0 0.0
        %8828 = vmatprep.subr.mxu0 0.0
        %8829 = vmatpush1.msra.mxu0 0.0
        %8830 = vmatprep.subr.mxu0 0.0
        %8831 = vmatpush1.msra.mxu0 0.0
        %8832 = vmatprep.subr.mxu0 0.0
        %8833 = vmatpush1.msra.mxu0 0.0
        %8834 = vmatprep.subr.mxu0 0.0
        %8835 = vmatpush1.msra.mxu0 0.0
        %8836 = vmatprep.subr.mxu0 0.0
        %8837 = vmatpush1.msra.mxu0 0.0
        %8838 = vmatprep.subr.mxu0 0.0
        %8839 = vmatpush1.msra.mxu0 0.0
        %8840 = vmatprep.subr.mxu0 0.0
        %8841 = vmatpush1.msra.mxu0 0.0
        %8842 = vmatprep.subr.mxu0 0.0
        %8843 = vmatpush1.msra.mxu0 0.0
        %8844 = vmatprep.subr.mxu0 0.0
        %8845 = vmatpush1.msra.mxu0 0.0
        %8846 = vmatprep.subr.mxu0 0.0
        %8847 = vmatpush1.msra.mxu0 0.0
        %8848 = vmatprep.subr.mxu0 0.0
        %8849 = vmatpush1.msra.mxu0 0.0
        %8850 = vmatprep.subr.mxu0 0.0
        %8851 = vmatpush1.msra.mxu0 0.0
        %8852 = vmatprep.subr.mxu0 0.0
        %8853 = vmatpush1.msra.mxu0 0.0
        %8854 = vmatprep.subr.mxu0 0.0
        %8855 = vmatpush1.msra.mxu0 0.0
        %8856 = vmatprep.subr.mxu0 0.0
        %8857 = vmatpush1.msra.mxu0 0.0
        %8858 = vmatprep.subr.mxu0 0.0
        %8859 = vmatpush1.msra.mxu0 0.0
        %8860 = vmatprep.subr.mxu0 0.0
        %8861 = vmatpush1.msra.mxu0 0.0
        %8862 = vmatprep.subr.mxu0 0.0
        %8863 = vmatpush1.msra.mxu0 0.0
        %8864 = vmatprep.subr.mxu0 0.0
        %8865 = vmatpush1.msra.mxu0 0.0
        %8866 = vmatprep.subr.mxu0 0.0
        %8867 = vmatpush1.msra.mxu0 0.0
        %8868 = vmatprep.subr.mxu0 0.0
        %8869 = vmatpush1.msra.mxu0 0.0
        %8870 = vmatprep.subr.mxu0 0.0
        %8871 = vmatpush1.msra.mxu0 0.0
        %8872 = vmatprep.subr.mxu0 0.0
        %8873 = vmatpush1.msra.mxu0 0.0
        %8874 = vmatprep.subr.mxu0 0.0
        %8875 = vmatpush1.msra.mxu0 0.0
        %8876 = vmatprep.subr.mxu0 0.0
        %8877 = vmatpush1.msra.mxu0 0.0
        %8878 = vmatprep.subr.mxu0 0.0
        %8879 = vmatpush1.msra.mxu0 0.0
        %8880 = vmatprep.subr.mxu0 0.0
        %8881 = vmatpush1.msra.mxu0 0.0
        %8882 = vmatprep.mubr.f32.mxu0 0.0
        %v8883 = vand.u32 %v477, 4294901760
        %v8884 = vsub.f32 %v477, %v8883
        %8885 = vmatmul.mubr.f32.gmra.mrb[0].mxu0 %v8884
        %v8886 = vpop.f32.mrb[0].mxu0
        %v8887 = vadd.f32 %v8805, %v8886
        %v8888 = vpop.f32.mrb[0].mxu0
        %8889 = vmatprep.mubr.f32.mxu0 0.0
        %v8890 = vand.u32 %v480, 4294901760
        %v8891 = vsub.f32 %v480, %v8890
        %8892 = vmatmul.mubr.f32.gmra.mrb[0].mxu0 %v8891
        %v8893 = vpop.f32.mrb[0].mxu0
        %v8894 = vadd.f32 %v8811, %v8893
        %v8895 = vpop.f32.mrb[0].mxu0
        %8896 = vdwg.mxu0
        %8897 = vmatprep.subr.mxu0 0.0
        %v8898 = vand.u32 %v8638, 4294901760
        %8899 = vmatpush1.msra.mxu0 %v8898
        %8900 = vmatprep.subr.mxu0 0.0
        %v8901 = vand.u32 %v8639, 4294901760
        %8902 = vmatpush1.msra.mxu0 %v8901
        %8903 = vmatprep.subr.mxu0 0.0
        %8904 = vmatpush1.msra.mxu0 0.0
        %8905 = vmatprep.subr.mxu0 0.0
        %8906 = vmatpush1.msra.mxu0 0.0
        %8907 = vmatprep.subr.mxu0 0.0
        %8908 = vmatpush1.msra.mxu0 0.0
        %8909 = vmatprep.subr.mxu0 0.0
        %8910 = vmatpush1.msra.mxu0 0.0
        %8911 = vmatprep.subr.mxu0 0.0
        %8912 = vmatpush1.msra.mxu0 0.0
        %8913 = vmatprep.subr.mxu0 0.0
        %8914 = vmatpush1.msra.mxu0 0.0
        %8915 = vmatprep.subr.mxu0 0.0
        %8916 = vmatpush1.msra.mxu0 0.0
        %8917 = vmatprep.subr.mxu0 0.0
        %8918 = vmatpush1.msra.mxu0 0.0
        %8919 = vmatprep.subr.mxu0 0.0
        %8920 = vmatpush1.msra.mxu0 0.0
        %8921 = vmatprep.subr.mxu0 0.0
        %8922 = vmatpush1.msra.mxu0 0.0
        %8923 = vmatprep.subr.mxu0 0.0
        %8924 = vmatpush1.msra.mxu0 0.0
        %8925 = vmatprep.subr.mxu0 0.0
        %8926 = vmatpush1.msra.mxu0 0.0
        %8927 = vmatprep.subr.mxu0 0.0
        %8928 = vmatpush1.msra.mxu0 0.0
        %8929 = vmatprep.subr.mxu0 0.0
        %8930 = vmatpush1.msra.mxu0 0.0
        %8931 = vmatprep.subr.mxu0 0.0
        %8932 = vmatpush1.msra.mxu0 0.0
        %8933 = vmatprep.subr.mxu0 0.0
        %8934 = vmatpush1.msra.mxu0 0.0
        %8935 = vmatprep.subr.mxu0 0.0
        %8936 = vmatpush1.msra.mxu0 0.0
        %8937 = vmatprep.subr.mxu0 0.0
        %8938 = vmatpush1.msra.mxu0 0.0
        %8939 = vmatprep.subr.mxu0 0.0
        %8940 = vmatpush1.msra.mxu0 0.0
        %8941 = vmatprep.subr.mxu0 0.0
        %8942 = vmatpush1.msra.mxu0 0.0
        %8943 = vmatprep.subr.mxu0 0.0
        %8944 = vmatpush1.msra.mxu0 0.0
        %8945 = vmatprep.subr.mxu0 0.0
        %8946 = vmatpush1.msra.mxu0 0.0
        %8947 = vmatprep.subr.mxu0 0.0
        %8948 = vmatpush1.msra.mxu0 0.0
        %8949 = vmatprep.subr.mxu0 0.0
        %8950 = vmatpush1.msra.mxu0 0.0
        %8951 = vmatprep.subr.mxu0 0.0
        %8952 = vmatpush1.msra.mxu0 0.0
        %8953 = vmatprep.subr.mxu0 0.0
        %8954 = vmatpush1.msra.mxu0 0.0
        %8955 = vmatprep.subr.mxu0 0.0
        %8956 = vmatpush1.msra.mxu0 0.0
        %8957 = vmatprep.subr.mxu0 0.0
        %8958 = vmatpush1.msra.mxu0 0.0
        %8959 = vmatprep.subr.mxu0 0.0
        %8960 = vmatpush1.msra.mxu0 0.0
        %8961 = vmatprep.subr.mxu0 0.0
        %8962 = vmatpush1.msra.mxu0 0.0
        %8963 = vmatprep.mubr.f32.mxu0 0.0
        %v8964 = vand.u32 %v477, 4294901760
        %v8965 = vsub.f32 %v477, %v8964
        %v8966 = vand.u32 %v8965, 4294901760
        %8967 = vmatmul.mubr.f32.gmra.mrb[0].mxu0 %v8966
        %v8968 = vpop.f32.mrb[0].mxu0
        %v8969 = vadd.f32 %v8887, %v8968
        %v8970 = vpop.f32.mrb[0].mxu0
        %8971 = vmatprep.mubr.f32.mxu0 0.0
        %v8972 = vand.u32 %v480, 4294901760
        %v8973 = vsub.f32 %v480, %v8972
        %v8974 = vand.u32 %v8973, 4294901760
        %8975 = vmatmul.mubr.f32.gmra.mrb[0].mxu0 %v8974
        %v8976 = vpop.f32.mrb[0].mxu0
        %v8977 = vadd.f32 %v8894, %v8976
        %v8978 = vpop.f32.mrb[0].mxu0
        %8979 = vdwg.mxu0
        %8980 = vmatprep.subr.mxu0 0.0
        %v8981 = vand.u32 %v8638, 4294901760
        %v8982 = vsub.f32 %v8638, %v8981
        %v8983 = vand.u32 %v8982, 4294901760
        %8984 = vmatpush1.msra.mxu0 %v8983
        %8985 = vmatprep.subr.mxu0 0.0
        %v8986 = vand.u32 %v8639, 4294901760
        %v8987 = vsub.f32 %v8639, %v8986
        %v8988 = vand.u32 %v8987, 4294901760
        %8989 = vmatpush1.msra.mxu0 %v8988
        %8990 = vmatprep.subr.mxu0 0.0
        %8991 = vmatpush1.msra.mxu0 0.0
        %8992 = vmatprep.subr.mxu0 0.0
        %8993 = vmatpush1.msra.mxu0 0.0
        %8994 = vmatprep.subr.mxu0 0.0
        %8995 = vmatpush1.msra.mxu0 0.0
        %8996 = vmatprep.subr.mxu0 0.0
        %8997 = vmatpush1.msra.mxu0 0.0
        %8998 = vmatprep.subr.mxu0 0.0
        %8999 = vmatpush1.msra.mxu0 0.0
        %9000 = vmatprep.subr.mxu0 0.0
        %9001 = vmatpush1.msra.mxu0 0.0
        %9002 = vmatprep.subr.mxu0 0.0
        %9003 = vmatpush1.msra.mxu0 0.0
        %9004 = vmatprep.subr.mxu0 0.0
        %9005 = vmatpush1.msra.mxu0 0.0
        %9006 = vmatprep.subr.mxu0 0.0
        %9007 = vmatpush1.msra.mxu0 0.0
        %9008 = vmatprep.subr.mxu0 0.0
        %9009 = vmatpush1.msra.mxu0 0.0
        %9010 = vmatprep.subr.mxu0 0.0
        %9011 = vmatpush1.msra.mxu0 0.0
        %9012 = vmatprep.subr.mxu0 0.0
        %9013 = vmatpush1.msra.mxu0 0.0
        %9014 = vmatprep.subr.mxu0 0.0
        %9015 = vmatpush1.msra.mxu0 0.0
        %9016 = vmatprep.subr.mxu0 0.0
        %9017 = vmatpush1.msra.mxu0 0.0
        %9018 = vmatprep.subr.mxu0 0.0
        %9019 = vmatpush1.msra.mxu0 0.0
        %9020 = vmatprep.subr.mxu0 0.0
        %9021 = vmatpush1.msra.mxu0 0.0
        %9022 = vmatprep.subr.mxu0 0.0
        %9023 = vmatpush1.msra.mxu0 0.0
        %9024 = vmatprep.subr.mxu0 0.0
        %9025 = vmatpush1.msra.mxu0 0.0
        %9026 = vmatprep.subr.mxu0 0.0
        %9027 = vmatpush1.msra.mxu0 0.0
        %9028 = vmatprep.subr.mxu0 0.0
        %9029 = vmatpush1.msra.mxu0 0.0
        %9030 = vmatprep.subr.mxu0 0.0
        %9031 = vmatpush1.msra.mxu0 0.0
        %9032 = vmatprep.subr.mxu0 0.0
        %9033 = vmatpush1.msra.mxu0 0.0
        %9034 = vmatprep.subr.mxu0 0.0
        %9035 = vmatpush1.msra.mxu0 0.0
        %9036 = vmatprep.subr.mxu0 0.0
        %9037 = vmatpush1.msra.mxu0 0.0
        %9038 = vmatprep.subr.mxu0 0.0
        %9039 = vmatpush1.msra.mxu0 0.0
        %9040 = vmatprep.subr.mxu0 0.0
        %9041 = vmatpush1.msra.mxu0 0.0
        %9042 = vmatprep.subr.mxu0 0.0
        %9043 = vmatpush1.msra.mxu0 0.0
        %9044 = vmatprep.subr.mxu0 0.0
        %9045 = vmatpush1.msra.mxu0 0.0
        %9046 = vmatprep.subr.mxu0 0.0
        %9047 = vmatpush1.msra.mxu0 0.0
        %9048 = vmatprep.subr.mxu0 0.0
        %9049 = vmatpush1.msra.mxu0 0.0
        %9050 = vmatprep.mubr.f32.mxu0 0.0
        %v9051 = vand.u32 %v477, 4294901760
        %9052 = vmatmul.mubr.f32.gmra.mrb[0].mxu0 %v9051
        %v9053 = vpop.f32.mrb[0].mxu0
        %v9054 = vadd.f32 %v8969, %v9053
        %v9055 = vpop.f32.mrb[0].mxu0
        %9056 = vmatprep.mubr.f32.mxu0 0.0
        %v9057 = vand.u32 %v480, 4294901760
        %9058 = vmatmul.mubr.f32.gmra.mrb[0].mxu0 %v9057
        %v9059 = vpop.f32.mrb[0].mxu0
        %v9060 = vadd.f32 %v8977, %v9059
        %v9061 = vpop.f32.mrb[0].mxu0
        %9062 = vdwg.mxu0
        %9063 = vmatprep.subr.mxu0 0.0
        %v9064 = vand.u32 %v8638, 4294901760
        %9065 = vmatpush1.msra.mxu0 %v9064
        %9066 = vmatprep.subr.mxu0 0.0
        %v9067 = vand.u32 %v8639, 4294901760
        %9068 = vmatpush1.msra.mxu0 %v9067
        %9069 = vmatprep.subr.mxu0 0.0
        %9070 = vmatpush1.msra.mxu0 0.0
        %9071 = vmatprep.subr.mxu0 0.0
        %9072 = vmatpush1.msra.mxu0 0.0
        %9073 = vmatprep.subr.mxu0 0.0
        %9074 = vmatpush1.msra.mxu0 0.0
        %9075 = vmatprep.subr.mxu0 0.0
        %9076 = vmatpush1.msra.mxu0 0.0
        %9077 = vmatprep.subr.mxu0 0.0
        %9078 = vmatpush1.msra.mxu0 0.0
        %9079 = vmatprep.subr.mxu0 0.0
        %9080 = vmatpush1.msra.mxu0 0.0
        %9081 = vmatprep.subr.mxu0 0.0
        %9082 = vmatpush1.msra.mxu0 0.0
        %9083 = vmatprep.subr.mxu0 0.0
        %9084 = vmatpush1.msra.mxu0 0.0
        %9085 = vmatprep.subr.mxu0 0.0
        %9086 = vmatpush1.msra.mxu0 0.0
        %9087 = vmatprep.subr.mxu0 0.0
        %9088 = vmatpush1.msra.mxu0 0.0
        %9089 = vmatprep.subr.mxu0 0.0
        %9090 = vmatpush1.msra.mxu0 0.0
        %9091 = vmatprep.subr.mxu0 0.0
        %9092 = vmatpush1.msra.mxu0 0.0
        %9093 = vmatprep.subr.mxu0 0.0
        %9094 = vmatpush1.msra.mxu0 0.0
        %9095 = vmatprep.subr.mxu0 0.0
        %9096 = vmatpush1.msra.mxu0 0.0
        %9097 = vmatprep.subr.mxu0 0.0
        %9098 = vmatpush1.msra.mxu0 0.0
        %9099 = vmatprep.subr.mxu0 0.0
        %9100 = vmatpush1.msra.mxu0 0.0
        %9101 = vmatprep.subr.mxu0 0.0
        %9102 = vmatpush1.msra.mxu0 0.0
        %9103 = vmatprep.subr.mxu0 0.0
        %9104 = vmatpush1.msra.mxu0 0.0
        %9105 = vmatprep.subr.mxu0 0.0
        %9106 = vmatpush1.msra.mxu0 0.0
        %9107 = vmatprep.subr.mxu0 0.0
        %9108 = vmatpush1.msra.mxu0 0.0
        %9109 = vmatprep.subr.mxu0 0.0
        %9110 = vmatpush1.msra.mxu0 0.0
        %9111 = vmatprep.subr.mxu0 0.0
        %9112 = vmatpush1.msra.mxu0 0.0
        %9113 = vmatprep.subr.mxu0 0.0
        %9114 = vmatpush1.msra.mxu0 0.0
        %9115 = vmatprep.subr.mxu0 0.0
        %9116 = vmatpush1.msra.mxu0 0.0
        %9117 = vmatprep.subr.mxu0 0.0
        %9118 = vmatpush1.msra.mxu0 0.0
        %9119 = vmatprep.subr.mxu0 0.0
        %9120 = vmatpush1.msra.mxu0 0.0
        %9121 = vmatprep.subr.mxu0 0.0
        %9122 = vmatpush1.msra.mxu0 0.0
        %9123 = vmatprep.subr.mxu0 0.0
        %9124 = vmatpush1.msra.mxu0 0.0
        %9125 = vmatprep.subr.mxu0 0.0
        %9126 = vmatpush1.msra.mxu0 0.0
        %9127 = vmatprep.subr.mxu0 0.0
        %9128 = vmatpush1.msra.mxu0 0.0
        %9129 = vmatprep.mubr.f32.mxu0 0.0
        %v9130 = vand.u32 %v477, 4294901760
        %9131 = vmatmul.mubr.f32.gmra.mrb[0].mxu0 %v9130
        %v9132 = vpop.f32.mrb[0].mxu0
        %v9133 = vadd.f32 %v9054, %v9132
        %v9134 = vpop.f32.mrb[0].mxu0
        %9135 = vmatprep.mubr.f32.mxu0 0.0
        %v9136 = vand.u32 %v480, 4294901760
        %9137 = vmatmul.mubr.f32.gmra.mrb[0].mxu0 %v9136
        %v9138 = vpop.f32.mrb[0].mxu0
        %v9139 = vadd.f32 %v9060, %v9138
        %v9140 = vpop.f32.mrb[0].mxu0
        %9141 = vdwg.mxu0
        %v9143 = vsel %vm463, %v9133, 0
        %v9146 = vsel %vm463, %v9139, 0
        %9148 = vmatprep.subr.mxu0 0.0
        %v9149 = vand.u32 %v453, 4294901760
        %9150 = vmatpush1.msra.mxu0 %v9149
        %9151 = vmatprep.subr.mxu0 0.0
        %v9152 = vand.u32 %v454, 4294901760
        %9153 = vmatpush1.msra.mxu0 %v9152
        %9154 = vmatprep.subr.mxu0 0.0
        %9155 = vmatpush1.msra.mxu0 0.0
        %9156 = vmatprep.subr.mxu0 0.0
        %9157 = vmatpush1.msra.mxu0 0.0
        %9158 = vmatprep.subr.mxu0 0.0
        %9159 = vmatpush1.msra.mxu0 0.0
        %9160 = vmatprep.subr.mxu0 0.0
        %9161 = vmatpush1.msra.mxu0 0.0
        %9162 = vmatprep.subr.mxu0 0.0
        %9163 = vmatpush1.msra.mxu0 0.0
        %9164 = vmatprep.subr.mxu0 0.0
        %9165 = vmatpush1.msra.mxu0 0.0
        %9166 = vmatprep.subr.mxu0 0.0
        %9167 = vmatpush1.msra.mxu0 0.0
        %9168 = vmatprep.subr.mxu0 0.0
        %9169 = vmatpush1.msra.mxu0 0.0
        %9170 = vmatprep.subr.mxu0 0.0
        %9171 = vmatpush1.msra.mxu0 0.0
        %9172 = vmatprep.subr.mxu0 0.0
        %9173 = vmatpush1.msra.mxu0 0.0
        %9174 = vmatprep.subr.mxu0 0.0
        %9175 = vmatpush1.msra.mxu0 0.0
        %9176 = vmatprep.subr.mxu0 0.0
        %9177 = vmatpush1.msra.mxu0 0.0
        %9178 = vmatprep.subr.mxu0 0.0
        %9179 = vmatpush1.msra.mxu0 0.0
        %9180 = vmatprep.subr.mxu0 0.0
        %9181 = vmatpush1.msra.mxu0 0.0
        %9182 = vmatprep.subr.mxu0 0.0
        %9183 = vmatpush1.msra.mxu0 0.0
        %9184 = vmatprep.subr.mxu0 0.0
        %9185 = vmatpush1.msra.mxu0 0.0
        %9186 = vmatprep.subr.mxu0 0.0
        %9187 = vmatpush1.msra.mxu0 0.0
        %9188 = vmatprep.subr.mxu0 0.0
        %9189 = vmatpush1.msra.mxu0 0.0
        %9190 = vmatprep.subr.mxu0 0.0
        %9191 = vmatpush1.msra.mxu0 0.0
        %9192 = vmatprep.subr.mxu0 0.0
        %9193 = vmatpush1.msra.mxu0 0.0
        %9194 = vmatprep.subr.mxu0 0.0
        %9195 = vmatpush1.msra.mxu0 0.0
        %9196 = vmatprep.subr.mxu0 0.0
        %9197 = vmatpush1.msra.mxu0 0.0
        %9198 = vmatprep.subr.mxu0 0.0
        %9199 = vmatpush1.msra.mxu0 0.0
        %9200 = vmatprep.subr.mxu0 0.0
        %9201 = vmatpush1.msra.mxu0 0.0
        %9202 = vmatprep.subr.mxu0 0.0
        %9203 = vmatpush1.msra.mxu0 0.0
        %9204 = vmatprep.subr.mxu0 0.0
        %9205 = vmatpush1.msra.mxu0 0.0
        %9206 = vmatprep.subr.mxu0 0.0
        %9207 = vmatpush1.msra.mxu0 0.0
        %9208 = vmatprep.subr.mxu0 0.0
        %9209 = vmatpush1.msra.mxu0 0.0
        %9210 = vmatprep.subr.mxu0 0.0
        %9211 = vmatpush1.msra.mxu0 0.0
        %9212 = vmatprep.subr.mxu0 0.0
        %9213 = vmatpush1.msra.mxu0 0.0
        %9214 = vmatprep.mubr.f32.mxu0 0.0
        %v9215 = vand.u32 %v9143, 4294901760
        %v9216 = vsub.f32 %v9143, %v9215
        %v9217 = vand.u32 %v9216, 4294901760
        %v9218 = vsub.f32 %v9216, %v9217
        %v9219 = vand.u32 %v9218, 4294901760
        %9220 = vmatmul.mubr.f32.gmra.mrb[0].mxu0 %v9219
        %v9221 = vpop.f32.mrb[0].mxu0
        %v9222 = vadd.f32 0.0, %v9221
        %v9223 = vpop.f32.mrb[0].mxu0
        %9224 = vmatprep.mubr.f32.mxu0 0.0
        %v9225 = vand.u32 %v9146, 4294901760
        %v9226 = vsub.f32 %v9146, %v9225
        %v9227 = vand.u32 %v9226, 4294901760
        %v9228 = vsub.f32 %v9226, %v9227
        %v9229 = vand.u32 %v9228, 4294901760
        %9230 = vmatmul.mubr.f32.gmra.mrb[0].mxu0 %v9229
        %v9231 = vpop.f32.mrb[0].mxu0
        %v9232 = vadd.f32 0.0, %v9231
        %v9233 = vpop.f32.mrb[0].mxu0
        %9234 = vdwg.mxu0
        %9235 = vmatprep.subr.mxu0 0.0
        %v9236 = vand.u32 %v453, 4294901760
        %v9237 = vsub.f32 %v453, %v9236
        %v9238 = vand.u32 %v9237, 4294901760
        %v9239 = vsub.f32 %v9237, %v9238
        %v9240 = vand.u32 %v9239, 4294901760
        %9241 = vmatpush1.msra.mxu0 %v9240
        %9242 = vmatprep.subr.mxu0 0.0
        %v9243 = vand.u32 %v454, 4294901760
        %v9244 = vsub.f32 %v454, %v9243
        %v9245 = vand.u32 %v9244, 4294901760
        %v9246 = vsub.f32 %v9244, %v9245
        %v9247 = vand.u32 %v9246, 4294901760
        %9248 = vmatpush1.msra.mxu0 %v9247
        %9249 = vmatprep.subr.mxu0 0.0
        %9250 = vmatpush1.msra.mxu0 0.0
        %9251 = vmatprep.subr.mxu0 0.0
        %9252 = vmatpush1.msra.mxu0 0.0
        %9253 = vmatprep.subr.mxu0 0.0
        %9254 = vmatpush1.msra.mxu0 0.0
        %9255 = vmatprep.subr.mxu0 0.0
        %9256 = vmatpush1.msra.mxu0 0.0
        %9257 = vmatprep.subr.mxu0 0.0
        %9258 = vmatpush1.msra.mxu0 0.0
        %9259 = vmatprep.subr.mxu0 0.0
        %9260 = vmatpush1.msra.mxu0 0.0
        %9261 = vmatprep.subr.mxu0 0.0
        %9262 = vmatpush1.msra.mxu0 0.0
        %9263 = vmatprep.subr.mxu0 0.0
        %9264 = vmatpush1.msra.mxu0 0.0
        %9265 = vmatprep.subr.mxu0 0.0
        %9266 = vmatpush1.msra.mxu0 0.0
        %9267 = vmatprep.subr.mxu0 0.0
        %9268 = vmatpush1.msra.mxu0 0.0
        %9269 = vmatprep.subr.mxu0 0.0
        %9270 = vmatpush1.msra.mxu0 0.0
        %9271 = vmatprep.subr.mxu0 0.0
        %9272 = vmatpush1.msra.mxu0 0.0
        %9273 = vmatprep.subr.mxu0 0.0
        %9274 = vmatpush1.msra.mxu0 0.0
        %9275 = vmatprep.subr.mxu0 0.0
        %9276 = vmatpush1.msra.mxu0 0.0
        %9277 = vmatprep.subr.mxu0 0.0
        %9278 = vmatpush1.msra.mxu0 0.0
        %9279 = vmatprep.subr.mxu0 0.0
        %9280 = vmatpush1.msra.mxu0 0.0
        %9281 = vmatprep.subr.mxu0 0.0
        %9282 = vmatpush1.msra.mxu0 0.0
        %9283 = vmatprep.subr.mxu0 0.0
        %9284 = vmatpush1.msra.mxu0 0.0
        %9285 = vmatprep.subr.mxu0 0.0
        %9286 = vmatpush1.msra.mxu0 0.0
        %9287 = vmatprep.subr.mxu0 0.0
        %9288 = vmatpush1.msra.mxu0 0.0
        %9289 = vmatprep.subr.mxu0 0.0
        %9290 = vmatpush1.msra.mxu0 0.0
        %9291 = vmatprep.subr.mxu0 0.0
        %9292 = vmatpush1.msra.mxu0 0.0
        %9293 = vmatprep.subr.mxu0 0.0
        %9294 = vmatpush1.msra.mxu0 0.0
        %9295 = vmatprep.subr.mxu0 0.0
        %9296 = vmatpush1.msra.mxu0 0.0
        %9297 = vmatprep.subr.mxu0 0.0
        %9298 = vmatpush1.msra.mxu0 0.0
        %9299 = vmatprep.subr.mxu0 0.0
        %9300 = vmatpush1.msra.mxu0 0.0
        %9301 = vmatprep.subr.mxu0 0.0
        %9302 = vmatpush1.msra.mxu0 0.0
        %9303 = vmatprep.subr.mxu0 0.0
        %9304 = vmatpush1.msra.mxu0 0.0
        %9305 = vmatprep.subr.mxu0 0.0
        %9306 = vmatpush1.msra.mxu0 0.0
        %9307 = vmatprep.subr.mxu0 0.0
        %9308 = vmatpush1.msra.mxu0 0.0
        %9309 = vmatprep.mubr.f32.mxu0 0.0
        %v9310 = vand.u32 %v9143, 4294901760
        %9311 = vmatmul.mubr.f32.gmra.mrb[0].mxu0 %v9310
        %v9312 = vpop.f32.mrb[0].mxu0
        %v9313 = vadd.f32 %v9222, %v9312
        %v9314 = vpop.f32.mrb[0].mxu0
        %9315 = vmatprep.mubr.f32.mxu0 0.0
        %v9316 = vand.u32 %v9146, 4294901760
        %9317 = vmatmul.mubr.f32.gmra.mrb[0].mxu0 %v9316
        %v9318 = vpop.f32.mrb[0].mxu0
        %v9319 = vadd.f32 %v9232, %v9318
        %v9320 = vpop.f32.mrb[0].mxu0
        %9321 = vdwg.mxu0
        %9322 = vmatprep.subr.mxu0 0.0
        %v9323 = vand.u32 %v453, 4294901760
        %v9324 = vsub.f32 %v453, %v9323
        %9325 = vmatpush1.msra.mxu0 %v9324
        %9326 = vmatprep.subr.mxu0 0.0
        %v9327 = vand.u32 %v454, 4294901760
        %v9328 = vsub.f32 %v454, %v9327
        %9329 = vmatpush1.msra.mxu0 %v9328
        %9330 = vmatprep.subr.mxu0 0.0
        %9331 = vmatpush1.msra.mxu0 0.0
        %9332 = vmatprep.subr.mxu0 0.0
        %9333 = vmatpush1.msra.mxu0 0.0
        %9334 = vmatprep.subr.mxu0 0.0
        %9335 = vmatpush1.msra.mxu0 0.0
        %9336 = vmatprep.subr.mxu0 0.0
        %9337 = vmatpush1.msra.mxu0 0.0
        %9338 = vmatprep.subr.mxu0 0.0
        %9339 = vmatpush1.msra.mxu0 0.0
        %9340 = vmatprep.subr.mxu0 0.0
        %9341 = vmatpush1.msra.mxu0 0.0
        %9342 = vmatprep.subr.mxu0 0.0
        %9343 = vmatpush1.msra.mxu0 0.0
        %9344 = vmatprep.subr.mxu0 0.0
        %9345 = vmatpush1.msra.mxu0 0.0
        %9346 = vmatprep.subr.mxu0 0.0
        %9347 = vmatpush1.msra.mxu0 0.0
        %9348 = vmatprep.subr.mxu0 0.0
        %9349 = vmatpush1.msra.mxu0 0.0
        %9350 = vmatprep.subr.mxu0 0.0
        %9351 = vmatpush1.msra.mxu0 0.0
        %9352 = vmatprep.subr.mxu0 0.0
        %9353 = vmatpush1.msra.mxu0 0.0
        %9354 = vmatprep.subr.mxu0 0.0
        %9355 = vmatpush1.msra.mxu0 0.0
        %9356 = vmatprep.subr.mxu0 0.0
        %9357 = vmatpush1.msra.mxu0 0.0
        %9358 = vmatprep.subr.mxu0 0.0
        %9359 = vmatpush1.msra.mxu0 0.0
        %9360 = vmatprep.subr.mxu0 0.0
        %9361 = vmatpush1.msra.mxu0 0.0
        %9362 = vmatprep.subr.mxu0 0.0
        %9363 = vmatpush1.msra.mxu0 0.0
        %9364 = vmatprep.subr.mxu0 0.0
        %9365 = vmatpush1.msra.mxu0 0.0
        %9366 = vmatprep.subr.mxu0 0.0
        %9367 = vmatpush1.msra.mxu0 0.0
        %9368 = vmatprep.subr.mxu0 0.0
        %9369 = vmatpush1.msra.mxu0 0.0
        %9370 = vmatprep.subr.mxu0 0.0
        %9371 = vmatpush1.msra.mxu0 0.0
        %9372 = vmatprep.subr.mxu0 0.0
        %9373 = vmatpush1.msra.mxu0 0.0
        %9374 = vmatprep.subr.mxu0 0.0
        %9375 = vmatpush1.msra.mxu0 0.0
        %9376 = vmatprep.subr.mxu0 0.0
        %9377 = vmatpush1.msra.mxu0 0.0
        %9378 = vmatprep.subr.mxu0 0.0
        %9379 = vmatpush1.msra.mxu0 0.0
        %9380 = vmatprep.subr.mxu0 0.0
        %9381 = vmatpush1.msra.mxu0 0.0
        %9382 = vmatprep.subr.mxu0 0.0
        %9383 = vmatpush1.msra.mxu0 0.0
        %9384 = vmatprep.subr.mxu0 0.0
        %9385 = vmatpush1.msra.mxu0 0.0
        %9386 = vmatprep.subr.mxu0 0.0
        %9387 = vmatpush1.msra.mxu0 0.0
        %9388 = vmatprep.subr.mxu0 0.0
        %9389 = vmatpush1.msra.mxu0 0.0
        %9390 = vmatprep.mubr.f32.mxu0 0.0
        %v9391 = vand.u32 %v9143, 4294901760
        %v9392 = vsub.f32 %v9143, %v9391
        %9393 = vmatmul.mubr.f32.gmra.mrb[0].mxu0 %v9392
        %v9394 = vpop.f32.mrb[0].mxu0
        %v9395 = vadd.f32 %v9313, %v9394
        %v9396 = vpop.f32.mrb[0].mxu0
        %9397 = vmatprep.mubr.f32.mxu0 0.0
        %v9398 = vand.u32 %v9146, 4294901760
        %v9399 = vsub.f32 %v9146, %v9398
        %9400 = vmatmul.mubr.f32.gmra.mrb[0].mxu0 %v9399
        %v9401 = vpop.f32.mrb[0].mxu0
        %v9402 = vadd.f32 %v9319, %v9401
        %v9403 = vpop.f32.mrb[0].mxu0
        %9404 = vdwg.mxu0
        %9405 = vmatprep.subr.mxu0 0.0
        %v9406 = vand.u32 %v453, 4294901760
        %9407 = vmatpush1.msra.mxu0 %v9406
        %9408 = vmatprep.subr.mxu0 0.0
        %v9409 = vand.u32 %v454, 4294901760
        %9410 = vmatpush1.msra.mxu0 %v9409
        %9411 = vmatprep.subr.mxu0 0.0
        %9412 = vmatpush1.msra.mxu0 0.0
        %9413 = vmatprep.subr.mxu0 0.0
        %9414 = vmatpush1.msra.mxu0 0.0
        %9415 = vmatprep.subr.mxu0 0.0
        %9416 = vmatpush1.msra.mxu0 0.0
        %9417 = vmatprep.subr.mxu0 0.0
        %9418 = vmatpush1.msra.mxu0 0.0
        %9419 = vmatprep.subr.mxu0 0.0
        %9420 = vmatpush1.msra.mxu0 0.0
        %9421 = vmatprep.subr.mxu0 0.0
        %9422 = vmatpush1.msra.mxu0 0.0
        %9423 = vmatprep.subr.mxu0 0.0
        %9424 = vmatpush1.msra.mxu0 0.0
        %9425 = vmatprep.subr.mxu0 0.0
        %9426 = vmatpush1.msra.mxu0 0.0
        %9427 = vmatprep.subr.mxu0 0.0
        %9428 = vmatpush1.msra.mxu0 0.0
        %9429 = vmatprep.subr.mxu0 0.0
        %9430 = vmatpush1.msra.mxu0 0.0
        %9431 = vmatprep.subr.mxu0 0.0
        %9432 = vmatpush1.msra.mxu0 0.0
        %9433 = vmatprep.subr.mxu0 0.0
        %9434 = vmatpush1.msra.mxu0 0.0
        %9435 = vmatprep.subr.mxu0 0.0
        %9436 = vmatpush1.msra.mxu0 0.0
        %9437 = vmatprep.subr.mxu0 0.0
        %9438 = vmatpush1.msra.mxu0 0.0
        %9439 = vmatprep.subr.mxu0 0.0
        %9440 = vmatpush1.msra.mxu0 0.0
        %9441 = vmatprep.subr.mxu0 0.0
        %9442 = vmatpush1.msra.mxu0 0.0
        %9443 = vmatprep.subr.mxu0 0.0
        %9444 = vmatpush1.msra.mxu0 0.0
        %9445 = vmatprep.subr.mxu0 0.0
        %9446 = vmatpush1.msra.mxu0 0.0
        %9447 = vmatprep.subr.mxu0 0.0
        %9448 = vmatpush1.msra.mxu0 0.0
        %9449 = vmatprep.subr.mxu0 0.0
        %9450 = vmatpush1.msra.mxu0 0.0
        %9451 = vmatprep.subr.mxu0 0.0
        %9452 = vmatpush1.msra.mxu0 0.0
        %9453 = vmatprep.subr.mxu0 0.0
        %9454 = vmatpush1.msra.mxu0 0.0
        %9455 = vmatprep.subr.mxu0 0.0
        %9456 = vmatpush1.msra.mxu0 0.0
        %9457 = vmatprep.subr.mxu0 0.0
        %9458 = vmatpush1.msra.mxu0 0.0
        %9459 = vmatprep.subr.mxu0 0.0
        %9460 = vmatpush1.msra.mxu0 0.0
        %9461 = vmatprep.subr.mxu0 0.0
        %9462 = vmatpush1.msra.mxu0 0.0
        %9463 = vmatprep.subr.mxu0 0.0
        %9464 = vmatpush1.msra.mxu0 0.0
        %9465 = vmatprep.subr.mxu0 0.0
        %9466 = vmatpush1.msra.mxu0 0.0
        %9467 = vmatprep.subr.mxu0 0.0
        %9468 = vmatpush1.msra.mxu0 0.0
        %9469 = vmatprep.subr.mxu0 0.0
        %9470 = vmatpush1.msra.mxu0 0.0
        %9471 = vmatprep.mubr.f32.mxu0 0.0
        %v9472 = vand.u32 %v9143, 4294901760
        %v9473 = vsub.f32 %v9143, %v9472
        %v9474 = vand.u32 %v9473, 4294901760
        %9475 = vmatmul.mubr.f32.gmra.mrb[0].mxu0 %v9474
        %v9476 = vpop.f32.mrb[0].mxu0
        %v9477 = vadd.f32 %v9395, %v9476
        %v9478 = vpop.f32.mrb[0].mxu0
        %9479 = vmatprep.mubr.f32.mxu0 0.0
        %v9480 = vand.u32 %v9146, 4294901760
        %v9481 = vsub.f32 %v9146, %v9480
        %v9482 = vand.u32 %v9481, 4294901760
        %9483 = vmatmul.mubr.f32.gmra.mrb[0].mxu0 %v9482
        %v9484 = vpop.f32.mrb[0].mxu0
        %v9485 = vadd.f32 %v9402, %v9484
        %v9486 = vpop.f32.mrb[0].mxu0
        %9487 = vdwg.mxu0
        %9488 = vmatprep.subr.mxu0 0.0
        %v9489 = vand.u32 %v453, 4294901760
        %v9490 = vsub.f32 %v453, %v9489
        %v9491 = vand.u32 %v9490, 4294901760
        %9492 = vmatpush1.msra.mxu0 %v9491
        %9493 = vmatprep.subr.mxu0 0.0
        %v9494 = vand.u32 %v454, 4294901760
        %v9495 = vsub.f32 %v454, %v9494
        %v9496 = vand.u32 %v9495, 4294901760
        %9497 = vmatpush1.msra.mxu0 %v9496
        %9498 = vmatprep.subr.mxu0 0.0
        %9499 = vmatpush1.msra.mxu0 0.0
        %9500 = vmatprep.subr.mxu0 0.0
        %9501 = vmatpush1.msra.mxu0 0.0
        %9502 = vmatprep.subr.mxu0 0.0
        %9503 = vmatpush1.msra.mxu0 0.0
        %9504 = vmatprep.subr.mxu0 0.0
        %9505 = vmatpush1.msra.mxu0 0.0
        %9506 = vmatprep.subr.mxu0 0.0
        %9507 = vmatpush1.msra.mxu0 0.0
        %9508 = vmatprep.subr.mxu0 0.0
        %9509 = vmatpush1.msra.mxu0 0.0
        %9510 = vmatprep.subr.mxu0 0.0
        %9511 = vmatpush1.msra.mxu0 0.0
        %9512 = vmatprep.subr.mxu0 0.0
        %9513 = vmatpush1.msra.mxu0 0.0
        %9514 = vmatprep.subr.mxu0 0.0
        %9515 = vmatpush1.msra.mxu0 0.0
        %9516 = vmatprep.subr.mxu0 0.0
        %9517 = vmatpush1.msra.mxu0 0.0
        %9518 = vmatprep.subr.mxu0 0.0
        %9519 = vmatpush1.msra.mxu0 0.0
        %9520 = vmatprep.subr.mxu0 0.0
        %9521 = vmatpush1.msra.mxu0 0.0
        %9522 = vmatprep.subr.mxu0 0.0
        %9523 = vmatpush1.msra.mxu0 0.0
        %9524 = vmatprep.subr.mxu0 0.0
        %9525 = vmatpush1.msra.mxu0 0.0
        %9526 = vmatprep.subr.mxu0 0.0
        %9527 = vmatpush1.msra.mxu0 0.0
        %9528 = vmatprep.subr.mxu0 0.0
        %9529 = vmatpush1.msra.mxu0 0.0
        %9530 = vmatprep.subr.mxu0 0.0
        %9531 = vmatpush1.msra.mxu0 0.0
        %9532 = vmatprep.subr.mxu0 0.0
        %9533 = vmatpush1.msra.mxu0 0.0
        %9534 = vmatprep.subr.mxu0 0.0
        %9535 = vmatpush1.msra.mxu0 0.0
        %9536 = vmatprep.subr.mxu0 0.0
        %9537 = vmatpush1.msra.mxu0 0.0
        %9538 = vmatprep.subr.mxu0 0.0
        %9539 = vmatpush1.msra.mxu0 0.0
        %9540 = vmatprep.subr.mxu0 0.0
        %9541 = vmatpush1.msra.mxu0 0.0
        %9542 = vmatprep.subr.mxu0 0.0
        %9543 = vmatpush1.msra.mxu0 0.0
        %9544 = vmatprep.subr.mxu0 0.0
        %9545 = vmatpush1.msra.mxu0 0.0
        %9546 = vmatprep.subr.mxu0 0.0
        %9547 = vmatpush1.msra.mxu0 0.0
        %9548 = vmatprep.subr.mxu0 0.0
        %9549 = vmatpush1.msra.mxu0 0.0
        %9550 = vmatprep.subr.mxu0 0.0
        %9551 = vmatpush1.msra.mxu0 0.0
        %9552 = vmatprep.subr.mxu0 0.0
        %9553 = vmatpush1.msra.mxu0 0.0
        %9554 = vmatprep.subr.mxu0 0.0
        %9555 = vmatpush1.msra.mxu0 0.0
        %9556 = vmatprep.subr.mxu0 0.0
        %9557 = vmatpush1.msra.mxu0 0.0
        %9558 = vmatprep.mubr.f32.mxu0 0.0
        %v9559 = vand.u32 %v9143, 4294901760
        %9560 = vmatmul.mubr.f32.gmra.mrb[0].mxu0 %v9559
        %v9561 = vpop.f32.mrb[0].mxu0
        %v9562 = vadd.f32 %v9477, %v9561
        %v9563 = vpop.f32.mrb[0].mxu0
        %9564 = vmatprep.mubr.f32.mxu0 0.0
        %v9565 = vand.u32 %v9146, 4294901760
        %9566 = vmatmul.mubr.f32.gmra.mrb[0].mxu0 %v9565
        %v9567 = vpop.f32.mrb[0].mxu0
        %v9568 = vadd.f32 %v9485, %v9567
        %v9569 = vpop.f32.mrb[0].mxu0
        %9570 = vdwg.mxu0
        %9571 = vmatprep.subr.mxu0 0.0
        %v9572 = vand.u32 %v453, 4294901760
        %9573 = vmatpush1.msra.mxu0 %v9572
        %9574 = vmatprep.subr.mxu0 0.0
        %v9575 = vand.u32 %v454, 4294901760
        %9576 = vmatpush1.msra.mxu0 %v9575
        %9577 = vmatprep.subr.mxu0 0.0
        %9578 = vmatpush1.msra.mxu0 0.0
        %9579 = vmatprep.subr.mxu0 0.0
        %9580 = vmatpush1.msra.mxu0 0.0
        %9581 = vmatprep.subr.mxu0 0.0
        %9582 = vmatpush1.msra.mxu0 0.0
        %9583 = vmatprep.subr.mxu0 0.0
        %9584 = vmatpush1.msra.mxu0 0.0
        %9585 = vmatprep.subr.mxu0 0.0
        %9586 = vmatpush1.msra.mxu0 0.0
        %9587 = vmatprep.subr.mxu0 0.0
        %9588 = vmatpush1.msra.mxu0 0.0
        %9589 = vmatprep.subr.mxu0 0.0
        %9590 = vmatpush1.msra.mxu0 0.0
        %9591 = vmatprep.subr.mxu0 0.0
        %9592 = vmatpush1.msra.mxu0 0.0
        %9593 = vmatprep.subr.mxu0 0.0
        %9594 = vmatpush1.msra.mxu0 0.0
        %9595 = vmatprep.subr.mxu0 0.0
        %9596 = vmatpush1.msra.mxu0 0.0
        %9597 = vmatprep.subr.mxu0 0.0
        %9598 = vmatpush1.msra.mxu0 0.0
        %9599 = vmatprep.subr.mxu0 0.0
        %9600 = vmatpush1.msra.mxu0 0.0
        %9601 = vmatprep.subr.mxu0 0.0
        %9602 = vmatpush1.msra.mxu0 0.0
        %9603 = vmatprep.subr.mxu0 0.0
        %9604 = vmatpush1.msra.mxu0 0.0
        %9605 = vmatprep.subr.mxu0 0.0
        %9606 = vmatpush1.msra.mxu0 0.0
        %9607 = vmatprep.subr.mxu0 0.0
        %9608 = vmatpush1.msra.mxu0 0.0
        %9609 = vmatprep.subr.mxu0 0.0
        %9610 = vmatpush1.msra.mxu0 0.0
        %9611 = vmatprep.subr.mxu0 0.0
        %9612 = vmatpush1.msra.mxu0 0.0
        %9613 = vmatprep.subr.mxu0 0.0
        %9614 = vmatpush1.msra.mxu0 0.0
        %9615 = vmatprep.subr.mxu0 0.0
        %9616 = vmatpush1.msra.mxu0 0.0
        %9617 = vmatprep.subr.mxu0 0.0
        %9618 = vmatpush1.msra.mxu0 0.0
        %9619 = vmatprep.subr.mxu0 0.0
        %9620 = vmatpush1.msra.mxu0 0.0
        %9621 = vmatprep.subr.mxu0 0.0
        %9622 = vmatpush1.msra.mxu0 0.0
        %9623 = vmatprep.subr.mxu0 0.0
        %9624 = vmatpush1.msra.mxu0 0.0
        %9625 = vmatprep.subr.mxu0 0.0
        %9626 = vmatpush1.msra.mxu0 0.0
        %9627 = vmatprep.subr.mxu0 0.0
        %9628 = vmatpush1.msra.mxu0 0.0
        %9629 = vmatprep.subr.mxu0 0.0
        %9630 = vmatpush1.msra.mxu0 0.0
        %9631 = vmatprep.subr.mxu0 0.0
        %9632 = vmatpush1.msra.mxu0 0.0
        %9633 = vmatprep.subr.mxu0 0.0
        %9634 = vmatpush1.msra.mxu0 0.0
        %9635 = vmatprep.subr.mxu0 0.0
        %9636 = vmatpush1.msra.mxu0 0.0
        %9637 = vmatprep.mubr.f32.mxu0 0.0
        %v9638 = vand.u32 %v9143, 4294901760
        %9639 = vmatmul.mubr.f32.gmra.mrb[0].mxu0 %v9638
        %v9640 = vpop.f32.mrb[0].mxu0
        %v9641 = vadd.f32 %v9562, %v9640
        %v9642 = vpop.f32.mrb[0].mxu0
        %9643 = vmatprep.mubr.f32.mxu0 0.0
        %v9644 = vand.u32 %v9146, 4294901760
        %9645 = vmatmul.mubr.f32.gmra.mrb[0].mxu0 %v9644
        %v9646 = vpop.f32.mrb[0].mxu0
        %v9647 = vadd.f32 %v9568, %v9646
        %v9648 = vpop.f32.mrb[0].mxu0
        %9649 = vdwg.mxu0
        %v9650 = vmul.f32 %v5586, %v5588
        %v9651 = vmul.f32 %v5587, %v5589
        %9652 = vmatprep.subr.mxu0 0.0
        %v9653 = vand.u32 %v9650, 4294901760
        %9654 = vmatpush1.msra.mxu0 %v9653
        %9655 = vmatprep.subr.mxu0 0.0
        %v9656 = vand.u32 %v9651, 4294901760
        %9657 = vmatpush1.msra.mxu0 %v9656
        %9658 = vmatprep.subr.mxu0 0.0
        %9659 = vmatpush1.msra.mxu0 0.0
        %9660 = vmatprep.subr.mxu0 0.0
        %9661 = vmatpush1.msra.mxu0 0.0
        %9662 = vmatprep.subr.mxu0 0.0
        %9663 = vmatpush1.msra.mxu0 0.0
        %9664 = vmatprep.subr.mxu0 0.0
        %9665 = vmatpush1.msra.mxu0 0.0
        %9666 = vmatprep.subr.mxu0 0.0
        %9667 = vmatpush1.msra.mxu0 0.0
        %9668 = vmatprep.subr.mxu0 0.0
        %9669 = vmatpush1.msra.mxu0 0.0
        %9670 = vmatprep.subr.mxu0 0.0
        %9671 = vmatpush1.msra.mxu0 0.0
        %9672 = vmatprep.subr.mxu0 0.0
        %9673 = vmatpush1.msra.mxu0 0.0
        %9674 = vmatprep.subr.mxu0 0.0
        %9675 = vmatpush1.msra.mxu0 0.0
        %9676 = vmatprep.subr.mxu0 0.0
        %9677 = vmatpush1.msra.mxu0 0.0
        %9678 = vmatprep.subr.mxu0 0.0
        %9679 = vmatpush1.msra.mxu0 0.0
        %9680 = vmatprep.subr.mxu0 0.0
        %9681 = vmatpush1.msra.mxu0 0.0
        %9682 = vmatprep.subr.mxu0 0.0
        %9683 = vmatpush1.msra.mxu0 0.0
        %9684 = vmatprep.subr.mxu0 0.0
        %9685 = vmatpush1.msra.mxu0 0.0
        %9686 = vmatprep.subr.mxu0 0.0
        %9687 = vmatpush1.msra.mxu0 0.0
        %9688 = vmatprep.subr.mxu0 0.0
        %9689 = vmatpush1.msra.mxu0 0.0
        %9690 = vmatprep.subr.mxu0 0.0
        %9691 = vmatpush1.msra.mxu0 0.0
        %9692 = vmatprep.subr.mxu0 0.0
        %9693 = vmatpush1.msra.mxu0 0.0
        %9694 = vmatprep.subr.mxu0 0.0
        %9695 = vmatpush1.msra.mxu0 0.0
        %9696 = vmatprep.subr.mxu0 0.0
        %9697 = vmatpush1.msra.mxu0 0.0
        %9698 = vmatprep.subr.mxu0 0.0
        %9699 = vmatpush1.msra.mxu0 0.0
        %9700 = vmatprep.subr.mxu0 0.0
        %9701 = vmatpush1.msra.mxu0 0.0
        %9702 = vmatprep.subr.mxu0 0.0
        %9703 = vmatpush1.msra.mxu0 0.0
        %9704 = vmatprep.subr.mxu0 0.0
        %9705 = vmatpush1.msra.mxu0 0.0
        %9706 = vmatprep.subr.mxu0 0.0
        %9707 = vmatpush1.msra.mxu0 0.0
        %9708 = vmatprep.subr.mxu0 0.0
        %9709 = vmatpush1.msra.mxu0 0.0
        %9710 = vmatprep.subr.mxu0 0.0
        %9711 = vmatpush1.msra.mxu0 0.0
        %9712 = vmatprep.subr.mxu0 0.0
        %9713 = vmatpush1.msra.mxu0 0.0
        %9714 = vmatprep.subr.mxu0 0.0
        %9715 = vmatpush1.msra.mxu0 0.0
        %9716 = vmatprep.subr.mxu0 0.0
        %9717 = vmatpush1.msra.mxu0 0.0
        %9718 = vmatprep.mubr.f32.mxu0 0.0
        %v9719 = vand.u32 %v477, 4294901760
        %v9720 = vsub.f32 %v477, %v9719
        %v9721 = vand.u32 %v9720, 4294901760
        %v9722 = vsub.f32 %v9720, %v9721
        %v9723 = vand.u32 %v9722, 4294901760
        %9724 = vmatmul.mubr.f32.gmra.mrb[0].mxu0 %v9723
        %v9725 = vpop.f32.mrb[0].mxu0
        %v9726 = vadd.f32 0.0, %v9725
        %v9727 = vpop.f32.mrb[0].mxu0
        %9728 = vmatprep.mubr.f32.mxu0 0.0
        %v9729 = vand.u32 %v480, 4294901760
        %v9730 = vsub.f32 %v480, %v9729
        %v9731 = vand.u32 %v9730, 4294901760
        %v9732 = vsub.f32 %v9730, %v9731
        %v9733 = vand.u32 %v9732, 4294901760
        %9734 = vmatmul.mubr.f32.gmra.mrb[0].mxu0 %v9733
        %v9735 = vpop.f32.mrb[0].mxu0
        %v9736 = vadd.f32 0.0, %v9735
        %v9737 = vpop.f32.mrb[0].mxu0
        %9738 = vdwg.mxu0
        %9739 = vmatprep.subr.mxu0 0.0
        %v9740 = vand.u32 %v9650, 4294901760
        %v9741 = vsub.f32 %v9650, %v9740
        %v9742 = vand.u32 %v9741, 4294901760
        %v9743 = vsub.f32 %v9741, %v9742
        %v9744 = vand.u32 %v9743, 4294901760
        %9745 = vmatpush1.msra.mxu0 %v9744
        %9746 = vmatprep.subr.mxu0 0.0
        %v9747 = vand.u32 %v9651, 4294901760
        %v9748 = vsub.f32 %v9651, %v9747
        %v9749 = vand.u32 %v9748, 4294901760
        %v9750 = vsub.f32 %v9748, %v9749
        %v9751 = vand.u32 %v9750, 4294901760
        %9752 = vmatpush1.msra.mxu0 %v9751
        %9753 = vmatprep.subr.mxu0 0.0
        %9754 = vmatpush1.msra.mxu0 0.0
        %9755 = vmatprep.subr.mxu0 0.0
        %9756 = vmatpush1.msra.mxu0 0.0
        %9757 = vmatprep.subr.mxu0 0.0
        %9758 = vmatpush1.msra.mxu0 0.0
        %9759 = vmatprep.subr.mxu0 0.0
        %9760 = vmatpush1.msra.mxu0 0.0
        %9761 = vmatprep.subr.mxu0 0.0
        %9762 = vmatpush1.msra.mxu0 0.0
        %9763 = vmatprep.subr.mxu0 0.0
        %9764 = vmatpush1.msra.mxu0 0.0
        %9765 = vmatprep.subr.mxu0 0.0
        %9766 = vmatpush1.msra.mxu0 0.0
        %9767 = vmatprep.subr.mxu0 0.0
        %9768 = vmatpush1.msra.mxu0 0.0
        %9769 = vmatprep.subr.mxu0 0.0
        %9770 = vmatpush1.msra.mxu0 0.0
        %9771 = vmatprep.subr.mxu0 0.0
        %9772 = vmatpush1.msra.mxu0 0.0
        %9773 = vmatprep.subr.mxu0 0.0
        %9774 = vmatpush1.msra.mxu0 0.0
        %9775 = vmatprep.subr.mxu0 0.0
        %9776 = vmatpush1.msra.mxu0 0.0
        %9777 = vmatprep.subr.mxu0 0.0
        %9778 = vmatpush1.msra.mxu0 0.0
        %9779 = vmatprep.subr.mxu0 0.0
        %9780 = vmatpush1.msra.mxu0 0.0
        %9781 = vmatprep.subr.mxu0 0.0
        %9782 = vmatpush1.msra.mxu0 0.0
        %9783 = vmatprep.subr.mxu0 0.0
        %9784 = vmatpush1.msra.mxu0 0.0
        %9785 = vmatprep.subr.mxu0 0.0
        %9786 = vmatpush1.msra.mxu0 0.0
        %9787 = vmatprep.subr.mxu0 0.0
        %9788 = vmatpush1.msra.mxu0 0.0
        %9789 = vmatprep.subr.mxu0 0.0
        %9790 = vmatpush1.msra.mxu0 0.0
        %9791 = vmatprep.subr.mxu0 0.0
        %9792 = vmatpush1.msra.mxu0 0.0
        %9793 = vmatprep.subr.mxu0 0.0
        %9794 = vmatpush1.msra.mxu0 0.0
        %9795 = vmatprep.subr.mxu0 0.0
        %9796 = vmatpush1.msra.mxu0 0.0
        %9797 = vmatprep.subr.mxu0 0.0
        %9798 = vmatpush1.msra.mxu0 0.0
        %9799 = vmatprep.subr.mxu0 0.0
        %9800 = vmatpush1.msra.mxu0 0.0
        %9801 = vmatprep.subr.mxu0 0.0
        %9802 = vmatpush1.msra.mxu0 0.0
        %9803 = vmatprep.subr.mxu0 0.0
        %9804 = vmatpush1.msra.mxu0 0.0
        %9805 = vmatprep.subr.mxu0 0.0
        %9806 = vmatpush1.msra.mxu0 0.0
        %9807 = vmatprep.subr.mxu0 0.0
        %9808 = vmatpush1.msra.mxu0 0.0
        %9809 = vmatprep.subr.mxu0 0.0
        %9810 = vmatpush1.msra.mxu0 0.0
        %9811 = vmatprep.subr.mxu0 0.0
        %9812 = vmatpush1.msra.mxu0 0.0
        %9813 = vmatprep.mubr.f32.mxu0 0.0
        %v9814 = vand.u32 %v477, 4294901760
        %9815 = vmatmul.mubr.f32.gmra.mrb[0].mxu0 %v9814
        %v9816 = vpop.f32.mrb[0].mxu0
        %v9817 = vadd.f32 %v9726, %v9816
        %v9818 = vpop.f32.mrb[0].mxu0
        %9819 = vmatprep.mubr.f32.mxu0 0.0
        %v9820 = vand.u32 %v480, 4294901760
        %9821 = vmatmul.mubr.f32.gmra.mrb[0].mxu0 %v9820
        %v9822 = vpop.f32.mrb[0].mxu0
        %v9823 = vadd.f32 %v9736, %v9822
        %v9824 = vpop.f32.mrb[0].mxu0
        %9825 = vdwg.mxu0
        %9826 = vmatprep.subr.mxu0 0.0
        %v9827 = vand.u32 %v9650, 4294901760
        %v9828 = vsub.f32 %v9650, %v9827
        %9829 = vmatpush1.msra.mxu0 %v9828
        %9830 = vmatprep.subr.mxu0 0.0
        %v9831 = vand.u32 %v9651, 4294901760
        %v9832 = vsub.f32 %v9651, %v9831
        %9833 = vmatpush1.msra.mxu0 %v9832
        %9834 = vmatprep.subr.mxu0 0.0
        %9835 = vmatpush1.msra.mxu0 0.0
        %9836 = vmatprep.subr.mxu0 0.0
        %9837 = vmatpush1.msra.mxu0 0.0
        %9838 = vmatprep.subr.mxu0 0.0
        %9839 = vmatpush1.msra.mxu0 0.0
        %9840 = vmatprep.subr.mxu0 0.0
        %9841 = vmatpush1.msra.mxu0 0.0
        %9842 = vmatprep.subr.mxu0 0.0
        %9843 = vmatpush1.msra.mxu0 0.0
        %9844 = vmatprep.subr.mxu0 0.0
        %9845 = vmatpush1.msra.mxu0 0.0
        %9846 = vmatprep.subr.mxu0 0.0
        %9847 = vmatpush1.msra.mxu0 0.0
        %9848 = vmatprep.subr.mxu0 0.0
        %9849 = vmatpush1.msra.mxu0 0.0
        %9850 = vmatprep.subr.mxu0 0.0
        %9851 = vmatpush1.msra.mxu0 0.0
        %9852 = vmatprep.subr.mxu0 0.0
        %9853 = vmatpush1.msra.mxu0 0.0
        %9854 = vmatprep.subr.mxu0 0.0
        %9855 = vmatpush1.msra.mxu0 0.0
        %9856 = vmatprep.subr.mxu0 0.0
        %9857 = vmatpush1.msra.mxu0 0.0
        %9858 = vmatprep.subr.mxu0 0.0
        %9859 = vmatpush1.msra.mxu0 0.0
        %9860 = vmatprep.subr.mxu0 0.0
        %9861 = vmatpush1.msra.mxu0 0.0
        %9862 = vmatprep.subr.mxu0 0.0
        %9863 = vmatpush1.msra.mxu0 0.0
        %9864 = vmatprep.subr.mxu0 0.0
        %9865 = vmatpush1.msra.mxu0 0.0
        %9866 = vmatprep.subr.mxu0 0.0
        %9867 = vmatpush1.msra.mxu0 0.0
        %9868 = vmatprep.subr.mxu0 0.0
        %9869 = vmatpush1.msra.mxu0 0.0
        %9870 = vmatprep.subr.mxu0 0.0
        %9871 = vmatpush1.msra.mxu0 0.0
        %9872 = vmatprep.subr.mxu0 0.0
        %9873 = vmatpush1.msra.mxu0 0.0
        %9874 = vmatprep.subr.mxu0 0.0
        %9875 = vmatpush1.msra.mxu0 0.0
        %9876 = vmatprep.subr.mxu0 0.0
        %9877 = vmatpush1.msra.mxu0 0.0
        %9878 = vmatprep.subr.mxu0 0.0
        %9879 = vmatpush1.msra.mxu0 0.0
        %9880 = vmatprep.subr.mxu0 0.0
        %9881 = vmatpush1.msra.mxu0 0.0
        %9882 = vmatprep.subr.mxu0 0.0
        %9883 = vmatpush1.msra.mxu0 0.0
        %9884 = vmatprep.subr.mxu0 0.0
        %9885 = vmatpush1.msra.mxu0 0.0
        %9886 = vmatprep.subr.mxu0 0.0
        %9887 = vmatpush1.msra.mxu0 0.0
        %9888 = vmatprep.subr.mxu0 0.0
        %9889 = vmatpush1.msra.mxu0 0.0
        %9890 = vmatprep.subr.mxu0 0.0
        %9891 = vmatpush1.msra.mxu0 0.0
        %9892 = vmatprep.subr.mxu0 0.0
        %9893 = vmatpush1.msra.mxu0 0.0
        %9894 = vmatprep.mubr.f32.mxu0 0.0
        %v9895 = vand.u32 %v477, 4294901760
        %v9896 = vsub.f32 %v477, %v9895
        %9897 = vmatmul.mubr.f32.gmra.mrb[0].mxu0 %v9896
        %v9898 = vpop.f32.mrb[0].mxu0
        %v9899 = vadd.f32 %v9817, %v9898
        %v9900 = vpop.f32.mrb[0].mxu0
        %9901 = vmatprep.mubr.f32.mxu0 0.0
        %v9902 = vand.u32 %v480, 4294901760
        %v9903 = vsub.f32 %v480, %v9902
        %9904 = vmatmul.mubr.f32.gmra.mrb[0].mxu0 %v9903
        %v9905 = vpop.f32.mrb[0].mxu0
        %v9906 = vadd.f32 %v9823, %v9905
        %v9907 = vpop.f32.mrb[0].mxu0
        %9908 = vdwg.mxu0
        %9909 = vmatprep.subr.mxu0 0.0
        %v9910 = vand.u32 %v9650, 4294901760
        %9911 = vmatpush1.msra.mxu0 %v9910
        %9912 = vmatprep.subr.mxu0 0.0
        %v9913 = vand.u32 %v9651, 4294901760
        %9914 = vmatpush1.msra.mxu0 %v9913
        %9915 = vmatprep.subr.mxu0 0.0
        %9916 = vmatpush1.msra.mxu0 0.0
        %9917 = vmatprep.subr.mxu0 0.0
        %9918 = vmatpush1.msra.mxu0 0.0
        %9919 = vmatprep.subr.mxu0 0.0
        %9920 = vmatpush1.msra.mxu0 0.0
        %9921 = vmatprep.subr.mxu0 0.0
        %9922 = vmatpush1.msra.mxu0 0.0
        %9923 = vmatprep.subr.mxu0 0.0
        %9924 = vmatpush1.msra.mxu0 0.0
        %9925 = vmatprep.subr.mxu0 0.0
        %9926 = vmatpush1.msra.mxu0 0.0
        %9927 = vmatprep.subr.mxu0 0.0
        %9928 = vmatpush1.msra.mxu0 0.0
        %9929 = vmatprep.subr.mxu0 0.0
        %9930 = vmatpush1.msra.mxu0 0.0
        %9931 = vmatprep.subr.mxu0 0.0
        %9932 = vmatpush1.msra.mxu0 0.0
        %9933 = vmatprep.subr.mxu0 0.0
        %9934 = vmatpush1.msra.mxu0 0.0
        %9935 = vmatprep.subr.mxu0 0.0
        %9936 = vmatpush1.msra.mxu0 0.0
        %9937 = vmatprep.subr.mxu0 0.0
        %9938 = vmatpush1.msra.mxu0 0.0
        %9939 = vmatprep.subr.mxu0 0.0
        %9940 = vmatpush1.msra.mxu0 0.0
        %9941 = vmatprep.subr.mxu0 0.0
        %9942 = vmatpush1.msra.mxu0 0.0
        %9943 = vmatprep.subr.mxu0 0.0
        %9944 = vmatpush1.msra.mxu0 0.0
        %9945 = vmatprep.subr.mxu0 0.0
        %9946 = vmatpush1.msra.mxu0 0.0
        %9947 = vmatprep.subr.mxu0 0.0
        %9948 = vmatpush1.msra.mxu0 0.0
        %9949 = vmatprep.subr.mxu0 0.0
        %9950 = vmatpush1.msra.mxu0 0.0
        %9951 = vmatprep.subr.mxu0 0.0
        %9952 = vmatpush1.msra.mxu0 0.0
        %9953 = vmatprep.subr.mxu0 0.0
        %9954 = vmatpush1.msra.mxu0 0.0
        %9955 = vmatprep.subr.mxu0 0.0
        %9956 = vmatpush1.msra.mxu0 0.0
        %9957 = vmatprep.subr.mxu0 0.0
        %9958 = vmatpush1.msra.mxu0 0.0
        %9959 = vmatprep.subr.mxu0 0.0
        %9960 = vmatpush1.msra.mxu0 0.0
        %9961 = vmatprep.subr.mxu0 0.0
        %9962 = vmatpush1.msra.mxu0 0.0
        %9963 = vmatprep.subr.mxu0 0.0
        %9964 = vmatpush1.msra.mxu0 0.0
        %9965 = vmatprep.subr.mxu0 0.0
        %9966 = vmatpush1.msra.mxu0 0.0
        %9967 = vmatprep.subr.mxu0 0.0
        %9968 = vmatpush1.msra.mxu0 0.0
        %9969 = vmatprep.subr.mxu0 0.0
        %9970 = vmatpush1.msra.mxu0 0.0
        %9971 = vmatprep.subr.mxu0 0.0
        %9972 = vmatpush1.msra.mxu0 0.0
        %9973 = vmatprep.subr.mxu0 0.0
        %9974 = vmatpush1.msra.mxu0 0.0
        %9975 = vmatprep.mubr.f32.mxu0 0.0
        %v9976 = vand.u32 %v477, 4294901760
        %v9977 = vsub.f32 %v477, %v9976
        %v9978 = vand.u32 %v9977, 4294901760
        %9979 = vmatmul.mubr.f32.gmra.mrb[0].mxu0 %v9978
        %v9980 = vpop.f32.mrb[0].mxu0
        %v9981 = vadd.f32 %v9899, %v9980
        %v9982 = vpop.f32.mrb[0].mxu0
        %9983 = vmatprep.mubr.f32.mxu0 0.0
        %v9984 = vand.u32 %v480, 4294901760
        %v9985 = vsub.f32 %v480, %v9984
        %v9986 = vand.u32 %v9985, 4294901760
        %9987 = vmatmul.mubr.f32.gmra.mrb[0].mxu0 %v9986
        %v9988 = vpop.f32.mrb[0].mxu0
        %v9989 = vadd.f32 %v9906, %v9988
        %v9990 = vpop.f32.mrb[0].mxu0
        %9991 = vdwg.mxu0
        %9992 = vmatprep.subr.mxu0 0.0
        %v9993 = vand.u32 %v9650, 4294901760
        %v9994 = vsub.f32 %v9650, %v9993
        %v9995 = vand.u32 %v9994, 4294901760
        %9996 = vmatpush1.msra.mxu0 %v9995
        %9997 = vmatprep.subr.mxu0 0.0
        %v9998 = vand.u32 %v9651, 4294901760
        %v9999 = vsub.f32 %v9651, %v9998
        %v10000 = vand.u32 %v9999, 4294901760
        %10001 = vmatpush1.msra.mxu0 %v10000
        %10002 = vmatprep.subr.mxu0 0.0
        %10003 = vmatpush1.msra.mxu0 0.0
        %10004 = vmatprep.subr.mxu0 0.0
        %10005 = vmatpush1.msra.mxu0 0.0
        %10006 = vmatprep.subr.mxu0 0.0
        %10007 = vmatpush1.msra.mxu0 0.0
        %10008 = vmatprep.subr.mxu0 0.0
        %10009 = vmatpush1.msra.mxu0 0.0
        %10010 = vmatprep.subr.mxu0 0.0
        %10011 = vmatpush1.msra.mxu0 0.0
        %10012 = vmatprep.subr.mxu0 0.0
        %10013 = vmatpush1.msra.mxu0 0.0
        %10014 = vmatprep.subr.mxu0 0.0
        %10015 = vmatpush1.msra.mxu0 0.0
        %10016 = vmatprep.subr.mxu0 0.0
        %10017 = vmatpush1.msra.mxu0 0.0
        %10018 = vmatprep.subr.mxu0 0.0
        %10019 = vmatpush1.msra.mxu0 0.0
        %10020 = vmatprep.subr.mxu0 0.0
        %10021 = vmatpush1.msra.mxu0 0.0
        %10022 = vmatprep.subr.mxu0 0.0
        %10023 = vmatpush1.msra.mxu0 0.0
        %10024 = vmatprep.subr.mxu0 0.0
        %10025 = vmatpush1.msra.mxu0 0.0
        %10026 = vmatprep.subr.mxu0 0.0
        %10027 = vmatpush1.msra.mxu0 0.0
        %10028 = vmatprep.subr.mxu0 0.0
        %10029 = vmatpush1.msra.mxu0 0.0
        %10030 = vmatprep.subr.mxu0 0.0
        %10031 = vmatpush1.msra.mxu0 0.0
        %10032 = vmatprep.subr.mxu0 0.0
        %10033 = vmatpush1.msra.mxu0 0.0
        %10034 = vmatprep.subr.mxu0 0.0
        %10035 = vmatpush1.msra.mxu0 0.0
        %10036 = vmatprep.subr.mxu0 0.0
        %10037 = vmatpush1.msra.mxu0 0.0
        %10038 = vmatprep.subr.mxu0 0.0
        %10039 = vmatpush1.msra.mxu0 0.0
        %10040 = vmatprep.subr.mxu0 0.0
        %10041 = vmatpush1.msra.mxu0 0.0
        %10042 = vmatprep.subr.mxu0 0.0
        %10043 = vmatpush1.msra.mxu0 0.0
        %10044 = vmatprep.subr.mxu0 0.0
        %10045 = vmatpush1.msra.mxu0 0.0
        %10046 = vmatprep.subr.mxu0 0.0
        %10047 = vmatpush1.msra.mxu0 0.0
        %10048 = vmatprep.subr.mxu0 0.0
        %10049 = vmatpush1.msra.mxu0 0.0
        %10050 = vmatprep.subr.mxu0 0.0
        %10051 = vmatpush1.msra.mxu0 0.0
        %10052 = vmatprep.subr.mxu0 0.0
        %10053 = vmatpush1.msra.mxu0 0.0
        %10054 = vmatprep.subr.mxu0 0.0
        %10055 = vmatpush1.msra.mxu0 0.0
        %10056 = vmatprep.subr.mxu0 0.0
        %10057 = vmatpush1.msra.mxu0 0.0
        %10058 = vmatprep.subr.mxu0 0.0
        %10059 = vmatpush1.msra.mxu0 0.0
        %10060 = vmatprep.subr.mxu0 0.0
        %10061 = vmatpush1.msra.mxu0 0.0
        %10062 = vmatprep.mubr.f32.mxu0 0.0
        %v10063 = vand.u32 %v477, 4294901760
        %10064 = vmatmul.mubr.f32.gmra.mrb[0].mxu0 %v10063
        %v10065 = vpop.f32.mrb[0].mxu0
        %v10066 = vadd.f32 %v9981, %v10065
        %v10067 = vpop.f32.mrb[0].mxu0
        %10068 = vmatprep.mubr.f32.mxu0 0.0
        %v10069 = vand.u32 %v480, 4294901760
        %10070 = vmatmul.mubr.f32.gmra.mrb[0].mxu0 %v10069
        %v10071 = vpop.f32.mrb[0].mxu0
        %v10072 = vadd.f32 %v9989, %v10071
        %v10073 = vpop.f32.mrb[0].mxu0
        %10074 = vdwg.mxu0
        %10075 = vmatprep.subr.mxu0 0.0
        %v10076 = vand.u32 %v9650, 4294901760
        %10077 = vmatpush1.msra.mxu0 %v10076
        %10078 = vmatprep.subr.mxu0 0.0
        %v10079 = vand.u32 %v9651, 4294901760
        %10080 = vmatpush1.msra.mxu0 %v10079
        %10081 = vmatprep.subr.mxu0 0.0
        %10082 = vmatpush1.msra.mxu0 0.0
        %10083 = vmatprep.subr.mxu0 0.0
        %10084 = vmatpush1.msra.mxu0 0.0
        %10085 = vmatprep.subr.mxu0 0.0
        %10086 = vmatpush1.msra.mxu0 0.0
        %10087 = vmatprep.subr.mxu0 0.0
        %10088 = vmatpush1.msra.mxu0 0.0
        %10089 = vmatprep.subr.mxu0 0.0
        %10090 = vmatpush1.msra.mxu0 0.0
        %10091 = vmatprep.subr.mxu0 0.0
        %10092 = vmatpush1.msra.mxu0 0.0
        %10093 = vmatprep.subr.mxu0 0.0
        %10094 = vmatpush1.msra.mxu0 0.0
        %10095 = vmatprep.subr.mxu0 0.0
        %10096 = vmatpush1.msra.mxu0 0.0
        %10097 = vmatprep.subr.mxu0 0.0
        %10098 = vmatpush1.msra.mxu0 0.0
        %10099 = vmatprep.subr.mxu0 0.0
        %10100 = vmatpush1.msra.mxu0 0.0
        %10101 = vmatprep.subr.mxu0 0.0
        %10102 = vmatpush1.msra.mxu0 0.0
        %10103 = vmatprep.subr.mxu0 0.0
        %10104 = vmatpush1.msra.mxu0 0.0
        %10105 = vmatprep.subr.mxu0 0.0
        %10106 = vmatpush1.msra.mxu0 0.0
        %10107 = vmatprep.subr.mxu0 0.0
        %10108 = vmatpush1.msra.mxu0 0.0
        %10109 = vmatprep.subr.mxu0 0.0
        %10110 = vmatpush1.msra.mxu0 0.0
        %10111 = vmatprep.subr.mxu0 0.0
        %10112 = vmatpush1.msra.mxu0 0.0
        %10113 = vmatprep.subr.mxu0 0.0
        %10114 = vmatpush1.msra.mxu0 0.0
        %10115 = vmatprep.subr.mxu0 0.0
        %10116 = vmatpush1.msra.mxu0 0.0
        %10117 = vmatprep.subr.mxu0 0.0
        %10118 = vmatpush1.msra.mxu0 0.0
        %10119 = vmatprep.subr.mxu0 0.0
        %10120 = vmatpush1.msra.mxu0 0.0
        %10121 = vmatprep.subr.mxu0 0.0
        %10122 = vmatpush1.msra.mxu0 0.0
        %10123 = vmatprep.subr.mxu0 0.0
        %10124 = vmatpush1.msra.mxu0 0.0
        %10125 = vmatprep.subr.mxu0 0.0
        %10126 = vmatpush1.msra.mxu0 0.0
        %10127 = vmatprep.subr.mxu0 0.0
        %10128 = vmatpush1.msra.mxu0 0.0
        %10129 = vmatprep.subr.mxu0 0.0
        %10130 = vmatpush1.msra.mxu0 0.0
        %10131 = vmatprep.subr.mxu0 0.0
        %10132 = vmatpush1.msra.mxu0 0.0
        %10133 = vmatprep.subr.mxu0 0.0
        %10134 = vmatpush1.msra.mxu0 0.0
        %10135 = vmatprep.subr.mxu0 0.0
        %10136 = vmatpush1.msra.mxu0 0.0
        %10137 = vmatprep.subr.mxu0 0.0
        %10138 = vmatpush1.msra.mxu0 0.0
        %10139 = vmatprep.subr.mxu0 0.0
        %10140 = vmatpush1.msra.mxu0 0.0
        %10141 = vmatprep.mubr.f32.mxu0 0.0
        %v10142 = vand.u32 %v477, 4294901760
        %10143 = vmatmul.mubr.f32.gmra.mrb[0].mxu0 %v10142
        %v10144 = vpop.f32.mrb[0].mxu0
        %v10145 = vadd.f32 %v10066, %v10144
        %v10146 = vpop.f32.mrb[0].mxu0
        %10147 = vmatprep.mubr.f32.mxu0 0.0
        %v10148 = vand.u32 %v480, 4294901760
        %10149 = vmatmul.mubr.f32.gmra.mrb[0].mxu0 %v10148
        %v10150 = vpop.f32.mrb[0].mxu0
        %v10151 = vadd.f32 %v10072, %v10150
        %v10152 = vpop.f32.mrb[0].mxu0
        %10153 = vdwg.mxu0
        %v10155 = vsel %vm463, %v10145, 0
        %v10158 = vsel %vm463, %v10151, 0
        %10160 = vmatprep.subr.mxu0 0.0
        %v10161 = vand.u32 %v453, 4294901760
        %10162 = vmatpush1.msra.mxu0 %v10161
        %10163 = vmatprep.subr.mxu0 0.0
        %v10164 = vand.u32 %v454, 4294901760
        %10165 = vmatpush1.msra.mxu0 %v10164
        %10166 = vmatprep.subr.mxu0 0.0
        %10167 = vmatpush1.msra.mxu0 0.0
        %10168 = vmatprep.subr.mxu0 0.0
        %10169 = vmatpush1.msra.mxu0 0.0
        %10170 = vmatprep.subr.mxu0 0.0
        %10171 = vmatpush1.msra.mxu0 0.0
        %10172 = vmatprep.subr.mxu0 0.0
        %10173 = vmatpush1.msra.mxu0 0.0
        %10174 = vmatprep.subr.mxu0 0.0
        %10175 = vmatpush1.msra.mxu0 0.0
        %10176 = vmatprep.subr.mxu0 0.0
        %10177 = vmatpush1.msra.mxu0 0.0
        %10178 = vmatprep.subr.mxu0 0.0
        %10179 = vmatpush1.msra.mxu0 0.0
        %10180 = vmatprep.subr.mxu0 0.0
        %10181 = vmatpush1.msra.mxu0 0.0
        %10182 = vmatprep.subr.mxu0 0.0
        %10183 = vmatpush1.msra.mxu0 0.0
        %10184 = vmatprep.subr.mxu0 0.0
        %10185 = vmatpush1.msra.mxu0 0.0
        %10186 = vmatprep.subr.mxu0 0.0
        %10187 = vmatpush1.msra.mxu0 0.0
        %10188 = vmatprep.subr.mxu0 0.0
        %10189 = vmatpush1.msra.mxu0 0.0
        %10190 = vmatprep.subr.mxu0 0.0
        %10191 = vmatpush1.msra.mxu0 0.0
        %10192 = vmatprep.subr.mxu0 0.0
        %10193 = vmatpush1.msra.mxu0 0.0
        %10194 = vmatprep.subr.mxu0 0.0
        %10195 = vmatpush1.msra.mxu0 0.0
        %10196 = vmatprep.subr.mxu0 0.0
        %10197 = vmatpush1.msra.mxu0 0.0
        %10198 = vmatprep.subr.mxu0 0.0
        %10199 = vmatpush1.msra.mxu0 0.0
        %10200 = vmatprep.subr.mxu0 0.0
        %10201 = vmatpush1.msra.mxu0 0.0
        %10202 = vmatprep.subr.mxu0 0.0
        %10203 = vmatpush1.msra.mxu0 0.0
        %10204 = vmatprep.subr.mxu0 0.0
        %10205 = vmatpush1.msra.mxu0 0.0
        %10206 = vmatprep.subr.mxu0 0.0
        %10207 = vmatpush1.msra.mxu0 0.0
        %10208 = vmatprep.subr.mxu0 0.0
        %10209 = vmatpush1.msra.mxu0 0.0
        %10210 = vmatprep.subr.mxu0 0.0
        %10211 = vmatpush1.msra.mxu0 0.0
        %10212 = vmatprep.subr.mxu0 0.0
        %10213 = vmatpush1.msra.mxu0 0.0
        %10214 = vmatprep.subr.mxu0 0.0
        %10215 = vmatpush1.msra.mxu0 0.0
        %10216 = vmatprep.subr.mxu0 0.0
        %10217 = vmatpush1.msra.mxu0 0.0
        %10218 = vmatprep.subr.mxu0 0.0
        %10219 = vmatpush1.msra.mxu0 0.0
        %10220 = vmatprep.subr.mxu0 0.0
        %10221 = vmatpush1.msra.mxu0 0.0
        %10222 = vmatprep.subr.mxu0 0.0
        %10223 = vmatpush1.msra.mxu0 0.0
        %10224 = vmatprep.subr.mxu0 0.0
        %10225 = vmatpush1.msra.mxu0 0.0
        %10226 = vmatprep.mubr.f32.mxu0 0.0
        %v10227 = vand.u32 %v10155, 4294901760
        %v10228 = vsub.f32 %v10155, %v10227
        %v10229 = vand.u32 %v10228, 4294901760
        %v10230 = vsub.f32 %v10228, %v10229
        %v10231 = vand.u32 %v10230, 4294901760
        %10232 = vmatmul.mubr.f32.gmra.mrb[0].mxu0 %v10231
        %v10233 = vpop.f32.mrb[0].mxu0
        %v10234 = vadd.f32 0.0, %v10233
        %v10235 = vpop.f32.mrb[0].mxu0
        %10236 = vmatprep.mubr.f32.mxu0 0.0
        %v10237 = vand.u32 %v10158, 4294901760
        %v10238 = vsub.f32 %v10158, %v10237
        %v10239 = vand.u32 %v10238, 4294901760
        %v10240 = vsub.f32 %v10238, %v10239
        %v10241 = vand.u32 %v10240, 4294901760
        %10242 = vmatmul.mubr.f32.gmra.mrb[0].mxu0 %v10241
        %v10243 = vpop.f32.mrb[0].mxu0
        %v10244 = vadd.f32 0.0, %v10243
        %v10245 = vpop.f32.mrb[0].mxu0
        %10246 = vdwg.mxu0
        %10247 = vmatprep.subr.mxu0 0.0
        %v10248 = vand.u32 %v453, 4294901760
        %v10249 = vsub.f32 %v453, %v10248
        %v10250 = vand.u32 %v10249, 4294901760
        %v10251 = vsub.f32 %v10249, %v10250
        %v10252 = vand.u32 %v10251, 4294901760
        %10253 = vmatpush1.msra.mxu0 %v10252
        %10254 = vmatprep.subr.mxu0 0.0
        %v10255 = vand.u32 %v454, 4294901760
        %v10256 = vsub.f32 %v454, %v10255
        %v10257 = vand.u32 %v10256, 4294901760
        %v10258 = vsub.f32 %v10256, %v10257
        %v10259 = vand.u32 %v10258, 4294901760
        %10260 = vmatpush1.msra.mxu0 %v10259
        %10261 = vmatprep.subr.mxu0 0.0
        %10262 = vmatpush1.msra.mxu0 0.0
        %10263 = vmatprep.subr.mxu0 0.0
        %10264 = vmatpush1.msra.mxu0 0.0
        %10265 = vmatprep.subr.mxu0 0.0
        %10266 = vmatpush1.msra.mxu0 0.0
        %10267 = vmatprep.subr.mxu0 0.0
        %10268 = vmatpush1.msra.mxu0 0.0
        %10269 = vmatprep.subr.mxu0 0.0
        %10270 = vmatpush1.msra.mxu0 0.0
        %10271 = vmatprep.subr.mxu0 0.0
        %10272 = vmatpush1.msra.mxu0 0.0
        %10273 = vmatprep.subr.mxu0 0.0
        %10274 = vmatpush1.msra.mxu0 0.0
        %10275 = vmatprep.subr.mxu0 0.0
        %10276 = vmatpush1.msra.mxu0 0.0
        %10277 = vmatprep.subr.mxu0 0.0
        %10278 = vmatpush1.msra.mxu0 0.0
        %10279 = vmatprep.subr.mxu0 0.0
        %10280 = vmatpush1.msra.mxu0 0.0
        %10281 = vmatprep.subr.mxu0 0.0
        %10282 = vmatpush1.msra.mxu0 0.0
        %10283 = vmatprep.subr.mxu0 0.0
        %10284 = vmatpush1.msra.mxu0 0.0
        %10285 = vmatprep.subr.mxu0 0.0
        %10286 = vmatpush1.msra.mxu0 0.0
        %10287 = vmatprep.subr.mxu0 0.0
        %10288 = vmatpush1.msra.mxu0 0.0
        %10289 = vmatprep.subr.mxu0 0.0
        %10290 = vmatpush1.msra.mxu0 0.0
        %10291 = vmatprep.subr.mxu0 0.0
        %10292 = vmatpush1.msra.mxu0 0.0
        %10293 = vmatprep.subr.mxu0 0.0
        %10294 = vmatpush1.msra.mxu0 0.0
        %10295 = vmatprep.subr.mxu0 0.0
        %10296 = vmatpush1.msra.mxu0 0.0
        %10297 = vmatprep.subr.mxu0 0.0
        %10298 = vmatpush1.msra.mxu0 0.0
        %10299 = vmatprep.subr.mxu0 0.0
        %10300 = vmatpush1.msra.mxu0 0.0
        %10301 = vmatprep.subr.mxu0 0.0
        %10302 = vmatpush1.msra.mxu0 0.0
        %10303 = vmatprep.subr.mxu0 0.0
        %10304 = vmatpush1.msra.mxu0 0.0
        %10305 = vmatprep.subr.mxu0 0.0
        %10306 = vmatpush1.msra.mxu0 0.0
        %10307 = vmatprep.subr.mxu0 0.0
        %10308 = vmatpush1.msra.mxu0 0.0
        %10309 = vmatprep.subr.mxu0 0.0
        %10310 = vmatpush1.msra.mxu0 0.0
        %10311 = vmatprep.subr.mxu0 0.0
        %10312 = vmatpush1.msra.mxu0 0.0
        %10313 = vmatprep.subr.mxu0 0.0
        %10314 = vmatpush1.msra.mxu0 0.0
        %10315 = vmatprep.subr.mxu0 0.0
        %10316 = vmatpush1.msra.mxu0 0.0
        %10317 = vmatprep.subr.mxu0 0.0
        %10318 = vmatpush1.msra.mxu0 0.0
        %10319 = vmatprep.subr.mxu0 0.0
        %10320 = vmatpush1.msra.mxu0 0.0
        %10321 = vmatprep.mubr.f32.mxu0 0.0
        %v10322 = vand.u32 %v10155, 4294901760
        %10323 = vmatmul.mubr.f32.gmra.mrb[0].mxu0 %v10322
        %v10324 = vpop.f32.mrb[0].mxu0
        %v10325 = vadd.f32 %v10234, %v10324
        %v10326 = vpop.f32.mrb[0].mxu0
        %10327 = vmatprep.mubr.f32.mxu0 0.0
        %v10328 = vand.u32 %v10158, 4294901760
        %10329 = vmatmul.mubr.f32.gmra.mrb[0].mxu0 %v10328
        %v10330 = vpop.f32.mrb[0].mxu0
        %v10331 = vadd.f32 %v10244, %v10330
        %v10332 = vpop.f32.mrb[0].mxu0
        %10333 = vdwg.mxu0
        %10334 = vmatprep.subr.mxu0 0.0
        %v10335 = vand.u32 %v453, 4294901760
        %v10336 = vsub.f32 %v453, %v10335
        %10337 = vmatpush1.msra.mxu0 %v10336
        %10338 = vmatprep.subr.mxu0 0.0
        %v10339 = vand.u32 %v454, 4294901760
        %v10340 = vsub.f32 %v454, %v10339
        %10341 = vmatpush1.msra.mxu0 %v10340
        %10342 = vmatprep.subr.mxu0 0.0
        %10343 = vmatpush1.msra.mxu0 0.0
        %10344 = vmatprep.subr.mxu0 0.0
        %10345 = vmatpush1.msra.mxu0 0.0
        %10346 = vmatprep.subr.mxu0 0.0
        %10347 = vmatpush1.msra.mxu0 0.0
        %10348 = vmatprep.subr.mxu0 0.0
        %10349 = vmatpush1.msra.mxu0 0.0
        %10350 = vmatprep.subr.mxu0 0.0
        %10351 = vmatpush1.msra.mxu0 0.0
        %10352 = vmatprep.subr.mxu0 0.0
        %10353 = vmatpush1.msra.mxu0 0.0
        %10354 = vmatprep.subr.mxu0 0.0
        %10355 = vmatpush1.msra.mxu0 0.0
        %10356 = vmatprep.subr.mxu0 0.0
        %10357 = vmatpush1.msra.mxu0 0.0
        %10358 = vmatprep.subr.mxu0 0.0
        %10359 = vmatpush1.msra.mxu0 0.0
        %10360 = vmatprep.subr.mxu0 0.0
        %10361 = vmatpush1.msra.mxu0 0.0
        %10362 = vmatprep.subr.mxu0 0.0
        %10363 = vmatpush1.msra.mxu0 0.0
        %10364 = vmatprep.subr.mxu0 0.0
        %10365 = vmatpush1.msra.mxu0 0.0
        %10366 = vmatprep.subr.mxu0 0.0
        %10367 = vmatpush1.msra.mxu0 0.0
        %10368 = vmatprep.subr.mxu0 0.0
        %10369 = vmatpush1.msra.mxu0 0.0
        %10370 = vmatprep.subr.mxu0 0.0
        %10371 = vmatpush1.msra.mxu0 0.0
        %10372 = vmatprep.subr.mxu0 0.0
        %10373 = vmatpush1.msra.mxu0 0.0
        %10374 = vmatprep.subr.mxu0 0.0
        %10375 = vmatpush1.msra.mxu0 0.0
        %10376 = vmatprep.subr.mxu0 0.0
        %10377 = vmatpush1.msra.mxu0 0.0
        %10378 = vmatprep.subr.mxu0 0.0
        %10379 = vmatpush1.msra.mxu0 0.0
        %10380 = vmatprep.subr.mxu0 0.0
        %10381 = vmatpush1.msra.mxu0 0.0
        %10382 = vmatprep.subr.mxu0 0.0
        %10383 = vmatpush1.msra.mxu0 0.0
        %10384 = vmatprep.subr.mxu0 0.0
        %10385 = vmatpush1.msra.mxu0 0.0
        %10386 = vmatprep.subr.mxu0 0.0
        %10387 = vmatpush1.msra.mxu0 0.0
        %10388 = vmatprep.subr.mxu0 0.0
        %10389 = vmatpush1.msra.mxu0 0.0
        %10390 = vmatprep.subr.mxu0 0.0
        %10391 = vmatpush1.msra.mxu0 0.0
        %10392 = vmatprep.subr.mxu0 0.0
        %10393 = vmatpush1.msra.mxu0 0.0
        %10394 = vmatprep.subr.mxu0 0.0
        %10395 = vmatpush1.msra.mxu0 0.0
        %10396 = vmatprep.subr.mxu0 0.0
        %10397 = vmatpush1.msra.mxu0 0.0
        %10398 = vmatprep.subr.mxu0 0.0
        %10399 = vmatpush1.msra.mxu0 0.0
        %10400 = vmatprep.subr.mxu0 0.0
        %10401 = vmatpush1.msra.mxu0 0.0
        %10402 = vmatprep.mubr.f32.mxu0 0.0
        %v10403 = vand.u32 %v10155, 4294901760
        %v10404 = vsub.f32 %v10155, %v10403
        %10405 = vmatmul.mubr.f32.gmra.mrb[0].mxu0 %v10404
        %v10406 = vpop.f32.mrb[0].mxu0
        %v10407 = vadd.f32 %v10325, %v10406
        %v10408 = vpop.f32.mrb[0].mxu0
        %10409 = vmatprep.mubr.f32.mxu0 0.0
        %v10410 = vand.u32 %v10158, 4294901760
        %v10411 = vsub.f32 %v10158, %v10410
        %10412 = vmatmul.mubr.f32.gmra.mrb[0].mxu0 %v10411
        %v10413 = vpop.f32.mrb[0].mxu0
        %v10414 = vadd.f32 %v10331, %v10413
        %v10415 = vpop.f32.mrb[0].mxu0
        %10416 = vdwg.mxu0
        %10417 = vmatprep.subr.mxu0 0.0
        %v10418 = vand.u32 %v453, 4294901760
        %10419 = vmatpush1.msra.mxu0 %v10418
        %10420 = vmatprep.subr.mxu0 0.0
        %v10421 = vand.u32 %v454, 4294901760
        %10422 = vmatpush1.msra.mxu0 %v10421
        %10423 = vmatprep.subr.mxu0 0.0
        %10424 = vmatpush1.msra.mxu0 0.0
        %10425 = vmatprep.subr.mxu0 0.0
        %10426 = vmatpush1.msra.mxu0 0.0
        %10427 = vmatprep.subr.mxu0 0.0
        %10428 = vmatpush1.msra.mxu0 0.0
        %10429 = vmatprep.subr.mxu0 0.0
        %10430 = vmatpush1.msra.mxu0 0.0
        %10431 = vmatprep.subr.mxu0 0.0
        %10432 = vmatpush1.msra.mxu0 0.0
        %10433 = vmatprep.subr.mxu0 0.0
        %10434 = vmatpush1.msra.mxu0 0.0
        %10435 = vmatprep.subr.mxu0 0.0
        %10436 = vmatpush1.msra.mxu0 0.0
        %10437 = vmatprep.subr.mxu0 0.0
        %10438 = vmatpush1.msra.mxu0 0.0
        %10439 = vmatprep.subr.mxu0 0.0
        %10440 = vmatpush1.msra.mxu0 0.0
        %10441 = vmatprep.subr.mxu0 0.0
        %10442 = vmatpush1.msra.mxu0 0.0
        %10443 = vmatprep.subr.mxu0 0.0
        %10444 = vmatpush1.msra.mxu0 0.0
        %10445 = vmatprep.subr.mxu0 0.0
        %10446 = vmatpush1.msra.mxu0 0.0
        %10447 = vmatprep.subr.mxu0 0.0
        %10448 = vmatpush1.msra.mxu0 0.0
        %10449 = vmatprep.subr.mxu0 0.0
        %10450 = vmatpush1.msra.mxu0 0.0
        %10451 = vmatprep.subr.mxu0 0.0
        %10452 = vmatpush1.msra.mxu0 0.0
        %10453 = vmatprep.subr.mxu0 0.0
        %10454 = vmatpush1.msra.mxu0 0.0
        %10455 = vmatprep.subr.mxu0 0.0
        %10456 = vmatpush1.msra.mxu0 0.0
        %10457 = vmatprep.subr.mxu0 0.0
        %10458 = vmatpush1.msra.mxu0 0.0
        %10459 = vmatprep.subr.mxu0 0.0
        %10460 = vmatpush1.msra.mxu0 0.0
        %10461 = vmatprep.subr.mxu0 0.0
        %10462 = vmatpush1.msra.mxu0 0.0
        %10463 = vmatprep.subr.mxu0 0.0
        %10464 = vmatpush1.msra.mxu0 0.0
        %10465 = vmatprep.subr.mxu0 0.0
        %10466 = vmatpush1.msra.mxu0 0.0
        %10467 = vmatprep.subr.mxu0 0.0
        %10468 = vmatpush1.msra.mxu0 0.0
        %10469 = vmatprep.subr.mxu0 0.0
        %10470 = vmatpush1.msra.mxu0 0.0
        %10471 = vmatprep.subr.mxu0 0.0
        %10472 = vmatpush1.msra.mxu0 0.0
        %10473 = vmatprep.subr.mxu0 0.0
        %10474 = vmatpush1.msra.mxu0 0.0
        %10475 = vmatprep.subr.mxu0 0.0
        %10476 = vmatpush1.msra.mxu0 0.0
        %10477 = vmatprep.subr.mxu0 0.0
        %10478 = vmatpush1.msra.mxu0 0.0
        %10479 = vmatprep.subr.mxu0 0.0
        %10480 = vmatpush1.msra.mxu0 0.0
        %10481 = vmatprep.subr.mxu0 0.0
        %10482 = vmatpush1.msra.mxu0 0.0
        %10483 = vmatprep.mubr.f32.mxu0 0.0
        %v10484 = vand.u32 %v10155, 4294901760
        %v10485 = vsub.f32 %v10155, %v10484
        %v10486 = vand.u32 %v10485, 4294901760
        %10487 = vmatmul.mubr.f32.gmra.mrb[0].mxu0 %v10486
        %v10488 = vpop.f32.mrb[0].mxu0
        %v10489 = vadd.f32 %v10407, %v10488
        %v10490 = vpop.f32.mrb[0].mxu0
        %10491 = vmatprep.mubr.f32.mxu0 0.0
        %v10492 = vand.u32 %v10158, 4294901760
        %v10493 = vsub.f32 %v10158, %v10492
        %v10494 = vand.u32 %v10493, 4294901760
        %10495 = vmatmul.mubr.f32.gmra.mrb[0].mxu0 %v10494
        %v10496 = vpop.f32.mrb[0].mxu0
        %v10497 = vadd.f32 %v10414, %v10496
        %v10498 = vpop.f32.mrb[0].mxu0
        %10499 = vdwg.mxu0
        %10500 = vmatprep.subr.mxu0 0.0
        %v10501 = vand.u32 %v453, 4294901760
        %v10502 = vsub.f32 %v453, %v10501
        %v10503 = vand.u32 %v10502, 4294901760
        %10504 = vmatpush1.msra.mxu0 %v10503
        %10505 = vmatprep.subr.mxu0 0.0
        %v10506 = vand.u32 %v454, 4294901760
        %v10507 = vsub.f32 %v454, %v10506
        %v10508 = vand.u32 %v10507, 4294901760
        %10509 = vmatpush1.msra.mxu0 %v10508
        %10510 = vmatprep.subr.mxu0 0.0
        %10511 = vmatpush1.msra.mxu0 0.0
        %10512 = vmatprep.subr.mxu0 0.0
        %10513 = vmatpush1.msra.mxu0 0.0
        %10514 = vmatprep.subr.mxu0 0.0
        %10515 = vmatpush1.msra.mxu0 0.0
        %10516 = vmatprep.subr.mxu0 0.0
        %10517 = vmatpush1.msra.mxu0 0.0
        %10518 = vmatprep.subr.mxu0 0.0
        %10519 = vmatpush1.msra.mxu0 0.0
        %10520 = vmatprep.subr.mxu0 0.0
        %10521 = vmatpush1.msra.mxu0 0.0
        %10522 = vmatprep.subr.mxu0 0.0
        %10523 = vmatpush1.msra.mxu0 0.0
        %10524 = vmatprep.subr.mxu0 0.0
        %10525 = vmatpush1.msra.mxu0 0.0
        %10526 = vmatprep.subr.mxu0 0.0
        %10527 = vmatpush1.msra.mxu0 0.0
        %10528 = vmatprep.subr.mxu0 0.0
        %10529 = vmatpush1.msra.mxu0 0.0
        %10530 = vmatprep.subr.mxu0 0.0
        %10531 = vmatpush1.msra.mxu0 0.0
        %10532 = vmatprep.subr.mxu0 0.0
        %10533 = vmatpush1.msra.mxu0 0.0
        %10534 = vmatprep.subr.mxu0 0.0
        %10535 = vmatpush1.msra.mxu0 0.0
        %10536 = vmatprep.subr.mxu0 0.0
        %10537 = vmatpush1.msra.mxu0 0.0
        %10538 = vmatprep.subr.mxu0 0.0
        %10539 = vmatpush1.msra.mxu0 0.0
        %10540 = vmatprep.subr.mxu0 0.0
        %10541 = vmatpush1.msra.mxu0 0.0
        %10542 = vmatprep.subr.mxu0 0.0
        %10543 = vmatpush1.msra.mxu0 0.0
        %10544 = vmatprep.subr.mxu0 0.0
        %10545 = vmatpush1.msra.mxu0 0.0
        %10546 = vmatprep.subr.mxu0 0.0
        %10547 = vmatpush1.msra.mxu0 0.0
        %10548 = vmatprep.subr.mxu0 0.0
        %10549 = vmatpush1.msra.mxu0 0.0
        %10550 = vmatprep.subr.mxu0 0.0
        %10551 = vmatpush1.msra.mxu0 0.0
        %10552 = vmatprep.subr.mxu0 0.0
        %10553 = vmatpush1.msra.mxu0 0.0
        %10554 = vmatprep.subr.mxu0 0.0
        %10555 = vmatpush1.msra.mxu0 0.0
        %10556 = vmatprep.subr.mxu0 0.0
        %10557 = vmatpush1.msra.mxu0 0.0
        %10558 = vmatprep.subr.mxu0 0.0
        %10559 = vmatpush1.msra.mxu0 0.0
        %10560 = vmatprep.subr.mxu0 0.0
        %10561 = vmatpush1.msra.mxu0 0.0
        %10562 = vmatprep.subr.mxu0 0.0
        %10563 = vmatpush1.msra.mxu0 0.0
        %10564 = vmatprep.subr.mxu0 0.0
        %10565 = vmatpush1.msra.mxu0 0.0
        %10566 = vmatprep.subr.mxu0 0.0
        %10567 = vmatpush1.msra.mxu0 0.0
        %10568 = vmatprep.subr.mxu0 0.0
        %10569 = vmatpush1.msra.mxu0 0.0
        %10570 = vmatprep.mubr.f32.mxu0 0.0
        %v10571 = vand.u32 %v10155, 4294901760
        %10572 = vmatmul.mubr.f32.gmra.mrb[0].mxu0 %v10571
        %v10573 = vpop.f32.mrb[0].mxu0
        %v10574 = vadd.f32 %v10489, %v10573
        %v10575 = vpop.f32.mrb[0].mxu0
        %10576 = vmatprep.mubr.f32.mxu0 0.0
        %v10577 = vand.u32 %v10158, 4294901760
        %10578 = vmatmul.mubr.f32.gmra.mrb[0].mxu0 %v10577
        %v10579 = vpop.f32.mrb[0].mxu0
        %v10580 = vadd.f32 %v10497, %v10579
        %v10581 = vpop.f32.mrb[0].mxu0
        %10582 = vdwg.mxu0
        %10583 = vmatprep.subr.mxu0 0.0
        %v10584 = vand.u32 %v453, 4294901760
        %10585 = vmatpush1.msra.mxu0 %v10584
        %10586 = vmatprep.subr.mxu0 0.0
        %v10587 = vand.u32 %v454, 4294901760
        %10588 = vmatpush1.msra.mxu0 %v10587
        %10589 = vmatprep.subr.mxu0 0.0
        %10590 = vmatpush1.msra.mxu0 0.0
        %10591 = vmatprep.subr.mxu0 0.0
        %10592 = vmatpush1.msra.mxu0 0.0
        %10593 = vmatprep.subr.mxu0 0.0
        %10594 = vmatpush1.msra.mxu0 0.0
        %10595 = vmatprep.subr.mxu0 0.0
        %10596 = vmatpush1.msra.mxu0 0.0
        %10597 = vmatprep.subr.mxu0 0.0
        %10598 = vmatpush1.msra.mxu0 0.0
        %10599 = vmatprep.subr.mxu0 0.0
        %10600 = vmatpush1.msra.mxu0 0.0
        %10601 = vmatprep.subr.mxu0 0.0
        %10602 = vmatpush1.msra.mxu0 0.0
        %10603 = vmatprep.subr.mxu0 0.0
        %10604 = vmatpush1.msra.mxu0 0.0
        %10605 = vmatprep.subr.mxu0 0.0
        %10606 = vmatpush1.msra.mxu0 0.0
        %10607 = vmatprep.subr.mxu0 0.0
        %10608 = vmatpush1.msra.mxu0 0.0
        %10609 = vmatprep.subr.mxu0 0.0
        %10610 = vmatpush1.msra.mxu0 0.0
        %10611 = vmatprep.subr.mxu0 0.0
        %10612 = vmatpush1.msra.mxu0 0.0
        %10613 = vmatprep.subr.mxu0 0.0
        %10614 = vmatpush1.msra.mxu0 0.0
        %10615 = vmatprep.subr.mxu0 0.0
        %10616 = vmatpush1.msra.mxu0 0.0
        %10617 = vmatprep.subr.mxu0 0.0
        %10618 = vmatpush1.msra.mxu0 0.0
        %10619 = vmatprep.subr.mxu0 0.0
        %10620 = vmatpush1.msra.mxu0 0.0
        %10621 = vmatprep.subr.mxu0 0.0
        %10622 = vmatpush1.msra.mxu0 0.0
        %10623 = vmatprep.subr.mxu0 0.0
        %10624 = vmatpush1.msra.mxu0 0.0
        %10625 = vmatprep.subr.mxu0 0.0
        %10626 = vmatpush1.msra.mxu0 0.0
        %10627 = vmatprep.subr.mxu0 0.0
        %10628 = vmatpush1.msra.mxu0 0.0
        %10629 = vmatprep.subr.mxu0 0.0
        %10630 = vmatpush1.msra.mxu0 0.0
        %10631 = vmatprep.subr.mxu0 0.0
        %10632 = vmatpush1.msra.mxu0 0.0
        %10633 = vmatprep.subr.mxu0 0.0
        %10634 = vmatpush1.msra.mxu0 0.0
        %10635 = vmatprep.subr.mxu0 0.0
        %10636 = vmatpush1.msra.mxu0 0.0
        %10637 = vmatprep.subr.mxu0 0.0
        %10638 = vmatpush1.msra.mxu0 0.0
        %10639 = vmatprep.subr.mxu0 0.0
        %10640 = vmatpush1.msra.mxu0 0.0
        %10641 = vmatprep.subr.mxu0 0.0
        %10642 = vmatpush1.msra.mxu0 0.0
        %10643 = vmatprep.subr.mxu0 0.0
        %10644 = vmatpush1.msra.mxu0 0.0
        %10645 = vmatprep.subr.mxu0 0.0
        %10646 = vmatpush1.msra.mxu0 0.0
        %10647 = vmatprep.subr.mxu0 0.0
        %10648 = vmatpush1.msra.mxu0 0.0
        %10649 = vmatprep.mubr.f32.mxu0 0.0
        %v10650 = vand.u32 %v10155, 4294901760
        %10651 = vmatmul.mubr.f32.gmra.mrb[0].mxu0 %v10650
        %v10652 = vpop.f32.mrb[0].mxu0
        %v10653 = vadd.f32 %v10574, %v10652
        %v10654 = vpop.f32.mrb[0].mxu0
        %10655 = vmatprep.mubr.f32.mxu0 0.0
        %v10656 = vand.u32 %v10158, 4294901760
        %10657 = vmatmul.mubr.f32.gmra.mrb[0].mxu0 %v10656
        %v10658 = vpop.f32.mrb[0].mxu0
        %v10659 = vadd.f32 %v10580, %v10658
        %v10660 = vpop.f32.mrb[0].mxu0
        %10661 = vdwg.mxu0
        %v10662 = vmul.f32 %v6607, %v6607
        %v10663 = vmul.f32 %v6613, %v6613
        %v10664 = vmul.f32 %v7617, %v7617
        %v10665 = vmul.f32 %v7623, %v7623
        %v10666 = vmul.f32 %v6607, %v7617
        %v10667 = vmul.f32 %v6613, %v7623
        %v10668 = vmul.f32 %v10666, 2.0
        %v10669 = vmul.f32 %v10667, 2.0
        %v10670 = vadd.f32 %v10668, 0.0001
        %v10671 = vadd.f32 %v10669, 0.0001
        %v10672 = vsub.f32 %v10653, %v10666
        %v10673 = vsub.f32 %v10659, %v10667
        %v10674 = vmul.f32 %v10672, 2.0
        %v10675 = vmul.f32 %v10673, 2.0
        %v10676 = vadd.f32 %v10674, 0.0009
        %v10677 = vadd.f32 %v10675, 0.0009
        %v10678 = vadd.f32 %v10662, %v10664
        %v10679 = vadd.f32 %v10663, %v10665
        %v10680 = vadd.f32 %v10678, 0.0001
        %v10681 = vadd.f32 %v10679, 0.0001
        %v10682 = vsub.f32 %v8629, %v10662
        %v10683 = vsub.f32 %v8635, %v10663
        %v10684 = vsub.f32 %v9641, %v10664
        %v10685 = vsub.f32 %v9647, %v10665
        %v10686 = vadd.f32 %v10682, %v10684
        %v10687 = vadd.f32 %v10683, %v10685
        %v10688 = vadd.f32 %v10686, 0.0009
        %v10689 = vadd.f32 %v10687, 0.0009
        %v10690 = vmul.f32 %v10670, %v10676
        %v10691 = vmul.f32 %v10671, %v10677
        %v10692 = vmul.f32 %v10680, %v10688
        %v10693 = vmul.f32 %v10681, %v10689
        %v10694 = vrcp.pop %v10692
        %v10695 = vrcp.pop %v10693
        %v10696 = vmul.f32 %v10690, %v10694
        %v10697 = vmul.f32 %v10691, %v10695
        %v10698 = vsel %vm463, %v10696, 0.0
        %v10699 = vsel %vm463, %v10697, 0.0
        %v10700 = vadd.f32 %v10698, %v10699
        %10701 = vadd.xlane.f32.xlu0 %v10700
        %v10702 = vpop.xlane.xlu0 %10701
        %v10703 = vrot.slane %v10702, 4
        %v10704 = vadd.f32 %v10702, %v10703
        %v10705 = vrot.slane %v10704, 2
        %v10706 = vadd.f32 %v10704, %v10705
        %v10707 = vrot.slane %v10706, 1
        %v10708 = vadd.f32 %v10706, %v10707
        %s10709 = vtos %v10708
        %v10710 = vlaneseq
        %v10711 = vand.u32 %v10710, 127
        %vm10712 = vcmp.eq.s32.totalorder %v10711, 0
        %v10713 = vsel %vm10712, 1, 0
        %v10714 = vcvt.s32.f32 %v10713
        %v10715 = vstv %s475
        %v10716 = vmul.f32 %v10715, %v10714
        %vm10717 = vcmp.eq.s32.totalorder %v10711, 1
        %v10718 = vsel %vm10717, 1, 0
        %v10719 = vcvt.s32.f32 %v10718
        %v10720 = vstv %s5585
        %v10721 = vmul.f32 %v10720, %v10719
        %v10722 = vadd.f32 %v10716, %v10721
        %vm10723 = vcmp.eq.s32.totalorder %v10711, 2
        %v10724 = vsel %vm10723, 1, 0
        %v10725 = vcvt.s32.f32 %v10724
        %v10726 = vstv %s5605
        %v10727 = vmul.f32 %v10726, %v10725
        %v10728 = vadd.f32 %v10722, %v10727
        %vm10729 = vcmp.eq.s32.totalorder %v10711, 3
        %v10730 = vsel %vm10729, 1, 0
        %v10731 = vcvt.s32.f32 %v10730
        %v10732 = vstv %s10709
        %v10733 = vmul.f32 %v10732, %v10731
        %v10734 = vadd.f32 %v10728, %v10733
        %p10735 = scmp.eq.s32.totalorder %s27, 0
        // Predicated region
        $region69: #{tpu_custom_call.1} parent=43 // pred_check
          %p10736 = pneg %p10735
        $region70: #{tpu_custom_call.1} parent=43 // pred_check_branch
          %10738 = sbr.rel (%p10736) target = $region72
        $region71: #{tpu_custom_call.1} parent=43 // pred_region
          %10739 = vst [vmem:[%s442] sm:$0x1] 0.0
        $region72: #{tpu_custom_call.1} parent=43 // pred_fallthru
          _
        %v10740 = vld [vmem:[%s442] sm:$0x1]
        %v10741 = vadd.f32 %v10740, %v10734
        %10742 = vst [vmem:[%s442] sm:$0x1] %v10741
        %s10743 = sand.u32 %s204, 1
        %s10744 = scalar_lea.sflag [#allocation4], %s10743
        %s10745 = sand.u32 %s204, 1
        %s10746 = scalar_lea.vmem [#allocation11], %s10745
        // Predicated region
        $region73: #{tpu_custom_call.1} parent=43 // pred_check
          %p10747 = pneg %p214
        $region74: #{tpu_custom_call.1} parent=43 // pred_check_branch
          %10749 = sbr.rel (%p10747) target = $region76
        $region75: #{tpu_custom_call.1} parent=43 // pred_region
          %s10751 = ssub.s32 16, 16
          %10752 = vsyncadd %s10744, %s10751
          %s10753 = smul.addr %s26, 16
          %s10754 = scalar_lea.hbm %s6, %s10753
          %s10756 = sshll.u32 %s10746, 4
          %s10757 = int_to_ptr.vmem [resolvable:$true] %s10756
          %10759 = dma.vmem_to_hbm [thread:$0]  %s10757, 16, %s10754, %s10744
        $region76: #{tpu_custom_call.1} parent=43 // pred_fallthru
          _
      $region44: #{tpu_custom_call.1} parent=5 // pred_fallthru
        _
      %p10760 = scmp.le.s32.totalorder 2, %s17
      // Predicated region
      $region77: #{tpu_custom_call.1} parent=5 // pred_check
        %p10761 = pneg %p10760
      $region78: #{tpu_custom_call.1} parent=5 // pred_check_branch
        %10763 = sbr.rel (%p10761) target = $region80
      $region79: #{tpu_custom_call.1} parent=5 // pred_region
        %s10764 = ssub.s32 %s17, 2
        // Predicated region
        $region81: #{tpu_custom_call.1} parent=79 // pred_check
          %p10765 = pneg %p220
        $region82: #{tpu_custom_call.1} parent=79 // pred_check_branch
          %10767 = sbr.rel (%p10765) target = $region84
        $region83: #{tpu_custom_call.1} parent=79 // pred_region
          %s10768 = sand.u32 %s205, 1
          %s10769 = scalar_lea.sflag [#allocation4], %s10768
          %s10770 = sand.u32 %s205, 1
          %s10771 = scalar_lea.vmem [#allocation11], %s10770
          %10772 = dma.done %s10769, 16
        $region84: #{tpu_custom_call.1} parent=79 // pred_fallthru
          _
      $region80: #{tpu_custom_call.1} parent=5 // pred_fallthru
        _
    $region6: #{tpu_custom_call.1} parent=1 // loop_footer
      %s21 = sadd.s32 1, %s17
    $region7: #{tpu_custom_call.1} parent=1 // loop_footer_branch
      %16 = sbr.rel target = $region3
    $region8: #{tpu_custom_call.1} parent=1 // loop_exit
      _
    %10773 = vsyncpa [#allocation3], 1
    %s10774 = scalar_lea.sflag [#allocation3], 1
    %10775 = vsyncpa %s10774, 1
    %10776 = vsyncpa [#allocation6], 1
    %10777 = vsyncpa [#allocation4], 1
    %s10778 = scalar_lea.sflag [#allocation4], 1
    %10779 = vsyncpa %s10778, 1

</llo_original>
